<compile_context>
chip_gen: v7x
topology: tpu7x:2x2x1
jax: 0.10.0
libtpu: 0.0.40
codegen_flags: <defaults>
</compile_context>

<pallas_src>
import functools

import numpy as np
import jax
import jax.numpy as jnp
from jax.experimental import pallas as pl
from jax.experimental.pallas import tpu as pltpu


def _round_up(x, m):
    return (x + m - 1) // m * m


def _col_interleave_mats(W2, W1, px0):
    """P[kj, j, px0 + 2*j + kj] = 1: places transposed-conv column j of parity kj
    at its final (F.pad-offset) column.  Out-of-range columns (negative diffX,
    i.e. F.pad cropping) are dropped, matching F.pad semantics."""
    mats = np.zeros((2, W2, W1), np.float32)
    for kj in range(2):
        for j in range(W2):
            c = px0 + 2 * j + kj
            if 0 <= c < W1:
                mats[kj, j, c] = 1.0
    return jnp.asarray(mats)


def _upsample_kernel(H1, W1, H2, W2, PAD, Cup_p, Cskip_p, py0, px0, nb,
                     x2_ref, x1_ref, wt_ref, bt_ref, pcol_ref,
                     w1_ref, b1_ref, w2_ref, b2_ref, o_ref,
                     pad1_scr, pad2_scr):
    # x2_ref: (nb, Cin2_p, S2) bf16   x1_ref: (nb, Cskip_p, S1) bf16
    # wt_ref: (4*Cup_p, Cin2_p) bf16  bt_ref: (Cup_p, 1) f32
    # pcol_ref: (2, W2, W1) f32
    # w1_ref: (9, C1_p, Ccat_p) bf16  b1_ref: (C1_p, 1) f32
    # w2_ref: (9, C2_p, C1_p)  bf16   b2_ref: (C2_p, 1) f32
    # o_ref:  (nb, C2_p, S1)   f32
    S1 = H1 * W1
    bf16 = jnp.bfloat16
    Ccat_p = pad1_scr.shape[0]
    C1_p = pad2_scr.shape[0]

    # x-edge masks for the 3x3 'same' taps in the flat (row-major) layout.
    xcol = jax.lax.broadcasted_iota(jnp.int32, (1, S1), 1) % W1
    mask_l = xcol >= 1              # tap column dx = 0 (offset -1)
    mask_r = xcol < (W1 - 1)        # tap column dx = 2 (offset +1)

    # Zero only the lane-padding border strips; the interior is always fully
    # overwritten below.
    pad1_scr[:, :PAD] = jnp.zeros((Ccat_p, PAD), bf16)
    pad1_scr[:, PAD + S1:] = jnp.zeros((Ccat_p, PAD), bf16)
    pad2_scr[:, :PAD] = jnp.zeros((C1_p, PAD), bf16)
    pad2_scr[:, PAD + S1:] = jnp.zeros((C1_p, PAD), bf16)
    if H1 > 2 * H2:
        # F.pad rows (diffY > 0) are never touched by the per-row scatter below.
        pad1_scr[Cskip_p:, PAD:PAD + S1] = jnp.zeros((Cup_p, S1), bf16)

    # Transposed-conv bias, masked to the columns actually produced by the
    # transposed conv (F.pad columns must stay exactly zero).
    if px0 == 0 and W1 == 2 * W2:
        bias_row = bt_ref[...]
    else:
        col = jax.lax.broadcasted_iota(jnp.int32, (1, W1), 1)
        valid = jnp.logical_and(col >= px0, col < px0 + 2 * W2)
        bias_row = bt_ref[...] * valid.astype(jnp.float32)

    def conv3x3_relu(pad_scr, w_ref, b_ref):
        # 9 accumulating (Cout, Cin) @ (Cin, S1) dots straight off the padded
        # flat buffer (no im2col scratch); f32 accumulation on the MXU.
        acc = None
        for dy in range(3):
            for dx in range(3):
                s = (dy - 1) * W1 + (dx - 1)
                win = pad_scr[:, PAD + s:PAD + s + S1]
                if dx == 0:
                    win = jnp.where(mask_l, win, jnp.zeros_like(win))
                elif dx == 2:
                    win = jnp.where(mask_r, win, jnp.zeros_like(win))
                d = jnp.dot(w_ref[dy * 3 + dx], win,
                            preferred_element_type=jnp.float32)
                acc = d if acc is None else acc + d
        return jnp.maximum(acc + b_ref[...], 0.0)

    for b in range(nb):
        # ---- skip connection -> channels [0, Cskip_p) of the concat buffer ----
        pad1_scr[:Cskip_p, PAD:PAD + S1] = x1_ref[b]

        # ---- ConvTranspose2d(k=2, s=2): one fused parity matmul ----
        # y rows ordered (ki, kj, c); lanes are the (i, j) grid of the input.
        y = jnp.dot(wt_ref[...], x2_ref[b], preferred_element_type=jnp.float32)

        # ---- 2x interleave + F.pad placement: per output row, one tiny
        #      (W2, W1) one-hot matmul per column parity, then a contiguous
        #      lane store into the padded concat buffer ----
        for ki in range(2):
            for i in range(H2):
                r = py0 + 2 * i + ki
                if not (0 <= r < H1):
                    continue          # F.pad cropping (negative diffY)
                a0 = y[(2 * ki + 0) * Cup_p:(2 * ki + 1) * Cup_p,
                       i * W2:(i + 1) * W2]
                a1 = y[(2 * ki + 1) * Cup_p:(2 * ki + 2) * Cup_p,
                       i * W2:(i + 1) * W2]
                row = (jnp.dot(a0, pcol_ref[0], preferred_element_type=jnp.float32)
                       + jnp.dot(a1, pcol_ref[1], preferred_element_type=jnp.float32)
                       + bias_row)
                pad1_scr[Cskip_p:, PAD + r * W1:PAD + (r + 1) * W1] = \
                    row.astype(bf16)

        # ---- DoubleConv ----
        h1 = conv3x3_relu(pad1_scr, w1_ref, b1_ref)          # (C1_p, S1) f32
        pad2_scr[:, PAD:PAD + S1] = h1.astype(bf16)
        h2 = conv3x3_relu(pad2_scr, w2_ref, b2_ref)          # (C2_p, S1) f32
        o_ref[b] = h2


def upsample(x2, x1, wt, bt, w1, b1, w2, b2):
    """Pallas forward of UpSample.
    x2: (N, Cin2, H2, W2)   decoder feature (input to the transposed conv)
    x1: (N, Cskip, H1, W1)  skip connection
    wt: (Cin2, Cup, 2, 2)   ConvTranspose2d weight (PyTorch layout), bt: (Cup,)
    w1: (C1, Cskip+Cup, 3, 3), b1: (C1,)  first DoubleConv conv (PyTorch OIHW)
    w2: (C2, C1, 3, 3),        b2: (C2,)  second DoubleConv conv
    returns (N, C2, H1, W1)
    """
    N, Cin2, H2, W2 = x2.shape
    _, Cskip, H1, W1 = x1.shape
    Cup = wt.shape[1]
    Ccat = Cskip + Cup
    C1 = w1.shape[0]
    C2 = w2.shape[0]
    assert w1.shape[1] == Ccat and w2.shape[1] == C1
    S1, S2 = H1 * W1, H2 * W2
    py0 = (H1 - 2 * H2) // 2          # F.pad offsets (diff // 2)
    px0 = (W1 - 2 * W2) // 2
    PAD = _round_up(W1 + 1, 128)      # lane-tile aligned zero border

    ALIGN = 16                        # packed-sublane alignment for bf16
    Cin2_p = _round_up(Cin2, ALIGN)
    Cup_p = _round_up(Cup, ALIGN)
    Cskip_p = _round_up(Cskip, ALIGN)
    Ccat_p = Cskip_p + Cup_p
    C1_p = _round_up(C1, ALIGN)
    C2_p = _round_up(C2, ALIGN)

    nb = 2 if N % 2 == 0 else 1       # images per grid step (amortize weights)

    bf16 = jnp.bfloat16
    f32 = jnp.float32

    # Activations: flatten spatial dims (free on contiguous NCHW), cast to bf16,
    # zero-pad channels to the aligned counts.
    x2f = jnp.pad(x2.reshape(N, Cin2, S2).astype(bf16),
                  ((0, 0), (0, Cin2_p - Cin2), (0, 0)))
    x1f = jnp.pad(x1.reshape(N, Cskip, S1).astype(bf16),
                  ((0, 0), (0, Cskip_p - Cskip), (0, 0)))

    # ConvTranspose2d weight -> (4*Cup_p, Cin2_p), rows ordered (ki, kj, cout).
    wt4 = jnp.transpose(wt, (2, 3, 1, 0)).reshape(4, Cup, Cin2).astype(f32)
    wt4 = jnp.pad(wt4, ((0, 0), (0, Cup_p - Cup), (0, Cin2_p - Cin2)))
    wt4 = wt4.reshape(4 * Cup_p, Cin2_p).astype(bf16)
    btr = jnp.pad(bt.astype(f32), (0, Cup_p - Cup)).reshape(Cup_p, 1)
    pcol = _col_interleave_mats(W2, W1, px0)                       # (2, W2, W1)

    # Conv weights -> (9, Cout_p, Cin_p) tap-major; conv1's input channels are
    # laid out to match the padded concat buffer [skip | pad | up | pad].
    w1p = jnp.zeros((C1, Ccat_p, 3, 3), f32)
    w1p = w1p.at[:, :Cskip].set(w1[:, :Cskip].astype(f32))
    w1p = w1p.at[:, Cskip_p:Cskip_p + Cup].set(w1[:, Cskip:].astype(f32))
    w1p = jnp.pad(w1p, ((0, C1_p - C1), (0, 0), (0, 0), (0, 0)))
    w1t = jnp.transpose(w1p, (2, 3, 0, 1)).reshape(9, C1_p, Ccat_p).astype(bf16)
    b1r = jnp.pad(b1.astype(f32), (0, C1_p - C1)).reshape(C1_p, 1)

    w2p = jnp.pad(w2.astype(f32),
                  ((0, C2_p - C2), (0, C1_p - C1), (0, 0), (0, 0)))
    w2t = jnp.transpose(w2p, (2, 3, 0, 1)).reshape(9, C2_p, C1_p).astype(bf16)
    b2r = jnp.pad(b2.astype(f32), (0, C2_p - C2)).reshape(C2_p, 1)

    kernel = functools.partial(_upsample_kernel, H1, W1, H2, W2, PAD,
                               Cup_p, Cskip_p, py0, px0, nb)

    const = dict(pipeline_mode=pl.Buffered(1))   # constants: single buffer

    out_flat = pl.pallas_call(
        kernel,
        out_shape=jax.ShapeDtypeStruct((N, C2_p, S1), f32),
        grid_spec=pltpu.PrefetchScalarGridSpec(
            num_scalar_prefetch=0,
            grid=(N // nb,),
            in_specs=[
                pl.BlockSpec((nb, Cin2_p, S2), lambda n: (n, 0, 0)),
                pl.BlockSpec((nb, Cskip_p, S1), lambda n: (n, 0, 0)),
                pl.BlockSpec((4 * Cup_p, Cin2_p), lambda n: (0, 0), **const),
                pl.BlockSpec((Cup_p, 1), lambda n: (0, 0), **const),
                pl.BlockSpec((2, W2, W1), lambda n: (0, 0, 0), **const),
                pl.BlockSpec((9, C1_p, Ccat_p), lambda n: (0, 0, 0), **const),
                pl.BlockSpec((C1_p, 1), lambda n: (0, 0), **const),
                pl.BlockSpec((9, C2_p, C1_p), lambda n: (0, 0, 0), **const),
                pl.BlockSpec((C2_p, 1), lambda n: (0, 0), **const),
            ],
            out_specs=pl.BlockSpec((nb, C2_p, S1), lambda n: (n, 0, 0)),
            scratch_shapes=[
                pltpu.VMEM((Ccat_p, S1 + 2 * PAD), bf16),   # padded concat image
                pltpu.VMEM((C1_p, S1 + 2 * PAD), bf16),     # padded conv1 output
            ],
        ),
        compiler_params=pltpu.CompilerParams(
            dimension_semantics=("parallel",),
            vmem_limit_bytes=48 * 1024 * 1024,
        ),
    )(x2f, x1f, wt4, btr, pcol, w1t, b1r, w2t, b2r)

    return out_flat[:, :C2, :].reshape(N, C2, H1, W1)


def ref_upsample(x2, x1, wt, bt, w1, b1, w2, b2):
    """Pure-JAX reference matching PyTorch UpSample.forward semantics."""
    x2 = x2.astype(jnp.float32)
    x1 = x1.astype(jnp.float32)
    N, Ci, H2, W2 = x2.shape
    Co = wt.shape[1]
    # ConvTranspose2d(k=2, s=2)
    t = jnp.einsum('ncij,cokl->noikjl', x2, wt,
                   precision=jax.lax.Precision.HIGHEST)
    y = t.reshape(N, Co, 2 * H2, 2 * W2) + bt[None, :, None, None]
    diffY = x1.shape[2] - y.shape[2]
    diffX = x1.shape[3] - y.shape[3]
    y = jnp.pad(y, ((0, 0), (0, 0),
                    (diffY // 2, diffY - diffY // 2),
                    (diffX // 2, diffX - diffX // 2)))
    cat = jnp.concatenate([x1, y], axis=1)
    dn = ('NCHW', 'OIHW', 'NCHW')
    h = jax.lax.conv_general_dilated(cat, w1, (1, 1), 'SAME',
                                     dimension_numbers=dn,
                                     precision=jax.lax.Precision.HIGHEST)
    h = jnp.maximum(h + b1[None, :, None, None], 0.0)
    h = jax.lax.conv_general_dilated(h, w2, (1, 1), 'SAME',
                                     dimension_numbers=dn,
                                     precision=jax.lax.Precision.HIGHEST)
    h = jnp.maximum(h + b2[None, :, None, None], 0.0)
    return h


if __name__ == "__main__":
    key = jax.random.PRNGKey(0)
    k = jax.random.split(key, 8)

    N, in_ch, out_ch, H2, W2 = 2, 8, 4, 8, 8
    H1, W1 = 2 * H2, 2 * W2

    x2 = jax.random.normal(k[0], (N, in_ch, H2, W2), jnp.float32)            # decoder feature
    x1 = jax.random.normal(k[1], (N, in_ch - out_ch, H1, W1), jnp.float32)   # skip connection
    wt = 0.2 * jax.random.normal(k[2], (in_ch, out_ch, 2, 2), jnp.float32)   # ConvTranspose2d
    bt = 0.1 * jax.random.normal(k[3], (out_ch,), jnp.float32)
    w1 = 0.2 * jax.random.normal(k[4], (out_ch, in_ch, 3, 3), jnp.float32)   # Conv2d OIHW
    b1 = 0.1 * jax.random.normal(k[5], (out_ch,), jnp.float32)
    w2 = 0.2 * jax.random.normal(k[6], (out_ch, out_ch, 3, 3), jnp.float32)
    b2 = 0.1 * jax.random.normal(k[7], (out_ch,), jnp.float32)

    out = upsample(x2, x1, wt, bt, w1, b1, w2, b2)
    out = jax.block_until_ready(out)

    ref = ref_upsample(x2, x1, wt, bt, w1, b1, w2, b2)
    assert out.shape == (N, out_ch, H1, W1), out.shape
    max_err = float(jnp.max(jnp.abs(out - ref)))
    # bf16 storage + bf16 MXU operands (f32 accumulation) vs. an f32 HIGHEST
    # reference: allow a bf16-level tolerance.
    assert jnp.allclose(out, ref, atol=5e-2, rtol=5e-2), f"max_err={max_err}"

    print("KERNEL_OK")
</pallas_src>

<mosaic_0001>
module attributes {stable_mosaic.version = 11 : i64} {
  func.func @_upsample_kernel(%arg0: i32, %arg1: memref<2x16x64xbf16, #tpu.memory_space<vmem>>, %arg2: memref<2x16x256xbf16, #tpu.memory_space<vmem>>, %arg3: memref<64x16xbf16, #tpu.memory_space<vmem>>, %arg4: memref<16x1xf32, #tpu.memory_space<vmem>>, %arg5: memref<2x8x16xf32, #tpu.memory_space<vmem>>, %arg6: memref<9x16x32xbf16, #tpu.memory_space<vmem>>, %arg7: memref<16x1xf32, #tpu.memory_space<vmem>>, %arg8: memref<9x16x16xbf16, #tpu.memory_space<vmem>>, %arg9: memref<16x1xf32, #tpu.memory_space<vmem>>, %arg10: memref<2x16x256xf32, #tpu.memory_space<vmem>>, %arg11: memref<32x512xbf16, #tpu.memory_space<vmem>>, %arg12: memref<16x512xbf16, #tpu.memory_space<vmem>>) attributes {dimension_semantics = [#tpu.dimension_semantics<parallel>], iteration_bounds = array<i64: 1>, scalar_prefetch = 0 : i64, scratch_operands = 2 : i64, tpu.core_type = #tpu.core_type<tc>, window_params = [{transform_indices = @transform_0, window_bounds = array<i64: 2, 16, 64>}, {transform_indices = @transform_1, window_bounds = array<i64: 2, 16, 256>}, {pipeline_mode = #tpu.pipeline_mode<synchronous>, transform_indices = @transform_2, window_bounds = array<i64: 64, 16>}, {pipeline_mode = #tpu.pipeline_mode<synchronous>, transform_indices = @transform_3, window_bounds = array<i64: 16, 1>}, {pipeline_mode = #tpu.pipeline_mode<synchronous>, transform_indices = @transform_4, window_bounds = array<i64: 2, 8, 16>}, {pipeline_mode = #tpu.pipeline_mode<synchronous>, transform_indices = @transform_5, window_bounds = array<i64: 9, 16, 32>}, {pipeline_mode = #tpu.pipeline_mode<synchronous>, transform_indices = @transform_6, window_bounds = array<i64: 16, 1>}, {pipeline_mode = #tpu.pipeline_mode<synchronous>, transform_indices = @transform_7, window_bounds = array<i64: 9, 16, 16>}, {pipeline_mode = #tpu.pipeline_mode<synchronous>, transform_indices = @transform_8, window_bounds = array<i64: 16, 1>}, {transform_indices = @transform_9, window_bounds = array<i64: 2, 16, 256>}]} {
    %0 = tpu.iota {dimensions = array<i32: 1>} : vector<1x256xi32>
    %c16_i32 = arith.constant 16 : i32
    %c0_i32 = arith.constant 0 : i32
    %1 = arith.cmpi eq, %c16_i32, %c0_i32 : i32
    %c1_i32 = arith.constant 1 : i32
    %2 = arith.select %1, %c1_i32, %c16_i32 : i32
    %3 = vector.broadcast %2 : i32 to vector<1x256xi32>
    %4 = arith.remsi %0, %3 : vector<1x256xi32>
    %c0_i32_0 = arith.constant 0 : i32
    %5 = vector.broadcast %c0_i32_0 : i32 to vector<1x256xi32>
    %6 = arith.cmpi ne, %4, %5 : vector<1x256xi32>
    %c0_i32_1 = arith.constant 0 : i32
    %7 = vector.broadcast %c0_i32_1 : i32 to vector<1x256xi32>
    %8 = arith.cmpi slt, %4, %7 : vector<1x256xi32>
    %c0_i32_2 = arith.constant 0 : i32
    %9 = arith.cmpi slt, %2, %c0_i32_2 : i32
    %10 = vector.broadcast %9 : i1 to vector<1x256xi1>
    %11 = vector.broadcast %10 : vector<1x256xi1> to vector<1x256xi1>
    %12 = arith.xori %8, %11 : vector<1x256xi1>
    %13 = arith.andi %12, %6 : vector<1x256xi1>
    %14 = vector.broadcast %2 : i32 to vector<1x256xi32>
    %15 = arith.addi %4, %14 : vector<1x256xi32>
    %16 = arith.select %13, %15, %4 : vector<1x256xi1>, vector<1x256xi32>
    %c1_i32_3 = arith.constant 1 : i32
    %17 = vector.broadcast %c1_i32_3 : i32 to vector<1x256xi32>
    %18 = arith.cmpi sge, %16, %17 : vector<1x256xi32>
    %c15_i32 = arith.constant 15 : i32
    %19 = vector.broadcast %c15_i32 : i32 to vector<1x256xi32>
    %20 = arith.cmpi slt, %16, %19 : vector<1x256xi32>
    %cst = arith.constant 0.000000e+00 : bf16
    %21 = vector.broadcast %cst : bf16 to vector<32x128xbf16>
    %c0 = arith.constant 0 : index
    %c0_4 = arith.constant 0 : index
    %22 = vector.load %arg11[%c0, %c0_4] : memref<32x512xbf16, #tpu.memory_space<vmem>>, vector<32x128xbf16>
    tpu.vector_store %arg11[%c0, %c0_4], %21 {strides = array<i32>} : memref<32x512xbf16, #tpu.memory_space<vmem>>, vector<32x128xbf16>,
    %cst_5 = arith.constant 0.000000e+00 : bf16
    %23 = vector.broadcast %cst_5 : bf16 to vector<32x128xbf16>
    %c0_6 = arith.constant 0 : index
    %c384 = arith.constant 384 : index
    %24 = vector.load %arg11[%c0_6, %c384] : memref<32x512xbf16, #tpu.memory_space<vmem>>, vector<32x128xbf16>
    tpu.vector_store %arg11[%c0_6, %c384], %23 {strides = array<i32>} : memref<32x512xbf16, #tpu.memory_space<vmem>>, vector<32x128xbf16>,
    %cst_7 = arith.constant 0.000000e+00 : bf16
    %25 = vector.broadcast %cst_7 : bf16 to vector<16x128xbf16>
    %c0_8 = arith.constant 0 : index
    %c0_9 = arith.constant 0 : index
    %26 = vector.load %arg12[%c0_8, %c0_9] : memref<16x512xbf16, #tpu.memory_space<vmem>>, vector<16x128xbf16>
    tpu.vector_store %arg12[%c0_8, %c0_9], %25 {strides = array<i32>} : memref<16x512xbf16, #tpu.memory_space<vmem>>, vector<16x128xbf16>,
    %cst_10 = arith.constant 0.000000e+00 : bf16
    %27 = vector.broadcast %cst_10 : bf16 to vector<16x128xbf16>
    %c0_11 = arith.constant 0 : index
    %c384_12 = arith.constant 384 : index
    %28 = vector.load %arg12[%c0_11, %c384_12] : memref<16x512xbf16, #tpu.memory_space<vmem>>, vector<16x128xbf16>
    tpu.vector_store %arg12[%c0_11, %c384_12], %27 {strides = array<i32>} : memref<16x512xbf16, #tpu.memory_space<vmem>>, vector<16x128xbf16>,
    %c0_13 = arith.constant 0 : index
    %c0_14 = arith.constant 0 : index
    %29 = vector.load %arg4[%c0_13, %c0_14] : memref<16x1xf32, #tpu.memory_space<vmem>>, vector<16x1xf32>
    %c0_15 = arith.constant 0 : index
    %c0_16 = arith.constant 0 : index
    %c0_17 = arith.constant 0 : index
    %30 = vector.load %arg2[%c0_15, %c0_16, %c0_17] : memref<2x16x256xbf16, #tpu.memory_space<vmem>>, vector<1x16x256xbf16>
    %31 = vector.shape_cast %30 : vector<1x16x256xbf16> to vector<16x256xbf16>
    %c0_18 = arith.constant 0 : index
    %c128 = arith.constant 128 : index
    %32 = vector.load %arg11[%c0_18, %c128] : memref<32x512xbf16, #tpu.memory_space<vmem>>, vector<16x256xbf16>
    tpu.vector_store %arg11[%c0_18, %c128], %31 {strides = array<i32>} : memref<32x512xbf16, #tpu.memory_space<vmem>>, vector<16x256xbf16>,
    %c0_19 = arith.constant 0 : index
    %c0_20 = arith.constant 0 : index
    %33 = vector.load %arg3[%c0_19, %c0_20] : memref<64x16xbf16, #tpu.memory_space<vmem>>, vector<64x16xbf16>
    %c0_21 = arith.constant 0 : index
    %c0_22 = arith.constant 0 : index
    %c0_23 = arith.constant 0 : index
    %34 = vector.load %arg1[%c0_21, %c0_22, %c0_23] : memref<2x16x64xbf16, #tpu.memory_space<vmem>>, vector<1x16x64xbf16>
    %35 = vector.shape_cast %34 : vector<1x16x64xbf16> to vector<16x64xbf16>
    %cst_24 = arith.constant dense<0.000000e+00> : vector<64x64xf32>
    %36 = tpu.matmul %33, %35, %cst_24 {dimension_numbers = #tpu.dot_dimension_numbers<[1], [0], [0], [1], [0, 0, 1, 1], [], []>} : vector<64x16xbf16>, vector<16x64xbf16>, vector<64x64xf32> -> vector<64x64xf32>
    %37 = vector.extract_strided_slice %36 {offsets = [0, 0], sizes = [16, 8], strides = [1, 1]} : vector<64x64xf32> to vector<16x8xf32>
    %38 = vector.extract_strided_slice %36 {offsets = [16, 0], sizes = [16, 8], strides = [1, 1]} : vector<64x64xf32> to vector<16x8xf32>
    %c0_25 = arith.constant 0 : index
    %c0_26 = arith.constant 0 : index
    %c0_27 = arith.constant 0 : index
    %39 = vector.load %arg5[%c0_25, %c0_26, %c0_27] : memref<2x8x16xf32, #tpu.memory_space<vmem>>, vector<1x8x16xf32>
    %40 = vector.shape_cast %39 : vector<1x8x16xf32> to vector<8x16xf32>
    %cst_28 = arith.constant dense<0.000000e+00> : vector<16x16xf32>
    %41 = tpu.matmul %37, %40, %cst_28 {dimension_numbers = #tpu.dot_dimension_numbers<[1], [0], [0], [1], [0, 0, 1, 1], [], []>} : vector<16x8xf32>, vector<8x16xf32>, vector<16x16xf32> -> vector<16x16xf32>
    %c1 = arith.constant 1 : index
    %c0_29 = arith.constant 0 : index
    %c0_30 = arith.constant 0 : index
    %42 = vector.load %arg5[%c1, %c0_29, %c0_30] : memref<2x8x16xf32, #tpu.memory_space<vmem>>, vector<1x8x16xf32>
    %43 = vector.shape_cast %42 : vector<1x8x16xf32> to vector<8x16xf32>
    %cst_31 = arith.constant dense<0.000000e+00> : vector<16x16xf32>
    %44 = tpu.matmul %38, %43, %cst_31 {dimension_numbers = #tpu.dot_dimension_numbers<[1], [0], [0], [1], [0, 0, 1, 1], [], []>} : vector<16x8xf32>, vector<8x16xf32>, vector<16x16xf32> -> vector<16x16xf32>
    %45 = arith.addf %41, %44 : vector<16x16xf32>
    %46 = vector.broadcast %29 : vector<16x1xf32> to vector<16x16xf32>
    %47 = arith.addf %45, %46 : vector<16x16xf32>
    %48 = arith.truncf %47 : vector<16x16xf32> to vector<16x16xbf16>
    %c16 = arith.constant 16 : index
    %c128_32 = arith.constant 128 : index
    %49 = vector.load %arg11[%c16, %c128_32] : memref<32x512xbf16, #tpu.memory_space<vmem>>, vector<16x16xbf16>
    tpu.vector_store %arg11[%c16, %c128_32], %48 {strides = array<i32>} : memref<32x512xbf16, #tpu.memory_space<vmem>>, vector<16x16xbf16>,
    %50 = vector.extract_strided_slice %36 {offsets = [0, 8], sizes = [16, 8], strides = [1, 1]} : vector<64x64xf32> to vector<16x8xf32>
    %51 = vector.extract_strided_slice %36 {offsets = [16, 8], sizes = [16, 8], strides = [1, 1]} : vector<64x64xf32> to vector<16x8xf32>
    %c0_33 = arith.constant 0 : index
    %c0_34 = arith.constant 0 : index
    %c0_35 = arith.constant 0 : index
    %52 = vector.load %arg5[%c0_33, %c0_34, %c0_35] : memref<2x8x16xf32, #tpu.memory_space<vmem>>, vector<1x8x16xf32>
    %53 = vector.shape_cast %52 : vector<1x8x16xf32> to vector<8x16xf32>
    %cst_36 = arith.constant dense<0.000000e+00> : vector<16x16xf32>
    %54 = tpu.matmul %50, %53, %cst_36 {dimension_numbers = #tpu.dot_dimension_numbers<[1], [0], [0], [1], [0, 0, 1, 1], [], []>} : vector<16x8xf32>, vector<8x16xf32>, vector<16x16xf32> -> vector<16x16xf32>
    %c1_37 = arith.constant 1 : index
    %c0_38 = arith.constant 0 : index
    %c0_39 = arith.constant 0 : index
    %55 = vector.load %arg5[%c1_37, %c0_38, %c0_39] : memref<2x8x16xf32, #tpu.memory_space<vmem>>, vector<1x8x16xf32>
    %56 = vector.shape_cast %55 : vector<1x8x16xf32> to vector<8x16xf32>
    %cst_40 = arith.constant dense<0.000000e+00> : vector<16x16xf32>
    %57 = tpu.matmul %51, %56, %cst_40 {dimension_numbers = #tpu.dot_dimension_numbers<[1], [0], [0], [1], [0, 0, 1, 1], [], []>} : vector<16x8xf32>, vector<8x16xf32>, vector<16x16xf32> -> vector<16x16xf32>
    %58 = arith.addf %54, %57 : vector<16x16xf32>
    %59 = vector.broadcast %29 : vector<16x1xf32> to vector<16x16xf32>
    %60 = arith.addf %58, %59 : vector<16x16xf32>
    %61 = arith.truncf %60 : vector<16x16xf32> to vector<16x16xbf16>
    %c16_41 = arith.constant 16 : index
    %c160 = arith.constant 160 : index
    %62 = vector.load %arg11[%c16_41, %c160] : memref<32x512xbf16, #tpu.memory_space<vmem>>, vector<16x16xbf16>
    tpu.vector_store %arg11[%c16_41, %c160], %61 {strides = array<i32>} : memref<32x512xbf16, #tpu.memory_space<vmem>>, vector<16x16xbf16>,
    %63 = vector.extract_strided_slice %36 {offsets = [0, 16], sizes = [16, 8], strides = [1, 1]} : vector<64x64xf32> to vector<16x8xf32>
    %64 = vector.extract_strided_slice %36 {offsets = [16, 16], sizes = [16, 8], strides = [1, 1]} : vector<64x64xf32> to vector<16x8xf32>
    %c0_42 = arith.constant 0 : index
    %c0_43 = arith.constant 0 : index
    %c0_44 = arith.constant 0 : index
    %65 = vector.load %arg5[%c0_42, %c0_43, %c0_44] : memref<2x8x16xf32, #tpu.memory_space<vmem>>, vector<1x8x16xf32>
    %66 = vector.shape_cast %65 : vector<1x8x16xf32> to vector<8x16xf32>
    %cst_45 = arith.constant dense<0.000000e+00> : vector<16x16xf32>
    %67 = tpu.matmul %63, %66, %cst_45 {dimension_numbers = #tpu.dot_dimension_numbers<[1], [0], [0], [1], [0, 0, 1, 1], [], []>} : vector<16x8xf32>, vector<8x16xf32>, vector<16x16xf32> -> vector<16x16xf32>
    %c1_46 = arith.constant 1 : index
    %c0_47 = arith.constant 0 : index
    %c0_48 = arith.constant 0 : index
    %68 = vector.load %arg5[%c1_46, %c0_47, %c0_48] : memref<2x8x16xf32, #tpu.memory_space<vmem>>, vector<1x8x16xf32>
    %69 = vector.shape_cast %68 : vector<1x8x16xf32> to vector<8x16xf32>
    %cst_49 = arith.constant dense<0.000000e+00> : vector<16x16xf32>
    %70 = tpu.matmul %64, %69, %cst_49 {dimension_numbers = #tpu.dot_dimension_numbers<[1], [0], [0], [1], [0, 0, 1, 1], [], []>} : vector<16x8xf32>, vector<8x16xf32>, vector<16x16xf32> -> vector<16x16xf32>
    %71 = arith.addf %67, %70 : vector<16x16xf32>
    %72 = vector.broadcast %29 : vector<16x1xf32> to vector<16x16xf32>
    %73 = arith.addf %71, %72 : vector<16x16xf32>
    %74 = arith.truncf %73 : vector<16x16xf32> to vector<16x16xbf16>
    %c16_50 = arith.constant 16 : index
    %c192 = arith.constant 192 : index
    %75 = vector.load %arg11[%c16_50, %c192] : memref<32x512xbf16, #tpu.memory_space<vmem>>, vector<16x16xbf16>
    tpu.vector_store %arg11[%c16_50, %c192], %74 {strides = array<i32>} : memref<32x512xbf16, #tpu.memory_space<vmem>>, vector<16x16xbf16>,
    %76 = vector.extract_strided_slice %36 {offsets = [0, 24], sizes = [16, 8], strides = [1, 1]} : vector<64x64xf32> to vector<16x8xf32>
    %77 = vector.extract_strided_slice %36 {offsets = [16, 24], sizes = [16, 8], strides = [1, 1]} : vector<64x64xf32> to vector<16x8xf32>
    %c0_51 = arith.constant 0 : index
    %c0_52 = arith.constant 0 : index
    %c0_53 = arith.constant 0 : index
    %78 = vector.load %arg5[%c0_51, %c0_52, %c0_53] : memref<2x8x16xf32, #tpu.memory_space<vmem>>, vector<1x8x16xf32>
    %79 = vector.shape_cast %78 : vector<1x8x16xf32> to vector<8x16xf32>
    %cst_54 = arith.constant dense<0.000000e+00> : vector<16x16xf32>
    %80 = tpu.matmul %76, %79, %cst_54 {dimension_numbers = #tpu.dot_dimension_numbers<[1], [0], [0], [1], [0, 0, 1, 1], [], []>} : vector<16x8xf32>, vector<8x16xf32>, vector<16x16xf32> -> vector<16x16xf32>
    %c1_55 = arith.constant 1 : index
    %c0_56 = arith.constant 0 : index
    %c0_57 = arith.constant 0 : index
    %81 = vector.load %arg5[%c1_55, %c0_56, %c0_57] : memref<2x8x16xf32, #tpu.memory_space<vmem>>, vector<1x8x16xf32>
    %82 = vector.shape_cast %81 : vector<1x8x16xf32> to vector<8x16xf32>
    %cst_58 = arith.constant dense<0.000000e+00> : vector<16x16xf32>
    %83 = tpu.matmul %77, %82, %cst_58 {dimension_numbers = #tpu.dot_dimension_numbers<[1], [0], [0], [1], [0, 0, 1, 1], [], []>} : vector<16x8xf32>, vector<8x16xf32>, vector<16x16xf32> -> vector<16x16xf32>
    %84 = arith.addf %80, %83 : vector<16x16xf32>
    %85 = vector.broadcast %29 : vector<16x1xf32> to vector<16x16xf32>
    %86 = arith.addf %84, %85 : vector<16x16xf32>
    %87 = arith.truncf %86 : vector<16x16xf32> to vector<16x16xbf16>
    %c16_59 = arith.constant 16 : index
    %c224 = arith.constant 224 : index
    %88 = vector.load %arg11[%c16_59, %c224] : memref<32x512xbf16, #tpu.memory_space<vmem>>, vector<16x16xbf16>
    tpu.vector_store %arg11[%c16_59, %c224], %87 {strides = array<i32>} : memref<32x512xbf16, #tpu.memory_space<vmem>>, vector<16x16xbf16>,
    %89 = vector.extract_strided_slice %36 {offsets = [0, 32], sizes = [16, 8], strides = [1, 1]} : vector<64x64xf32> to vector<16x8xf32>
    %90 = vector.extract_strided_slice %36 {offsets = [16, 32], sizes = [16, 8], strides = [1, 1]} : vector<64x64xf32> to vector<16x8xf32>
    %c0_60 = arith.constant 0 : index
    %c0_61 = arith.constant 0 : index
    %c0_62 = arith.constant 0 : index
    %91 = vector.load %arg5[%c0_60, %c0_61, %c0_62] : memref<2x8x16xf32, #tpu.memory_space<vmem>>, vector<1x8x16xf32>
    %92 = vector.shape_cast %91 : vector<1x8x16xf32> to vector<8x16xf32>
    %cst_63 = arith.constant dense<0.000000e+00> : vector<16x16xf32>
    %93 = tpu.matmul %89, %92, %cst_63 {dimension_numbers = #tpu.dot_dimension_numbers<[1], [0], [0], [1], [0, 0, 1, 1], [], []>} : vector<16x8xf32>, vector<8x16xf32>, vector<16x16xf32> -> vector<16x16xf32>
    %c1_64 = arith.constant 1 : index
    %c0_65 = arith.constant 0 : index
    %c0_66 = arith.constant 0 : index
    %94 = vector.load %arg5[%c1_64, %c0_65, %c0_66] : memref<2x8x16xf32, #tpu.memory_space<vmem>>, vector<1x8x16xf32>
    %95 = vector.shape_cast %94 : vector<1x8x16xf32> to vector<8x16xf32>
    %cst_67 = arith.constant dense<0.000000e+00> : vector<16x16xf32>
    %96 = tpu.matmul %90, %95, %cst_67 {dimension_numbers = #tpu.dot_dimension_numbers<[1], [0], [0], [1], [0, 0, 1, 1], [], []>} : vector<16x8xf32>, vector<8x16xf32>, vector<16x16xf32> -> vector<16x16xf32>
    %97 = arith.addf %93, %96 : vector<16x16xf32>
    %98 = vector.broadcast %29 : vector<16x1xf32> to vector<16x16xf32>
    %99 = arith.addf %97, %98 : vector<16x16xf32>
    %100 = arith.truncf %99 : vector<16x16xf32> to vector<16x16xbf16>
    %c16_68 = arith.constant 16 : index
    %c256 = arith.constant 256 : index
    %101 = vector.load %arg11[%c16_68, %c256] : memref<32x512xbf16, #tpu.memory_space<vmem>>, vector<16x16xbf16>
    tpu.vector_store %arg11[%c16_68, %c256], %100 {strides = array<i32>} : memref<32x512xbf16, #tpu.memory_space<vmem>>, vector<16x16xbf16>,
    %102 = vector.extract_strided_slice %36 {offsets = [0, 40], sizes = [16, 8], strides = [1, 1]} : vector<64x64xf32> to vector<16x8xf32>
    %103 = vector.extract_strided_slice %36 {offsets = [16, 40], sizes = [16, 8], strides = [1, 1]} : vector<64x64xf32> to vector<16x8xf32>
    %c0_69 = arith.constant 0 : index
    %c0_70 = arith.constant 0 : index
    %c0_71 = arith.constant 0 : index
    %104 = vector.load %arg5[%c0_69, %c0_70, %c0_71] : memref<2x8x16xf32, #tpu.memory_space<vmem>>, vector<1x8x16xf32>
    %105 = vector.shape_cast %104 : vector<1x8x16xf32> to vector<8x16xf32>
    %cst_72 = arith.constant dense<0.000000e+00> : vector<16x16xf32>
    %106 = tpu.matmul %102, %105, %cst_72 {dimension_numbers = #tpu.dot_dimension_numbers<[1], [0], [0], [1], [0, 0, 1, 1], [], []>} : vector<16x8xf32>, vector<8x16xf32>, vector<16x16xf32> -> vector<16x16xf32>
    %c1_73 = arith.constant 1 : index
    %c0_74 = arith.constant 0 : index
    %c0_75 = arith.constant 0 : index
    %107 = vector.load %arg5[%c1_73, %c0_74, %c0_75] : memref<2x8x16xf32, #tpu.memory_space<vmem>>, vector<1x8x16xf32>
    %108 = vector.shape_cast %107 : vector<1x8x16xf32> to vector<8x16xf32>
    %cst_76 = arith.constant dense<0.000000e+00> : vector<16x16xf32>
    %109 = tpu.matmul %103, %108, %cst_76 {dimension_numbers = #tpu.dot_dimension_numbers<[1], [0], [0], [1], [0, 0, 1, 1], [], []>} : vector<16x8xf32>, vector<8x16xf32>, vector<16x16xf32> -> vector<16x16xf32>
    %110 = arith.addf %106, %109 : vector<16x16xf32>
    %111 = vector.broadcast %29 : vector<16x1xf32> to vector<16x16xf32>
    %112 = arith.addf %110, %111 : vector<16x16xf32>
    %113 = arith.truncf %112 : vector<16x16xf32> to vector<16x16xbf16>
    %c16_77 = arith.constant 16 : index
    %c288 = arith.constant 288 : index
    %114 = vector.load %arg11[%c16_77, %c288] : memref<32x512xbf16, #tpu.memory_space<vmem>>, vector<16x16xbf16>
    tpu.vector_store %arg11[%c16_77, %c288], %113 {strides = array<i32>} : memref<32x512xbf16, #tpu.memory_space<vmem>>, vector<16x16xbf16>,
    %115 = vector.extract_strided_slice %36 {offsets = [0, 48], sizes = [16, 8], strides = [1, 1]} : vector<64x64xf32> to vector<16x8xf32>
    %116 = vector.extract_strided_slice %36 {offsets = [16, 48], sizes = [16, 8], strides = [1, 1]} : vector<64x64xf32> to vector<16x8xf32>
    %c0_78 = arith.constant 0 : index
    %c0_79 = arith.constant 0 : index
    %c0_80 = arith.constant 0 : index
    %117 = vector.load %arg5[%c0_78, %c0_79, %c0_80] : memref<2x8x16xf32, #tpu.memory_space<vmem>>, vector<1x8x16xf32>
    %118 = vector.shape_cast %117 : vector<1x8x16xf32> to vector<8x16xf32>
    %cst_81 = arith.constant dense<0.000000e+00> : vector<16x16xf32>
    %119 = tpu.matmul %115, %118, %cst_81 {dimension_numbers = #tpu.dot_dimension_numbers<[1], [0], [0], [1], [0, 0, 1, 1], [], []>} : vector<16x8xf32>, vector<8x16xf32>, vector<16x16xf32> -> vector<16x16xf32>
    %c1_82 = arith.constant 1 : index
    %c0_83 = arith.constant 0 : index
    %c0_84 = arith.constant 0 : index
    %120 = vector.load %arg5[%c1_82, %c0_83, %c0_84] : memref<2x8x16xf32, #tpu.memory_space<vmem>>, vector<1x8x16xf32>
    %121 = vector.shape_cast %120 : vector<1x8x16xf32> to vector<8x16xf32>
    %cst_85 = arith.constant dense<0.000000e+00> : vector<16x16xf32>
    %122 = tpu.matmul %116, %121, %cst_85 {dimension_numbers = #tpu.dot_dimension_numbers<[1], [0], [0], [1], [0, 0, 1, 1], [], []>} : vector<16x8xf32>, vector<8x16xf32>, vector<16x16xf32> -> vector<16x16xf32>
    %123 = arith.addf %119, %122 : vector<16x16xf32>
    %124 = vector.broadcast %29 : vector<16x1xf32> to vector<16x16xf32>
    %125 = arith.addf %123, %124 : vector<16x16xf32>
    %126 = arith.truncf %125 : vector<16x16xf32> to vector<16x16xbf16>
    %c16_86 = arith.constant 16 : index
    %c320 = arith.constant 320 : index
    %127 = vector.load %arg11[%c16_86, %c320] : memref<32x512xbf16, #tpu.memory_space<vmem>>, vector<16x16xbf16>
    tpu.vector_store %arg11[%c16_86, %c320], %126 {strides = array<i32>} : memref<32x512xbf16, #tpu.memory_space<vmem>>, vector<16x16xbf16>,
    %128 = vector.extract_strided_slice %36 {offsets = [0, 56], sizes = [16, 8], strides = [1, 1]} : vector<64x64xf32> to vector<16x8xf32>
    %129 = vector.extract_strided_slice %36 {offsets = [16, 56], sizes = [16, 8], strides = [1, 1]} : vector<64x64xf32> to vector<16x8xf32>
    %c0_87 = arith.constant 0 : index
    %c0_88 = arith.constant 0 : index
    %c0_89 = arith.constant 0 : index
    %130 = vector.load %arg5[%c0_87, %c0_88, %c0_89] : memref<2x8x16xf32, #tpu.memory_space<vmem>>, vector<1x8x16xf32>
    %131 = vector.shape_cast %130 : vector<1x8x16xf32> to vector<8x16xf32>
    %cst_90 = arith.constant dense<0.000000e+00> : vector<16x16xf32>
    %132 = tpu.matmul %128, %131, %cst_90 {dimension_numbers = #tpu.dot_dimension_numbers<[1], [0], [0], [1], [0, 0, 1, 1], [], []>} : vector<16x8xf32>, vector<8x16xf32>, vector<16x16xf32> -> vector<16x16xf32>
    %c1_91 = arith.constant 1 : index
    %c0_92 = arith.constant 0 : index
    %c0_93 = arith.constant 0 : index
    %133 = vector.load %arg5[%c1_91, %c0_92, %c0_93] : memref<2x8x16xf32, #tpu.memory_space<vmem>>, vector<1x8x16xf32>
    %134 = vector.shape_cast %133 : vector<1x8x16xf32> to vector<8x16xf32>
    %cst_94 = arith.constant dense<0.000000e+00> : vector<16x16xf32>
    %135 = tpu.matmul %129, %134, %cst_94 {dimension_numbers = #tpu.dot_dimension_numbers<[1], [0], [0], [1], [0, 0, 1, 1], [], []>} : vector<16x8xf32>, vector<8x16xf32>, vector<16x16xf32> -> vector<16x16xf32>
    %136 = arith.addf %132, %135 : vector<16x16xf32>
    %137 = vector.broadcast %29 : vector<16x1xf32> to vector<16x16xf32>
    %138 = arith.addf %136, %137 : vector<16x16xf32>
    %139 = arith.truncf %138 : vector<16x16xf32> to vector<16x16xbf16>
    %c16_95 = arith.constant 16 : index
    %c352 = arith.constant 352 : index
    %140 = vector.load %arg11[%c16_95, %c352] : memref<32x512xbf16, #tpu.memory_space<vmem>>, vector<16x16xbf16>
    tpu.vector_store %arg11[%c16_95, %c352], %139 {strides = array<i32>} : memref<32x512xbf16, #tpu.memory_space<vmem>>, vector<16x16xbf16>,
    %141 = vector.extract_strided_slice %36 {offsets = [32, 0], sizes = [16, 8], strides = [1, 1]} : vector<64x64xf32> to vector<16x8xf32>
    %142 = vector.extract_strided_slice %36 {offsets = [48, 0], sizes = [16, 8], strides = [1, 1]} : vector<64x64xf32> to vector<16x8xf32>
    %c0_96 = arith.constant 0 : index
    %c0_97 = arith.constant 0 : index
    %c0_98 = arith.constant 0 : index
    %143 = vector.load %arg5[%c0_96, %c0_97, %c0_98] : memref<2x8x16xf32, #tpu.memory_space<vmem>>, vector<1x8x16xf32>
    %144 = vector.shape_cast %143 : vector<1x8x16xf32> to vector<8x16xf32>
    %cst_99 = arith.constant dense<0.000000e+00> : vector<16x16xf32>
    %145 = tpu.matmul %141, %144, %cst_99 {dimension_numbers = #tpu.dot_dimension_numbers<[1], [0], [0], [1], [0, 0, 1, 1], [], []>} : vector<16x8xf32>, vector<8x16xf32>, vector<16x16xf32> -> vector<16x16xf32>
    %c1_100 = arith.constant 1 : index
    %c0_101 = arith.constant 0 : index
    %c0_102 = arith.constant 0 : index
    %146 = vector.load %arg5[%c1_100, %c0_101, %c0_102] : memref<2x8x16xf32, #tpu.memory_space<vmem>>, vector<1x8x16xf32>
    %147 = vector.shape_cast %146 : vector<1x8x16xf32> to vector<8x16xf32>
    %cst_103 = arith.constant dense<0.000000e+00> : vector<16x16xf32>
    %148 = tpu.matmul %142, %147, %cst_103 {dimension_numbers = #tpu.dot_dimension_numbers<[1], [0], [0], [1], [0, 0, 1, 1], [], []>} : vector<16x8xf32>, vector<8x16xf32>, vector<16x16xf32> -> vector<16x16xf32>
    %149 = arith.addf %145, %148 : vector<16x16xf32>
    %150 = vector.broadcast %29 : vector<16x1xf32> to vector<16x16xf32>
    %151 = arith.addf %149, %150 : vector<16x16xf32>
    %152 = arith.truncf %151 : vector<16x16xf32> to vector<16x16xbf16>
    %c16_104 = arith.constant 16 : index
    %c144 = arith.constant 144 : index
    %153 = vector.load %arg11[%c16_104, %c144] : memref<32x512xbf16, #tpu.memory_space<vmem>>, vector<16x16xbf16>
    tpu.vector_store %arg11[%c16_104, %c144], %152 {strides = array<i32>} : memref<32x512xbf16, #tpu.memory_space<vmem>>, vector<16x16xbf16>,
    %154 = vector.extract_strided_slice %36 {offsets = [32, 8], sizes = [16, 8], strides = [1, 1]} : vector<64x64xf32> to vector<16x8xf32>
    %155 = vector.extract_strided_slice %36 {offsets = [48, 8], sizes = [16, 8], strides = [1, 1]} : vector<64x64xf32> to vector<16x8xf32>
    %c0_105 = arith.constant 0 : index
    %c0_106 = arith.constant 0 : index
    %c0_107 = arith.constant 0 : index
    %156 = vector.load %arg5[%c0_105, %c0_106, %c0_107] : memref<2x8x16xf32, #tpu.memory_space<vmem>>, vector<1x8x16xf32>
    %157 = vector.shape_cast %156 : vector<1x8x16xf32> to vector<8x16xf32>
    %cst_108 = arith.constant dense<0.000000e+00> : vector<16x16xf32>
    %158 = tpu.matmul %154, %157, %cst_108 {dimension_numbers = #tpu.dot_dimension_numbers<[1], [0], [0], [1], [0, 0, 1, 1], [], []>} : vector<16x8xf32>, vector<8x16xf32>, vector<16x16xf32> -> vector<16x16xf32>
    %c1_109 = arith.constant 1 : index
    %c0_110 = arith.constant 0 : index
    %c0_111 = arith.constant 0 : index
    %159 = vector.load %arg5[%c1_109, %c0_110, %c0_111] : memref<2x8x16xf32, #tpu.memory_space<vmem>>, vector<1x8x16xf32>
    %160 = vector.shape_cast %159 : vector<1x8x16xf32> to vector<8x16xf32>
    %cst_112 = arith.constant dense<0.000000e+00> : vector<16x16xf32>
    %161 = tpu.matmul %155, %160, %cst_112 {dimension_numbers = #tpu.dot_dimension_numbers<[1], [0], [0], [1], [0, 0, 1, 1], [], []>} : vector<16x8xf32>, vector<8x16xf32>, vector<16x16xf32> -> vector<16x16xf32>
    %162 = arith.addf %158, %161 : vector<16x16xf32>
    %163 = vector.broadcast %29 : vector<16x1xf32> to vector<16x16xf32>
    %164 = arith.addf %162, %163 : vector<16x16xf32>
    %165 = arith.truncf %164 : vector<16x16xf32> to vector<16x16xbf16>
    %c16_113 = arith.constant 16 : index
    %c176 = arith.constant 176 : index
    %166 = vector.load %arg11[%c16_113, %c176] : memref<32x512xbf16, #tpu.memory_space<vmem>>, vector<16x16xbf16>
    tpu.vector_store %arg11[%c16_113, %c176], %165 {strides = array<i32>} : memref<32x512xbf16, #tpu.memory_space<vmem>>, vector<16x16xbf16>,
    %167 = vector.extract_strided_slice %36 {offsets = [32, 16], sizes = [16, 8], strides = [1, 1]} : vector<64x64xf32> to vector<16x8xf32>
    %168 = vector.extract_strided_slice %36 {offsets = [48, 16], sizes = [16, 8], strides = [1, 1]} : vector<64x64xf32> to vector<16x8xf32>
    %c0_114 = arith.constant 0 : index
    %c0_115 = arith.constant 0 : index
    %c0_116 = arith.constant 0 : index
    %169 = vector.load %arg5[%c0_114, %c0_115, %c0_116] : memref<2x8x16xf32, #tpu.memory_space<vmem>>, vector<1x8x16xf32>
    %170 = vector.shape_cast %169 : vector<1x8x16xf32> to vector<8x16xf32>
    %cst_117 = arith.constant dense<0.000000e+00> : vector<16x16xf32>
    %171 = tpu.matmul %167, %170, %cst_117 {dimension_numbers = #tpu.dot_dimension_numbers<[1], [0], [0], [1], [0, 0, 1, 1], [], []>} : vector<16x8xf32>, vector<8x16xf32>, vector<16x16xf32> -> vector<16x16xf32>
    %c1_118 = arith.constant 1 : index
    %c0_119 = arith.constant 0 : index
    %c0_120 = arith.constant 0 : index
    %172 = vector.load %arg5[%c1_118, %c0_119, %c0_120] : memref<2x8x16xf32, #tpu.memory_space<vmem>>, vector<1x8x16xf32>
    %173 = vector.shape_cast %172 : vector<1x8x16xf32> to vector<8x16xf32>
    %cst_121 = arith.constant dense<0.000000e+00> : vector<16x16xf32>
    %174 = tpu.matmul %168, %173, %cst_121 {dimension_numbers = #tpu.dot_dimension_numbers<[1], [0], [0], [1], [0, 0, 1, 1], [], []>} : vector<16x8xf32>, vector<8x16xf32>, vector<16x16xf32> -> vector<16x16xf32>
    %175 = arith.addf %171, %174 : vector<16x16xf32>
    %176 = vector.broadcast %29 : vector<16x1xf32> to vector<16x16xf32>
    %177 = arith.addf %175, %176 : vector<16x16xf32>
    %178 = arith.truncf %177 : vector<16x16xf32> to vector<16x16xbf16>
    %c16_122 = arith.constant 16 : index
    %c208 = arith.constant 208 : index
    %179 = vector.load %arg11[%c16_122, %c208] : memref<32x512xbf16, #tpu.memory_space<vmem>>, vector<16x16xbf16>
    tpu.vector_store %arg11[%c16_122, %c208], %178 {strides = array<i32>} : memref<32x512xbf16, #tpu.memory_space<vmem>>, vector<16x16xbf16>,
    %180 = vector.extract_strided_slice %36 {offsets = [32, 24], sizes = [16, 8], strides = [1, 1]} : vector<64x64xf32> to vector<16x8xf32>
    %181 = vector.extract_strided_slice %36 {offsets = [48, 24], sizes = [16, 8], strides = [1, 1]} : vector<64x64xf32> to vector<16x8xf32>
    %c0_123 = arith.constant 0 : index
    %c0_124 = arith.constant 0 : index
    %c0_125 = arith.constant 0 : index
    %182 = vector.load %arg5[%c0_123, %c0_124, %c0_125] : memref<2x8x16xf32, #tpu.memory_space<vmem>>, vector<1x8x16xf32>
    %183 = vector.shape_cast %182 : vector<1x8x16xf32> to vector<8x16xf32>
    %cst_126 = arith.constant dense<0.000000e+00> : vector<16x16xf32>
    %184 = tpu.matmul %180, %183, %cst_126 {dimension_numbers = #tpu.dot_dimension_numbers<[1], [0], [0], [1], [0, 0, 1, 1], [], []>} : vector<16x8xf32>, vector<8x16xf32>, vector<16x16xf32> -> vector<16x16xf32>
    %c1_127 = arith.constant 1 : index
    %c0_128 = arith.constant 0 : index
    %c0_129 = arith.constant 0 : index
    %185 = vector.load %arg5[%c1_127, %c0_128, %c0_129] : memref<2x8x16xf32, #tpu.memory_space<vmem>>, vector<1x8x16xf32>
    %186 = vector.shape_cast %185 : vector<1x8x16xf32> to vector<8x16xf32>
    %cst_130 = arith.constant dense<0.000000e+00> : vector<16x16xf32>
    %187 = tpu.matmul %181, %186, %cst_130 {dimension_numbers = #tpu.dot_dimension_numbers<[1], [0], [0], [1], [0, 0, 1, 1], [], []>} : vector<16x8xf32>, vector<8x16xf32>, vector<16x16xf32> -> vector<16x16xf32>
    %188 = arith.addf %184, %187 : vector<16x16xf32>
    %189 = vector.broadcast %29 : vector<16x1xf32> to vector<16x16xf32>
    %190 = arith.addf %188, %189 : vector<16x16xf32>
    %191 = arith.truncf %190 : vector<16x16xf32> to vector<16x16xbf16>
    %c16_131 = arith.constant 16 : index
    %c240 = arith.constant 240 : index
    %192 = vector.load %arg11[%c16_131, %c240] : memref<32x512xbf16, #tpu.memory_space<vmem>>, vector<16x16xbf16>
    tpu.vector_store %arg11[%c16_131, %c240], %191 {strides = array<i32>} : memref<32x512xbf16, #tpu.memory_space<vmem>>, vector<16x16xbf16>,
    %193 = vector.extract_strided_slice %36 {offsets = [32, 32], sizes = [16, 8], strides = [1, 1]} : vector<64x64xf32> to vector<16x8xf32>
    %194 = vector.extract_strided_slice %36 {offsets = [48, 32], sizes = [16, 8], strides = [1, 1]} : vector<64x64xf32> to vector<16x8xf32>
    %c0_132 = arith.constant 0 : index
    %c0_133 = arith.constant 0 : index
    %c0_134 = arith.constant 0 : index
    %195 = vector.load %arg5[%c0_132, %c0_133, %c0_134] : memref<2x8x16xf32, #tpu.memory_space<vmem>>, vector<1x8x16xf32>
    %196 = vector.shape_cast %195 : vector<1x8x16xf32> to vector<8x16xf32>
    %cst_135 = arith.constant dense<0.000000e+00> : vector<16x16xf32>
    %197 = tpu.matmul %193, %196, %cst_135 {dimension_numbers = #tpu.dot_dimension_numbers<[1], [0], [0], [1], [0, 0, 1, 1], [], []>} : vector<16x8xf32>, vector<8x16xf32>, vector<16x16xf32> -> vector<16x16xf32>
    %c1_136 = arith.constant 1 : index
    %c0_137 = arith.constant 0 : index
    %c0_138 = arith.constant 0 : index
    %198 = vector.load %arg5[%c1_136, %c0_137, %c0_138] : memref<2x8x16xf32, #tpu.memory_space<vmem>>, vector<1x8x16xf32>
    %199 = vector.shape_cast %198 : vector<1x8x16xf32> to vector<8x16xf32>
    %cst_139 = arith.constant dense<0.000000e+00> : vector<16x16xf32>
    %200 = tpu.matmul %194, %199, %cst_139 {dimension_numbers = #tpu.dot_dimension_numbers<[1], [0], [0], [1], [0, 0, 1, 1], [], []>} : vector<16x8xf32>, vector<8x16xf32>, vector<16x16xf32> -> vector<16x16xf32>
    %201 = arith.addf %197, %200 : vector<16x16xf32>
    %202 = vector.broadcast %29 : vector<16x1xf32> to vector<16x16xf32>
    %203 = arith.addf %201, %202 : vector<16x16xf32>
    %204 = arith.truncf %203 : vector<16x16xf32> to vector<16x16xbf16>
    %c16_140 = arith.constant 16 : index
    %c272 = arith.constant 272 : index
    %205 = vector.load %arg11[%c16_140, %c272] : memref<32x512xbf16, #tpu.memory_space<vmem>>, vector<16x16xbf16>
    tpu.vector_store %arg11[%c16_140, %c272], %204 {strides = array<i32>} : memref<32x512xbf16, #tpu.memory_space<vmem>>, vector<16x16xbf16>,
    %206 = vector.extract_strided_slice %36 {offsets = [32, 40], sizes = [16, 8], strides = [1, 1]} : vector<64x64xf32> to vector<16x8xf32>
    %207 = vector.extract_strided_slice %36 {offsets = [48, 40], sizes = [16, 8], strides = [1, 1]} : vector<64x64xf32> to vector<16x8xf32>
    %c0_141 = arith.constant 0 : index
    %c0_142 = arith.constant 0 : index
    %c0_143 = arith.constant 0 : index
    %208 = vector.load %arg5[%c0_141, %c0_142, %c0_143] : memref<2x8x16xf32, #tpu.memory_space<vmem>>, vector<1x8x16xf32>
    %209 = vector.shape_cast %208 : vector<1x8x16xf32> to vector<8x16xf32>
    %cst_144 = arith.constant dense<0.000000e+00> : vector<16x16xf32>
    %210 = tpu.matmul %206, %209, %cst_144 {dimension_numbers = #tpu.dot_dimension_numbers<[1], [0], [0], [1], [0, 0, 1, 1], [], []>} : vector<16x8xf32>, vector<8x16xf32>, vector<16x16xf32> -> vector<16x16xf32>
    %c1_145 = arith.constant 1 : index
    %c0_146 = arith.constant 0 : index
    %c0_147 = arith.constant 0 : index
    %211 = vector.load %arg5[%c1_145, %c0_146, %c0_147] : memref<2x8x16xf32, #tpu.memory_space<vmem>>, vector<1x8x16xf32>
    %212 = vector.shape_cast %211 : vector<1x8x16xf32> to vector<8x16xf32>
    %cst_148 = arith.constant dense<0.000000e+00> : vector<16x16xf32>
    %213 = tpu.matmul %207, %212, %cst_148 {dimension_numbers = #tpu.dot_dimension_numbers<[1], [0], [0], [1], [0, 0, 1, 1], [], []>} : vector<16x8xf32>, vector<8x16xf32>, vector<16x16xf32> -> vector<16x16xf32>
    %214 = arith.addf %210, %213 : vector<16x16xf32>
    %215 = vector.broadcast %29 : vector<16x1xf32> to vector<16x16xf32>
    %216 = arith.addf %214, %215 : vector<16x16xf32>
    %217 = arith.truncf %216 : vector<16x16xf32> to vector<16x16xbf16>
    %c16_149 = arith.constant 16 : index
    %c304 = arith.constant 304 : index
    %218 = vector.load %arg11[%c16_149, %c304] : memref<32x512xbf16, #tpu.memory_space<vmem>>, vector<16x16xbf16>
    tpu.vector_store %arg11[%c16_149, %c304], %217 {strides = array<i32>} : memref<32x512xbf16, #tpu.memory_space<vmem>>, vector<16x16xbf16>,
    %219 = vector.extract_strided_slice %36 {offsets = [32, 48], sizes = [16, 8], strides = [1, 1]} : vector<64x64xf32> to vector<16x8xf32>
    %220 = vector.extract_strided_slice %36 {offsets = [48, 48], sizes = [16, 8], strides = [1, 1]} : vector<64x64xf32> to vector<16x8xf32>
    %c0_150 = arith.constant 0 : index
    %c0_151 = arith.constant 0 : index
    %c0_152 = arith.constant 0 : index
    %221 = vector.load %arg5[%c0_150, %c0_151, %c0_152] : memref<2x8x16xf32, #tpu.memory_space<vmem>>, vector<1x8x16xf32>
    %222 = vector.shape_cast %221 : vector<1x8x16xf32> to vector<8x16xf32>
    %cst_153 = arith.constant dense<0.000000e+00> : vector<16x16xf32>
    %223 = tpu.matmul %219, %222, %cst_153 {dimension_numbers = #tpu.dot_dimension_numbers<[1], [0], [0], [1], [0, 0, 1, 1], [], []>} : vector<16x8xf32>, vector<8x16xf32>, vector<16x16xf32> -> vector<16x16xf32>
    %c1_154 = arith.constant 1 : index
    %c0_155 = arith.constant 0 : index
    %c0_156 = arith.constant 0 : index
    %224 = vector.load %arg5[%c1_154, %c0_155, %c0_156] : memref<2x8x16xf32, #tpu.memory_space<vmem>>, vector<1x8x16xf32>
    %225 = vector.shape_cast %224 : vector<1x8x16xf32> to vector<8x16xf32>
    %cst_157 = arith.constant dense<0.000000e+00> : vector<16x16xf32>
    %226 = tpu.matmul %220, %225, %cst_157 {dimension_numbers = #tpu.dot_dimension_numbers<[1], [0], [0], [1], [0, 0, 1, 1], [], []>} : vector<16x8xf32>, vector<8x16xf32>, vector<16x16xf32> -> vector<16x16xf32>
    %227 = arith.addf %223, %226 : vector<16x16xf32>
    %228 = vector.broadcast %29 : vector<16x1xf32> to vector<16x16xf32>
    %229 = arith.addf %227, %228 : vector<16x16xf32>
    %230 = arith.truncf %229 : vector<16x16xf32> to vector<16x16xbf16>
    %c16_158 = arith.constant 16 : index
    %c336 = arith.constant 336 : index
    %231 = vector.load %arg11[%c16_158, %c336] : memref<32x512xbf16, #tpu.memory_space<vmem>>, vector<16x16xbf16>
    tpu.vector_store %arg11[%c16_158, %c336], %230 {strides = array<i32>} : memref<32x512xbf16, #tpu.memory_space<vmem>>, vector<16x16xbf16>,
    %232 = vector.extract_strided_slice %36 {offsets = [32, 56], sizes = [16, 8], strides = [1, 1]} : vector<64x64xf32> to vector<16x8xf32>
    %233 = vector.extract_strided_slice %36 {offsets = [48, 56], sizes = [16, 8], strides = [1, 1]} : vector<64x64xf32> to vector<16x8xf32>
    %c0_159 = arith.constant 0 : index
    %c0_160 = arith.constant 0 : index
    %c0_161 = arith.constant 0 : index
    %234 = vector.load %arg5[%c0_159, %c0_160, %c0_161] : memref<2x8x16xf32, #tpu.memory_space<vmem>>, vector<1x8x16xf32>
    %235 = vector.shape_cast %234 : vector<1x8x16xf32> to vector<8x16xf32>
    %cst_162 = arith.constant dense<0.000000e+00> : vector<16x16xf32>
    %236 = tpu.matmul %232, %235, %cst_162 {dimension_numbers = #tpu.dot_dimension_numbers<[1], [0], [0], [1], [0, 0, 1, 1], [], []>} : vector<16x8xf32>, vector<8x16xf32>, vector<16x16xf32> -> vector<16x16xf32>
    %c1_163 = arith.constant 1 : index
    %c0_164 = arith.constant 0 : index
    %c0_165 = arith.constant 0 : index
    %237 = vector.load %arg5[%c1_163, %c0_164, %c0_165] : memref<2x8x16xf32, #tpu.memory_space<vmem>>, vector<1x8x16xf32>
    %238 = vector.shape_cast %237 : vector<1x8x16xf32> to vector<8x16xf32>
    %cst_166 = arith.constant dense<0.000000e+00> : vector<16x16xf32>
    %239 = tpu.matmul %233, %238, %cst_166 {dimension_numbers = #tpu.dot_dimension_numbers<[1], [0], [0], [1], [0, 0, 1, 1], [], []>} : vector<16x8xf32>, vector<8x16xf32>, vector<16x16xf32> -> vector<16x16xf32>
    %240 = arith.addf %236, %239 : vector<16x16xf32>
    %241 = vector.broadcast %29 : vector<16x1xf32> to vector<16x16xf32>
    %242 = arith.addf %240, %241 : vector<16x16xf32>
    %243 = arith.truncf %242 : vector<16x16xf32> to vector<16x16xbf16>
    %c16_167 = arith.constant 16 : index
    %c368 = arith.constant 368 : index
    %244 = vector.load %arg11[%c16_167, %c368] : memref<32x512xbf16, #tpu.memory_space<vmem>>, vector<16x16xbf16>
    tpu.vector_store %arg11[%c16_167, %c368], %243 {strides = array<i32>} : memref<32x512xbf16, #tpu.memory_space<vmem>>, vector<16x16xbf16>,
    %c0_168 = arith.constant 0 : index
    %c111 = arith.constant 111 : index
    %245 = vector.load %arg11[%c0_168, %c111] : memref<32x512xbf16, #tpu.memory_space<vmem>>, vector<32x256xbf16>
    %cst_169 = arith.constant 0.000000e+00 : bf16
    %246 = vector.broadcast %cst_169 : bf16 to vector<32x256xbf16>
    %247 = vector.shape_cast %18 : vector<1x256xi1> to vector<1x256xi1>
    %248 = vector.broadcast %247 : vector<1x256xi1> to vector<32x256xi1>
    %249 = arith.select %248, %245, %246 : vector<32x256xi1>, vector<32x256xbf16>
    %c0_170 = arith.constant 0 : index
    %c0_171 = arith.constant 0 : index
    %c0_172 = arith.constant 0 : index
    %250 = vector.load %arg6[%c0_170, %c0_171, %c0_172] : memref<9x16x32xbf16, #tpu.memory_space<vmem>>, vector<1x16x32xbf16>
    %251 = vector.shape_cast %250 : vector<1x16x32xbf16> to vector<16x32xbf16>
    %cst_173 = arith.constant dense<0.000000e+00> : vector<16x256xf32>
    %252 = tpu.matmul %251, %249, %cst_173 {dimension_numbers = #tpu.dot_dimension_numbers<[1], [0], [0], [1], [0, 0, 1, 1], [], []>} : vector<16x32xbf16>, vector<32x256xbf16>, vector<16x256xf32> -> vector<16x256xf32>
    %c0_174 = arith.constant 0 : index
    %c112 = arith.constant 112 : index
    %253 = vector.load %arg11[%c0_174, %c112] : memref<32x512xbf16, #tpu.memory_space<vmem>>, vector<32x256xbf16>
    %c1_175 = arith.constant 1 : index
    %c0_176 = arith.constant 0 : index
    %c0_177 = arith.constant 0 : index
    %254 = vector.load %arg6[%c1_175, %c0_176, %c0_177] : memref<9x16x32xbf16, #tpu.memory_space<vmem>>, vector<1x16x32xbf16>
    %255 = vector.shape_cast %254 : vector<1x16x32xbf16> to vector<16x32xbf16>
    %cst_178 = arith.constant dense<0.000000e+00> : vector<16x256xf32>
    %256 = tpu.matmul %255, %253, %cst_178 {dimension_numbers = #tpu.dot_dimension_numbers<[1], [0], [0], [1], [0, 0, 1, 1], [], []>} : vector<16x32xbf16>, vector<32x256xbf16>, vector<16x256xf32> -> vector<16x256xf32>
    %257 = arith.addf %252, %256 : vector<16x256xf32>
    %c0_179 = arith.constant 0 : index
    %c113 = arith.constant 113 : index
    %258 = vector.load %arg11[%c0_179, %c113] : memref<32x512xbf16, #tpu.memory_space<vmem>>, vector<32x256xbf16>
    %cst_180 = arith.constant 0.000000e+00 : bf16
    %259 = vector.broadcast %cst_180 : bf16 to vector<32x256xbf16>
    %260 = vector.shape_cast %20 : vector<1x256xi1> to vector<1x256xi1>
    %261 = vector.broadcast %260 : vector<1x256xi1> to vector<32x256xi1>
    %262 = arith.select %261, %258, %259 : vector<32x256xi1>, vector<32x256xbf16>
    %c2 = arith.constant 2 : index
    %c0_181 = arith.constant 0 : index
    %c0_182 = arith.constant 0 : index
    %263 = vector.load %arg6[%c2, %c0_181, %c0_182] : memref<9x16x32xbf16, #tpu.memory_space<vmem>>, vector<1x16x32xbf16>
    %264 = vector.shape_cast %263 : vector<1x16x32xbf16> to vector<16x32xbf16>
    %cst_183 = arith.constant dense<0.000000e+00> : vector<16x256xf32>
    %265 = tpu.matmul %264, %262, %cst_183 {dimension_numbers = #tpu.dot_dimension_numbers<[1], [0], [0], [1], [0, 0, 1, 1], [], []>} : vector<16x32xbf16>, vector<32x256xbf16>, vector<16x256xf32> -> vector<16x256xf32>
    %266 = arith.addf %257, %265 : vector<16x256xf32>
    %c0_184 = arith.constant 0 : index
    %c127 = arith.constant 127 : index
    %267 = vector.load %arg11[%c0_184, %c127] : memref<32x512xbf16, #tpu.memory_space<vmem>>, vector<32x256xbf16>
    %cst_185 = arith.constant 0.000000e+00 : bf16
    %268 = vector.broadcast %cst_185 : bf16 to vector<32x256xbf16>
    %269 = vector.shape_cast %18 : vector<1x256xi1> to vector<1x256xi1>
    %270 = vector.broadcast %269 : vector<1x256xi1> to vector<32x256xi1>
    %271 = arith.select %270, %267, %268 : vector<32x256xi1>, vector<32x256xbf16>
    %c3 = arith.constant 3 : index
    %c0_186 = arith.constant 0 : index
    %c0_187 = arith.constant 0 : index
    %272 = vector.load %arg6[%c3, %c0_186, %c0_187] : memref<9x16x32xbf16, #tpu.memory_space<vmem>>, vector<1x16x32xbf16>
    %273 = vector.shape_cast %272 : vector<1x16x32xbf16> to vector<16x32xbf16>
    %cst_188 = arith.constant dense<0.000000e+00> : vector<16x256xf32>
    %274 = tpu.matmul %273, %271, %cst_188 {dimension_numbers = #tpu.dot_dimension_numbers<[1], [0], [0], [1], [0, 0, 1, 1], [], []>} : vector<16x32xbf16>, vector<32x256xbf16>, vector<16x256xf32> -> vector<16x256xf32>
    %275 = arith.addf %266, %274 : vector<16x256xf32>
    %c0_189 = arith.constant 0 : index
    %c128_190 = arith.constant 128 : index
    %276 = vector.load %arg11[%c0_189, %c128_190] : memref<32x512xbf16, #tpu.memory_space<vmem>>, vector<32x256xbf16>
    %c4 = arith.constant 4 : index
    %c0_191 = arith.constant 0 : index
    %c0_192 = arith.constant 0 : index
    %277 = vector.load %arg6[%c4, %c0_191, %c0_192] : memref<9x16x32xbf16, #tpu.memory_space<vmem>>, vector<1x16x32xbf16>
    %278 = vector.shape_cast %277 : vector<1x16x32xbf16> to vector<16x32xbf16>
    %cst_193 = arith.constant dense<0.000000e+00> : vector<16x256xf32>
    %279 = tpu.matmul %278, %276, %cst_193 {dimension_numbers = #tpu.dot_dimension_numbers<[1], [0], [0], [1], [0, 0, 1, 1], [], []>} : vector<16x32xbf16>, vector<32x256xbf16>, vector<16x256xf32> -> vector<16x256xf32>
    %280 = arith.addf %275, %279 : vector<16x256xf32>
    %c0_194 = arith.constant 0 : index
    %c129 = arith.constant 129 : index
    %281 = vector.load %arg11[%c0_194, %c129] : memref<32x512xbf16, #tpu.memory_space<vmem>>, vector<32x256xbf16>
    %cst_195 = arith.constant 0.000000e+00 : bf16
    %282 = vector.broadcast %cst_195 : bf16 to vector<32x256xbf16>
    %283 = vector.shape_cast %20 : vector<1x256xi1> to vector<1x256xi1>
    %284 = vector.broadcast %283 : vector<1x256xi1> to vector<32x256xi1>
    %285 = arith.select %284, %281, %282 : vector<32x256xi1>, vector<32x256xbf16>
    %c5 = arith.constant 5 : index
    %c0_196 = arith.constant 0 : index
    %c0_197 = arith.constant 0 : index
    %286 = vector.load %arg6[%c5, %c0_196, %c0_197] : memref<9x16x32xbf16, #tpu.memory_space<vmem>>, vector<1x16x32xbf16>
    %287 = vector.shape_cast %286 : vector<1x16x32xbf16> to vector<16x32xbf16>
    %cst_198 = arith.constant dense<0.000000e+00> : vector<16x256xf32>
    %288 = tpu.matmul %287, %285, %cst_198 {dimension_numbers = #tpu.dot_dimension_numbers<[1], [0], [0], [1], [0, 0, 1, 1], [], []>} : vector<16x32xbf16>, vector<32x256xbf16>, vector<16x256xf32> -> vector<16x256xf32>
    %289 = arith.addf %280, %288 : vector<16x256xf32>
    %c0_199 = arith.constant 0 : index
    %c143 = arith.constant 143 : index
    %290 = vector.load %arg11[%c0_199, %c143] : memref<32x512xbf16, #tpu.memory_space<vmem>>, vector<32x256xbf16>
    %cst_200 = arith.constant 0.000000e+00 : bf16
    %291 = vector.broadcast %cst_200 : bf16 to vector<32x256xbf16>
    %292 = vector.shape_cast %18 : vector<1x256xi1> to vector<1x256xi1>
    %293 = vector.broadcast %292 : vector<1x256xi1> to vector<32x256xi1>
    %294 = arith.select %293, %290, %291 : vector<32x256xi1>, vector<32x256xbf16>
    %c6 = arith.constant 6 : index
    %c0_201 = arith.constant 0 : index
    %c0_202 = arith.constant 0 : index
    %295 = vector.load %arg6[%c6, %c0_201, %c0_202] : memref<9x16x32xbf16, #tpu.memory_space<vmem>>, vector<1x16x32xbf16>
    %296 = vector.shape_cast %295 : vector<1x16x32xbf16> to vector<16x32xbf16>
    %cst_203 = arith.constant dense<0.000000e+00> : vector<16x256xf32>
    %297 = tpu.matmul %296, %294, %cst_203 {dimension_numbers = #tpu.dot_dimension_numbers<[1], [0], [0], [1], [0, 0, 1, 1], [], []>} : vector<16x32xbf16>, vector<32x256xbf16>, vector<16x256xf32> -> vector<16x256xf32>
    %298 = arith.addf %289, %297 : vector<16x256xf32>
    %c0_204 = arith.constant 0 : index
    %c144_205 = arith.constant 144 : index
    %299 = vector.load %arg11[%c0_204, %c144_205] : memref<32x512xbf16, #tpu.memory_space<vmem>>, vector<32x256xbf16>
    %c7 = arith.constant 7 : index
    %c0_206 = arith.constant 0 : index
    %c0_207 = arith.constant 0 : index
    %300 = vector.load %arg6[%c7, %c0_206, %c0_207] : memref<9x16x32xbf16, #tpu.memory_space<vmem>>, vector<1x16x32xbf16>
    %301 = vector.shape_cast %300 : vector<1x16x32xbf16> to vector<16x32xbf16>
    %cst_208 = arith.constant dense<0.000000e+00> : vector<16x256xf32>
    %302 = tpu.matmul %301, %299, %cst_208 {dimension_numbers = #tpu.dot_dimension_numbers<[1], [0], [0], [1], [0, 0, 1, 1], [], []>} : vector<16x32xbf16>, vector<32x256xbf16>, vector<16x256xf32> -> vector<16x256xf32>
    %303 = arith.addf %298, %302 : vector<16x256xf32>
    %c0_209 = arith.constant 0 : index
    %c145 = arith.constant 145 : index
    %304 = vector.load %arg11[%c0_209, %c145] : memref<32x512xbf16, #tpu.memory_space<vmem>>, vector<32x256xbf16>
    %cst_210 = arith.constant 0.000000e+00 : bf16
    %305 = vector.broadcast %cst_210 : bf16 to vector<32x256xbf16>
    %306 = vector.shape_cast %20 : vector<1x256xi1> to vector<1x256xi1>
    %307 = vector.broadcast %306 : vector<1x256xi1> to vector<32x256xi1>
    %308 = arith.select %307, %304, %305 : vector<32x256xi1>, vector<32x256xbf16>
    %c8 = arith.constant 8 : index
    %c0_211 = arith.constant 0 : index
    %c0_212 = arith.constant 0 : index
    %309 = vector.load %arg6[%c8, %c0_211, %c0_212] : memref<9x16x32xbf16, #tpu.memory_space<vmem>>, vector<1x16x32xbf16>
    %310 = vector.shape_cast %309 : vector<1x16x32xbf16> to vector<16x32xbf16>
    %cst_213 = arith.constant dense<0.000000e+00> : vector<16x256xf32>
    %311 = tpu.matmul %310, %308, %cst_213 {dimension_numbers = #tpu.dot_dimension_numbers<[1], [0], [0], [1], [0, 0, 1, 1], [], []>} : vector<16x32xbf16>, vector<32x256xbf16>, vector<16x256xf32> -> vector<16x256xf32>
    %312 = arith.addf %303, %311 : vector<16x256xf32>
    %c0_214 = arith.constant 0 : index
    %c0_215 = arith.constant 0 : index
    %313 = vector.load %arg7[%c0_214, %c0_215] : memref<16x1xf32, #tpu.memory_space<vmem>>, vector<16x1xf32>
    %314 = vector.broadcast %313 : vector<16x1xf32> to vector<16x256xf32>
    %315 = arith.addf %312, %314 : vector<16x256xf32>
    %cst_216 = arith.constant 0.000000e+00 : f32
    %316 = vector.broadcast %cst_216 : f32 to vector<16x256xf32>
    %317 = arith.maximumf %315, %316 : vector<16x256xf32>
    %318 = arith.truncf %317 : vector<16x256xf32> to vector<16x256xbf16>
    %c0_217 = arith.constant 0 : index
    %c128_218 = arith.constant 128 : index
    %319 = vector.load %arg12[%c0_217, %c128_218] : memref<16x512xbf16, #tpu.memory_space<vmem>>, vector<16x256xbf16>
    tpu.vector_store %arg12[%c0_217, %c128_218], %318 {strides = array<i32>} : memref<16x512xbf16, #tpu.memory_space<vmem>>, vector<16x256xbf16>,
    %c0_219 = arith.constant 0 : index
    %c111_220 = arith.constant 111 : index
    %320 = vector.load %arg12[%c0_219, %c111_220] : memref<16x512xbf16, #tpu.memory_space<vmem>>, vector<16x256xbf16>
    %cst_221 = arith.constant 0.000000e+00 : bf16
    %321 = vector.broadcast %cst_221 : bf16 to vector<16x256xbf16>
    %322 = vector.shape_cast %18 : vector<1x256xi1> to vector<1x256xi1>
    %323 = vector.broadcast %322 : vector<1x256xi1> to vector<16x256xi1>
    %324 = arith.select %323, %320, %321 : vector<16x256xi1>, vector<16x256xbf16>
    %c0_222 = arith.constant 0 : index
    %c0_223 = arith.constant 0 : index
    %c0_224 = arith.constant 0 : index
    %325 = vector.load %arg8[%c0_222, %c0_223, %c0_224] : memref<9x16x16xbf16, #tpu.memory_space<vmem>>, vector<1x16x16xbf16>
    %326 = vector.shape_cast %325 : vector<1x16x16xbf16> to vector<16x16xbf16>
    %cst_225 = arith.constant dense<0.000000e+00> : vector<16x256xf32>
    %327 = tpu.matmul %326, %324, %cst_225 {dimension_numbers = #tpu.dot_dimension_numbers<[1], [0], [0], [1], [0, 0, 1, 1], [], []>} : vector<16x16xbf16>, vector<16x256xbf16>, vector<16x256xf32> -> vector<16x256xf32>
    %c0_226 = arith.constant 0 : index
    %c112_227 = arith.constant 112 : index
    %328 = vector.load %arg12[%c0_226, %c112_227] : memref<16x512xbf16, #tpu.memory_space<vmem>>, vector<16x256xbf16>
    %c1_228 = arith.constant 1 : index
    %c0_229 = arith.constant 0 : index
    %c0_230 = arith.constant 0 : index
    %329 = vector.load %arg8[%c1_228, %c0_229, %c0_230] : memref<9x16x16xbf16, #tpu.memory_space<vmem>>, vector<1x16x16xbf16>
    %330 = vector.shape_cast %329 : vector<1x16x16xbf16> to vector<16x16xbf16>
    %cst_231 = arith.constant dense<0.000000e+00> : vector<16x256xf32>
    %331 = tpu.matmul %330, %328, %cst_231 {dimension_numbers = #tpu.dot_dimension_numbers<[1], [0], [0], [1], [0, 0, 1, 1], [], []>} : vector<16x16xbf16>, vector<16x256xbf16>, vector<16x256xf32> -> vector<16x256xf32>
    %332 = arith.addf %327, %331 : vector<16x256xf32>
    %c0_232 = arith.constant 0 : index
    %c113_233 = arith.constant 113 : index
    %333 = vector.load %arg12[%c0_232, %c113_233] : memref<16x512xbf16, #tpu.memory_space<vmem>>, vector<16x256xbf16>
    %cst_234 = arith.constant 0.000000e+00 : bf16
    %334 = vector.broadcast %cst_234 : bf16 to vector<16x256xbf16>
    %335 = vector.shape_cast %20 : vector<1x256xi1> to vector<1x256xi1>
    %336 = vector.broadcast %335 : vector<1x256xi1> to vector<16x256xi1>
    %337 = arith.select %336, %333, %334 : vector<16x256xi1>, vector<16x256xbf16>
    %c2_235 = arith.constant 2 : index
    %c0_236 = arith.constant 0 : index
    %c0_237 = arith.constant 0 : index
    %338 = vector.load %arg8[%c2_235, %c0_236, %c0_237] : memref<9x16x16xbf16, #tpu.memory_space<vmem>>, vector<1x16x16xbf16>
    %339 = vector.shape_cast %338 : vector<1x16x16xbf16> to vector<16x16xbf16>
    %cst_238 = arith.constant dense<0.000000e+00> : vector<16x256xf32>
    %340 = tpu.matmul %339, %337, %cst_238 {dimension_numbers = #tpu.dot_dimension_numbers<[1], [0], [0], [1], [0, 0, 1, 1], [], []>} : vector<16x16xbf16>, vector<16x256xbf16>, vector<16x256xf32> -> vector<16x256xf32>
    %341 = arith.addf %332, %340 : vector<16x256xf32>
    %c0_239 = arith.constant 0 : index
    %c127_240 = arith.constant 127 : index
    %342 = vector.load %arg12[%c0_239, %c127_240] : memref<16x512xbf16, #tpu.memory_space<vmem>>, vector<16x256xbf16>
    %cst_241 = arith.constant 0.000000e+00 : bf16
    %343 = vector.broadcast %cst_241 : bf16 to vector<16x256xbf16>
    %344 = vector.shape_cast %18 : vector<1x256xi1> to vector<1x256xi1>
    %345 = vector.broadcast %344 : vector<1x256xi1> to vector<16x256xi1>
    %346 = arith.select %345, %342, %343 : vector<16x256xi1>, vector<16x256xbf16>
    %c3_242 = arith.constant 3 : index
    %c0_243 = arith.constant 0 : index
    %c0_244 = arith.constant 0 : index
    %347 = vector.load %arg8[%c3_242, %c0_243, %c0_244] : memref<9x16x16xbf16, #tpu.memory_space<vmem>>, vector<1x16x16xbf16>
    %348 = vector.shape_cast %347 : vector<1x16x16xbf16> to vector<16x16xbf16>
    %cst_245 = arith.constant dense<0.000000e+00> : vector<16x256xf32>
    %349 = tpu.matmul %348, %346, %cst_245 {dimension_numbers = #tpu.dot_dimension_numbers<[1], [0], [0], [1], [0, 0, 1, 1], [], []>} : vector<16x16xbf16>, vector<16x256xbf16>, vector<16x256xf32> -> vector<16x256xf32>
    %350 = arith.addf %341, %349 : vector<16x256xf32>
    %c0_246 = arith.constant 0 : index
    %c128_247 = arith.constant 128 : index
    %351 = vector.load %arg12[%c0_246, %c128_247] : memref<16x512xbf16, #tpu.memory_space<vmem>>, vector<16x256xbf16>
    %c4_248 = arith.constant 4 : index
    %c0_249 = arith.constant 0 : index
    %c0_250 = arith.constant 0 : index
    %352 = vector.load %arg8[%c4_248, %c0_249, %c0_250] : memref<9x16x16xbf16, #tpu.memory_space<vmem>>, vector<1x16x16xbf16>
    %353 = vector.shape_cast %352 : vector<1x16x16xbf16> to vector<16x16xbf16>
    %cst_251 = arith.constant dense<0.000000e+00> : vector<16x256xf32>
    %354 = tpu.matmul %353, %351, %cst_251 {dimension_numbers = #tpu.dot_dimension_numbers<[1], [0], [0], [1], [0, 0, 1, 1], [], []>} : vector<16x16xbf16>, vector<16x256xbf16>, vector<16x256xf32> -> vector<16x256xf32>
    %355 = arith.addf %350, %354 : vector<16x256xf32>
    %c0_252 = arith.constant 0 : index
    %c129_253 = arith.constant 129 : index
    %356 = vector.load %arg12[%c0_252, %c129_253] : memref<16x512xbf16, #tpu.memory_space<vmem>>, vector<16x256xbf16>
    %cst_254 = arith.constant 0.000000e+00 : bf16
    %357 = vector.broadcast %cst_254 : bf16 to vector<16x256xbf16>
    %358 = vector.shape_cast %20 : vector<1x256xi1> to vector<1x256xi1>
    %359 = vector.broadcast %358 : vector<1x256xi1> to vector<16x256xi1>
    %360 = arith.select %359, %356, %357 : vector<16x256xi1>, vector<16x256xbf16>
    %c5_255 = arith.constant 5 : index
    %c0_256 = arith.constant 0 : index
    %c0_257 = arith.constant 0 : index
    %361 = vector.load %arg8[%c5_255, %c0_256, %c0_257] : memref<9x16x16xbf16, #tpu.memory_space<vmem>>, vector<1x16x16xbf16>
    %362 = vector.shape_cast %361 : vector<1x16x16xbf16> to vector<16x16xbf16>
    %cst_258 = arith.constant dense<0.000000e+00> : vector<16x256xf32>
    %363 = tpu.matmul %362, %360, %cst_258 {dimension_numbers = #tpu.dot_dimension_numbers<[1], [0], [0], [1], [0, 0, 1, 1], [], []>} : vector<16x16xbf16>, vector<16x256xbf16>, vector<16x256xf32> -> vector<16x256xf32>
    %364 = arith.addf %355, %363 : vector<16x256xf32>
    %c0_259 = arith.constant 0 : index
    %c143_260 = arith.constant 143 : index
    %365 = vector.load %arg12[%c0_259, %c143_260] : memref<16x512xbf16, #tpu.memory_space<vmem>>, vector<16x256xbf16>
    %cst_261 = arith.constant 0.000000e+00 : bf16
    %366 = vector.broadcast %cst_261 : bf16 to vector<16x256xbf16>
    %367 = vector.shape_cast %18 : vector<1x256xi1> to vector<1x256xi1>
    %368 = vector.broadcast %367 : vector<1x256xi1> to vector<16x256xi1>
    %369 = arith.select %368, %365, %366 : vector<16x256xi1>, vector<16x256xbf16>
    %c6_262 = arith.constant 6 : index
    %c0_263 = arith.constant 0 : index
    %c0_264 = arith.constant 0 : index
    %370 = vector.load %arg8[%c6_262, %c0_263, %c0_264] : memref<9x16x16xbf16, #tpu.memory_space<vmem>>, vector<1x16x16xbf16>
    %371 = vector.shape_cast %370 : vector<1x16x16xbf16> to vector<16x16xbf16>
    %cst_265 = arith.constant dense<0.000000e+00> : vector<16x256xf32>
    %372 = tpu.matmul %371, %369, %cst_265 {dimension_numbers = #tpu.dot_dimension_numbers<[1], [0], [0], [1], [0, 0, 1, 1], [], []>} : vector<16x16xbf16>, vector<16x256xbf16>, vector<16x256xf32> -> vector<16x256xf32>
    %373 = arith.addf %364, %372 : vector<16x256xf32>
    %c0_266 = arith.constant 0 : index
    %c144_267 = arith.constant 144 : index
    %374 = vector.load %arg12[%c0_266, %c144_267] : memref<16x512xbf16, #tpu.memory_space<vmem>>, vector<16x256xbf16>
    %c7_268 = arith.constant 7 : index
    %c0_269 = arith.constant 0 : index
    %c0_270 = arith.constant 0 : index
    %375 = vector.load %arg8[%c7_268, %c0_269, %c0_270] : memref<9x16x16xbf16, #tpu.memory_space<vmem>>, vector<1x16x16xbf16>
    %376 = vector.shape_cast %375 : vector<1x16x16xbf16> to vector<16x16xbf16>
    %cst_271 = arith.constant dense<0.000000e+00> : vector<16x256xf32>
    %377 = tpu.matmul %376, %374, %cst_271 {dimension_numbers = #tpu.dot_dimension_numbers<[1], [0], [0], [1], [0, 0, 1, 1], [], []>} : vector<16x16xbf16>, vector<16x256xbf16>, vector<16x256xf32> -> vector<16x256xf32>
    %378 = arith.addf %373, %377 : vector<16x256xf32>
    %c0_272 = arith.constant 0 : index
    %c145_273 = arith.constant 145 : index
    %379 = vector.load %arg12[%c0_272, %c145_273] : memref<16x512xbf16, #tpu.memory_space<vmem>>, vector<16x256xbf16>
    %cst_274 = arith.constant 0.000000e+00 : bf16
    %380 = vector.broadcast %cst_274 : bf16 to vector<16x256xbf16>
    %381 = vector.shape_cast %20 : vector<1x256xi1> to vector<1x256xi1>
    %382 = vector.broadcast %381 : vector<1x256xi1> to vector<16x256xi1>
    %383 = arith.select %382, %379, %380 : vector<16x256xi1>, vector<16x256xbf16>
    %c8_275 = arith.constant 8 : index
    %c0_276 = arith.constant 0 : index
    %c0_277 = arith.constant 0 : index
    %384 = vector.load %arg8[%c8_275, %c0_276, %c0_277] : memref<9x16x16xbf16, #tpu.memory_space<vmem>>, vector<1x16x16xbf16>
    %385 = vector.shape_cast %384 : vector<1x16x16xbf16> to vector<16x16xbf16>
    %cst_278 = arith.constant dense<0.000000e+00> : vector<16x256xf32>
    %386 = tpu.matmul %385, %383, %cst_278 {dimension_numbers = #tpu.dot_dimension_numbers<[1], [0], [0], [1], [0, 0, 1, 1], [], []>} : vector<16x16xbf16>, vector<16x256xbf16>, vector<16x256xf32> -> vector<16x256xf32>
    %387 = arith.addf %378, %386 : vector<16x256xf32>
    %c0_279 = arith.constant 0 : index
    %c0_280 = arith.constant 0 : index
    %388 = vector.load %arg9[%c0_279, %c0_280] : memref<16x1xf32, #tpu.memory_space<vmem>>, vector<16x1xf32>
    %389 = vector.broadcast %388 : vector<16x1xf32> to vector<16x256xf32>
    %390 = arith.addf %387, %389 : vector<16x256xf32>
    %cst_281 = arith.constant 0.000000e+00 : f32
    %391 = vector.broadcast %cst_281 : f32 to vector<16x256xf32>
    %392 = arith.maximumf %390, %391 : vector<16x256xf32>
    %c0_282 = arith.constant 0 : index
    %c0_283 = arith.constant 0 : index
    %c0_284 = arith.constant 0 : index
    %393 = vector.load %arg10[%c0_282, %c0_283, %c0_284] : memref<2x16x256xf32, #tpu.memory_space<vmem>>, vector<1x16x256xf32>
    %394 = vector.shape_cast %393 : vector<1x16x256xf32> to vector<16x256xf32>
    %395 = vector.shape_cast %392 : vector<16x256xf32> to vector<1x16x256xf32>
    tpu.vector_store %arg10[%c0_282, %c0_283, %c0_284], %395 {strides = array<i32>} : memref<2x16x256xf32, #tpu.memory_space<vmem>>, vector<1x16x256xf32>,
    %c1_285 = arith.constant 1 : index
    %c0_286 = arith.constant 0 : index
    %c0_287 = arith.constant 0 : index
    %396 = vector.load %arg2[%c1_285, %c0_286, %c0_287] : memref<2x16x256xbf16, #tpu.memory_space<vmem>>, vector<1x16x256xbf16>
    %397 = vector.shape_cast %396 : vector<1x16x256xbf16> to vector<16x256xbf16>
    %c0_288 = arith.constant 0 : index
    %c128_289 = arith.constant 128 : index
    %398 = vector.load %arg11[%c0_288, %c128_289] : memref<32x512xbf16, #tpu.memory_space<vmem>>, vector<16x256xbf16>
    tpu.vector_store %arg11[%c0_288, %c128_289], %397 {strides = array<i32>} : memref<32x512xbf16, #tpu.memory_space<vmem>>, vector<16x256xbf16>,
    %c0_290 = arith.constant 0 : index
    %c0_291 = arith.constant 0 : index
    %399 = vector.load %arg3[%c0_290, %c0_291] : memref<64x16xbf16, #tpu.memory_space<vmem>>, vector<64x16xbf16>
    %c1_292 = arith.constant 1 : index
    %c0_293 = arith.constant 0 : index
    %c0_294 = arith.constant 0 : index
    %400 = vector.load %arg1[%c1_292, %c0_293, %c0_294] : memref<2x16x64xbf16, #tpu.memory_space<vmem>>, vector<1x16x64xbf16>
    %401 = vector.shape_cast %400 : vector<1x16x64xbf16> to vector<16x64xbf16>
    %cst_295 = arith.constant dense<0.000000e+00> : vector<64x64xf32>
    %402 = tpu.matmul %399, %401, %cst_295 {dimension_numbers = #tpu.dot_dimension_numbers<[1], [0], [0], [1], [0, 0, 1, 1], [], []>} : vector<64x16xbf16>, vector<16x64xbf16>, vector<64x64xf32> -> vector<64x64xf32>
    %403 = vector.extract_strided_slice %402 {offsets = [0, 0], sizes = [16, 8], strides = [1, 1]} : vector<64x64xf32> to vector<16x8xf32>
    %404 = vector.extract_strided_slice %402 {offsets = [16, 0], sizes = [16, 8], strides = [1, 1]} : vector<64x64xf32> to vector<16x8xf32>
    %c0_296 = arith.constant 0 : index
    %c0_297 = arith.constant 0 : index
    %c0_298 = arith.constant 0 : index
    %405 = vector.load %arg5[%c0_296, %c0_297, %c0_298] : memref<2x8x16xf32, #tpu.memory_space<vmem>>, vector<1x8x16xf32>
    %406 = vector.shape_cast %405 : vector<1x8x16xf32> to vector<8x16xf32>
    %cst_299 = arith.constant dense<0.000000e+00> : vector<16x16xf32>
    %407 = tpu.matmul %403, %406, %cst_299 {dimension_numbers = #tpu.dot_dimension_numbers<[1], [0], [0], [1], [0, 0, 1, 1], [], []>} : vector<16x8xf32>, vector<8x16xf32>, vector<16x16xf32> -> vector<16x16xf32>
    %c1_300 = arith.constant 1 : index
    %c0_301 = arith.constant 0 : index
    %c0_302 = arith.constant 0 : index
    %408 = vector.load %arg5[%c1_300, %c0_301, %c0_302] : memref<2x8x16xf32, #tpu.memory_space<vmem>>, vector<1x8x16xf32>
    %409 = vector.shape_cast %408 : vector<1x8x16xf32> to vector<8x16xf32>
    %cst_303 = arith.constant dense<0.000000e+00> : vector<16x16xf32>
    %410 = tpu.matmul %404, %409, %cst_303 {dimension_numbers = #tpu.dot_dimension_numbers<[1], [0], [0], [1], [0, 0, 1, 1], [], []>} : vector<16x8xf32>, vector<8x16xf32>, vector<16x16xf32> -> vector<16x16xf32>
    %411 = arith.addf %407, %410 : vector<16x16xf32>
    %412 = vector.broadcast %29 : vector<16x1xf32> to vector<16x16xf32>
    %413 = arith.addf %411, %412 : vector<16x16xf32>
    %414 = arith.truncf %413 : vector<16x16xf32> to vector<16x16xbf16>
    %c16_304 = arith.constant 16 : index
    %c128_305 = arith.constant 128 : index
    %415 = vector.load %arg11[%c16_304, %c128_305] : memref<32x512xbf16, #tpu.memory_space<vmem>>, vector<16x16xbf16>
    tpu.vector_store %arg11[%c16_304, %c128_305], %414 {strides = array<i32>} : memref<32x512xbf16, #tpu.memory_space<vmem>>, vector<16x16xbf16>,
    %416 = vector.extract_strided_slice %402 {offsets = [0, 8], sizes = [16, 8], strides = [1, 1]} : vector<64x64xf32> to vector<16x8xf32>
    %417 = vector.extract_strided_slice %402 {offsets = [16, 8], sizes = [16, 8], strides = [1, 1]} : vector<64x64xf32> to vector<16x8xf32>
    %c0_306 = arith.constant 0 : index
    %c0_307 = arith.constant 0 : index
    %c0_308 = arith.constant 0 : index
    %418 = vector.load %arg5[%c0_306, %c0_307, %c0_308] : memref<2x8x16xf32, #tpu.memory_space<vmem>>, vector<1x8x16xf32>
    %419 = vector.shape_cast %418 : vector<1x8x16xf32> to vector<8x16xf32>
    %cst_309 = arith.constant dense<0.000000e+00> : vector<16x16xf32>
    %420 = tpu.matmul %416, %419, %cst_309 {dimension_numbers = #tpu.dot_dimension_numbers<[1], [0], [0], [1], [0, 0, 1, 1], [], []>} : vector<16x8xf32>, vector<8x16xf32>, vector<16x16xf32> -> vector<16x16xf32>
    %c1_310 = arith.constant 1 : index
    %c0_311 = arith.constant 0 : index
    %c0_312 = arith.constant 0 : index
    %421 = vector.load %arg5[%c1_310, %c0_311, %c0_312] : memref<2x8x16xf32, #tpu.memory_space<vmem>>, vector<1x8x16xf32>
    %422 = vector.shape_cast %421 : vector<1x8x16xf32> to vector<8x16xf32>
    %cst_313 = arith.constant dense<0.000000e+00> : vector<16x16xf32>
    %423 = tpu.matmul %417, %422, %cst_313 {dimension_numbers = #tpu.dot_dimension_numbers<[1], [0], [0], [1], [0, 0, 1, 1], [], []>} : vector<16x8xf32>, vector<8x16xf32>, vector<16x16xf32> -> vector<16x16xf32>
    %424 = arith.addf %420, %423 : vector<16x16xf32>
    %425 = vector.broadcast %29 : vector<16x1xf32> to vector<16x16xf32>
    %426 = arith.addf %424, %425 : vector<16x16xf32>
    %427 = arith.truncf %426 : vector<16x16xf32> to vector<16x16xbf16>
    %c16_314 = arith.constant 16 : index
    %c160_315 = arith.constant 160 : index
    %428 = vector.load %arg11[%c16_314, %c160_315] : memref<32x512xbf16, #tpu.memory_space<vmem>>, vector<16x16xbf16>
    tpu.vector_store %arg11[%c16_314, %c160_315], %427 {strides = array<i32>} : memref<32x512xbf16, #tpu.memory_space<vmem>>, vector<16x16xbf16>,
    %429 = vector.extract_strided_slice %402 {offsets = [0, 16], sizes = [16, 8], strides = [1, 1]} : vector<64x64xf32> to vector<16x8xf32>
    %430 = vector.extract_strided_slice %402 {offsets = [16, 16], sizes = [16, 8], strides = [1, 1]} : vector<64x64xf32> to vector<16x8xf32>
    %c0_316 = arith.constant 0 : index
    %c0_317 = arith.constant 0 : index
    %c0_318 = arith.constant 0 : index
    %431 = vector.load %arg5[%c0_316, %c0_317, %c0_318] : memref<2x8x16xf32, #tpu.memory_space<vmem>>, vector<1x8x16xf32>
    %432 = vector.shape_cast %431 : vector<1x8x16xf32> to vector<8x16xf32>
    %cst_319 = arith.constant dense<0.000000e+00> : vector<16x16xf32>
    %433 = tpu.matmul %429, %432, %cst_319 {dimension_numbers = #tpu.dot_dimension_numbers<[1], [0], [0], [1], [0, 0, 1, 1], [], []>} : vector<16x8xf32>, vector<8x16xf32>, vector<16x16xf32> -> vector<16x16xf32>
    %c1_320 = arith.constant 1 : index
    %c0_321 = arith.constant 0 : index
    %c0_322 = arith.constant 0 : index
    %434 = vector.load %arg5[%c1_320, %c0_321, %c0_322] : memref<2x8x16xf32, #tpu.memory_space<vmem>>, vector<1x8x16xf32>
    %435 = vector.shape_cast %434 : vector<1x8x16xf32> to vector<8x16xf32>
    %cst_323 = arith.constant dense<0.000000e+00> : vector<16x16xf32>
    %436 = tpu.matmul %430, %435, %cst_323 {dimension_numbers = #tpu.dot_dimension_numbers<[1], [0], [0], [1], [0, 0, 1, 1], [], []>} : vector<16x8xf32>, vector<8x16xf32>, vector<16x16xf32> -> vector<16x16xf32>
    %437 = arith.addf %433, %436 : vector<16x16xf32>
    %438 = vector.broadcast %29 : vector<16x1xf32> to vector<16x16xf32>
    %439 = arith.addf %437, %438 : vector<16x16xf32>
    %440 = arith.truncf %439 : vector<16x16xf32> to vector<16x16xbf16>
    %c16_324 = arith.constant 16 : index
    %c192_325 = arith.constant 192 : index
    %441 = vector.load %arg11[%c16_324, %c192_325] : memref<32x512xbf16, #tpu.memory_space<vmem>>, vector<16x16xbf16>
    tpu.vector_store %arg11[%c16_324, %c192_325], %440 {strides = array<i32>} : memref<32x512xbf16, #tpu.memory_space<vmem>>, vector<16x16xbf16>,
    %442 = vector.extract_strided_slice %402 {offsets = [0, 24], sizes = [16, 8], strides = [1, 1]} : vector<64x64xf32> to vector<16x8xf32>
    %443 = vector.extract_strided_slice %402 {offsets = [16, 24], sizes = [16, 8], strides = [1, 1]} : vector<64x64xf32> to vector<16x8xf32>
    %c0_326 = arith.constant 0 : index
    %c0_327 = arith.constant 0 : index
    %c0_328 = arith.constant 0 : index
    %444 = vector.load %arg5[%c0_326, %c0_327, %c0_328] : memref<2x8x16xf32, #tpu.memory_space<vmem>>, vector<1x8x16xf32>
    %445 = vector.shape_cast %444 : vector<1x8x16xf32> to vector<8x16xf32>
    %cst_329 = arith.constant dense<0.000000e+00> : vector<16x16xf32>
    %446 = tpu.matmul %442, %445, %cst_329 {dimension_numbers = #tpu.dot_dimension_numbers<[1], [0], [0], [1], [0, 0, 1, 1], [], []>} : vector<16x8xf32>, vector<8x16xf32>, vector<16x16xf32> -> vector<16x16xf32>
    %c1_330 = arith.constant 1 : index
    %c0_331 = arith.constant 0 : index
    %c0_332 = arith.constant 0 : index
    %447 = vector.load %arg5[%c1_330, %c0_331, %c0_332] : memref<2x8x16xf32, #tpu.memory_space<vmem>>, vector<1x8x16xf32>
    %448 = vector.shape_cast %447 : vector<1x8x16xf32> to vector<8x16xf32>
    %cst_333 = arith.constant dense<0.000000e+00> : vector<16x16xf32>
    %449 = tpu.matmul %443, %448, %cst_333 {dimension_numbers = #tpu.dot_dimension_numbers<[1], [0], [0], [1], [0, 0, 1, 1], [], []>} : vector<16x8xf32>, vector<8x16xf32>, vector<16x16xf32> -> vector<16x16xf32>
    %450 = arith.addf %446, %449 : vector<16x16xf32>
    %451 = vector.broadcast %29 : vector<16x1xf32> to vector<16x16xf32>
    %452 = arith.addf %450, %451 : vector<16x16xf32>
    %453 = arith.truncf %452 : vector<16x16xf32> to vector<16x16xbf16>
    %c16_334 = arith.constant 16 : index
    %c224_335 = arith.constant 224 : index
    %454 = vector.load %arg11[%c16_334, %c224_335] : memref<32x512xbf16, #tpu.memory_space<vmem>>, vector<16x16xbf16>
    tpu.vector_store %arg11[%c16_334, %c224_335], %453 {strides = array<i32>} : memref<32x512xbf16, #tpu.memory_space<vmem>>, vector<16x16xbf16>,
    %455 = vector.extract_strided_slice %402 {offsets = [0, 32], sizes = [16, 8], strides = [1, 1]} : vector<64x64xf32> to vector<16x8xf32>
    %456 = vector.extract_strided_slice %402 {offsets = [16, 32], sizes = [16, 8], strides = [1, 1]} : vector<64x64xf32> to vector<16x8xf32>
    %c0_336 = arith.constant 0 : index
    %c0_337 = arith.constant 0 : index
    %c0_338 = arith.constant 0 : index
    %457 = vector.load %arg5[%c0_336, %c0_337, %c0_338] : memref<2x8x16xf32, #tpu.memory_space<vmem>>, vector<1x8x16xf32>
    %458 = vector.shape_cast %457 : vector<1x8x16xf32> to vector<8x16xf32>
    %cst_339 = arith.constant dense<0.000000e+00> : vector<16x16xf32>
    %459 = tpu.matmul %455, %458, %cst_339 {dimension_numbers = #tpu.dot_dimension_numbers<[1], [0], [0], [1], [0, 0, 1, 1], [], []>} : vector<16x8xf32>, vector<8x16xf32>, vector<16x16xf32> -> vector<16x16xf32>
    %c1_340 = arith.constant 1 : index
    %c0_341 = arith.constant 0 : index
    %c0_342 = arith.constant 0 : index
    %460 = vector.load %arg5[%c1_340, %c0_341, %c0_342] : memref<2x8x16xf32, #tpu.memory_space<vmem>>, vector<1x8x16xf32>
    %461 = vector.shape_cast %460 : vector<1x8x16xf32> to vector<8x16xf32>
    %cst_343 = arith.constant dense<0.000000e+00> : vector<16x16xf32>
    %462 = tpu.matmul %456, %461, %cst_343 {dimension_numbers = #tpu.dot_dimension_numbers<[1], [0], [0], [1], [0, 0, 1, 1], [], []>} : vector<16x8xf32>, vector<8x16xf32>, vector<16x16xf32> -> vector<16x16xf32>
    %463 = arith.addf %459, %462 : vector<16x16xf32>
    %464 = vector.broadcast %29 : vector<16x1xf32> to vector<16x16xf32>
    %465 = arith.addf %463, %464 : vector<16x16xf32>
    %466 = arith.truncf %465 : vector<16x16xf32> to vector<16x16xbf16>
    %c16_344 = arith.constant 16 : index
    %c256_345 = arith.constant 256 : index
    %467 = vector.load %arg11[%c16_344, %c256_345] : memref<32x512xbf16, #tpu.memory_space<vmem>>, vector<16x16xbf16>
    tpu.vector_store %arg11[%c16_344, %c256_345], %466 {strides = array<i32>} : memref<32x512xbf16, #tpu.memory_space<vmem>>, vector<16x16xbf16>,
    %468 = vector.extract_strided_slice %402 {offsets = [0, 40], sizes = [16, 8], strides = [1, 1]} : vector<64x64xf32> to vector<16x8xf32>
    %469 = vector.extract_strided_slice %402 {offsets = [16, 40], sizes = [16, 8], strides = [1, 1]} : vector<64x64xf32> to vector<16x8xf32>
    %c0_346 = arith.constant 0 : index
    %c0_347 = arith.constant 0 : index
    %c0_348 = arith.constant 0 : index
    %470 = vector.load %arg5[%c0_346, %c0_347, %c0_348] : memref<2x8x16xf32, #tpu.memory_space<vmem>>, vector<1x8x16xf32>
    %471 = vector.shape_cast %470 : vector<1x8x16xf32> to vector<8x16xf32>
    %cst_349 = arith.constant dense<0.000000e+00> : vector<16x16xf32>
    %472 = tpu.matmul %468, %471, %cst_349 {dimension_numbers = #tpu.dot_dimension_numbers<[1], [0], [0], [1], [0, 0, 1, 1], [], []>} : vector<16x8xf32>, vector<8x16xf32>, vector<16x16xf32> -> vector<16x16xf32>
    %c1_350 = arith.constant 1 : index
    %c0_351 = arith.constant 0 : index
    %c0_352 = arith.constant 0 : index
    %473 = vector.load %arg5[%c1_350, %c0_351, %c0_352] : memref<2x8x16xf32, #tpu.memory_space<vmem>>, vector<1x8x16xf32>
    %474 = vector.shape_cast %473 : vector<1x8x16xf32> to vector<8x16xf32>
    %cst_353 = arith.constant dense<0.000000e+00> : vector<16x16xf32>
    %475 = tpu.matmul %469, %474, %cst_353 {dimension_numbers = #tpu.dot_dimension_numbers<[1], [0], [0], [1], [0, 0, 1, 1], [], []>} : vector<16x8xf32>, vector<8x16xf32>, vector<16x16xf32> -> vector<16x16xf32>
    %476 = arith.addf %472, %475 : vector<16x16xf32>
    %477 = vector.broadcast %29 : vector<16x1xf32> to vector<16x16xf32>
    %478 = arith.addf %476, %477 : vector<16x16xf32>
    %479 = arith.truncf %478 : vector<16x16xf32> to vector<16x16xbf16>
    %c16_354 = arith.constant 16 : index
    %c288_355 = arith.constant 288 : index
    %480 = vector.load %arg11[%c16_354, %c288_355] : memref<32x512xbf16, #tpu.memory_space<vmem>>, vector<16x16xbf16>
    tpu.vector_store %arg11[%c16_354, %c288_355], %479 {strides = array<i32>} : memref<32x512xbf16, #tpu.memory_space<vmem>>, vector<16x16xbf16>,
    %481 = vector.extract_strided_slice %402 {offsets = [0, 48], sizes = [16, 8], strides = [1, 1]} : vector<64x64xf32> to vector<16x8xf32>
    %482 = vector.extract_strided_slice %402 {offsets = [16, 48], sizes = [16, 8], strides = [1, 1]} : vector<64x64xf32> to vector<16x8xf32>
    %c0_356 = arith.constant 0 : index
    %c0_357 = arith.constant 0 : index
    %c0_358 = arith.constant 0 : index
    %483 = vector.load %arg5[%c0_356, %c0_357, %c0_358] : memref<2x8x16xf32, #tpu.memory_space<vmem>>, vector<1x8x16xf32>
    %484 = vector.shape_cast %483 : vector<1x8x16xf32> to vector<8x16xf32>
    %cst_359 = arith.constant dense<0.000000e+00> : vector<16x16xf32>
    %485 = tpu.matmul %481, %484, %cst_359 {dimension_numbers = #tpu.dot_dimension_numbers<[1], [0], [0], [1], [0, 0, 1, 1], [], []>} : vector<16x8xf32>, vector<8x16xf32>, vector<16x16xf32> -> vector<16x16xf32>
    %c1_360 = arith.constant 1 : index
    %c0_361 = arith.constant 0 : index
    %c0_362 = arith.constant 0 : index
    %486 = vector.load %arg5[%c1_360, %c0_361, %c0_362] : memref<2x8x16xf32, #tpu.memory_space<vmem>>, vector<1x8x16xf32>
    %487 = vector.shape_cast %486 : vector<1x8x16xf32> to vector<8x16xf32>
    %cst_363 = arith.constant dense<0.000000e+00> : vector<16x16xf32>
    %488 = tpu.matmul %482, %487, %cst_363 {dimension_numbers = #tpu.dot_dimension_numbers<[1], [0], [0], [1], [0, 0, 1, 1], [], []>} : vector<16x8xf32>, vector<8x16xf32>, vector<16x16xf32> -> vector<16x16xf32>
    %489 = arith.addf %485, %488 : vector<16x16xf32>
    %490 = vector.broadcast %29 : vector<16x1xf32> to vector<16x16xf32>
    %491 = arith.addf %489, %490 : vector<16x16xf32>
    %492 = arith.truncf %491 : vector<16x16xf32> to vector<16x16xbf16>
    %c16_364 = arith.constant 16 : index
    %c320_365 = arith.constant 320 : index
    %493 = vector.load %arg11[%c16_364, %c320_365] : memref<32x512xbf16, #tpu.memory_space<vmem>>, vector<16x16xbf16>
    tpu.vector_store %arg11[%c16_364, %c320_365], %492 {strides = array<i32>} : memref<32x512xbf16, #tpu.memory_space<vmem>>, vector<16x16xbf16>,
    %494 = vector.extract_strided_slice %402 {offsets = [0, 56], sizes = [16, 8], strides = [1, 1]} : vector<64x64xf32> to vector<16x8xf32>
    %495 = vector.extract_strided_slice %402 {offsets = [16, 56], sizes = [16, 8], strides = [1, 1]} : vector<64x64xf32> to vector<16x8xf32>
    %c0_366 = arith.constant 0 : index
    %c0_367 = arith.constant 0 : index
    %c0_368 = arith.constant 0 : index
    %496 = vector.load %arg5[%c0_366, %c0_367, %c0_368] : memref<2x8x16xf32, #tpu.memory_space<vmem>>, vector<1x8x16xf32>
    %497 = vector.shape_cast %496 : vector<1x8x16xf32> to vector<8x16xf32>
    %cst_369 = arith.constant dense<0.000000e+00> : vector<16x16xf32>
    %498 = tpu.matmul %494, %497, %cst_369 {dimension_numbers = #tpu.dot_dimension_numbers<[1], [0], [0], [1], [0, 0, 1, 1], [], []>} : vector<16x8xf32>, vector<8x16xf32>, vector<16x16xf32> -> vector<16x16xf32>
    %c1_370 = arith.constant 1 : index
    %c0_371 = arith.constant 0 : index
    %c0_372 = arith.constant 0 : index
    %499 = vector.load %arg5[%c1_370, %c0_371, %c0_372] : memref<2x8x16xf32, #tpu.memory_space<vmem>>, vector<1x8x16xf32>
    %500 = vector.shape_cast %499 : vector<1x8x16xf32> to vector<8x16xf32>
    %cst_373 = arith.constant dense<0.000000e+00> : vector<16x16xf32>
    %501 = tpu.matmul %495, %500, %cst_373 {dimension_numbers = #tpu.dot_dimension_numbers<[1], [0], [0], [1], [0, 0, 1, 1], [], []>} : vector<16x8xf32>, vector<8x16xf32>, vector<16x16xf32> -> vector<16x16xf32>
    %502 = arith.addf %498, %501 : vector<16x16xf32>
    %503 = vector.broadcast %29 : vector<16x1xf32> to vector<16x16xf32>
    %504 = arith.addf %502, %503 : vector<16x16xf32>
    %505 = arith.truncf %504 : vector<16x16xf32> to vector<16x16xbf16>
    %c16_374 = arith.constant 16 : index
    %c352_375 = arith.constant 352 : index
    %506 = vector.load %arg11[%c16_374, %c352_375] : memref<32x512xbf16, #tpu.memory_space<vmem>>, vector<16x16xbf16>
    tpu.vector_store %arg11[%c16_374, %c352_375], %505 {strides = array<i32>} : memref<32x512xbf16, #tpu.memory_space<vmem>>, vector<16x16xbf16>,
    %507 = vector.extract_strided_slice %402 {offsets = [32, 0], sizes = [16, 8], strides = [1, 1]} : vector<64x64xf32> to vector<16x8xf32>
    %508 = vector.extract_strided_slice %402 {offsets = [48, 0], sizes = [16, 8], strides = [1, 1]} : vector<64x64xf32> to vector<16x8xf32>
    %c0_376 = arith.constant 0 : index
    %c0_377 = arith.constant 0 : index
    %c0_378 = arith.constant 0 : index
    %509 = vector.load %arg5[%c0_376, %c0_377, %c0_378] : memref<2x8x16xf32, #tpu.memory_space<vmem>>, vector<1x8x16xf32>
    %510 = vector.shape_cast %509 : vector<1x8x16xf32> to vector<8x16xf32>
    %cst_379 = arith.constant dense<0.000000e+00> : vector<16x16xf32>
    %511 = tpu.matmul %507, %510, %cst_379 {dimension_numbers = #tpu.dot_dimension_numbers<[1], [0], [0], [1], [0, 0, 1, 1], [], []>} : vector<16x8xf32>, vector<8x16xf32>, vector<16x16xf32> -> vector<16x16xf32>
    %c1_380 = arith.constant 1 : index
    %c0_381 = arith.constant 0 : index
    %c0_382 = arith.constant 0 : index
    %512 = vector.load %arg5[%c1_380, %c0_381, %c0_382] : memref<2x8x16xf32, #tpu.memory_space<vmem>>, vector<1x8x16xf32>
    %513 = vector.shape_cast %512 : vector<1x8x16xf32> to vector<8x16xf32>
    %cst_383 = arith.constant dense<0.000000e+00> : vector<16x16xf32>
    %514 = tpu.matmul %508, %513, %cst_383 {dimension_numbers = #tpu.dot_dimension_numbers<[1], [0], [0], [1], [0, 0, 1, 1], [], []>} : vector<16x8xf32>, vector<8x16xf32>, vector<16x16xf32> -> vector<16x16xf32>
    %515 = arith.addf %511, %514 : vector<16x16xf32>
    %516 = vector.broadcast %29 : vector<16x1xf32> to vector<16x16xf32>
    %517 = arith.addf %515, %516 : vector<16x16xf32>
    %518 = arith.truncf %517 : vector<16x16xf32> to vector<16x16xbf16>
    %c16_384 = arith.constant 16 : index
    %c144_385 = arith.constant 144 : index
    %519 = vector.load %arg11[%c16_384, %c144_385] : memref<32x512xbf16, #tpu.memory_space<vmem>>, vector<16x16xbf16>
    tpu.vector_store %arg11[%c16_384, %c144_385], %518 {strides = array<i32>} : memref<32x512xbf16, #tpu.memory_space<vmem>>, vector<16x16xbf16>,
    %520 = vector.extract_strided_slice %402 {offsets = [32, 8], sizes = [16, 8], strides = [1, 1]} : vector<64x64xf32> to vector<16x8xf32>
    %521 = vector.extract_strided_slice %402 {offsets = [48, 8], sizes = [16, 8], strides = [1, 1]} : vector<64x64xf32> to vector<16x8xf32>
    %c0_386 = arith.constant 0 : index
    %c0_387 = arith.constant 0 : index
    %c0_388 = arith.constant 0 : index
    %522 = vector.load %arg5[%c0_386, %c0_387, %c0_388] : memref<2x8x16xf32, #tpu.memory_space<vmem>>, vector<1x8x16xf32>
    %523 = vector.shape_cast %522 : vector<1x8x16xf32> to vector<8x16xf32>
    %cst_389 = arith.constant dense<0.000000e+00> : vector<16x16xf32>
    %524 = tpu.matmul %520, %523, %cst_389 {dimension_numbers = #tpu.dot_dimension_numbers<[1], [0], [0], [1], [0, 0, 1, 1], [], []>} : vector<16x8xf32>, vector<8x16xf32>, vector<16x16xf32> -> vector<16x16xf32>
    %c1_390 = arith.constant 1 : index
    %c0_391 = arith.constant 0 : index
    %c0_392 = arith.constant 0 : index
    %525 = vector.load %arg5[%c1_390, %c0_391, %c0_392] : memref<2x8x16xf32, #tpu.memory_space<vmem>>, vector<1x8x16xf32>
    %526 = vector.shape_cast %525 : vector<1x8x16xf32> to vector<8x16xf32>
    %cst_393 = arith.constant dense<0.000000e+00> : vector<16x16xf32>
    %527 = tpu.matmul %521, %526, %cst_393 {dimension_numbers = #tpu.dot_dimension_numbers<[1], [0], [0], [1], [0, 0, 1, 1], [], []>} : vector<16x8xf32>, vector<8x16xf32>, vector<16x16xf32> -> vector<16x16xf32>
    %528 = arith.addf %524, %527 : vector<16x16xf32>
    %529 = vector.broadcast %29 : vector<16x1xf32> to vector<16x16xf32>
    %530 = arith.addf %528, %529 : vector<16x16xf32>
    %531 = arith.truncf %530 : vector<16x16xf32> to vector<16x16xbf16>
    %c16_394 = arith.constant 16 : index
    %c176_395 = arith.constant 176 : index
    %532 = vector.load %arg11[%c16_394, %c176_395] : memref<32x512xbf16, #tpu.memory_space<vmem>>, vector<16x16xbf16>
    tpu.vector_store %arg11[%c16_394, %c176_395], %531 {strides = array<i32>} : memref<32x512xbf16, #tpu.memory_space<vmem>>, vector<16x16xbf16>,
    %533 = vector.extract_strided_slice %402 {offsets = [32, 16], sizes = [16, 8], strides = [1, 1]} : vector<64x64xf32> to vector<16x8xf32>
    %534 = vector.extract_strided_slice %402 {offsets = [48, 16], sizes = [16, 8], strides = [1, 1]} : vector<64x64xf32> to vector<16x8xf32>
    %c0_396 = arith.constant 0 : index
    %c0_397 = arith.constant 0 : index
    %c0_398 = arith.constant 0 : index
    %535 = vector.load %arg5[%c0_396, %c0_397, %c0_398] : memref<2x8x16xf32, #tpu.memory_space<vmem>>, vector<1x8x16xf32>
    %536 = vector.shape_cast %535 : vector<1x8x16xf32> to vector<8x16xf32>
    %cst_399 = arith.constant dense<0.000000e+00> : vector<16x16xf32>
    %537 = tpu.matmul %533, %536, %cst_399 {dimension_numbers = #tpu.dot_dimension_numbers<[1], [0], [0], [1], [0, 0, 1, 1], [], []>} : vector<16x8xf32>, vector<8x16xf32>, vector<16x16xf32> -> vector<16x16xf32>
    %c1_400 = arith.constant 1 : index
    %c0_401 = arith.constant 0 : index
    %c0_402 = arith.constant 0 : index
    %538 = vector.load %arg5[%c1_400, %c0_401, %c0_402] : memref<2x8x16xf32, #tpu.memory_space<vmem>>, vector<1x8x16xf32>
    %539 = vector.shape_cast %538 : vector<1x8x16xf32> to vector<8x16xf32>
    %cst_403 = arith.constant dense<0.000000e+00> : vector<16x16xf32>
    %540 = tpu.matmul %534, %539, %cst_403 {dimension_numbers = #tpu.dot_dimension_numbers<[1], [0], [0], [1], [0, 0, 1, 1], [], []>} : vector<16x8xf32>, vector<8x16xf32>, vector<16x16xf32> -> vector<16x16xf32>
    %541 = arith.addf %537, %540 : vector<16x16xf32>
    %542 = vector.broadcast %29 : vector<16x1xf32> to vector<16x16xf32>
    %543 = arith.addf %541, %542 : vector<16x16xf32>
    %544 = arith.truncf %543 : vector<16x16xf32> to vector<16x16xbf16>
    %c16_404 = arith.constant 16 : index
    %c208_405 = arith.constant 208 : index
    %545 = vector.load %arg11[%c16_404, %c208_405] : memref<32x512xbf16, #tpu.memory_space<vmem>>, vector<16x16xbf16>
    tpu.vector_store %arg11[%c16_404, %c208_405], %544 {strides = array<i32>} : memref<32x512xbf16, #tpu.memory_space<vmem>>, vector<16x16xbf16>,
    %546 = vector.extract_strided_slice %402 {offsets = [32, 24], sizes = [16, 8], strides = [1, 1]} : vector<64x64xf32> to vector<16x8xf32>
    %547 = vector.extract_strided_slice %402 {offsets = [48, 24], sizes = [16, 8], strides = [1, 1]} : vector<64x64xf32> to vector<16x8xf32>
    %c0_406 = arith.constant 0 : index
    %c0_407 = arith.constant 0 : index
    %c0_408 = arith.constant 0 : index
    %548 = vector.load %arg5[%c0_406, %c0_407, %c0_408] : memref<2x8x16xf32, #tpu.memory_space<vmem>>, vector<1x8x16xf32>
    %549 = vector.shape_cast %548 : vector<1x8x16xf32> to vector<8x16xf32>
    %cst_409 = arith.constant dense<0.000000e+00> : vector<16x16xf32>
    %550 = tpu.matmul %546, %549, %cst_409 {dimension_numbers = #tpu.dot_dimension_numbers<[1], [0], [0], [1], [0, 0, 1, 1], [], []>} : vector<16x8xf32>, vector<8x16xf32>, vector<16x16xf32> -> vector<16x16xf32>
    %c1_410 = arith.constant 1 : index
    %c0_411 = arith.constant 0 : index
    %c0_412 = arith.constant 0 : index
    %551 = vector.load %arg5[%c1_410, %c0_411, %c0_412] : memref<2x8x16xf32, #tpu.memory_space<vmem>>, vector<1x8x16xf32>
    %552 = vector.shape_cast %551 : vector<1x8x16xf32> to vector<8x16xf32>
    %cst_413 = arith.constant dense<0.000000e+00> : vector<16x16xf32>
    %553 = tpu.matmul %547, %552, %cst_413 {dimension_numbers = #tpu.dot_dimension_numbers<[1], [0], [0], [1], [0, 0, 1, 1], [], []>} : vector<16x8xf32>, vector<8x16xf32>, vector<16x16xf32> -> vector<16x16xf32>
    %554 = arith.addf %550, %553 : vector<16x16xf32>
    %555 = vector.broadcast %29 : vector<16x1xf32> to vector<16x16xf32>
    %556 = arith.addf %554, %555 : vector<16x16xf32>
    %557 = arith.truncf %556 : vector<16x16xf32> to vector<16x16xbf16>
    %c16_414 = arith.constant 16 : index
    %c240_415 = arith.constant 240 : index
    %558 = vector.load %arg11[%c16_414, %c240_415] : memref<32x512xbf16, #tpu.memory_space<vmem>>, vector<16x16xbf16>
    tpu.vector_store %arg11[%c16_414, %c240_415], %557 {strides = array<i32>} : memref<32x512xbf16, #tpu.memory_space<vmem>>, vector<16x16xbf16>,
    %559 = vector.extract_strided_slice %402 {offsets = [32, 32], sizes = [16, 8], strides = [1, 1]} : vector<64x64xf32> to vector<16x8xf32>
    %560 = vector.extract_strided_slice %402 {offsets = [48, 32], sizes = [16, 8], strides = [1, 1]} : vector<64x64xf32> to vector<16x8xf32>
    %c0_416 = arith.constant 0 : index
    %c0_417 = arith.constant 0 : index
    %c0_418 = arith.constant 0 : index
    %561 = vector.load %arg5[%c0_416, %c0_417, %c0_418] : memref<2x8x16xf32, #tpu.memory_space<vmem>>, vector<1x8x16xf32>
    %562 = vector.shape_cast %561 : vector<1x8x16xf32> to vector<8x16xf32>
    %cst_419 = arith.constant dense<0.000000e+00> : vector<16x16xf32>
    %563 = tpu.matmul %559, %562, %cst_419 {dimension_numbers = #tpu.dot_dimension_numbers<[1], [0], [0], [1], [0, 0, 1, 1], [], []>} : vector<16x8xf32>, vector<8x16xf32>, vector<16x16xf32> -> vector<16x16xf32>
    %c1_420 = arith.constant 1 : index
    %c0_421 = arith.constant 0 : index
    %c0_422 = arith.constant 0 : index
    %564 = vector.load %arg5[%c1_420, %c0_421, %c0_422] : memref<2x8x16xf32, #tpu.memory_space<vmem>>, vector<1x8x16xf32>
    %565 = vector.shape_cast %564 : vector<1x8x16xf32> to vector<8x16xf32>
    %cst_423 = arith.constant dense<0.000000e+00> : vector<16x16xf32>
    %566 = tpu.matmul %560, %565, %cst_423 {dimension_numbers = #tpu.dot_dimension_numbers<[1], [0], [0], [1], [0, 0, 1, 1], [], []>} : vector<16x8xf32>, vector<8x16xf32>, vector<16x16xf32> -> vector<16x16xf32>
    %567 = arith.addf %563, %566 : vector<16x16xf32>
    %568 = vector.broadcast %29 : vector<16x1xf32> to vector<16x16xf32>
    %569 = arith.addf %567, %568 : vector<16x16xf32>
    %570 = arith.truncf %569 : vector<16x16xf32> to vector<16x16xbf16>
    %c16_424 = arith.constant 16 : index
    %c272_425 = arith.constant 272 : index
    %571 = vector.load %arg11[%c16_424, %c272_425] : memref<32x512xbf16, #tpu.memory_space<vmem>>, vector<16x16xbf16>
    tpu.vector_store %arg11[%c16_424, %c272_425], %570 {strides = array<i32>} : memref<32x512xbf16, #tpu.memory_space<vmem>>, vector<16x16xbf16>,
    %572 = vector.extract_strided_slice %402 {offsets = [32, 40], sizes = [16, 8], strides = [1, 1]} : vector<64x64xf32> to vector<16x8xf32>
    %573 = vector.extract_strided_slice %402 {offsets = [48, 40], sizes = [16, 8], strides = [1, 1]} : vector<64x64xf32> to vector<16x8xf32>
    %c0_426 = arith.constant 0 : index
    %c0_427 = arith.constant 0 : index
    %c0_428 = arith.constant 0 : index
    %574 = vector.load %arg5[%c0_426, %c0_427, %c0_428] : memref<2x8x16xf32, #tpu.memory_space<vmem>>, vector<1x8x16xf32>
    %575 = vector.shape_cast %574 : vector<1x8x16xf32> to vector<8x16xf32>
    %cst_429 = arith.constant dense<0.000000e+00> : vector<16x16xf32>
    %576 = tpu.matmul %572, %575, %cst_429 {dimension_numbers = #tpu.dot_dimension_numbers<[1], [0], [0], [1], [0, 0, 1, 1], [], []>} : vector<16x8xf32>, vector<8x16xf32>, vector<16x16xf32> -> vector<16x16xf32>
    %c1_430 = arith.constant 1 : index
    %c0_431 = arith.constant 0 : index
    %c0_432 = arith.constant 0 : index
    %577 = vector.load %arg5[%c1_430, %c0_431, %c0_432] : memref<2x8x16xf32, #tpu.memory_space<vmem>>, vector<1x8x16xf32>
    %578 = vector.shape_cast %577 : vector<1x8x16xf32> to vector<8x16xf32>
    %cst_433 = arith.constant dense<0.000000e+00> : vector<16x16xf32>
    %579 = tpu.matmul %573, %578, %cst_433 {dimension_numbers = #tpu.dot_dimension_numbers<[1], [0], [0], [1], [0, 0, 1, 1], [], []>} : vector<16x8xf32>, vector<8x16xf32>, vector<16x16xf32> -> vector<16x16xf32>
    %580 = arith.addf %576, %579 : vector<16x16xf32>
    %581 = vector.broadcast %29 : vector<16x1xf32> to vector<16x16xf32>
    %582 = arith.addf %580, %581 : vector<16x16xf32>
    %583 = arith.truncf %582 : vector<16x16xf32> to vector<16x16xbf16>
    %c16_434 = arith.constant 16 : index
    %c304_435 = arith.constant 304 : index
    %584 = vector.load %arg11[%c16_434, %c304_435] : memref<32x512xbf16, #tpu.memory_space<vmem>>, vector<16x16xbf16>
    tpu.vector_store %arg11[%c16_434, %c304_435], %583 {strides = array<i32>} : memref<32x512xbf16, #tpu.memory_space<vmem>>, vector<16x16xbf16>,
    %585 = vector.extract_strided_slice %402 {offsets = [32, 48], sizes = [16, 8], strides = [1, 1]} : vector<64x64xf32> to vector<16x8xf32>
    %586 = vector.extract_strided_slice %402 {offsets = [48, 48], sizes = [16, 8], strides = [1, 1]} : vector<64x64xf32> to vector<16x8xf32>
    %c0_436 = arith.constant 0 : index
    %c0_437 = arith.constant 0 : index
    %c0_438 = arith.constant 0 : index
    %587 = vector.load %arg5[%c0_436, %c0_437, %c0_438] : memref<2x8x16xf32, #tpu.memory_space<vmem>>, vector<1x8x16xf32>
    %588 = vector.shape_cast %587 : vector<1x8x16xf32> to vector<8x16xf32>
    %cst_439 = arith.constant dense<0.000000e+00> : vector<16x16xf32>
    %589 = tpu.matmul %585, %588, %cst_439 {dimension_numbers = #tpu.dot_dimension_numbers<[1], [0], [0], [1], [0, 0, 1, 1], [], []>} : vector<16x8xf32>, vector<8x16xf32>, vector<16x16xf32> -> vector<16x16xf32>
    %c1_440 = arith.constant 1 : index
    %c0_441 = arith.constant 0 : index
    %c0_442 = arith.constant 0 : index
    %590 = vector.load %arg5[%c1_440, %c0_441, %c0_442] : memref<2x8x16xf32, #tpu.memory_space<vmem>>, vector<1x8x16xf32>
    %591 = vector.shape_cast %590 : vector<1x8x16xf32> to vector<8x16xf32>
    %cst_443 = arith.constant dense<0.000000e+00> : vector<16x16xf32>
    %592 = tpu.matmul %586, %591, %cst_443 {dimension_numbers = #tpu.dot_dimension_numbers<[1], [0], [0], [1], [0, 0, 1, 1], [], []>} : vector<16x8xf32>, vector<8x16xf32>, vector<16x16xf32> -> vector<16x16xf32>
    %593 = arith.addf %589, %592 : vector<16x16xf32>
    %594 = vector.broadcast %29 : vector<16x1xf32> to vector<16x16xf32>
    %595 = arith.addf %593, %594 : vector<16x16xf32>
    %596 = arith.truncf %595 : vector<16x16xf32> to vector<16x16xbf16>
    %c16_444 = arith.constant 16 : index
    %c336_445 = arith.constant 336 : index
    %597 = vector.load %arg11[%c16_444, %c336_445] : memref<32x512xbf16, #tpu.memory_space<vmem>>, vector<16x16xbf16>
    tpu.vector_store %arg11[%c16_444, %c336_445], %596 {strides = array<i32>} : memref<32x512xbf16, #tpu.memory_space<vmem>>, vector<16x16xbf16>,
    %598 = vector.extract_strided_slice %402 {offsets = [32, 56], sizes = [16, 8], strides = [1, 1]} : vector<64x64xf32> to vector<16x8xf32>
    %599 = vector.extract_strided_slice %402 {offsets = [48, 56], sizes = [16, 8], strides = [1, 1]} : vector<64x64xf32> to vector<16x8xf32>
    %c0_446 = arith.constant 0 : index
    %c0_447 = arith.constant 0 : index
    %c0_448 = arith.constant 0 : index
    %600 = vector.load %arg5[%c0_446, %c0_447, %c0_448] : memref<2x8x16xf32, #tpu.memory_space<vmem>>, vector<1x8x16xf32>
    %601 = vector.shape_cast %600 : vector<1x8x16xf32> to vector<8x16xf32>
    %cst_449 = arith.constant dense<0.000000e+00> : vector<16x16xf32>
    %602 = tpu.matmul %598, %601, %cst_449 {dimension_numbers = #tpu.dot_dimension_numbers<[1], [0], [0], [1], [0, 0, 1, 1], [], []>} : vector<16x8xf32>, vector<8x16xf32>, vector<16x16xf32> -> vector<16x16xf32>
    %c1_450 = arith.constant 1 : index
    %c0_451 = arith.constant 0 : index
    %c0_452 = arith.constant 0 : index
    %603 = vector.load %arg5[%c1_450, %c0_451, %c0_452] : memref<2x8x16xf32, #tpu.memory_space<vmem>>, vector<1x8x16xf32>
    %604 = vector.shape_cast %603 : vector<1x8x16xf32> to vector<8x16xf32>
    %cst_453 = arith.constant dense<0.000000e+00> : vector<16x16xf32>
    %605 = tpu.matmul %599, %604, %cst_453 {dimension_numbers = #tpu.dot_dimension_numbers<[1], [0], [0], [1], [0, 0, 1, 1], [], []>} : vector<16x8xf32>, vector<8x16xf32>, vector<16x16xf32> -> vector<16x16xf32>
    %606 = arith.addf %602, %605 : vector<16x16xf32>
    %607 = vector.broadcast %29 : vector<16x1xf32> to vector<16x16xf32>
    %608 = arith.addf %606, %607 : vector<16x16xf32>
    %609 = arith.truncf %608 : vector<16x16xf32> to vector<16x16xbf16>
    %c16_454 = arith.constant 16 : index
    %c368_455 = arith.constant 368 : index
    %610 = vector.load %arg11[%c16_454, %c368_455] : memref<32x512xbf16, #tpu.memory_space<vmem>>, vector<16x16xbf16>
    tpu.vector_store %arg11[%c16_454, %c368_455], %609 {strides = array<i32>} : memref<32x512xbf16, #tpu.memory_space<vmem>>, vector<16x16xbf16>,
    %c0_456 = arith.constant 0 : index
    %c111_457 = arith.constant 111 : index
    %611 = vector.load %arg11[%c0_456, %c111_457] : memref<32x512xbf16, #tpu.memory_space<vmem>>, vector<32x256xbf16>
    %cst_458 = arith.constant 0.000000e+00 : bf16
    %612 = vector.broadcast %cst_458 : bf16 to vector<32x256xbf16>
    %613 = vector.shape_cast %18 : vector<1x256xi1> to vector<1x256xi1>
    %614 = vector.broadcast %613 : vector<1x256xi1> to vector<32x256xi1>
    %615 = arith.select %614, %611, %612 : vector<32x256xi1>, vector<32x256xbf16>
    %c0_459 = arith.constant 0 : index
    %c0_460 = arith.constant 0 : index
    %c0_461 = arith.constant 0 : index
    %616 = vector.load %arg6[%c0_459, %c0_460, %c0_461] : memref<9x16x32xbf16, #tpu.memory_space<vmem>>, vector<1x16x32xbf16>
    %617 = vector.shape_cast %616 : vector<1x16x32xbf16> to vector<16x32xbf16>
    %cst_462 = arith.constant dense<0.000000e+00> : vector<16x256xf32>
    %618 = tpu.matmul %617, %615, %cst_462 {dimension_numbers = #tpu.dot_dimension_numbers<[1], [0], [0], [1], [0, 0, 1, 1], [], []>} : vector<16x32xbf16>, vector<32x256xbf16>, vector<16x256xf32> -> vector<16x256xf32>
    %c0_463 = arith.constant 0 : index
    %c112_464 = arith.constant 112 : index
    %619 = vector.load %arg11[%c0_463, %c112_464] : memref<32x512xbf16, #tpu.memory_space<vmem>>, vector<32x256xbf16>
    %c1_465 = arith.constant 1 : index
    %c0_466 = arith.constant 0 : index
    %c0_467 = arith.constant 0 : index
    %620 = vector.load %arg6[%c1_465, %c0_466, %c0_467] : memref<9x16x32xbf16, #tpu.memory_space<vmem>>, vector<1x16x32xbf16>
    %621 = vector.shape_cast %620 : vector<1x16x32xbf16> to vector<16x32xbf16>
    %cst_468 = arith.constant dense<0.000000e+00> : vector<16x256xf32>
    %622 = tpu.matmul %621, %619, %cst_468 {dimension_numbers = #tpu.dot_dimension_numbers<[1], [0], [0], [1], [0, 0, 1, 1], [], []>} : vector<16x32xbf16>, vector<32x256xbf16>, vector<16x256xf32> -> vector<16x256xf32>
    %623 = arith.addf %618, %622 : vector<16x256xf32>
    %c0_469 = arith.constant 0 : index
    %c113_470 = arith.constant 113 : index
    %624 = vector.load %arg11[%c0_469, %c113_470] : memref<32x512xbf16, #tpu.memory_space<vmem>>, vector<32x256xbf16>
    %cst_471 = arith.constant 0.000000e+00 : bf16
    %625 = vector.broadcast %cst_471 : bf16 to vector<32x256xbf16>
    %626 = vector.shape_cast %20 : vector<1x256xi1> to vector<1x256xi1>
    %627 = vector.broadcast %626 : vector<1x256xi1> to vector<32x256xi1>
    %628 = arith.select %627, %624, %625 : vector<32x256xi1>, vector<32x256xbf16>
    %c2_472 = arith.constant 2 : index
    %c0_473 = arith.constant 0 : index
    %c0_474 = arith.constant 0 : index
    %629 = vector.load %arg6[%c2_472, %c0_473, %c0_474] : memref<9x16x32xbf16, #tpu.memory_space<vmem>>, vector<1x16x32xbf16>
    %630 = vector.shape_cast %629 : vector<1x16x32xbf16> to vector<16x32xbf16>
    %cst_475 = arith.constant dense<0.000000e+00> : vector<16x256xf32>
    %631 = tpu.matmul %630, %628, %cst_475 {dimension_numbers = #tpu.dot_dimension_numbers<[1], [0], [0], [1], [0, 0, 1, 1], [], []>} : vector<16x32xbf16>, vector<32x256xbf16>, vector<16x256xf32> -> vector<16x256xf32>
    %632 = arith.addf %623, %631 : vector<16x256xf32>
    %c0_476 = arith.constant 0 : index
    %c127_477 = arith.constant 127 : index
    %633 = vector.load %arg11[%c0_476, %c127_477] : memref<32x512xbf16, #tpu.memory_space<vmem>>, vector<32x256xbf16>
    %cst_478 = arith.constant 0.000000e+00 : bf16
    %634 = vector.broadcast %cst_478 : bf16 to vector<32x256xbf16>
    %635 = vector.shape_cast %18 : vector<1x256xi1> to vector<1x256xi1>
    %636 = vector.broadcast %635 : vector<1x256xi1> to vector<32x256xi1>
    %637 = arith.select %636, %633, %634 : vector<32x256xi1>, vector<32x256xbf16>
    %c3_479 = arith.constant 3 : index
    %c0_480 = arith.constant 0 : index
    %c0_481 = arith.constant 0 : index
    %638 = vector.load %arg6[%c3_479, %c0_480, %c0_481] : memref<9x16x32xbf16, #tpu.memory_space<vmem>>, vector<1x16x32xbf16>
    %639 = vector.shape_cast %638 : vector<1x16x32xbf16> to vector<16x32xbf16>
    %cst_482 = arith.constant dense<0.000000e+00> : vector<16x256xf32>
    %640 = tpu.matmul %639, %637, %cst_482 {dimension_numbers = #tpu.dot_dimension_numbers<[1], [0], [0], [1], [0, 0, 1, 1], [], []>} : vector<16x32xbf16>, vector<32x256xbf16>, vector<16x256xf32> -> vector<16x256xf32>
    %641 = arith.addf %632, %640 : vector<16x256xf32>
    %c0_483 = arith.constant 0 : index
    %c128_484 = arith.constant 128 : index
    %642 = vector.load %arg11[%c0_483, %c128_484] : memref<32x512xbf16, #tpu.memory_space<vmem>>, vector<32x256xbf16>
    %c4_485 = arith.constant 4 : index
    %c0_486 = arith.constant 0 : index
    %c0_487 = arith.constant 0 : index
    %643 = vector.load %arg6[%c4_485, %c0_486, %c0_487] : memref<9x16x32xbf16, #tpu.memory_space<vmem>>, vector<1x16x32xbf16>
    %644 = vector.shape_cast %643 : vector<1x16x32xbf16> to vector<16x32xbf16>
    %cst_488 = arith.constant dense<0.000000e+00> : vector<16x256xf32>
    %645 = tpu.matmul %644, %642, %cst_488 {dimension_numbers = #tpu.dot_dimension_numbers<[1], [0], [0], [1], [0, 0, 1, 1], [], []>} : vector<16x32xbf16>, vector<32x256xbf16>, vector<16x256xf32> -> vector<16x256xf32>
    %646 = arith.addf %641, %645 : vector<16x256xf32>
    %c0_489 = arith.constant 0 : index
    %c129_490 = arith.constant 129 : index
    %647 = vector.load %arg11[%c0_489, %c129_490] : memref<32x512xbf16, #tpu.memory_space<vmem>>, vector<32x256xbf16>
    %cst_491 = arith.constant 0.000000e+00 : bf16
    %648 = vector.broadcast %cst_491 : bf16 to vector<32x256xbf16>
    %649 = vector.shape_cast %20 : vector<1x256xi1> to vector<1x256xi1>
    %650 = vector.broadcast %649 : vector<1x256xi1> to vector<32x256xi1>
    %651 = arith.select %650, %647, %648 : vector<32x256xi1>, vector<32x256xbf16>
    %c5_492 = arith.constant 5 : index
    %c0_493 = arith.constant 0 : index
    %c0_494 = arith.constant 0 : index
    %652 = vector.load %arg6[%c5_492, %c0_493, %c0_494] : memref<9x16x32xbf16, #tpu.memory_space<vmem>>, vector<1x16x32xbf16>
    %653 = vector.shape_cast %652 : vector<1x16x32xbf16> to vector<16x32xbf16>
    %cst_495 = arith.constant dense<0.000000e+00> : vector<16x256xf32>
    %654 = tpu.matmul %653, %651, %cst_495 {dimension_numbers = #tpu.dot_dimension_numbers<[1], [0], [0], [1], [0, 0, 1, 1], [], []>} : vector<16x32xbf16>, vector<32x256xbf16>, vector<16x256xf32> -> vector<16x256xf32>
    %655 = arith.addf %646, %654 : vector<16x256xf32>
    %c0_496 = arith.constant 0 : index
    %c143_497 = arith.constant 143 : index
    %656 = vector.load %arg11[%c0_496, %c143_497] : memref<32x512xbf16, #tpu.memory_space<vmem>>, vector<32x256xbf16>
    %cst_498 = arith.constant 0.000000e+00 : bf16
    %657 = vector.broadcast %cst_498 : bf16 to vector<32x256xbf16>
    %658 = vector.shape_cast %18 : vector<1x256xi1> to vector<1x256xi1>
    %659 = vector.broadcast %658 : vector<1x256xi1> to vector<32x256xi1>
    %660 = arith.select %659, %656, %657 : vector<32x256xi1>, vector<32x256xbf16>
    %c6_499 = arith.constant 6 : index
    %c0_500 = arith.constant 0 : index
    %c0_501 = arith.constant 0 : index
    %661 = vector.load %arg6[%c6_499, %c0_500, %c0_501] : memref<9x16x32xbf16, #tpu.memory_space<vmem>>, vector<1x16x32xbf16>
    %662 = vector.shape_cast %661 : vector<1x16x32xbf16> to vector<16x32xbf16>
    %cst_502 = arith.constant dense<0.000000e+00> : vector<16x256xf32>
    %663 = tpu.matmul %662, %660, %cst_502 {dimension_numbers = #tpu.dot_dimension_numbers<[1], [0], [0], [1], [0, 0, 1, 1], [], []>} : vector<16x32xbf16>, vector<32x256xbf16>, vector<16x256xf32> -> vector<16x256xf32>
    %664 = arith.addf %655, %663 : vector<16x256xf32>
    %c0_503 = arith.constant 0 : index
    %c144_504 = arith.constant 144 : index
    %665 = vector.load %arg11[%c0_503, %c144_504] : memref<32x512xbf16, #tpu.memory_space<vmem>>, vector<32x256xbf16>
    %c7_505 = arith.constant 7 : index
    %c0_506 = arith.constant 0 : index
    %c0_507 = arith.constant 0 : index
    %666 = vector.load %arg6[%c7_505, %c0_506, %c0_507] : memref<9x16x32xbf16, #tpu.memory_space<vmem>>, vector<1x16x32xbf16>
    %667 = vector.shape_cast %666 : vector<1x16x32xbf16> to vector<16x32xbf16>
    %cst_508 = arith.constant dense<0.000000e+00> : vector<16x256xf32>
    %668 = tpu.matmul %667, %665, %cst_508 {dimension_numbers = #tpu.dot_dimension_numbers<[1], [0], [0], [1], [0, 0, 1, 1], [], []>} : vector<16x32xbf16>, vector<32x256xbf16>, vector<16x256xf32> -> vector<16x256xf32>
    %669 = arith.addf %664, %668 : vector<16x256xf32>
    %c0_509 = arith.constant 0 : index
    %c145_510 = arith.constant 145 : index
    %670 = vector.load %arg11[%c0_509, %c145_510] : memref<32x512xbf16, #tpu.memory_space<vmem>>, vector<32x256xbf16>
    %cst_511 = arith.constant 0.000000e+00 : bf16
    %671 = vector.broadcast %cst_511 : bf16 to vector<32x256xbf16>
    %672 = vector.shape_cast %20 : vector<1x256xi1> to vector<1x256xi1>
    %673 = vector.broadcast %672 : vector<1x256xi1> to vector<32x256xi1>
    %674 = arith.select %673, %670, %671 : vector<32x256xi1>, vector<32x256xbf16>
    %c8_512 = arith.constant 8 : index
    %c0_513 = arith.constant 0 : index
    %c0_514 = arith.constant 0 : index
    %675 = vector.load %arg6[%c8_512, %c0_513, %c0_514] : memref<9x16x32xbf16, #tpu.memory_space<vmem>>, vector<1x16x32xbf16>
    %676 = vector.shape_cast %675 : vector<1x16x32xbf16> to vector<16x32xbf16>
    %cst_515 = arith.constant dense<0.000000e+00> : vector<16x256xf32>
    %677 = tpu.matmul %676, %674, %cst_515 {dimension_numbers = #tpu.dot_dimension_numbers<[1], [0], [0], [1], [0, 0, 1, 1], [], []>} : vector<16x32xbf16>, vector<32x256xbf16>, vector<16x256xf32> -> vector<16x256xf32>
    %678 = arith.addf %669, %677 : vector<16x256xf32>
    %c0_516 = arith.constant 0 : index
    %c0_517 = arith.constant 0 : index
    %679 = vector.load %arg7[%c0_516, %c0_517] : memref<16x1xf32, #tpu.memory_space<vmem>>, vector<16x1xf32>
    %680 = vector.broadcast %679 : vector<16x1xf32> to vector<16x256xf32>
    %681 = arith.addf %678, %680 : vector<16x256xf32>
    %cst_518 = arith.constant 0.000000e+00 : f32
    %682 = vector.broadcast %cst_518 : f32 to vector<16x256xf32>
    %683 = arith.maximumf %681, %682 : vector<16x256xf32>
    %684 = arith.truncf %683 : vector<16x256xf32> to vector<16x256xbf16>
    %c0_519 = arith.constant 0 : index
    %c128_520 = arith.constant 128 : index
    %685 = vector.load %arg12[%c0_519, %c128_520] : memref<16x512xbf16, #tpu.memory_space<vmem>>, vector<16x256xbf16>
    tpu.vector_store %arg12[%c0_519, %c128_520], %684 {strides = array<i32>} : memref<16x512xbf16, #tpu.memory_space<vmem>>, vector<16x256xbf16>,
    %c0_521 = arith.constant 0 : index
    %c111_522 = arith.constant 111 : index
    %686 = vector.load %arg12[%c0_521, %c111_522] : memref<16x512xbf16, #tpu.memory_space<vmem>>, vector<16x256xbf16>
    %cst_523 = arith.constant 0.000000e+00 : bf16
    %687 = vector.broadcast %cst_523 : bf16 to vector<16x256xbf16>
    %688 = vector.shape_cast %18 : vector<1x256xi1> to vector<1x256xi1>
    %689 = vector.broadcast %688 : vector<1x256xi1> to vector<16x256xi1>
    %690 = arith.select %689, %686, %687 : vector<16x256xi1>, vector<16x256xbf16>
    %c0_524 = arith.constant 0 : index
    %c0_525 = arith.constant 0 : index
    %c0_526 = arith.constant 0 : index
    %691 = vector.load %arg8[%c0_524, %c0_525, %c0_526] : memref<9x16x16xbf16, #tpu.memory_space<vmem>>, vector<1x16x16xbf16>
    %692 = vector.shape_cast %691 : vector<1x16x16xbf16> to vector<16x16xbf16>
    %cst_527 = arith.constant dense<0.000000e+00> : vector<16x256xf32>
    %693 = tpu.matmul %692, %690, %cst_527 {dimension_numbers = #tpu.dot_dimension_numbers<[1], [0], [0], [1], [0, 0, 1, 1], [], []>} : vector<16x16xbf16>, vector<16x256xbf16>, vector<16x256xf32> -> vector<16x256xf32>
    %c0_528 = arith.constant 0 : index
    %c112_529 = arith.constant 112 : index
    %694 = vector.load %arg12[%c0_528, %c112_529] : memref<16x512xbf16, #tpu.memory_space<vmem>>, vector<16x256xbf16>
    %c1_530 = arith.constant 1 : index
    %c0_531 = arith.constant 0 : index
    %c0_532 = arith.constant 0 : index
    %695 = vector.load %arg8[%c1_530, %c0_531, %c0_532] : memref<9x16x16xbf16, #tpu.memory_space<vmem>>, vector<1x16x16xbf16>
    %696 = vector.shape_cast %695 : vector<1x16x16xbf16> to vector<16x16xbf16>
    %cst_533 = arith.constant dense<0.000000e+00> : vector<16x256xf32>
    %697 = tpu.matmul %696, %694, %cst_533 {dimension_numbers = #tpu.dot_dimension_numbers<[1], [0], [0], [1], [0, 0, 1, 1], [], []>} : vector<16x16xbf16>, vector<16x256xbf16>, vector<16x256xf32> -> vector<16x256xf32>
    %698 = arith.addf %693, %697 : vector<16x256xf32>
    %c0_534 = arith.constant 0 : index
    %c113_535 = arith.constant 113 : index
    %699 = vector.load %arg12[%c0_534, %c113_535] : memref<16x512xbf16, #tpu.memory_space<vmem>>, vector<16x256xbf16>
    %cst_536 = arith.constant 0.000000e+00 : bf16
    %700 = vector.broadcast %cst_536 : bf16 to vector<16x256xbf16>
    %701 = vector.shape_cast %20 : vector<1x256xi1> to vector<1x256xi1>
    %702 = vector.broadcast %701 : vector<1x256xi1> to vector<16x256xi1>
    %703 = arith.select %702, %699, %700 : vector<16x256xi1>, vector<16x256xbf16>
    %c2_537 = arith.constant 2 : index
    %c0_538 = arith.constant 0 : index
    %c0_539 = arith.constant 0 : index
    %704 = vector.load %arg8[%c2_537, %c0_538, %c0_539] : memref<9x16x16xbf16, #tpu.memory_space<vmem>>, vector<1x16x16xbf16>
    %705 = vector.shape_cast %704 : vector<1x16x16xbf16> to vector<16x16xbf16>
    %cst_540 = arith.constant dense<0.000000e+00> : vector<16x256xf32>
    %706 = tpu.matmul %705, %703, %cst_540 {dimension_numbers = #tpu.dot_dimension_numbers<[1], [0], [0], [1], [0, 0, 1, 1], [], []>} : vector<16x16xbf16>, vector<16x256xbf16>, vector<16x256xf32> -> vector<16x256xf32>
    %707 = arith.addf %698, %706 : vector<16x256xf32>
    %c0_541 = arith.constant 0 : index
    %c127_542 = arith.constant 127 : index
    %708 = vector.load %arg12[%c0_541, %c127_542] : memref<16x512xbf16, #tpu.memory_space<vmem>>, vector<16x256xbf16>
    %cst_543 = arith.constant 0.000000e+00 : bf16
    %709 = vector.broadcast %cst_543 : bf16 to vector<16x256xbf16>
    %710 = vector.shape_cast %18 : vector<1x256xi1> to vector<1x256xi1>
    %711 = vector.broadcast %710 : vector<1x256xi1> to vector<16x256xi1>
    %712 = arith.select %711, %708, %709 : vector<16x256xi1>, vector<16x256xbf16>
    %c3_544 = arith.constant 3 : index
    %c0_545 = arith.constant 0 : index
    %c0_546 = arith.constant 0 : index
    %713 = vector.load %arg8[%c3_544, %c0_545, %c0_546] : memref<9x16x16xbf16, #tpu.memory_space<vmem>>, vector<1x16x16xbf16>
    %714 = vector.shape_cast %713 : vector<1x16x16xbf16> to vector<16x16xbf16>
    %cst_547 = arith.constant dense<0.000000e+00> : vector<16x256xf32>
    %715 = tpu.matmul %714, %712, %cst_547 {dimension_numbers = #tpu.dot_dimension_numbers<[1], [0], [0], [1], [0, 0, 1, 1], [], []>} : vector<16x16xbf16>, vector<16x256xbf16>, vector<16x256xf32> -> vector<16x256xf32>
    %716 = arith.addf %707, %715 : vector<16x256xf32>
    %c0_548 = arith.constant 0 : index
    %c128_549 = arith.constant 128 : index
    %717 = vector.load %arg12[%c0_548, %c128_549] : memref<16x512xbf16, #tpu.memory_space<vmem>>, vector<16x256xbf16>
    %c4_550 = arith.constant 4 : index
    %c0_551 = arith.constant 0 : index
    %c0_552 = arith.constant 0 : index
    %718 = vector.load %arg8[%c4_550, %c0_551, %c0_552] : memref<9x16x16xbf16, #tpu.memory_space<vmem>>, vector<1x16x16xbf16>
    %719 = vector.shape_cast %718 : vector<1x16x16xbf16> to vector<16x16xbf16>
    %cst_553 = arith.constant dense<0.000000e+00> : vector<16x256xf32>
    %720 = tpu.matmul %719, %717, %cst_553 {dimension_numbers = #tpu.dot_dimension_numbers<[1], [0], [0], [1], [0, 0, 1, 1], [], []>} : vector<16x16xbf16>, vector<16x256xbf16>, vector<16x256xf32> -> vector<16x256xf32>
    %721 = arith.addf %716, %720 : vector<16x256xf32>
    %c0_554 = arith.constant 0 : index
    %c129_555 = arith.constant 129 : index
    %722 = vector.load %arg12[%c0_554, %c129_555] : memref<16x512xbf16, #tpu.memory_space<vmem>>, vector<16x256xbf16>
    %cst_556 = arith.constant 0.000000e+00 : bf16
    %723 = vector.broadcast %cst_556 : bf16 to vector<16x256xbf16>
    %724 = vector.shape_cast %20 : vector<1x256xi1> to vector<1x256xi1>
    %725 = vector.broadcast %724 : vector<1x256xi1> to vector<16x256xi1>
    %726 = arith.select %725, %722, %723 : vector<16x256xi1>, vector<16x256xbf16>
    %c5_557 = arith.constant 5 : index
    %c0_558 = arith.constant 0 : index
    %c0_559 = arith.constant 0 : index
    %727 = vector.load %arg8[%c5_557, %c0_558, %c0_559] : memref<9x16x16xbf16, #tpu.memory_space<vmem>>, vector<1x16x16xbf16>
    %728 = vector.shape_cast %727 : vector<1x16x16xbf16> to vector<16x16xbf16>
    %cst_560 = arith.constant dense<0.000000e+00> : vector<16x256xf32>
    %729 = tpu.matmul %728, %726, %cst_560 {dimension_numbers = #tpu.dot_dimension_numbers<[1], [0], [0], [1], [0, 0, 1, 1], [], []>} : vector<16x16xbf16>, vector<16x256xbf16>, vector<16x256xf32> -> vector<16x256xf32>
    %730 = arith.addf %721, %729 : vector<16x256xf32>
    %c0_561 = arith.constant 0 : index
    %c143_562 = arith.constant 143 : index
    %731 = vector.load %arg12[%c0_561, %c143_562] : memref<16x512xbf16, #tpu.memory_space<vmem>>, vector<16x256xbf16>
    %cst_563 = arith.constant 0.000000e+00 : bf16
    %732 = vector.broadcast %cst_563 : bf16 to vector<16x256xbf16>
    %733 = vector.shape_cast %18 : vector<1x256xi1> to vector<1x256xi1>
    %734 = vector.broadcast %733 : vector<1x256xi1> to vector<16x256xi1>
    %735 = arith.select %734, %731, %732 : vector<16x256xi1>, vector<16x256xbf16>
    %c6_564 = arith.constant 6 : index
    %c0_565 = arith.constant 0 : index
    %c0_566 = arith.constant 0 : index
    %736 = vector.load %arg8[%c6_564, %c0_565, %c0_566] : memref<9x16x16xbf16, #tpu.memory_space<vmem>>, vector<1x16x16xbf16>
    %737 = vector.shape_cast %736 : vector<1x16x16xbf16> to vector<16x16xbf16>
    %cst_567 = arith.constant dense<0.000000e+00> : vector<16x256xf32>
    %738 = tpu.matmul %737, %735, %cst_567 {dimension_numbers = #tpu.dot_dimension_numbers<[1], [0], [0], [1], [0, 0, 1, 1], [], []>} : vector<16x16xbf16>, vector<16x256xbf16>, vector<16x256xf32> -> vector<16x256xf32>
    %739 = arith.addf %730, %738 : vector<16x256xf32>
    %c0_568 = arith.constant 0 : index
    %c144_569 = arith.constant 144 : index
    %740 = vector.load %arg12[%c0_568, %c144_569] : memref<16x512xbf16, #tpu.memory_space<vmem>>, vector<16x256xbf16>
    %c7_570 = arith.constant 7 : index
    %c0_571 = arith.constant 0 : index
    %c0_572 = arith.constant 0 : index
    %741 = vector.load %arg8[%c7_570, %c0_571, %c0_572] : memref<9x16x16xbf16, #tpu.memory_space<vmem>>, vector<1x16x16xbf16>
    %742 = vector.shape_cast %741 : vector<1x16x16xbf16> to vector<16x16xbf16>
    %cst_573 = arith.constant dense<0.000000e+00> : vector<16x256xf32>
    %743 = tpu.matmul %742, %740, %cst_573 {dimension_numbers = #tpu.dot_dimension_numbers<[1], [0], [0], [1], [0, 0, 1, 1], [], []>} : vector<16x16xbf16>, vector<16x256xbf16>, vector<16x256xf32> -> vector<16x256xf32>
    %744 = arith.addf %739, %743 : vector<16x256xf32>
    %c0_574 = arith.constant 0 : index
    %c145_575 = arith.constant 145 : index
    %745 = vector.load %arg12[%c0_574, %c145_575] : memref<16x512xbf16, #tpu.memory_space<vmem>>, vector<16x256xbf16>
    %cst_576 = arith.constant 0.000000e+00 : bf16
    %746 = vector.broadcast %cst_576 : bf16 to vector<16x256xbf16>
    %747 = vector.shape_cast %20 : vector<1x256xi1> to vector<1x256xi1>
    %748 = vector.broadcast %747 : vector<1x256xi1> to vector<16x256xi1>
    %749 = arith.select %748, %745, %746 : vector<16x256xi1>, vector<16x256xbf16>
    %c8_577 = arith.constant 8 : index
    %c0_578 = arith.constant 0 : index
    %c0_579 = arith.constant 0 : index
    %750 = vector.load %arg8[%c8_577, %c0_578, %c0_579] : memref<9x16x16xbf16, #tpu.memory_space<vmem>>, vector<1x16x16xbf16>
    %751 = vector.shape_cast %750 : vector<1x16x16xbf16> to vector<16x16xbf16>
    %cst_580 = arith.constant dense<0.000000e+00> : vector<16x256xf32>
    %752 = tpu.matmul %751, %749, %cst_580 {dimension_numbers = #tpu.dot_dimension_numbers<[1], [0], [0], [1], [0, 0, 1, 1], [], []>} : vector<16x16xbf16>, vector<16x256xbf16>, vector<16x256xf32> -> vector<16x256xf32>
    %753 = arith.addf %744, %752 : vector<16x256xf32>
    %c0_581 = arith.constant 0 : index
    %c0_582 = arith.constant 0 : index
    %754 = vector.load %arg9[%c0_581, %c0_582] : memref<16x1xf32, #tpu.memory_space<vmem>>, vector<16x1xf32>
    %755 = vector.broadcast %754 : vector<16x1xf32> to vector<16x256xf32>
    %756 = arith.addf %753, %755 : vector<16x256xf32>
    %cst_583 = arith.constant 0.000000e+00 : f32
    %757 = vector.broadcast %cst_583 : f32 to vector<16x256xf32>
    %758 = arith.maximumf %756, %757 : vector<16x256xf32>
    %c1_584 = arith.constant 1 : index
    %c0_585 = arith.constant 0 : index
    %c0_586 = arith.constant 0 : index
    %759 = vector.load %arg10[%c1_584, %c0_585, %c0_586] : memref<2x16x256xf32, #tpu.memory_space<vmem>>, vector<1x16x256xf32>
    %760 = vector.shape_cast %759 : vector<1x16x256xf32> to vector<16x256xf32>
    %761 = vector.shape_cast %758 : vector<16x256xf32> to vector<1x16x256xf32>
    tpu.vector_store %arg10[%c1_584, %c0_585, %c0_586], %761 {strides = array<i32>} : memref<2x16x256xf32, #tpu.memory_space<vmem>>, vector<1x16x256xf32>,
    return
  }
  func.func @transform_0(%arg0: i32) -> (i32, i32, i32) {
    %c0_i32 = arith.constant 0 : i32
    %c0_i32_0 = arith.constant 0 : i32
    %c0_i32_1 = arith.constant 0 : i32
    return %arg0, %c0_i32, %c0_i32_0 : i32, i32, i32
  }
  func.func @transform_1(%arg0: i32) -> (i32, i32, i32) {
    %c0_i32 = arith.constant 0 : i32
    %c0_i32_0 = arith.constant 0 : i32
    %c0_i32_1 = arith.constant 0 : i32
    return %arg0, %c0_i32, %c0_i32_0 : i32, i32, i32
  }
  func.func @transform_2(%arg0: i32) -> (i32, i32) {
    %c0_i32 = arith.constant 0 : i32
    %c0_i32_0 = arith.constant 0 : i32
    %c0_i32_1 = arith.constant 0 : i32
    return %c0_i32, %c0_i32_0 : i32, i32
  }
  func.func @transform_3(%arg0: i32) -> (i32, i32) {
    %c0_i32 = arith.constant 0 : i32
    %c0_i32_0 = arith.constant 0 : i32
    %c0_i32_1 = arith.constant 0 : i32
    return %c0_i32, %c0_i32_0 : i32, i32
  }
  func.func @transform_4(%arg0: i32) -> (i32, i32, i32) {
    %c0_i32 = arith.constant 0 : i32
    %c0_i32_0 = arith.constant 0 : i32
    %c0_i32_1 = arith.constant 0 : i32
    %c0_i32_2 = arith.constant 0 : i32
    return %c0_i32, %c0_i32_0, %c0_i32_1 : i32, i32, i32
  }
  func.func @transform_5(%arg0: i32) -> (i32, i32, i32) {
    %c0_i32 = arith.constant 0 : i32
    %c0_i32_0 = arith.constant 0 : i32
    %c0_i32_1 = arith.constant 0 : i32
    %c0_i32_2 = arith.constant 0 : i32
    return %c0_i32, %c0_i32_0, %c0_i32_1 : i32, i32, i32
  }
  func.func @transform_6(%arg0: i32) -> (i32, i32) {
    %c0_i32 = arith.constant 0 : i32
    %c0_i32_0 = arith.constant 0 : i32
    %c0_i32_1 = arith.constant 0 : i32
    return %c0_i32, %c0_i32_0 : i32, i32
  }
  func.func @transform_7(%arg0: i32) -> (i32, i32, i32) {
    %c0_i32 = arith.constant 0 : i32
    %c0_i32_0 = arith.constant 0 : i32
    %c0_i32_1 = arith.constant 0 : i32
    %c0_i32_2 = arith.constant 0 : i32
    return %c0_i32, %c0_i32_0, %c0_i32_1 : i32, i32, i32
  }
  func.func @transform_8(%arg0: i32) -> (i32, i32) {
    %c0_i32 = arith.constant 0 : i32
    %c0_i32_0 = arith.constant 0 : i32
    %c0_i32_1 = arith.constant 0 : i32
    return %c0_i32, %c0_i32_0 : i32, i32
  }
  func.func @transform_9(%arg0: i32) -> (i32, i32, i32) {
    %c0_i32 = arith.constant 0 : i32
    %c0_i32_0 = arith.constant 0 : i32
    %c0_i32_1 = arith.constant 0 : i32
    return %arg0, %c0_i32, %c0_i32_0 : i32, i32, i32
  }
}

</mosaic_0001>

<llo_original>
// kernel: tpu_custom_call.1
$region0: #{tpu_custom_call.1}
  #allocation0 [shape = 'u32[]', space=smem, size = 0x4, offset = 0x4, fixed_abs, tag = 'smem constant byte address 0x4 - core index']
  #allocation1 [shape = 'u32[144,128]{1,0:T(1,128)}', space=vmem, size = 0x12000, scoped, tag = 'internal scratch']
  #allocation2 [shape = 'bf16[32,512]{1,0:T(16,128)(2,1)}', space=vmem, size = 0x8000, scoped, tag = 'scratch operand']
  #allocation3 [shape = 'bf16[16,512]{1,0:T(16,128)(2,1)}', space=vmem, size = 0x4000, scoped, tag = 'scratch operand']
  %s0 = inlined_call_operand.hbm [shape: bf16[2,16,64], index: 0, kind: input, shape index: {}]
  %s1 = inlined_call_operand.vmem [shape: bf16[2,16,256], index: 1, kind: input, shape index: {}]
  %s2 = inlined_call_operand.vmem [shape: bf16[64,16], index: 2, kind: input, shape index: {}]
  %s3 = inlined_call_operand.vmem [shape: f32[16,1], index: 3, kind: input, shape index: {}]
  %s4 = inlined_call_operand.hbm [shape: f32[2,8,16], index: 4, kind: input, shape index: {}]
  %s5 = inlined_call_operand.vmem [shape: bf16[9,16,32], index: 5, kind: input, shape index: {}]
  %s6 = inlined_call_operand.vmem [shape: f32[16,1], index: 6, kind: input, shape index: {}]
  %s7 = inlined_call_operand.hbm [shape: bf16[9,16,16], index: 7, kind: input, shape index: {}]
  %s8 = inlined_call_operand.vmem [shape: f32[16,1], index: 8, kind: input, shape index: {}]
  %s9 = inlined_call_operand.hbm [shape: f32[2,16,256], index: 9, kind: output, shape index: {}]
  %s10 = sld [smem:[#allocation0]]
  $region58: #{tpu_custom_call.1} parent=0
    _
  %s12 = ssub.s32 1, %s10
  %s13 = scalar_select 0, %s12, %s10
  $region1: #{tpu_custom_call.1} parent=0
    #allocation4 [shape = 'u8[8192]{0}', space=vmem, size = 0x2000, scoped, tag = 'input window, operand 0, single buffered']
    #allocation5 [shape = 's32[1]{0}', space=sflag, size = 0x4, scoped, tag = 'scoped memory for tpu_custom_call.1']
    #allocation6 [shape = 's32[1]{0}', space=sflag, size = 0x4, scoped, tag = 'scoped memory for tpu_custom_call.1']
    #allocation7 [shape = 'u8[8192]{0}', space=vmem, size = 0x2000, scoped, tag = 'input window, operand 4, single buffered']
    #allocation8 [shape = 's32[1]{0}', space=sflag, size = 0x4, scoped, tag = 'scoped memory for tpu_custom_call.1']
    #allocation9 [shape = 'u8[36864]{0}', space=vmem, size = 0x9000, scoped, tag = 'input window, operand 7, single buffered']
    #allocation10 [shape = 'u8[32768]{0}', space=vmem, size = 0x8000, scoped, tag = 'output window, operand 0, single buffered']
    %14 = vsyncpa [#allocation5], 0
    %15 = vsyncpa [#allocation8], 0
    %16 = vsyncpa [#allocation6], 0
    // Predicated region
    $region2: #{tpu_custom_call.1} parent=1 // pred_check
      _
    $region3: #{tpu_custom_call.1} parent=1 // pred_check_branch
      %18 = sbr.rel (0) target = $region5
    $region4: #{tpu_custom_call.1} parent=1 // pred_region
      %s20 = ssub.s32 256, 256
      %21 = vsyncadd [#allocation5], %s20
      %s22 = sshll.u32 [#allocation4], 4
      %s23 = int_to_ptr.vmem [resolvable:$true] %s22
      %28 = dma.hbm_to_vmem [thread:$0]  %s0, 256, %s23, [#allocation5], 64, 64, 4
    $region5: #{tpu_custom_call.1} parent=1 // pred_fallthru
      _
    // Predicated region
    $region6: #{tpu_custom_call.1} parent=1 // pred_check
      _
    $region7: #{tpu_custom_call.1} parent=1 // pred_check_branch
      %30 = sbr.rel (0) target = $region9
    $region8: #{tpu_custom_call.1} parent=1 // pred_region
      _
    $region9: #{tpu_custom_call.1} parent=1 // pred_fallthru
      _
    // Predicated region
    $region10: #{tpu_custom_call.1} parent=1 // pred_check
      _
    $region11: #{tpu_custom_call.1} parent=1 // pred_check_branch
      %32 = sbr.rel (0) target = $region13
    $region12: #{tpu_custom_call.1} parent=1 // pred_region
      _
    $region13: #{tpu_custom_call.1} parent=1 // pred_fallthru
      _
    // Predicated region
    $region14: #{tpu_custom_call.1} parent=1 // pred_check
      _
    $region15: #{tpu_custom_call.1} parent=1 // pred_check_branch
      %34 = sbr.rel (0) target = $region17
    $region16: #{tpu_custom_call.1} parent=1 // pred_region
      _
    $region17: #{tpu_custom_call.1} parent=1 // pred_fallthru
      _
    // Predicated region
    $region18: #{tpu_custom_call.1} parent=1 // pred_check
      _
    $region19: #{tpu_custom_call.1} parent=1 // pred_check_branch
      %36 = sbr.rel (0) target = $region21
    $region20: #{tpu_custom_call.1} parent=1 // pred_region
      %s38 = ssub.s32 256, 256
      %39 = vsyncadd [#allocation8], %s38
      %s40 = sshll.u32 [#allocation7], 4
      %s41 = int_to_ptr.vmem [resolvable:$true] %s40
      %46 = dma.hbm_to_vmem [thread:$0]  %s4, 256, %s41, [#allocation8], 128, 128, 8
    $region21: #{tpu_custom_call.1} parent=1 // pred_fallthru
      _
    // Predicated region
    $region22: #{tpu_custom_call.1} parent=1 // pred_check
      _
    $region23: #{tpu_custom_call.1} parent=1 // pred_check_branch
      %48 = sbr.rel (0) target = $region25
    $region24: #{tpu_custom_call.1} parent=1 // pred_region
      _
    $region25: #{tpu_custom_call.1} parent=1 // pred_fallthru
      _
    // Predicated region
    $region26: #{tpu_custom_call.1} parent=1 // pred_check
      _
    $region27: #{tpu_custom_call.1} parent=1 // pred_check_branch
      %50 = sbr.rel (0) target = $region29
    $region28: #{tpu_custom_call.1} parent=1 // pred_region
      _
    $region29: #{tpu_custom_call.1} parent=1 // pred_fallthru
      _
    // Predicated region
    $region30: #{tpu_custom_call.1} parent=1 // pred_check
      _
    $region31: #{tpu_custom_call.1} parent=1 // pred_check_branch
      %52 = sbr.rel (0) target = $region33
    $region32: #{tpu_custom_call.1} parent=1 // pred_region
      %s54 = ssub.s32 1152, 1152
      %55 = vsyncadd [#allocation8], %s54
      %s56 = sshll.u32 [#allocation9], 4
      %s57 = int_to_ptr.vmem [resolvable:$true] %s56
      %62 = dma.hbm_to_vmem [thread:$0]  %s7, 1152, %s57, [#allocation8], 64, 64, 4
    $region33: #{tpu_custom_call.1} parent=1 // pred_fallthru
      _
    // Predicated region
    $region34: #{tpu_custom_call.1} parent=1 // pred_check
      _
    $region35: #{tpu_custom_call.1} parent=1 // pred_check_branch
      %64 = sbr.rel (0) target = $region37
    $region36: #{tpu_custom_call.1} parent=1 // pred_region
      _
    $region37: #{tpu_custom_call.1} parent=1 // pred_fallthru
      _
    // Predicated region
    $region38: #{tpu_custom_call.1} parent=1 // pred_check
      _
    $region39: #{tpu_custom_call.1} parent=1 // pred_check_branch
      %66 = sbr.rel (0) target = $region41
    $region40: #{tpu_custom_call.1} parent=1 // pred_region
      %67 = dma.done [#allocation5], 256
    $region41: #{tpu_custom_call.1} parent=1 // pred_fallthru
      _
    // Predicated region
    $region42: #{tpu_custom_call.1} parent=1 // pred_check
      _
    $region43: #{tpu_custom_call.1} parent=1 // pred_check_branch
      %69 = sbr.rel (0) target = $region45
    $region44: #{tpu_custom_call.1} parent=1 // pred_region
      %70 = dma.done [#allocation8], 256
    $region45: #{tpu_custom_call.1} parent=1 // pred_fallthru
      _
    // Predicated region
    $region46: #{tpu_custom_call.1} parent=1 // pred_check
      _
    $region47: #{tpu_custom_call.1} parent=1 // pred_check_branch
      %72 = sbr.rel (0) target = $region49
    $region48: #{tpu_custom_call.1} parent=1 // pred_region
      %73 = dma.done [#allocation8], 1152
    $region49: #{tpu_custom_call.1} parent=1 // pred_fallthru
      _
    %v77 = vlaneseq
    %v78 = vand.u32 %v77, 127
    %v79 = vadd.s32 %v78, 128
    %vm80 = vcmp.lt.s32.totalorder %v78, 0
    %v81 = vsub.s32 0, %v78
    %v82 = vsel %vm80, %v81, %v78
    %v83 = vshrl.u32 %v82, 4
    %v84 = vand.u32 %v82, 15
    %v85 = vsub.s32 0, %v84
    %v86 = vsel %vm80, %v85, %v84
    %vm87 = vcmp.lt.s32.totalorder %v79, 0
    %v88 = vsub.s32 0, %v79
    %v89 = vsel %vm87, %v88, %v79
    %v90 = vshrl.u32 %v89, 4
    %v91 = vand.u32 %v89, 15
    %v92 = vsub.s32 0, %v91
    %v93 = vsel %vm87, %v92, %v91
    %vm94 = vcmp.ne.s32.totalorder %v86, 0
    %vm95 = vcmp.ne.s32.totalorder %v93, 0
    %vm96 = vcmp.lt.s32.totalorder %v86, 0
    %vm97 = vcmp.lt.s32.totalorder %v93, 0
    %vm98 = vmand %vm96, %vm94
    %vm99 = vmand %vm97, %vm95
    %v100 = vadd.s32 %v86, 16
    %v101 = vadd.s32 %v93, 16
    %v102 = vsel %vm98, %v100, %v86
    %v103 = vsel %vm99, %v101, %v93
    %vm104 = vcmp.ge.s32.totalorder %v102, 1
    %vm105 = vcmp.ge.s32.totalorder %v103, 1
    %vm106 = vcmp.lt.s32.totalorder %v102, 15
    %vm107 = vcmp.lt.s32.totalorder %v103, 15
    %108 = vst [vmem:[#allocation2] sm:$0xff] 0
    %109 = vst [vmem:[#allocation2 + $0x20] sm:$0xff] 0
    %110 = vst [vmem:[#allocation2 + $0x18] sm:$0xff] 0
    %111 = vst [vmem:[#allocation2 + $0x38] sm:$0xff] 0
    %112 = vst [vmem:[#allocation3] sm:$0xff] 0
    %113 = vst [vmem:[#allocation3 + $0x18] sm:$0xff] 0
    %v114 = vld [vmem:[%s3] sm:$0xff]
    %v115 = vld [vmem:[%s3 + $0x8] sm:$0xff]
    %v116 = vld [vmem:[%s1] sm:$0xff]
    %v117 = vld [vmem:[%s1 + $0x8] sm:$0xff]
    %v120 = vunpack.c.l.b16 %v116
    %v121 = vunpack.c.h.b16 %v116
    %v122 = vunpack.c.l.b16 %v117
    %v123 = vunpack.c.h.b16 %v117
    %v124 = vpack.c.b16 %v122, %v120
    %v125 = vpack.c.b16 %v123, %v121
    %128 = vst [vmem:[#allocation2 + $0x8] sm:$0xff] %v124
    %129 = vst [vmem:[#allocation2 + $0x10] sm:$0xff] %v125
    %v130 = vld [vmem:[%s2] sm:$0xf]
    %v131 = vld [vmem:[%s2 + $0x4] sm:$0xf]
    %v132 = vld [vmem:[%s2 + $0x8] sm:$0xf]
    %v133 = vld [vmem:[%s2 + $0xc] sm:$0xf]
    %v134 = vld [vmem:[%s2 + $0x10] sm:$0xf]
    %v135 = vld [vmem:[%s2 + $0x14] sm:$0xf]
    %v136 = vld [vmem:[%s2 + $0x18] sm:$0xf]
    %v137 = vld [vmem:[%s2 + $0x1c] sm:$0xf]
    %v138 = vld [vmem:[#allocation4] sm:$0xf]
    %v139 = vld [vmem:[#allocation4 + $0x4] sm:$0xf]
    %v148 = vunpack.c.l.b16 %v130
    %v149 = vunpack.c.l.b16 %v131
    %v150 = vunpack.c.l.b16 %v132
    %v151 = vunpack.c.l.b16 %v133
    %v152 = vunpack.c.l.b16 %v134
    %v153 = vunpack.c.l.b16 %v135
    %v154 = vunpack.c.l.b16 %v136
    %v155 = vunpack.c.l.b16 %v137
    %v156 = vpack.c.b16 %v149, %v148
    %v157 = vpack.c.b16 %v151, %v150
    %v158 = vpack.c.b16 %v153, %v152
    %v159 = vpack.c.b16 %v155, %v154
    %v162 = vunpack.c.l.b16 %v138
    %v163 = vunpack.c.l.b16 %v139
    %v164 = vpack.c.b16 %v163, %v162
    %vm166 = vcmask 130048
    %v168 = vsel %vm166, %v156, 0
    %v171 = vsel %vm166, %v157, 0
    %v174 = vsel %vm166, %v158, 0
    %v177 = vsel %vm166, %v159, 0
    %179 = vmatprep.subr.bf16.mxu0 0
    %180 = vmatpush1.bf16.msra.mxu0 %v164
    %181 = vmatprep.subr.bf16.mxu0 0
    %182 = vmatpush1.bf16.msra.mxu0 0
    %183 = vmatprep.subr.bf16.mxu0 0
    %184 = vmatpush1.bf16.msra.mxu0 0
    %185 = vmatprep.subr.bf16.mxu0 0
    %186 = vmatpush1.bf16.msra.mxu0 0
    %187 = vmatprep.subr.bf16.mxu0 0
    %188 = vmatpush1.bf16.msra.mxu0 0
    %189 = vmatprep.subr.bf16.mxu0 0
    %190 = vmatpush1.bf16.msra.mxu0 0
    %191 = vmatprep.subr.bf16.mxu0 0
    %192 = vmatpush1.bf16.msra.mxu0 0
    %193 = vmatprep.subr.bf16.mxu0 0
    %194 = vmatpush1.bf16.msra.mxu0 0
    %195 = vmatprep.subr.bf16.mxu0 0
    %196 = vmatpush1.bf16.msra.mxu0 0
    %197 = vmatprep.subr.bf16.mxu0 0
    %198 = vmatpush1.bf16.msra.mxu0 0
    %199 = vmatprep.subr.bf16.mxu0 0
    %200 = vmatpush1.bf16.msra.mxu0 0
    %201 = vmatprep.subr.bf16.mxu0 0
    %202 = vmatpush1.bf16.msra.mxu0 0
    %203 = vmatprep.subr.bf16.mxu0 0
    %204 = vmatpush1.bf16.msra.mxu0 0
    %205 = vmatprep.subr.bf16.mxu0 0
    %206 = vmatpush1.bf16.msra.mxu0 0
    %207 = vmatprep.subr.bf16.mxu0 0
    %208 = vmatpush1.bf16.msra.mxu0 0
    %209 = vmatprep.subr.bf16.mxu0 0
    %210 = vmatpush1.bf16.msra.mxu0 0
    %211 = vmatprep.mubr.bf16.mxu0 0
    %212 = vmatmul.mubr.bf16.gmra.mrb[0].mxu0 %v168
    %v213 = vpop.f32.mrb[0].mxu0
    %v214 = vadd.f32 0.0, %v213
    %v215 = vpop.f32.mrb[0].mxu0
    %v216 = vpop.f32.mrb[0].mxu0
    %v217 = vadd.f32 0.0, %v216
    %v218 = vpop.f32.mrb[0].mxu0
    %219 = vmatprep.mubr.bf16.mxu0 0
    %220 = vmatmul.mubr.bf16.gmra.mrb[0].mxu0 %v171
    %v221 = vpop.f32.mrb[0].mxu0
    %v222 = vadd.f32 0.0, %v221
    %v223 = vpop.f32.mrb[0].mxu0
    %v224 = vpop.f32.mrb[0].mxu0
    %v225 = vadd.f32 0.0, %v224
    %v226 = vpop.f32.mrb[0].mxu0
    %227 = vmatprep.mubr.bf16.mxu0 0
    %228 = vmatmul.mubr.bf16.gmra.mrb[0].mxu0 %v174
    %v229 = vpop.f32.mrb[0].mxu0
    %v230 = vadd.f32 0.0, %v229
    %v231 = vpop.f32.mrb[0].mxu0
    %v232 = vpop.f32.mrb[0].mxu0
    %v233 = vadd.f32 0.0, %v232
    %v234 = vpop.f32.mrb[0].mxu0
    %235 = vmatprep.mubr.bf16.mxu0 0
    %236 = vmatmul.mubr.bf16.gmra.mrb[0].mxu0 %v177
    %v237 = vpop.f32.mrb[0].mxu0
    %v238 = vadd.f32 0.0, %v237
    %v239 = vpop.f32.mrb[0].mxu0
    %v240 = vpop.f32.mrb[0].mxu0
    %v241 = vadd.f32 0.0, %v240
    %v242 = vpop.f32.mrb[0].mxu0
    %243 = vdwg.mxu0
    %v244 = vld [vmem:[#allocation7] sm:$0xff]
    %s245 = scalar_lea.vmem [#allocation7], 8
    %v246 = vld [vmem:[%s245] sm:$0xff]
    %vm247 = vcmask 64512
    %v249 = vsel %vm247, %v222, 0
    %v252 = vsel %vm247, %v225, 0
    %254 = vmatprep.subr.mxu0 0.0
    %255 = vmatpush1.msra.mxu0 %v246
    %256 = vmatprep.subr.mxu0 0.0
    %257 = vmatpush1.msra.mxu0 0.0
    %258 = vmatprep.subr.mxu0 0.0
    %259 = vmatpush1.msra.mxu0 0.0
    %260 = vmatprep.subr.mxu0 0.0
    %261 = vmatpush1.msra.mxu0 0.0
    %262 = vmatprep.subr.mxu0 0.0
    %263 = vmatpush1.msra.mxu0 0.0
    %264 = vmatprep.subr.mxu0 0.0
    %265 = vmatpush1.msra.mxu0 0.0
    %266 = vmatprep.subr.mxu0 0.0
    %267 = vmatpush1.msra.mxu0 0.0
    %268 = vmatprep.subr.mxu0 0.0
    %269 = vmatpush1.msra.mxu0 0.0
    %270 = vmatprep.subr.mxu0 0.0
    %271 = vmatpush1.msra.mxu0 0.0
    %272 = vmatprep.subr.mxu0 0.0
    %273 = vmatpush1.msra.mxu0 0.0
    %274 = vmatprep.subr.mxu0 0.0
    %275 = vmatpush1.msra.mxu0 0.0
    %276 = vmatprep.subr.mxu0 0.0
    %277 = vmatpush1.msra.mxu0 0.0
    %278 = vmatprep.subr.mxu0 0.0
    %279 = vmatpush1.msra.mxu0 0.0
    %280 = vmatprep.subr.mxu0 0.0
    %281 = vmatpush1.msra.mxu0 0.0
    %282 = vmatprep.subr.mxu0 0.0
    %283 = vmatpush1.msra.mxu0 0.0
    %284 = vmatprep.subr.mxu0 0.0
    %285 = vmatpush1.msra.mxu0 0.0
    %286 = vmatprep.subr.mxu0 0.0
    %287 = vmatpush1.msra.mxu0 0.0
    %288 = vmatprep.subr.mxu0 0.0
    %289 = vmatpush1.msra.mxu0 0.0
    %290 = vmatprep.subr.mxu0 0.0
    %291 = vmatpush1.msra.mxu0 0.0
    %292 = vmatprep.subr.mxu0 0.0
    %293 = vmatpush1.msra.mxu0 0.0
    %294 = vmatprep.subr.mxu0 0.0
    %295 = vmatpush1.msra.mxu0 0.0
    %296 = vmatprep.subr.mxu0 0.0
    %297 = vmatpush1.msra.mxu0 0.0
    %298 = vmatprep.subr.mxu0 0.0
    %299 = vmatpush1.msra.mxu0 0.0
    %300 = vmatprep.subr.mxu0 0.0
    %301 = vmatpush1.msra.mxu0 0.0
    %302 = vmatprep.subr.mxu0 0.0
    %303 = vmatpush1.msra.mxu0 0.0
    %304 = vmatprep.subr.mxu0 0.0
    %305 = vmatpush1.msra.mxu0 0.0
    %306 = vmatprep.subr.mxu0 0.0
    %307 = vmatpush1.msra.mxu0 0.0
    %308 = vmatprep.subr.mxu0 0.0
    %309 = vmatpush1.msra.mxu0 0.0
    %310 = vmatprep.subr.mxu0 0.0
    %311 = vmatpush1.msra.mxu0 0.0
    %312 = vmatprep.subr.mxu0 0.0
    %313 = vmatpush1.msra.mxu0 0.0
    %314 = vmatprep.subr.mxu0 0.0
    %315 = vmatpush1.msra.mxu0 0.0
    %316 = vmatprep.subr.mxu0 0.0
    %317 = vmatpush1.msra.mxu0 0.0
    %318 = vmatprep.mubr.f32.mxu0 0.0
    %319 = vmatmul.mubr.f32.gmra.mrb[0].mxu0 %v249
    %v320 = vpop.f32.mrb[0].mxu0
    %v321 = vadd.f32 0.0, %v320
    %v322 = vpop.f32.mrb[0].mxu0
    %323 = vmatprep.mubr.f32.mxu0 0.0
    %324 = vmatmul.mubr.f32.gmra.mrb[0].mxu0 %v252
    %v325 = vpop.f32.mrb[0].mxu0
    %v326 = vadd.f32 0.0, %v325
    %v327 = vpop.f32.mrb[0].mxu0
    %328 = vdwg.mxu0
    %v330 = vsel %vm247, %v214, 0
    %v333 = vsel %vm247, %v217, 0
    %335 = vmatprep.subr.mxu0 0.0
    %336 = vmatpush1.msra.mxu0 %v244
    %337 = vmatprep.subr.mxu0 0.0
    %338 = vmatpush1.msra.mxu0 0.0
    %339 = vmatprep.subr.mxu0 0.0
    %340 = vmatpush1.msra.mxu0 0.0
    %341 = vmatprep.subr.mxu0 0.0
    %342 = vmatpush1.msra.mxu0 0.0
    %343 = vmatprep.subr.mxu0 0.0
    %344 = vmatpush1.msra.mxu0 0.0
    %345 = vmatprep.subr.mxu0 0.0
    %346 = vmatpush1.msra.mxu0 0.0
    %347 = vmatprep.subr.mxu0 0.0
    %348 = vmatpush1.msra.mxu0 0.0
    %349 = vmatprep.subr.mxu0 0.0
    %350 = vmatpush1.msra.mxu0 0.0
    %351 = vmatprep.subr.mxu0 0.0
    %352 = vmatpush1.msra.mxu0 0.0
    %353 = vmatprep.subr.mxu0 0.0
    %354 = vmatpush1.msra.mxu0 0.0
    %355 = vmatprep.subr.mxu0 0.0
    %356 = vmatpush1.msra.mxu0 0.0
    %357 = vmatprep.subr.mxu0 0.0
    %358 = vmatpush1.msra.mxu0 0.0
    %359 = vmatprep.subr.mxu0 0.0
    %360 = vmatpush1.msra.mxu0 0.0
    %361 = vmatprep.subr.mxu0 0.0
    %362 = vmatpush1.msra.mxu0 0.0
    %363 = vmatprep.subr.mxu0 0.0
    %364 = vmatpush1.msra.mxu0 0.0
    %365 = vmatprep.subr.mxu0 0.0
    %366 = vmatpush1.msra.mxu0 0.0
    %367 = vmatprep.subr.mxu0 0.0
    %368 = vmatpush1.msra.mxu0 0.0
    %369 = vmatprep.subr.mxu0 0.0
    %370 = vmatpush1.msra.mxu0 0.0
    %371 = vmatprep.subr.mxu0 0.0
    %372 = vmatpush1.msra.mxu0 0.0
    %373 = vmatprep.subr.mxu0 0.0
    %374 = vmatpush1.msra.mxu0 0.0
    %375 = vmatprep.subr.mxu0 0.0
    %376 = vmatpush1.msra.mxu0 0.0
    %377 = vmatprep.subr.mxu0 0.0
    %378 = vmatpush1.msra.mxu0 0.0
    %379 = vmatprep.subr.mxu0 0.0
    %380 = vmatpush1.msra.mxu0 0.0
    %381 = vmatprep.subr.mxu0 0.0
    %382 = vmatpush1.msra.mxu0 0.0
    %383 = vmatprep.subr.mxu0 0.0
    %384 = vmatpush1.msra.mxu0 0.0
    %385 = vmatprep.subr.mxu0 0.0
    %386 = vmatpush1.msra.mxu0 0.0
    %387 = vmatprep.subr.mxu0 0.0
    %388 = vmatpush1.msra.mxu0 0.0
    %389 = vmatprep.subr.mxu0 0.0
    %390 = vmatpush1.msra.mxu0 0.0
    %391 = vmatprep.subr.mxu0 0.0
    %392 = vmatpush1.msra.mxu0 0.0
    %393 = vmatprep.subr.mxu0 0.0
    %394 = vmatpush1.msra.mxu0 0.0
    %395 = vmatprep.subr.mxu0 0.0
    %396 = vmatpush1.msra.mxu0 0.0
    %397 = vmatprep.subr.mxu0 0.0
    %398 = vmatpush1.msra.mxu0 0.0
    %399 = vmatprep.mubr.f32.mxu0 0.0
    %400 = vmatmul.mubr.f32.gmra.mrb[0].mxu0 %v330
    %v401 = vpop.f32.mrb[0].mxu0
    %v402 = vadd.f32 %v321, %v401
    %v403 = vpop.f32.mrb[0].mxu0
    %404 = vmatprep.mubr.f32.mxu0 0.0
    %405 = vmatmul.mubr.f32.gmra.mrb[0].mxu0 %v333
    %v406 = vpop.f32.mrb[0].mxu0
    %v407 = vadd.f32 %v326, %v406
    %v408 = vpop.f32.mrb[0].mxu0
    %409 = vdwg.mxu0
    %411 = vset.pattern.permute.xlu0 0
    %412 = vperm.xlu0 %411, %v114
    %v413 = vpop.permute.xlu0 %412
    %416 = vset.pattern.permute.xlu0 0
    %417 = vperm.xlu0 %416, %v115
    %v418 = vpop.permute.xlu0 %417
    %v420 = vadd.f32 %v402, %v413
    %v421 = vadd.f32 %v407, %v418
    %v422 = vpack.c.bf16 %v421, %v420
    %423 = vst.msk [vmem:[#allocation2 + $0x28] sm:$0xff] %vm166, %v422
    %v424 = vld [vmem:[#allocation7] sm:$0xff]
    %v425 = vld [vmem:[%s245] sm:$0xff]
    %426 = vrot.lane.b32.xlu0 %v222, 120
    %v427 = vpop.permute.xlu0 %426
    %428 = vrot.lane.b32.xlu0 %v225, 120
    %v429 = vpop.permute.xlu0 %428
    %v430 = vsel %vm247, %v427, 0
    %v432 = vsel %vm247, %v429, 0
    %434 = vmatprep.subr.mxu0 0.0
    %435 = vmatpush1.msra.mxu0 %v425
    %436 = vmatprep.subr.mxu0 0.0
    %437 = vmatpush1.msra.mxu0 0.0
    %438 = vmatprep.subr.mxu0 0.0
    %439 = vmatpush1.msra.mxu0 0.0
    %440 = vmatprep.subr.mxu0 0.0
    %441 = vmatpush1.msra.mxu0 0.0
    %442 = vmatprep.subr.mxu0 0.0
    %443 = vmatpush1.msra.mxu0 0.0
    %444 = vmatprep.subr.mxu0 0.0
    %445 = vmatpush1.msra.mxu0 0.0
    %446 = vmatprep.subr.mxu0 0.0
    %447 = vmatpush1.msra.mxu0 0.0
    %448 = vmatprep.subr.mxu0 0.0
    %449 = vmatpush1.msra.mxu0 0.0
    %450 = vmatprep.subr.mxu0 0.0
    %451 = vmatpush1.msra.mxu0 0.0
    %452 = vmatprep.subr.mxu0 0.0
    %453 = vmatpush1.msra.mxu0 0.0
    %454 = vmatprep.subr.mxu0 0.0
    %455 = vmatpush1.msra.mxu0 0.0
    %456 = vmatprep.subr.mxu0 0.0
    %457 = vmatpush1.msra.mxu0 0.0
    %458 = vmatprep.subr.mxu0 0.0
    %459 = vmatpush1.msra.mxu0 0.0
    %460 = vmatprep.subr.mxu0 0.0
    %461 = vmatpush1.msra.mxu0 0.0
    %462 = vmatprep.subr.mxu0 0.0
    %463 = vmatpush1.msra.mxu0 0.0
    %464 = vmatprep.subr.mxu0 0.0
    %465 = vmatpush1.msra.mxu0 0.0
    %466 = vmatprep.subr.mxu0 0.0
    %467 = vmatpush1.msra.mxu0 0.0
    %468 = vmatprep.subr.mxu0 0.0
    %469 = vmatpush1.msra.mxu0 0.0
    %470 = vmatprep.subr.mxu0 0.0
    %471 = vmatpush1.msra.mxu0 0.0
    %472 = vmatprep.subr.mxu0 0.0
    %473 = vmatpush1.msra.mxu0 0.0
    %474 = vmatprep.subr.mxu0 0.0
    %475 = vmatpush1.msra.mxu0 0.0
    %476 = vmatprep.subr.mxu0 0.0
    %477 = vmatpush1.msra.mxu0 0.0
    %478 = vmatprep.subr.mxu0 0.0
    %479 = vmatpush1.msra.mxu0 0.0
    %480 = vmatprep.subr.mxu0 0.0
    %481 = vmatpush1.msra.mxu0 0.0
    %482 = vmatprep.subr.mxu0 0.0
    %483 = vmatpush1.msra.mxu0 0.0
    %484 = vmatprep.subr.mxu0 0.0
    %485 = vmatpush1.msra.mxu0 0.0
    %486 = vmatprep.subr.mxu0 0.0
    %487 = vmatpush1.msra.mxu0 0.0
    %488 = vmatprep.subr.mxu0 0.0
    %489 = vmatpush1.msra.mxu0 0.0
    %490 = vmatprep.subr.mxu0 0.0
    %491 = vmatpush1.msra.mxu0 0.0
    %492 = vmatprep.subr.mxu0 0.0
    %493 = vmatpush1.msra.mxu0 0.0
    %494 = vmatprep.subr.mxu0 0.0
    %495 = vmatpush1.msra.mxu0 0.0
    %496 = vmatprep.subr.mxu0 0.0
    %497 = vmatpush1.msra.mxu0 0.0
    %498 = vmatprep.mubr.f32.mxu0 0.0
    %499 = vmatmul.mubr.f32.gmra.mrb[0].mxu0 %v430
    %v500 = vpop.f32.mrb[0].mxu0
    %v501 = vadd.f32 0.0, %v500
    %v502 = vpop.f32.mrb[0].mxu0
    %503 = vmatprep.mubr.f32.mxu0 0.0
    %504 = vmatmul.mubr.f32.gmra.mrb[0].mxu0 %v432
    %v505 = vpop.f32.mrb[0].mxu0
    %v506 = vadd.f32 0.0, %v505
    %v507 = vpop.f32.mrb[0].mxu0
    %508 = vdwg.mxu0
    %509 = vrot.lane.b32.xlu0 %v214, 120
    %v510 = vpop.permute.xlu0 %509
    %511 = vrot.lane.b32.xlu0 %v217, 120
    %v512 = vpop.permute.xlu0 %511
    %v513 = vsel %vm247, %v510, 0
    %v515 = vsel %vm247, %v512, 0
    %517 = vmatprep.subr.mxu0 0.0
    %518 = vmatpush1.msra.mxu0 %v424
    %519 = vmatprep.subr.mxu0 0.0
    %520 = vmatpush1.msra.mxu0 0.0
    %521 = vmatprep.subr.mxu0 0.0
    %522 = vmatpush1.msra.mxu0 0.0
    %523 = vmatprep.subr.mxu0 0.0
    %524 = vmatpush1.msra.mxu0 0.0
    %525 = vmatprep.subr.mxu0 0.0
    %526 = vmatpush1.msra.mxu0 0.0
    %527 = vmatprep.subr.mxu0 0.0
    %528 = vmatpush1.msra.mxu0 0.0
    %529 = vmatprep.subr.mxu0 0.0
    %530 = vmatpush1.msra.mxu0 0.0
    %531 = vmatprep.subr.mxu0 0.0
    %532 = vmatpush1.msra.mxu0 0.0
    %533 = vmatprep.subr.mxu0 0.0
    %534 = vmatpush1.msra.mxu0 0.0
    %535 = vmatprep.subr.mxu0 0.0
    %536 = vmatpush1.msra.mxu0 0.0
    %537 = vmatprep.subr.mxu0 0.0
    %538 = vmatpush1.msra.mxu0 0.0
    %539 = vmatprep.subr.mxu0 0.0
    %540 = vmatpush1.msra.mxu0 0.0
    %541 = vmatprep.subr.mxu0 0.0
    %542 = vmatpush1.msra.mxu0 0.0
    %543 = vmatprep.subr.mxu0 0.0
    %544 = vmatpush1.msra.mxu0 0.0
    %545 = vmatprep.subr.mxu0 0.0
    %546 = vmatpush1.msra.mxu0 0.0
    %547 = vmatprep.subr.mxu0 0.0
    %548 = vmatpush1.msra.mxu0 0.0
    %549 = vmatprep.subr.mxu0 0.0
    %550 = vmatpush1.msra.mxu0 0.0
    %551 = vmatprep.subr.mxu0 0.0
    %552 = vmatpush1.msra.mxu0 0.0
    %553 = vmatprep.subr.mxu0 0.0
    %554 = vmatpush1.msra.mxu0 0.0
    %555 = vmatprep.subr.mxu0 0.0
    %556 = vmatpush1.msra.mxu0 0.0
    %557 = vmatprep.subr.mxu0 0.0
    %558 = vmatpush1.msra.mxu0 0.0
    %559 = vmatprep.subr.mxu0 0.0
    %560 = vmatpush1.msra.mxu0 0.0
    %561 = vmatprep.subr.mxu0 0.0
    %562 = vmatpush1.msra.mxu0 0.0
    %563 = vmatprep.subr.mxu0 0.0
    %564 = vmatpush1.msra.mxu0 0.0
    %565 = vmatprep.subr.mxu0 0.0
    %566 = vmatpush1.msra.mxu0 0.0
    %567 = vmatprep.subr.mxu0 0.0
    %568 = vmatpush1.msra.mxu0 0.0
    %569 = vmatprep.subr.mxu0 0.0
    %570 = vmatpush1.msra.mxu0 0.0
    %571 = vmatprep.subr.mxu0 0.0
    %572 = vmatpush1.msra.mxu0 0.0
    %573 = vmatprep.subr.mxu0 0.0
    %574 = vmatpush1.msra.mxu0 0.0
    %575 = vmatprep.subr.mxu0 0.0
    %576 = vmatpush1.msra.mxu0 0.0
    %577 = vmatprep.subr.mxu0 0.0
    %578 = vmatpush1.msra.mxu0 0.0
    %579 = vmatprep.subr.mxu0 0.0
    %580 = vmatpush1.msra.mxu0 0.0
    %581 = vmatprep.mubr.f32.mxu0 0.0
    %582 = vmatmul.mubr.f32.gmra.mrb[0].mxu0 %v513
    %v583 = vpop.f32.mrb[0].mxu0
    %v584 = vadd.f32 %v501, %v583
    %v585 = vpop.f32.mrb[0].mxu0
    %586 = vmatprep.mubr.f32.mxu0 0.0
    %587 = vmatmul.mubr.f32.gmra.mrb[0].mxu0 %v515
    %v588 = vpop.f32.mrb[0].mxu0
    %v589 = vadd.f32 %v506, %v588
    %v590 = vpop.f32.mrb[0].mxu0
    %591 = vdwg.mxu0
    %v592 = vadd.f32 %v584, %v413
    %v593 = vadd.f32 %v589, %v418
    %v594 = vpack.c.bf16 %v593, %v592
    %596 = vrot.lane.b32.xlu0 %v594, 32
    %v597 = vpop.permute.xlu0 %596
    %vm599 = vcmask 392448
    %600 = vst.msk [vmem:[#allocation2 + $0x28] sm:$0xff] %vm599, %v597
    %v601 = vld [vmem:[#allocation7] sm:$0xff]
    %v602 = vld [vmem:[%s245] sm:$0xff]
    %603 = vrot.lane.b32.xlu0 %v222, 112
    %v604 = vpop.permute.xlu0 %603
    %605 = vrot.lane.b32.xlu0 %v225, 112
    %v606 = vpop.permute.xlu0 %605
    %v607 = vsel %vm247, %v604, 0
    %v609 = vsel %vm247, %v606, 0
    %611 = vmatprep.subr.mxu0 0.0
    %612 = vmatpush1.msra.mxu0 %v602
    %613 = vmatprep.subr.mxu0 0.0
    %614 = vmatpush1.msra.mxu0 0.0
    %615 = vmatprep.subr.mxu0 0.0
    %616 = vmatpush1.msra.mxu0 0.0
    %617 = vmatprep.subr.mxu0 0.0
    %618 = vmatpush1.msra.mxu0 0.0
    %619 = vmatprep.subr.mxu0 0.0
    %620 = vmatpush1.msra.mxu0 0.0
    %621 = vmatprep.subr.mxu0 0.0
    %622 = vmatpush1.msra.mxu0 0.0
    %623 = vmatprep.subr.mxu0 0.0
    %624 = vmatpush1.msra.mxu0 0.0
    %625 = vmatprep.subr.mxu0 0.0
    %626 = vmatpush1.msra.mxu0 0.0
    %627 = vmatprep.subr.mxu0 0.0
    %628 = vmatpush1.msra.mxu0 0.0
    %629 = vmatprep.subr.mxu0 0.0
    %630 = vmatpush1.msra.mxu0 0.0
    %631 = vmatprep.subr.mxu0 0.0
    %632 = vmatpush1.msra.mxu0 0.0
    %633 = vmatprep.subr.mxu0 0.0
    %634 = vmatpush1.msra.mxu0 0.0
    %635 = vmatprep.subr.mxu0 0.0
    %636 = vmatpush1.msra.mxu0 0.0
    %637 = vmatprep.subr.mxu0 0.0
    %638 = vmatpush1.msra.mxu0 0.0
    %639 = vmatprep.subr.mxu0 0.0
    %640 = vmatpush1.msra.mxu0 0.0
    %641 = vmatprep.subr.mxu0 0.0
    %642 = vmatpush1.msra.mxu0 0.0
    %643 = vmatprep.subr.mxu0 0.0
    %644 = vmatpush1.msra.mxu0 0.0
    %645 = vmatprep.subr.mxu0 0.0
    %646 = vmatpush1.msra.mxu0 0.0
    %647 = vmatprep.subr.mxu0 0.0
    %648 = vmatpush1.msra.mxu0 0.0
    %649 = vmatprep.subr.mxu0 0.0
    %650 = vmatpush1.msra.mxu0 0.0
    %651 = vmatprep.subr.mxu0 0.0
    %652 = vmatpush1.msra.mxu0 0.0
    %653 = vmatprep.subr.mxu0 0.0
    %654 = vmatpush1.msra.mxu0 0.0
    %655 = vmatprep.subr.mxu0 0.0
    %656 = vmatpush1.msra.mxu0 0.0
    %657 = vmatprep.subr.mxu0 0.0
    %658 = vmatpush1.msra.mxu0 0.0
    %659 = vmatprep.subr.mxu0 0.0
    %660 = vmatpush1.msra.mxu0 0.0
    %661 = vmatprep.subr.mxu0 0.0
    %662 = vmatpush1.msra.mxu0 0.0
    %663 = vmatprep.subr.mxu0 0.0
    %664 = vmatpush1.msra.mxu0 0.0
    %665 = vmatprep.subr.mxu0 0.0
    %666 = vmatpush1.msra.mxu0 0.0
    %667 = vmatprep.subr.mxu0 0.0
    %668 = vmatpush1.msra.mxu0 0.0
    %669 = vmatprep.subr.mxu0 0.0
    %670 = vmatpush1.msra.mxu0 0.0
    %671 = vmatprep.subr.mxu0 0.0
    %672 = vmatpush1.msra.mxu0 0.0
    %673 = vmatprep.subr.mxu0 0.0
    %674 = vmatpush1.msra.mxu0 0.0
    %675 = vmatprep.mubr.f32.mxu0 0.0
    %676 = vmatmul.mubr.f32.gmra.mrb[0].mxu0 %v607
    %v677 = vpop.f32.mrb[0].mxu0
    %v678 = vadd.f32 0.0, %v677
    %v679 = vpop.f32.mrb[0].mxu0
    %680 = vmatprep.mubr.f32.mxu0 0.0
    %681 = vmatmul.mubr.f32.gmra.mrb[0].mxu0 %v609
    %v682 = vpop.f32.mrb[0].mxu0
    %v683 = vadd.f32 0.0, %v682
    %v684 = vpop.f32.mrb[0].mxu0
    %685 = vdwg.mxu0
    %686 = vrot.lane.b32.xlu0 %v214, 112
    %v687 = vpop.permute.xlu0 %686
    %688 = vrot.lane.b32.xlu0 %v217, 112
    %v689 = vpop.permute.xlu0 %688
    %v690 = vsel %vm247, %v687, 0
    %v692 = vsel %vm247, %v689, 0
    %694 = vmatprep.subr.mxu0 0.0
    %695 = vmatpush1.msra.mxu0 %v601
    %696 = vmatprep.subr.mxu0 0.0
    %697 = vmatpush1.msra.mxu0 0.0
    %698 = vmatprep.subr.mxu0 0.0
    %699 = vmatpush1.msra.mxu0 0.0
    %700 = vmatprep.subr.mxu0 0.0
    %701 = vmatpush1.msra.mxu0 0.0
    %702 = vmatprep.subr.mxu0 0.0
    %703 = vmatpush1.msra.mxu0 0.0
    %704 = vmatprep.subr.mxu0 0.0
    %705 = vmatpush1.msra.mxu0 0.0
    %706 = vmatprep.subr.mxu0 0.0
    %707 = vmatpush1.msra.mxu0 0.0
    %708 = vmatprep.subr.mxu0 0.0
    %709 = vmatpush1.msra.mxu0 0.0
    %710 = vmatprep.subr.mxu0 0.0
    %711 = vmatpush1.msra.mxu0 0.0
    %712 = vmatprep.subr.mxu0 0.0
    %713 = vmatpush1.msra.mxu0 0.0
    %714 = vmatprep.subr.mxu0 0.0
    %715 = vmatpush1.msra.mxu0 0.0
    %716 = vmatprep.subr.mxu0 0.0
    %717 = vmatpush1.msra.mxu0 0.0
    %718 = vmatprep.subr.mxu0 0.0
    %719 = vmatpush1.msra.mxu0 0.0
    %720 = vmatprep.subr.mxu0 0.0
    %721 = vmatpush1.msra.mxu0 0.0
    %722 = vmatprep.subr.mxu0 0.0
    %723 = vmatpush1.msra.mxu0 0.0
    %724 = vmatprep.subr.mxu0 0.0
    %725 = vmatpush1.msra.mxu0 0.0
    %726 = vmatprep.subr.mxu0 0.0
    %727 = vmatpush1.msra.mxu0 0.0
    %728 = vmatprep.subr.mxu0 0.0
    %729 = vmatpush1.msra.mxu0 0.0
    %730 = vmatprep.subr.mxu0 0.0
    %731 = vmatpush1.msra.mxu0 0.0
    %732 = vmatprep.subr.mxu0 0.0
    %733 = vmatpush1.msra.mxu0 0.0
    %734 = vmatprep.subr.mxu0 0.0
    %735 = vmatpush1.msra.mxu0 0.0
    %736 = vmatprep.subr.mxu0 0.0
    %737 = vmatpush1.msra.mxu0 0.0
    %738 = vmatprep.subr.mxu0 0.0
    %739 = vmatpush1.msra.mxu0 0.0
    %740 = vmatprep.subr.mxu0 0.0
    %741 = vmatpush1.msra.mxu0 0.0
    %742 = vmatprep.subr.mxu0 0.0
    %743 = vmatpush1.msra.mxu0 0.0
    %744 = vmatprep.subr.mxu0 0.0
    %745 = vmatpush1.msra.mxu0 0.0
    %746 = vmatprep.subr.mxu0 0.0
    %747 = vmatpush1.msra.mxu0 0.0
    %748 = vmatprep.subr.mxu0 0.0
    %749 = vmatpush1.msra.mxu0 0.0
    %750 = vmatprep.subr.mxu0 0.0
    %751 = vmatpush1.msra.mxu0 0.0
    %752 = vmatprep.subr.mxu0 0.0
    %753 = vmatpush1.msra.mxu0 0.0
    %754 = vmatprep.subr.mxu0 0.0
    %755 = vmatpush1.msra.mxu0 0.0
    %756 = vmatprep.subr.mxu0 0.0
    %757 = vmatpush1.msra.mxu0 0.0
    %758 = vmatprep.mubr.f32.mxu0 0.0
    %759 = vmatmul.mubr.f32.gmra.mrb[0].mxu0 %v690
    %v760 = vpop.f32.mrb[0].mxu0
    %v761 = vadd.f32 %v678, %v760
    %v762 = vpop.f32.mrb[0].mxu0
    %763 = vmatprep.mubr.f32.mxu0 0.0
    %764 = vmatmul.mubr.f32.gmra.mrb[0].mxu0 %v692
    %v765 = vpop.f32.mrb[0].mxu0
    %v766 = vadd.f32 %v683, %v765
    %v767 = vpop.f32.mrb[0].mxu0
    %768 = vdwg.mxu0
    %v769 = vadd.f32 %v761, %v413
    %v770 = vadd.f32 %v766, %v418
    %v771 = vpack.c.bf16 %v770, %v769
    %773 = vrot.lane.b32.xlu0 %v771, 64
    %v774 = vpop.permute.xlu0 %773
    %vm776 = vcmask 654848
    %777 = vst.msk [vmem:[#allocation2 + $0x28] sm:$0xff] %vm776, %v774
    %v778 = vld [vmem:[#allocation7] sm:$0xff]
    %v779 = vld [vmem:[%s245] sm:$0xff]
    %780 = vrot.lane.b32.xlu0 %v222, 104
    %v781 = vpop.permute.xlu0 %780
    %782 = vrot.lane.b32.xlu0 %v225, 104
    %v783 = vpop.permute.xlu0 %782
    %v784 = vsel %vm247, %v781, 0
    %v786 = vsel %vm247, %v783, 0
    %788 = vmatprep.subr.mxu0 0.0
    %789 = vmatpush1.msra.mxu0 %v779
    %790 = vmatprep.subr.mxu0 0.0
    %791 = vmatpush1.msra.mxu0 0.0
    %792 = vmatprep.subr.mxu0 0.0
    %793 = vmatpush1.msra.mxu0 0.0
    %794 = vmatprep.subr.mxu0 0.0
    %795 = vmatpush1.msra.mxu0 0.0
    %796 = vmatprep.subr.mxu0 0.0
    %797 = vmatpush1.msra.mxu0 0.0
    %798 = vmatprep.subr.mxu0 0.0
    %799 = vmatpush1.msra.mxu0 0.0
    %800 = vmatprep.subr.mxu0 0.0
    %801 = vmatpush1.msra.mxu0 0.0
    %802 = vmatprep.subr.mxu0 0.0
    %803 = vmatpush1.msra.mxu0 0.0
    %804 = vmatprep.subr.mxu0 0.0
    %805 = vmatpush1.msra.mxu0 0.0
    %806 = vmatprep.subr.mxu0 0.0
    %807 = vmatpush1.msra.mxu0 0.0
    %808 = vmatprep.subr.mxu0 0.0
    %809 = vmatpush1.msra.mxu0 0.0
    %810 = vmatprep.subr.mxu0 0.0
    %811 = vmatpush1.msra.mxu0 0.0
    %812 = vmatprep.subr.mxu0 0.0
    %813 = vmatpush1.msra.mxu0 0.0
    %814 = vmatprep.subr.mxu0 0.0
    %815 = vmatpush1.msra.mxu0 0.0
    %816 = vmatprep.subr.mxu0 0.0
    %817 = vmatpush1.msra.mxu0 0.0
    %818 = vmatprep.subr.mxu0 0.0
    %819 = vmatpush1.msra.mxu0 0.0
    %820 = vmatprep.subr.mxu0 0.0
    %821 = vmatpush1.msra.mxu0 0.0
    %822 = vmatprep.subr.mxu0 0.0
    %823 = vmatpush1.msra.mxu0 0.0
    %824 = vmatprep.subr.mxu0 0.0
    %825 = vmatpush1.msra.mxu0 0.0
    %826 = vmatprep.subr.mxu0 0.0
    %827 = vmatpush1.msra.mxu0 0.0
    %828 = vmatprep.subr.mxu0 0.0
    %829 = vmatpush1.msra.mxu0 0.0
    %830 = vmatprep.subr.mxu0 0.0
    %831 = vmatpush1.msra.mxu0 0.0
    %832 = vmatprep.subr.mxu0 0.0
    %833 = vmatpush1.msra.mxu0 0.0
    %834 = vmatprep.subr.mxu0 0.0
    %835 = vmatpush1.msra.mxu0 0.0
    %836 = vmatprep.subr.mxu0 0.0
    %837 = vmatpush1.msra.mxu0 0.0
    %838 = vmatprep.subr.mxu0 0.0
    %839 = vmatpush1.msra.mxu0 0.0
    %840 = vmatprep.subr.mxu0 0.0
    %841 = vmatpush1.msra.mxu0 0.0
    %842 = vmatprep.subr.mxu0 0.0
    %843 = vmatpush1.msra.mxu0 0.0
    %844 = vmatprep.subr.mxu0 0.0
    %845 = vmatpush1.msra.mxu0 0.0
    %846 = vmatprep.subr.mxu0 0.0
    %847 = vmatpush1.msra.mxu0 0.0
    %848 = vmatprep.subr.mxu0 0.0
    %849 = vmatpush1.msra.mxu0 0.0
    %850 = vmatprep.subr.mxu0 0.0
    %851 = vmatpush1.msra.mxu0 0.0
    %852 = vmatprep.mubr.f32.mxu0 0.0
    %853 = vmatmul.mubr.f32.gmra.mrb[0].mxu0 %v784
    %v854 = vpop.f32.mrb[0].mxu0
    %v855 = vadd.f32 0.0, %v854
    %v856 = vpop.f32.mrb[0].mxu0
    %857 = vmatprep.mubr.f32.mxu0 0.0
    %858 = vmatmul.mubr.f32.gmra.mrb[0].mxu0 %v786
    %v859 = vpop.f32.mrb[0].mxu0
    %v860 = vadd.f32 0.0, %v859
    %v861 = vpop.f32.mrb[0].mxu0
    %862 = vdwg.mxu0
    %863 = vrot.lane.b32.xlu0 %v214, 104
    %v864 = vpop.permute.xlu0 %863
    %865 = vrot.lane.b32.xlu0 %v217, 104
    %v866 = vpop.permute.xlu0 %865
    %v867 = vsel %vm247, %v864, 0
    %v869 = vsel %vm247, %v866, 0
    %871 = vmatprep.subr.mxu0 0.0
    %872 = vmatpush1.msra.mxu0 %v778
    %873 = vmatprep.subr.mxu0 0.0
    %874 = vmatpush1.msra.mxu0 0.0
    %875 = vmatprep.subr.mxu0 0.0
    %876 = vmatpush1.msra.mxu0 0.0
    %877 = vmatprep.subr.mxu0 0.0
    %878 = vmatpush1.msra.mxu0 0.0
    %879 = vmatprep.subr.mxu0 0.0
    %880 = vmatpush1.msra.mxu0 0.0
    %881 = vmatprep.subr.mxu0 0.0
    %882 = vmatpush1.msra.mxu0 0.0
    %883 = vmatprep.subr.mxu0 0.0
    %884 = vmatpush1.msra.mxu0 0.0
    %885 = vmatprep.subr.mxu0 0.0
    %886 = vmatpush1.msra.mxu0 0.0
    %887 = vmatprep.subr.mxu0 0.0
    %888 = vmatpush1.msra.mxu0 0.0
    %889 = vmatprep.subr.mxu0 0.0
    %890 = vmatpush1.msra.mxu0 0.0
    %891 = vmatprep.subr.mxu0 0.0
    %892 = vmatpush1.msra.mxu0 0.0
    %893 = vmatprep.subr.mxu0 0.0
    %894 = vmatpush1.msra.mxu0 0.0
    %895 = vmatprep.subr.mxu0 0.0
    %896 = vmatpush1.msra.mxu0 0.0
    %897 = vmatprep.subr.mxu0 0.0
    %898 = vmatpush1.msra.mxu0 0.0
    %899 = vmatprep.subr.mxu0 0.0
    %900 = vmatpush1.msra.mxu0 0.0
    %901 = vmatprep.subr.mxu0 0.0
    %902 = vmatpush1.msra.mxu0 0.0
    %903 = vmatprep.subr.mxu0 0.0
    %904 = vmatpush1.msra.mxu0 0.0
    %905 = vmatprep.subr.mxu0 0.0
    %906 = vmatpush1.msra.mxu0 0.0
    %907 = vmatprep.subr.mxu0 0.0
    %908 = vmatpush1.msra.mxu0 0.0
    %909 = vmatprep.subr.mxu0 0.0
    %910 = vmatpush1.msra.mxu0 0.0
    %911 = vmatprep.subr.mxu0 0.0
    %912 = vmatpush1.msra.mxu0 0.0
    %913 = vmatprep.subr.mxu0 0.0
    %914 = vmatpush1.msra.mxu0 0.0
    %915 = vmatprep.subr.mxu0 0.0
    %916 = vmatpush1.msra.mxu0 0.0
    %917 = vmatprep.subr.mxu0 0.0
    %918 = vmatpush1.msra.mxu0 0.0
    %919 = vmatprep.subr.mxu0 0.0
    %920 = vmatpush1.msra.mxu0 0.0
    %921 = vmatprep.subr.mxu0 0.0
    %922 = vmatpush1.msra.mxu0 0.0
    %923 = vmatprep.subr.mxu0 0.0
    %924 = vmatpush1.msra.mxu0 0.0
    %925 = vmatprep.subr.mxu0 0.0
    %926 = vmatpush1.msra.mxu0 0.0
    %927 = vmatprep.subr.mxu0 0.0
    %928 = vmatpush1.msra.mxu0 0.0
    %929 = vmatprep.subr.mxu0 0.0
    %930 = vmatpush1.msra.mxu0 0.0
    %931 = vmatprep.subr.mxu0 0.0
    %932 = vmatpush1.msra.mxu0 0.0
    %933 = vmatprep.subr.mxu0 0.0
    %934 = vmatpush1.msra.mxu0 0.0
    %935 = vmatprep.mubr.f32.mxu0 0.0
    %936 = vmatmul.mubr.f32.gmra.mrb[0].mxu0 %v867
    %v937 = vpop.f32.mrb[0].mxu0
    %v938 = vadd.f32 %v855, %v937
    %v939 = vpop.f32.mrb[0].mxu0
    %940 = vmatprep.mubr.f32.mxu0 0.0
    %941 = vmatmul.mubr.f32.gmra.mrb[0].mxu0 %v869
    %v942 = vpop.f32.mrb[0].mxu0
    %v943 = vadd.f32 %v860, %v942
    %v944 = vpop.f32.mrb[0].mxu0
    %945 = vdwg.mxu0
    %v946 = vadd.f32 %v938, %v413
    %v947 = vadd.f32 %v943, %v418
    %v948 = vpack.c.bf16 %v947, %v946
    %950 = vrot.lane.b32.xlu0 %v948, 96
    %v951 = vpop.permute.xlu0 %950
    %vm953 = vcmask 917248
    %954 = vst.msk [vmem:[#allocation2 + $0x28] sm:$0xff] %vm953, %v951
    %v955 = vld [vmem:[#allocation7] sm:$0xff]
    %v956 = vld [vmem:[%s245] sm:$0xff]
    %957 = vrot.lane.b32.xlu0 %v222, 96
    %v958 = vpop.permute.xlu0 %957
    %959 = vrot.lane.b32.xlu0 %v225, 96
    %v960 = vpop.permute.xlu0 %959
    %v961 = vsel %vm247, %v958, 0
    %v963 = vsel %vm247, %v960, 0
    %965 = vmatprep.subr.mxu0 0.0
    %966 = vmatpush1.msra.mxu0 %v956
    %967 = vmatprep.subr.mxu0 0.0
    %968 = vmatpush1.msra.mxu0 0.0
    %969 = vmatprep.subr.mxu0 0.0
    %970 = vmatpush1.msra.mxu0 0.0
    %971 = vmatprep.subr.mxu0 0.0
    %972 = vmatpush1.msra.mxu0 0.0
    %973 = vmatprep.subr.mxu0 0.0
    %974 = vmatpush1.msra.mxu0 0.0
    %975 = vmatprep.subr.mxu0 0.0
    %976 = vmatpush1.msra.mxu0 0.0
    %977 = vmatprep.subr.mxu0 0.0
    %978 = vmatpush1.msra.mxu0 0.0
    %979 = vmatprep.subr.mxu0 0.0
    %980 = vmatpush1.msra.mxu0 0.0
    %981 = vmatprep.subr.mxu0 0.0
    %982 = vmatpush1.msra.mxu0 0.0
    %983 = vmatprep.subr.mxu0 0.0
    %984 = vmatpush1.msra.mxu0 0.0
    %985 = vmatprep.subr.mxu0 0.0
    %986 = vmatpush1.msra.mxu0 0.0
    %987 = vmatprep.subr.mxu0 0.0
    %988 = vmatpush1.msra.mxu0 0.0
    %989 = vmatprep.subr.mxu0 0.0
    %990 = vmatpush1.msra.mxu0 0.0
    %991 = vmatprep.subr.mxu0 0.0
    %992 = vmatpush1.msra.mxu0 0.0
    %993 = vmatprep.subr.mxu0 0.0
    %994 = vmatpush1.msra.mxu0 0.0
    %995 = vmatprep.subr.mxu0 0.0
    %996 = vmatpush1.msra.mxu0 0.0
    %997 = vmatprep.subr.mxu0 0.0
    %998 = vmatpush1.msra.mxu0 0.0
    %999 = vmatprep.subr.mxu0 0.0
    %1000 = vmatpush1.msra.mxu0 0.0
    %1001 = vmatprep.subr.mxu0 0.0
    %1002 = vmatpush1.msra.mxu0 0.0
    %1003 = vmatprep.subr.mxu0 0.0
    %1004 = vmatpush1.msra.mxu0 0.0
    %1005 = vmatprep.subr.mxu0 0.0
    %1006 = vmatpush1.msra.mxu0 0.0
    %1007 = vmatprep.subr.mxu0 0.0
    %1008 = vmatpush1.msra.mxu0 0.0
    %1009 = vmatprep.subr.mxu0 0.0
    %1010 = vmatpush1.msra.mxu0 0.0
    %1011 = vmatprep.subr.mxu0 0.0
    %1012 = vmatpush1.msra.mxu0 0.0
    %1013 = vmatprep.subr.mxu0 0.0
    %1014 = vmatpush1.msra.mxu0 0.0
    %1015 = vmatprep.subr.mxu0 0.0
    %1016 = vmatpush1.msra.mxu0 0.0
    %1017 = vmatprep.subr.mxu0 0.0
    %1018 = vmatpush1.msra.mxu0 0.0
    %1019 = vmatprep.subr.mxu0 0.0
    %1020 = vmatpush1.msra.mxu0 0.0
    %1021 = vmatprep.subr.mxu0 0.0
    %1022 = vmatpush1.msra.mxu0 0.0
    %1023 = vmatprep.subr.mxu0 0.0
    %1024 = vmatpush1.msra.mxu0 0.0
    %1025 = vmatprep.subr.mxu0 0.0
    %1026 = vmatpush1.msra.mxu0 0.0
    %1027 = vmatprep.subr.mxu0 0.0
    %1028 = vmatpush1.msra.mxu0 0.0
    %1029 = vmatprep.mubr.f32.mxu0 0.0
    %1030 = vmatmul.mubr.f32.gmra.mrb[0].mxu0 %v961
    %v1031 = vpop.f32.mrb[0].mxu0
    %v1032 = vadd.f32 0.0, %v1031
    %v1033 = vpop.f32.mrb[0].mxu0
    %1034 = vmatprep.mubr.f32.mxu0 0.0
    %1035 = vmatmul.mubr.f32.gmra.mrb[0].mxu0 %v963
    %v1036 = vpop.f32.mrb[0].mxu0
    %v1037 = vadd.f32 0.0, %v1036
    %v1038 = vpop.f32.mrb[0].mxu0
    %1039 = vdwg.mxu0
    %1040 = vrot.lane.b32.xlu0 %v214, 96
    %v1041 = vpop.permute.xlu0 %1040
    %1042 = vrot.lane.b32.xlu0 %v217, 96
    %v1043 = vpop.permute.xlu0 %1042
    %v1044 = vsel %vm247, %v1041, 0
    %v1046 = vsel %vm247, %v1043, 0
    %1048 = vmatprep.subr.mxu0 0.0
    %1049 = vmatpush1.msra.mxu0 %v955
    %1050 = vmatprep.subr.mxu0 0.0
    %1051 = vmatpush1.msra.mxu0 0.0
    %1052 = vmatprep.subr.mxu0 0.0
    %1053 = vmatpush1.msra.mxu0 0.0
    %1054 = vmatprep.subr.mxu0 0.0
    %1055 = vmatpush1.msra.mxu0 0.0
    %1056 = vmatprep.subr.mxu0 0.0
    %1057 = vmatpush1.msra.mxu0 0.0
    %1058 = vmatprep.subr.mxu0 0.0
    %1059 = vmatpush1.msra.mxu0 0.0
    %1060 = vmatprep.subr.mxu0 0.0
    %1061 = vmatpush1.msra.mxu0 0.0
    %1062 = vmatprep.subr.mxu0 0.0
    %1063 = vmatpush1.msra.mxu0 0.0
    %1064 = vmatprep.subr.mxu0 0.0
    %1065 = vmatpush1.msra.mxu0 0.0
    %1066 = vmatprep.subr.mxu0 0.0
    %1067 = vmatpush1.msra.mxu0 0.0
    %1068 = vmatprep.subr.mxu0 0.0
    %1069 = vmatpush1.msra.mxu0 0.0
    %1070 = vmatprep.subr.mxu0 0.0
    %1071 = vmatpush1.msra.mxu0 0.0
    %1072 = vmatprep.subr.mxu0 0.0
    %1073 = vmatpush1.msra.mxu0 0.0
    %1074 = vmatprep.subr.mxu0 0.0
    %1075 = vmatpush1.msra.mxu0 0.0
    %1076 = vmatprep.subr.mxu0 0.0
    %1077 = vmatpush1.msra.mxu0 0.0
    %1078 = vmatprep.subr.mxu0 0.0
    %1079 = vmatpush1.msra.mxu0 0.0
    %1080 = vmatprep.subr.mxu0 0.0
    %1081 = vmatpush1.msra.mxu0 0.0
    %1082 = vmatprep.subr.mxu0 0.0
    %1083 = vmatpush1.msra.mxu0 0.0
    %1084 = vmatprep.subr.mxu0 0.0
    %1085 = vmatpush1.msra.mxu0 0.0
    %1086 = vmatprep.subr.mxu0 0.0
    %1087 = vmatpush1.msra.mxu0 0.0
    %1088 = vmatprep.subr.mxu0 0.0
    %1089 = vmatpush1.msra.mxu0 0.0
    %1090 = vmatprep.subr.mxu0 0.0
    %1091 = vmatpush1.msra.mxu0 0.0
    %1092 = vmatprep.subr.mxu0 0.0
    %1093 = vmatpush1.msra.mxu0 0.0
    %1094 = vmatprep.subr.mxu0 0.0
    %1095 = vmatpush1.msra.mxu0 0.0
    %1096 = vmatprep.subr.mxu0 0.0
    %1097 = vmatpush1.msra.mxu0 0.0
    %1098 = vmatprep.subr.mxu0 0.0
    %1099 = vmatpush1.msra.mxu0 0.0
    %1100 = vmatprep.subr.mxu0 0.0
    %1101 = vmatpush1.msra.mxu0 0.0
    %1102 = vmatprep.subr.mxu0 0.0
    %1103 = vmatpush1.msra.mxu0 0.0
    %1104 = vmatprep.subr.mxu0 0.0
    %1105 = vmatpush1.msra.mxu0 0.0
    %1106 = vmatprep.subr.mxu0 0.0
    %1107 = vmatpush1.msra.mxu0 0.0
    %1108 = vmatprep.subr.mxu0 0.0
    %1109 = vmatpush1.msra.mxu0 0.0
    %1110 = vmatprep.subr.mxu0 0.0
    %1111 = vmatpush1.msra.mxu0 0.0
    %1112 = vmatprep.mubr.f32.mxu0 0.0
    %1113 = vmatmul.mubr.f32.gmra.mrb[0].mxu0 %v1044
    %v1114 = vpop.f32.mrb[0].mxu0
    %v1115 = vadd.f32 %v1032, %v1114
    %v1116 = vpop.f32.mrb[0].mxu0
    %1117 = vmatprep.mubr.f32.mxu0 0.0
    %1118 = vmatmul.mubr.f32.gmra.mrb[0].mxu0 %v1046
    %v1119 = vpop.f32.mrb[0].mxu0
    %v1120 = vadd.f32 %v1037, %v1119
    %v1121 = vpop.f32.mrb[0].mxu0
    %1122 = vdwg.mxu0
    %v1123 = vadd.f32 %v1115, %v413
    %v1124 = vadd.f32 %v1120, %v418
    %v1125 = vpack.c.bf16 %v1124, %v1123
    %1126 = vst.msk [vmem:[#allocation2 + $0x30] sm:$0xff] %vm166, %v1125
    %v1127 = vld [vmem:[#allocation7] sm:$0xff]
    %v1128 = vld [vmem:[%s245] sm:$0xff]
    %1129 = vrot.lane.b32.xlu0 %v222, 88
    %v1130 = vpop.permute.xlu0 %1129
    %1131 = vrot.lane.b32.xlu0 %v225, 88
    %v1132 = vpop.permute.xlu0 %1131
    %v1133 = vsel %vm247, %v1130, 0
    %v1135 = vsel %vm247, %v1132, 0
    %1137 = vmatprep.subr.mxu0 0.0
    %1138 = vmatpush1.msra.mxu0 %v1128
    %1139 = vmatprep.subr.mxu0 0.0
    %1140 = vmatpush1.msra.mxu0 0.0
    %1141 = vmatprep.subr.mxu0 0.0
    %1142 = vmatpush1.msra.mxu0 0.0
    %1143 = vmatprep.subr.mxu0 0.0
    %1144 = vmatpush1.msra.mxu0 0.0
    %1145 = vmatprep.subr.mxu0 0.0
    %1146 = vmatpush1.msra.mxu0 0.0
    %1147 = vmatprep.subr.mxu0 0.0
    %1148 = vmatpush1.msra.mxu0 0.0
    %1149 = vmatprep.subr.mxu0 0.0
    %1150 = vmatpush1.msra.mxu0 0.0
    %1151 = vmatprep.subr.mxu0 0.0
    %1152 = vmatpush1.msra.mxu0 0.0
    %1153 = vmatprep.subr.mxu0 0.0
    %1154 = vmatpush1.msra.mxu0 0.0
    %1155 = vmatprep.subr.mxu0 0.0
    %1156 = vmatpush1.msra.mxu0 0.0
    %1157 = vmatprep.subr.mxu0 0.0
    %1158 = vmatpush1.msra.mxu0 0.0
    %1159 = vmatprep.subr.mxu0 0.0
    %1160 = vmatpush1.msra.mxu0 0.0
    %1161 = vmatprep.subr.mxu0 0.0
    %1162 = vmatpush1.msra.mxu0 0.0
    %1163 = vmatprep.subr.mxu0 0.0
    %1164 = vmatpush1.msra.mxu0 0.0
    %1165 = vmatprep.subr.mxu0 0.0
    %1166 = vmatpush1.msra.mxu0 0.0
    %1167 = vmatprep.subr.mxu0 0.0
    %1168 = vmatpush1.msra.mxu0 0.0
    %1169 = vmatprep.subr.mxu0 0.0
    %1170 = vmatpush1.msra.mxu0 0.0
    %1171 = vmatprep.subr.mxu0 0.0
    %1172 = vmatpush1.msra.mxu0 0.0
    %1173 = vmatprep.subr.mxu0 0.0
    %1174 = vmatpush1.msra.mxu0 0.0
    %1175 = vmatprep.subr.mxu0 0.0
    %1176 = vmatpush1.msra.mxu0 0.0
    %1177 = vmatprep.subr.mxu0 0.0
    %1178 = vmatpush1.msra.mxu0 0.0
    %1179 = vmatprep.subr.mxu0 0.0
    %1180 = vmatpush1.msra.mxu0 0.0
    %1181 = vmatprep.subr.mxu0 0.0
    %1182 = vmatpush1.msra.mxu0 0.0
    %1183 = vmatprep.subr.mxu0 0.0
    %1184 = vmatpush1.msra.mxu0 0.0
    %1185 = vmatprep.subr.mxu0 0.0
    %1186 = vmatpush1.msra.mxu0 0.0
    %1187 = vmatprep.subr.mxu0 0.0
    %1188 = vmatpush1.msra.mxu0 0.0
    %1189 = vmatprep.subr.mxu0 0.0
    %1190 = vmatpush1.msra.mxu0 0.0
    %1191 = vmatprep.subr.mxu0 0.0
    %1192 = vmatpush1.msra.mxu0 0.0
    %1193 = vmatprep.subr.mxu0 0.0
    %1194 = vmatpush1.msra.mxu0 0.0
    %1195 = vmatprep.subr.mxu0 0.0
    %1196 = vmatpush1.msra.mxu0 0.0
    %1197 = vmatprep.subr.mxu0 0.0
    %1198 = vmatpush1.msra.mxu0 0.0
    %1199 = vmatprep.subr.mxu0 0.0
    %1200 = vmatpush1.msra.mxu0 0.0
    %1201 = vmatprep.mubr.f32.mxu0 0.0
    %1202 = vmatmul.mubr.f32.gmra.mrb[0].mxu0 %v1133
    %v1203 = vpop.f32.mrb[0].mxu0
    %v1204 = vadd.f32 0.0, %v1203
    %v1205 = vpop.f32.mrb[0].mxu0
    %1206 = vmatprep.mubr.f32.mxu0 0.0
    %1207 = vmatmul.mubr.f32.gmra.mrb[0].mxu0 %v1135
    %v1208 = vpop.f32.mrb[0].mxu0
    %v1209 = vadd.f32 0.0, %v1208
    %v1210 = vpop.f32.mrb[0].mxu0
    %1211 = vdwg.mxu0
    %1212 = vrot.lane.b32.xlu0 %v214, 88
    %v1213 = vpop.permute.xlu0 %1212
    %1214 = vrot.lane.b32.xlu0 %v217, 88
    %v1215 = vpop.permute.xlu0 %1214
    %v1216 = vsel %vm247, %v1213, 0
    %v1218 = vsel %vm247, %v1215, 0
    %1220 = vmatprep.subr.mxu0 0.0
    %1221 = vmatpush1.msra.mxu0 %v1127
    %1222 = vmatprep.subr.mxu0 0.0
    %1223 = vmatpush1.msra.mxu0 0.0
    %1224 = vmatprep.subr.mxu0 0.0
    %1225 = vmatpush1.msra.mxu0 0.0
    %1226 = vmatprep.subr.mxu0 0.0
    %1227 = vmatpush1.msra.mxu0 0.0
    %1228 = vmatprep.subr.mxu0 0.0
    %1229 = vmatpush1.msra.mxu0 0.0
    %1230 = vmatprep.subr.mxu0 0.0
    %1231 = vmatpush1.msra.mxu0 0.0
    %1232 = vmatprep.subr.mxu0 0.0
    %1233 = vmatpush1.msra.mxu0 0.0
    %1234 = vmatprep.subr.mxu0 0.0
    %1235 = vmatpush1.msra.mxu0 0.0
    %1236 = vmatprep.subr.mxu0 0.0
    %1237 = vmatpush1.msra.mxu0 0.0
    %1238 = vmatprep.subr.mxu0 0.0
    %1239 = vmatpush1.msra.mxu0 0.0
    %1240 = vmatprep.subr.mxu0 0.0
    %1241 = vmatpush1.msra.mxu0 0.0
    %1242 = vmatprep.subr.mxu0 0.0
    %1243 = vmatpush1.msra.mxu0 0.0
    %1244 = vmatprep.subr.mxu0 0.0
    %1245 = vmatpush1.msra.mxu0 0.0
    %1246 = vmatprep.subr.mxu0 0.0
    %1247 = vmatpush1.msra.mxu0 0.0
    %1248 = vmatprep.subr.mxu0 0.0
    %1249 = vmatpush1.msra.mxu0 0.0
    %1250 = vmatprep.subr.mxu0 0.0
    %1251 = vmatpush1.msra.mxu0 0.0
    %1252 = vmatprep.subr.mxu0 0.0
    %1253 = vmatpush1.msra.mxu0 0.0
    %1254 = vmatprep.subr.mxu0 0.0
    %1255 = vmatpush1.msra.mxu0 0.0
    %1256 = vmatprep.subr.mxu0 0.0
    %1257 = vmatpush1.msra.mxu0 0.0
    %1258 = vmatprep.subr.mxu0 0.0
    %1259 = vmatpush1.msra.mxu0 0.0
    %1260 = vmatprep.subr.mxu0 0.0
    %1261 = vmatpush1.msra.mxu0 0.0
    %1262 = vmatprep.subr.mxu0 0.0
    %1263 = vmatpush1.msra.mxu0 0.0
    %1264 = vmatprep.subr.mxu0 0.0
    %1265 = vmatpush1.msra.mxu0 0.0
    %1266 = vmatprep.subr.mxu0 0.0
    %1267 = vmatpush1.msra.mxu0 0.0
    %1268 = vmatprep.subr.mxu0 0.0
    %1269 = vmatpush1.msra.mxu0 0.0
    %1270 = vmatprep.subr.mxu0 0.0
    %1271 = vmatpush1.msra.mxu0 0.0
    %1272 = vmatprep.subr.mxu0 0.0
    %1273 = vmatpush1.msra.mxu0 0.0
    %1274 = vmatprep.subr.mxu0 0.0
    %1275 = vmatpush1.msra.mxu0 0.0
    %1276 = vmatprep.subr.mxu0 0.0
    %1277 = vmatpush1.msra.mxu0 0.0
    %1278 = vmatprep.subr.mxu0 0.0
    %1279 = vmatpush1.msra.mxu0 0.0
    %1280 = vmatprep.subr.mxu0 0.0
    %1281 = vmatpush1.msra.mxu0 0.0
    %1282 = vmatprep.subr.mxu0 0.0
    %1283 = vmatpush1.msra.mxu0 0.0
    %1284 = vmatprep.mubr.f32.mxu0 0.0
    %1285 = vmatmul.mubr.f32.gmra.mrb[0].mxu0 %v1216
    %v1286 = vpop.f32.mrb[0].mxu0
    %v1287 = vadd.f32 %v1204, %v1286
    %v1288 = vpop.f32.mrb[0].mxu0
    %1289 = vmatprep.mubr.f32.mxu0 0.0
    %1290 = vmatmul.mubr.f32.gmra.mrb[0].mxu0 %v1218
    %v1291 = vpop.f32.mrb[0].mxu0
    %v1292 = vadd.f32 %v1209, %v1291
    %v1293 = vpop.f32.mrb[0].mxu0
    %1294 = vdwg.mxu0
    %v1295 = vadd.f32 %v1287, %v413
    %v1296 = vadd.f32 %v1292, %v418
    %v1297 = vpack.c.bf16 %v1296, %v1295
    %1299 = vrot.lane.b32.xlu0 %v1297, 32
    %v1300 = vpop.permute.xlu0 %1299
    %1302 = vst.msk [vmem:[#allocation2 + $0x30] sm:$0xff] %vm599, %v1300
    %v1303 = vld [vmem:[#allocation7] sm:$0xff]
    %v1304 = vld [vmem:[%s245] sm:$0xff]
    %1305 = vrot.lane.b32.xlu0 %v222, 80
    %v1306 = vpop.permute.xlu0 %1305
    %1307 = vrot.lane.b32.xlu0 %v225, 80
    %v1308 = vpop.permute.xlu0 %1307
    %v1309 = vsel %vm247, %v1306, 0
    %v1311 = vsel %vm247, %v1308, 0
    %1313 = vmatprep.subr.mxu0 0.0
    %1314 = vmatpush1.msra.mxu0 %v1304
    %1315 = vmatprep.subr.mxu0 0.0
    %1316 = vmatpush1.msra.mxu0 0.0
    %1317 = vmatprep.subr.mxu0 0.0
    %1318 = vmatpush1.msra.mxu0 0.0
    %1319 = vmatprep.subr.mxu0 0.0
    %1320 = vmatpush1.msra.mxu0 0.0
    %1321 = vmatprep.subr.mxu0 0.0
    %1322 = vmatpush1.msra.mxu0 0.0
    %1323 = vmatprep.subr.mxu0 0.0
    %1324 = vmatpush1.msra.mxu0 0.0
    %1325 = vmatprep.subr.mxu0 0.0
    %1326 = vmatpush1.msra.mxu0 0.0
    %1327 = vmatprep.subr.mxu0 0.0
    %1328 = vmatpush1.msra.mxu0 0.0
    %1329 = vmatprep.subr.mxu0 0.0
    %1330 = vmatpush1.msra.mxu0 0.0
    %1331 = vmatprep.subr.mxu0 0.0
    %1332 = vmatpush1.msra.mxu0 0.0
    %1333 = vmatprep.subr.mxu0 0.0
    %1334 = vmatpush1.msra.mxu0 0.0
    %1335 = vmatprep.subr.mxu0 0.0
    %1336 = vmatpush1.msra.mxu0 0.0
    %1337 = vmatprep.subr.mxu0 0.0
    %1338 = vmatpush1.msra.mxu0 0.0
    %1339 = vmatprep.subr.mxu0 0.0
    %1340 = vmatpush1.msra.mxu0 0.0
    %1341 = vmatprep.subr.mxu0 0.0
    %1342 = vmatpush1.msra.mxu0 0.0
    %1343 = vmatprep.subr.mxu0 0.0
    %1344 = vmatpush1.msra.mxu0 0.0
    %1345 = vmatprep.subr.mxu0 0.0
    %1346 = vmatpush1.msra.mxu0 0.0
    %1347 = vmatprep.subr.mxu0 0.0
    %1348 = vmatpush1.msra.mxu0 0.0
    %1349 = vmatprep.subr.mxu0 0.0
    %1350 = vmatpush1.msra.mxu0 0.0
    %1351 = vmatprep.subr.mxu0 0.0
    %1352 = vmatpush1.msra.mxu0 0.0
    %1353 = vmatprep.subr.mxu0 0.0
    %1354 = vmatpush1.msra.mxu0 0.0
    %1355 = vmatprep.subr.mxu0 0.0
    %1356 = vmatpush1.msra.mxu0 0.0
    %1357 = vmatprep.subr.mxu0 0.0
    %1358 = vmatpush1.msra.mxu0 0.0
    %1359 = vmatprep.subr.mxu0 0.0
    %1360 = vmatpush1.msra.mxu0 0.0
    %1361 = vmatprep.subr.mxu0 0.0
    %1362 = vmatpush1.msra.mxu0 0.0
    %1363 = vmatprep.subr.mxu0 0.0
    %1364 = vmatpush1.msra.mxu0 0.0
    %1365 = vmatprep.subr.mxu0 0.0
    %1366 = vmatpush1.msra.mxu0 0.0
    %1367 = vmatprep.subr.mxu0 0.0
    %1368 = vmatpush1.msra.mxu0 0.0
    %1369 = vmatprep.subr.mxu0 0.0
    %1370 = vmatpush1.msra.mxu0 0.0
    %1371 = vmatprep.subr.mxu0 0.0
    %1372 = vmatpush1.msra.mxu0 0.0
    %1373 = vmatprep.subr.mxu0 0.0
    %1374 = vmatpush1.msra.mxu0 0.0
    %1375 = vmatprep.subr.mxu0 0.0
    %1376 = vmatpush1.msra.mxu0 0.0
    %1377 = vmatprep.mubr.f32.mxu0 0.0
    %1378 = vmatmul.mubr.f32.gmra.mrb[0].mxu0 %v1309
    %v1379 = vpop.f32.mrb[0].mxu0
    %v1380 = vadd.f32 0.0, %v1379
    %v1381 = vpop.f32.mrb[0].mxu0
    %1382 = vmatprep.mubr.f32.mxu0 0.0
    %1383 = vmatmul.mubr.f32.gmra.mrb[0].mxu0 %v1311
    %v1384 = vpop.f32.mrb[0].mxu0
    %v1385 = vadd.f32 0.0, %v1384
    %v1386 = vpop.f32.mrb[0].mxu0
    %1387 = vdwg.mxu0
    %1388 = vrot.lane.b32.xlu0 %v214, 80
    %v1389 = vpop.permute.xlu0 %1388
    %1390 = vrot.lane.b32.xlu0 %v217, 80
    %v1391 = vpop.permute.xlu0 %1390
    %v1392 = vsel %vm247, %v1389, 0
    %v1394 = vsel %vm247, %v1391, 0
    %1396 = vmatprep.subr.mxu0 0.0
    %1397 = vmatpush1.msra.mxu0 %v1303
    %1398 = vmatprep.subr.mxu0 0.0
    %1399 = vmatpush1.msra.mxu0 0.0
    %1400 = vmatprep.subr.mxu0 0.0
    %1401 = vmatpush1.msra.mxu0 0.0
    %1402 = vmatprep.subr.mxu0 0.0
    %1403 = vmatpush1.msra.mxu0 0.0
    %1404 = vmatprep.subr.mxu0 0.0
    %1405 = vmatpush1.msra.mxu0 0.0
    %1406 = vmatprep.subr.mxu0 0.0
    %1407 = vmatpush1.msra.mxu0 0.0
    %1408 = vmatprep.subr.mxu0 0.0
    %1409 = vmatpush1.msra.mxu0 0.0
    %1410 = vmatprep.subr.mxu0 0.0
    %1411 = vmatpush1.msra.mxu0 0.0
    %1412 = vmatprep.subr.mxu0 0.0
    %1413 = vmatpush1.msra.mxu0 0.0
    %1414 = vmatprep.subr.mxu0 0.0
    %1415 = vmatpush1.msra.mxu0 0.0
    %1416 = vmatprep.subr.mxu0 0.0
    %1417 = vmatpush1.msra.mxu0 0.0
    %1418 = vmatprep.subr.mxu0 0.0
    %1419 = vmatpush1.msra.mxu0 0.0
    %1420 = vmatprep.subr.mxu0 0.0
    %1421 = vmatpush1.msra.mxu0 0.0
    %1422 = vmatprep.subr.mxu0 0.0
    %1423 = vmatpush1.msra.mxu0 0.0
    %1424 = vmatprep.subr.mxu0 0.0
    %1425 = vmatpush1.msra.mxu0 0.0
    %1426 = vmatprep.subr.mxu0 0.0
    %1427 = vmatpush1.msra.mxu0 0.0
    %1428 = vmatprep.subr.mxu0 0.0
    %1429 = vmatpush1.msra.mxu0 0.0
    %1430 = vmatprep.subr.mxu0 0.0
    %1431 = vmatpush1.msra.mxu0 0.0
    %1432 = vmatprep.subr.mxu0 0.0
    %1433 = vmatpush1.msra.mxu0 0.0
    %1434 = vmatprep.subr.mxu0 0.0
    %1435 = vmatpush1.msra.mxu0 0.0
    %1436 = vmatprep.subr.mxu0 0.0
    %1437 = vmatpush1.msra.mxu0 0.0
    %1438 = vmatprep.subr.mxu0 0.0
    %1439 = vmatpush1.msra.mxu0 0.0
    %1440 = vmatprep.subr.mxu0 0.0
    %1441 = vmatpush1.msra.mxu0 0.0
    %1442 = vmatprep.subr.mxu0 0.0
    %1443 = vmatpush1.msra.mxu0 0.0
    %1444 = vmatprep.subr.mxu0 0.0
    %1445 = vmatpush1.msra.mxu0 0.0
    %1446 = vmatprep.subr.mxu0 0.0
    %1447 = vmatpush1.msra.mxu0 0.0
    %1448 = vmatprep.subr.mxu0 0.0
    %1449 = vmatpush1.msra.mxu0 0.0
    %1450 = vmatprep.subr.mxu0 0.0
    %1451 = vmatpush1.msra.mxu0 0.0
    %1452 = vmatprep.subr.mxu0 0.0
    %1453 = vmatpush1.msra.mxu0 0.0
    %1454 = vmatprep.subr.mxu0 0.0
    %1455 = vmatpush1.msra.mxu0 0.0
    %1456 = vmatprep.subr.mxu0 0.0
    %1457 = vmatpush1.msra.mxu0 0.0
    %1458 = vmatprep.subr.mxu0 0.0
    %1459 = vmatpush1.msra.mxu0 0.0
    %1460 = vmatprep.mubr.f32.mxu0 0.0
    %1461 = vmatmul.mubr.f32.gmra.mrb[0].mxu0 %v1392
    %v1462 = vpop.f32.mrb[0].mxu0
    %v1463 = vadd.f32 %v1380, %v1462
    %v1464 = vpop.f32.mrb[0].mxu0
    %1465 = vmatprep.mubr.f32.mxu0 0.0
    %1466 = vmatmul.mubr.f32.gmra.mrb[0].mxu0 %v1394
    %v1467 = vpop.f32.mrb[0].mxu0
    %v1468 = vadd.f32 %v1385, %v1467
    %v1469 = vpop.f32.mrb[0].mxu0
    %1470 = vdwg.mxu0
    %v1471 = vadd.f32 %v1463, %v413
    %v1472 = vadd.f32 %v1468, %v418
    %v1473 = vpack.c.bf16 %v1472, %v1471
    %1475 = vrot.lane.b32.xlu0 %v1473, 64
    %v1476 = vpop.permute.xlu0 %1475
    %1478 = vst.msk [vmem:[#allocation2 + $0x30] sm:$0xff] %vm776, %v1476
    %v1479 = vld [vmem:[#allocation7] sm:$0xff]
    %v1480 = vld [vmem:[%s245] sm:$0xff]
    %1481 = vrot.lane.b32.xlu0 %v222, 72
    %v1482 = vpop.permute.xlu0 %1481
    %1483 = vrot.lane.b32.xlu0 %v225, 72
    %v1484 = vpop.permute.xlu0 %1483
    %v1485 = vsel %vm247, %v1482, 0
    %v1487 = vsel %vm247, %v1484, 0
    %1489 = vmatprep.subr.mxu0 0.0
    %1490 = vmatpush1.msra.mxu0 %v1480
    %1491 = vmatprep.subr.mxu0 0.0
    %1492 = vmatpush1.msra.mxu0 0.0
    %1493 = vmatprep.subr.mxu0 0.0
    %1494 = vmatpush1.msra.mxu0 0.0
    %1495 = vmatprep.subr.mxu0 0.0
    %1496 = vmatpush1.msra.mxu0 0.0
    %1497 = vmatprep.subr.mxu0 0.0
    %1498 = vmatpush1.msra.mxu0 0.0
    %1499 = vmatprep.subr.mxu0 0.0
    %1500 = vmatpush1.msra.mxu0 0.0
    %1501 = vmatprep.subr.mxu0 0.0
    %1502 = vmatpush1.msra.mxu0 0.0
    %1503 = vmatprep.subr.mxu0 0.0
    %1504 = vmatpush1.msra.mxu0 0.0
    %1505 = vmatprep.subr.mxu0 0.0
    %1506 = vmatpush1.msra.mxu0 0.0
    %1507 = vmatprep.subr.mxu0 0.0
    %1508 = vmatpush1.msra.mxu0 0.0
    %1509 = vmatprep.subr.mxu0 0.0
    %1510 = vmatpush1.msra.mxu0 0.0
    %1511 = vmatprep.subr.mxu0 0.0
    %1512 = vmatpush1.msra.mxu0 0.0
    %1513 = vmatprep.subr.mxu0 0.0
    %1514 = vmatpush1.msra.mxu0 0.0
    %1515 = vmatprep.subr.mxu0 0.0
    %1516 = vmatpush1.msra.mxu0 0.0
    %1517 = vmatprep.subr.mxu0 0.0
    %1518 = vmatpush1.msra.mxu0 0.0
    %1519 = vmatprep.subr.mxu0 0.0
    %1520 = vmatpush1.msra.mxu0 0.0
    %1521 = vmatprep.subr.mxu0 0.0
    %1522 = vmatpush1.msra.mxu0 0.0
    %1523 = vmatprep.subr.mxu0 0.0
    %1524 = vmatpush1.msra.mxu0 0.0
    %1525 = vmatprep.subr.mxu0 0.0
    %1526 = vmatpush1.msra.mxu0 0.0
    %1527 = vmatprep.subr.mxu0 0.0
    %1528 = vmatpush1.msra.mxu0 0.0
    %1529 = vmatprep.subr.mxu0 0.0
    %1530 = vmatpush1.msra.mxu0 0.0
    %1531 = vmatprep.subr.mxu0 0.0
    %1532 = vmatpush1.msra.mxu0 0.0
    %1533 = vmatprep.subr.mxu0 0.0
    %1534 = vmatpush1.msra.mxu0 0.0
    %1535 = vmatprep.subr.mxu0 0.0
    %1536 = vmatpush1.msra.mxu0 0.0
    %1537 = vmatprep.subr.mxu0 0.0
    %1538 = vmatpush1.msra.mxu0 0.0
    %1539 = vmatprep.subr.mxu0 0.0
    %1540 = vmatpush1.msra.mxu0 0.0
    %1541 = vmatprep.subr.mxu0 0.0
    %1542 = vmatpush1.msra.mxu0 0.0
    %1543 = vmatprep.subr.mxu0 0.0
    %1544 = vmatpush1.msra.mxu0 0.0
    %1545 = vmatprep.subr.mxu0 0.0
    %1546 = vmatpush1.msra.mxu0 0.0
    %1547 = vmatprep.subr.mxu0 0.0
    %1548 = vmatpush1.msra.mxu0 0.0
    %1549 = vmatprep.subr.mxu0 0.0
    %1550 = vmatpush1.msra.mxu0 0.0
    %1551 = vmatprep.subr.mxu0 0.0
    %1552 = vmatpush1.msra.mxu0 0.0
    %1553 = vmatprep.mubr.f32.mxu0 0.0
    %1554 = vmatmul.mubr.f32.gmra.mrb[0].mxu0 %v1485
    %v1555 = vpop.f32.mrb[0].mxu0
    %v1556 = vadd.f32 0.0, %v1555
    %v1557 = vpop.f32.mrb[0].mxu0
    %1558 = vmatprep.mubr.f32.mxu0 0.0
    %1559 = vmatmul.mubr.f32.gmra.mrb[0].mxu0 %v1487
    %v1560 = vpop.f32.mrb[0].mxu0
    %v1561 = vadd.f32 0.0, %v1560
    %v1562 = vpop.f32.mrb[0].mxu0
    %1563 = vdwg.mxu0
    %1564 = vrot.lane.b32.xlu0 %v214, 72
    %v1565 = vpop.permute.xlu0 %1564
    %1566 = vrot.lane.b32.xlu0 %v217, 72
    %v1567 = vpop.permute.xlu0 %1566
    %v1568 = vsel %vm247, %v1565, 0
    %v1570 = vsel %vm247, %v1567, 0
    %1572 = vmatprep.subr.mxu0 0.0
    %1573 = vmatpush1.msra.mxu0 %v1479
    %1574 = vmatprep.subr.mxu0 0.0
    %1575 = vmatpush1.msra.mxu0 0.0
    %1576 = vmatprep.subr.mxu0 0.0
    %1577 = vmatpush1.msra.mxu0 0.0
    %1578 = vmatprep.subr.mxu0 0.0
    %1579 = vmatpush1.msra.mxu0 0.0
    %1580 = vmatprep.subr.mxu0 0.0
    %1581 = vmatpush1.msra.mxu0 0.0
    %1582 = vmatprep.subr.mxu0 0.0
    %1583 = vmatpush1.msra.mxu0 0.0
    %1584 = vmatprep.subr.mxu0 0.0
    %1585 = vmatpush1.msra.mxu0 0.0
    %1586 = vmatprep.subr.mxu0 0.0
    %1587 = vmatpush1.msra.mxu0 0.0
    %1588 = vmatprep.subr.mxu0 0.0
    %1589 = vmatpush1.msra.mxu0 0.0
    %1590 = vmatprep.subr.mxu0 0.0
    %1591 = vmatpush1.msra.mxu0 0.0
    %1592 = vmatprep.subr.mxu0 0.0
    %1593 = vmatpush1.msra.mxu0 0.0
    %1594 = vmatprep.subr.mxu0 0.0
    %1595 = vmatpush1.msra.mxu0 0.0
    %1596 = vmatprep.subr.mxu0 0.0
    %1597 = vmatpush1.msra.mxu0 0.0
    %1598 = vmatprep.subr.mxu0 0.0
    %1599 = vmatpush1.msra.mxu0 0.0
    %1600 = vmatprep.subr.mxu0 0.0
    %1601 = vmatpush1.msra.mxu0 0.0
    %1602 = vmatprep.subr.mxu0 0.0
    %1603 = vmatpush1.msra.mxu0 0.0
    %1604 = vmatprep.subr.mxu0 0.0
    %1605 = vmatpush1.msra.mxu0 0.0
    %1606 = vmatprep.subr.mxu0 0.0
    %1607 = vmatpush1.msra.mxu0 0.0
    %1608 = vmatprep.subr.mxu0 0.0
    %1609 = vmatpush1.msra.mxu0 0.0
    %1610 = vmatprep.subr.mxu0 0.0
    %1611 = vmatpush1.msra.mxu0 0.0
    %1612 = vmatprep.subr.mxu0 0.0
    %1613 = vmatpush1.msra.mxu0 0.0
    %1614 = vmatprep.subr.mxu0 0.0
    %1615 = vmatpush1.msra.mxu0 0.0
    %1616 = vmatprep.subr.mxu0 0.0
    %1617 = vmatpush1.msra.mxu0 0.0
    %1618 = vmatprep.subr.mxu0 0.0
    %1619 = vmatpush1.msra.mxu0 0.0
    %1620 = vmatprep.subr.mxu0 0.0
    %1621 = vmatpush1.msra.mxu0 0.0
    %1622 = vmatprep.subr.mxu0 0.0
    %1623 = vmatpush1.msra.mxu0 0.0
    %1624 = vmatprep.subr.mxu0 0.0
    %1625 = vmatpush1.msra.mxu0 0.0
    %1626 = vmatprep.subr.mxu0 0.0
    %1627 = vmatpush1.msra.mxu0 0.0
    %1628 = vmatprep.subr.mxu0 0.0
    %1629 = vmatpush1.msra.mxu0 0.0
    %1630 = vmatprep.subr.mxu0 0.0
    %1631 = vmatpush1.msra.mxu0 0.0
    %1632 = vmatprep.subr.mxu0 0.0
    %1633 = vmatpush1.msra.mxu0 0.0
    %1634 = vmatprep.subr.mxu0 0.0
    %1635 = vmatpush1.msra.mxu0 0.0
    %1636 = vmatprep.mubr.f32.mxu0 0.0
    %1637 = vmatmul.mubr.f32.gmra.mrb[0].mxu0 %v1568
    %v1638 = vpop.f32.mrb[0].mxu0
    %v1639 = vadd.f32 %v1556, %v1638
    %v1640 = vpop.f32.mrb[0].mxu0
    %1641 = vmatprep.mubr.f32.mxu0 0.0
    %1642 = vmatmul.mubr.f32.gmra.mrb[0].mxu0 %v1570
    %v1643 = vpop.f32.mrb[0].mxu0
    %v1644 = vadd.f32 %v1561, %v1643
    %v1645 = vpop.f32.mrb[0].mxu0
    %1646 = vdwg.mxu0
    %v1647 = vadd.f32 %v1639, %v413
    %v1648 = vadd.f32 %v1644, %v418
    %v1649 = vpack.c.bf16 %v1648, %v1647
    %1651 = vrot.lane.b32.xlu0 %v1649, 96
    %v1652 = vpop.permute.xlu0 %1651
    %1654 = vst.msk [vmem:[#allocation2 + $0x30] sm:$0xff] %vm953, %v1652
    %v1655 = vld [vmem:[#allocation7] sm:$0xff]
    %v1656 = vld [vmem:[%s245] sm:$0xff]
    %v1658 = vsel %vm247, %v238, 0
    %v1661 = vsel %vm247, %v241, 0
    %1663 = vmatprep.subr.mxu0 0.0
    %1664 = vmatpush1.msra.mxu0 %v1656
    %1665 = vmatprep.subr.mxu0 0.0
    %1666 = vmatpush1.msra.mxu0 0.0
    %1667 = vmatprep.subr.mxu0 0.0
    %1668 = vmatpush1.msra.mxu0 0.0
    %1669 = vmatprep.subr.mxu0 0.0
    %1670 = vmatpush1.msra.mxu0 0.0
    %1671 = vmatprep.subr.mxu0 0.0
    %1672 = vmatpush1.msra.mxu0 0.0
    %1673 = vmatprep.subr.mxu0 0.0
    %1674 = vmatpush1.msra.mxu0 0.0
    %1675 = vmatprep.subr.mxu0 0.0
    %1676 = vmatpush1.msra.mxu0 0.0
    %1677 = vmatprep.subr.mxu0 0.0
    %1678 = vmatpush1.msra.mxu0 0.0
    %1679 = vmatprep.subr.mxu0 0.0
    %1680 = vmatpush1.msra.mxu0 0.0
    %1681 = vmatprep.subr.mxu0 0.0
    %1682 = vmatpush1.msra.mxu0 0.0
    %1683 = vmatprep.subr.mxu0 0.0
    %1684 = vmatpush1.msra.mxu0 0.0
    %1685 = vmatprep.subr.mxu0 0.0
    %1686 = vmatpush1.msra.mxu0 0.0
    %1687 = vmatprep.subr.mxu0 0.0
    %1688 = vmatpush1.msra.mxu0 0.0
    %1689 = vmatprep.subr.mxu0 0.0
    %1690 = vmatpush1.msra.mxu0 0.0
    %1691 = vmatprep.subr.mxu0 0.0
    %1692 = vmatpush1.msra.mxu0 0.0
    %1693 = vmatprep.subr.mxu0 0.0
    %1694 = vmatpush1.msra.mxu0 0.0
    %1695 = vmatprep.subr.mxu0 0.0
    %1696 = vmatpush1.msra.mxu0 0.0
    %1697 = vmatprep.subr.mxu0 0.0
    %1698 = vmatpush1.msra.mxu0 0.0
    %1699 = vmatprep.subr.mxu0 0.0
    %1700 = vmatpush1.msra.mxu0 0.0
    %1701 = vmatprep.subr.mxu0 0.0
    %1702 = vmatpush1.msra.mxu0 0.0
    %1703 = vmatprep.subr.mxu0 0.0
    %1704 = vmatpush1.msra.mxu0 0.0
    %1705 = vmatprep.subr.mxu0 0.0
    %1706 = vmatpush1.msra.mxu0 0.0
    %1707 = vmatprep.subr.mxu0 0.0
    %1708 = vmatpush1.msra.mxu0 0.0
    %1709 = vmatprep.subr.mxu0 0.0
    %1710 = vmatpush1.msra.mxu0 0.0
    %1711 = vmatprep.subr.mxu0 0.0
    %1712 = vmatpush1.msra.mxu0 0.0
    %1713 = vmatprep.subr.mxu0 0.0
    %1714 = vmatpush1.msra.mxu0 0.0
    %1715 = vmatprep.subr.mxu0 0.0
    %1716 = vmatpush1.msra.mxu0 0.0
    %1717 = vmatprep.subr.mxu0 0.0
    %1718 = vmatpush1.msra.mxu0 0.0
    %1719 = vmatprep.subr.mxu0 0.0
    %1720 = vmatpush1.msra.mxu0 0.0
    %1721 = vmatprep.subr.mxu0 0.0
    %1722 = vmatpush1.msra.mxu0 0.0
    %1723 = vmatprep.subr.mxu0 0.0
    %1724 = vmatpush1.msra.mxu0 0.0
    %1725 = vmatprep.subr.mxu0 0.0
    %1726 = vmatpush1.msra.mxu0 0.0
    %1727 = vmatprep.mubr.f32.mxu0 0.0
    %1728 = vmatmul.mubr.f32.gmra.mrb[0].mxu0 %v1658
    %v1729 = vpop.f32.mrb[0].mxu0
    %v1730 = vadd.f32 0.0, %v1729
    %v1731 = vpop.f32.mrb[0].mxu0
    %1732 = vmatprep.mubr.f32.mxu0 0.0
    %1733 = vmatmul.mubr.f32.gmra.mrb[0].mxu0 %v1661
    %v1734 = vpop.f32.mrb[0].mxu0
    %v1735 = vadd.f32 0.0, %v1734
    %v1736 = vpop.f32.mrb[0].mxu0
    %1737 = vdwg.mxu0
    %v1739 = vsel %vm247, %v230, 0
    %v1742 = vsel %vm247, %v233, 0
    %1744 = vmatprep.subr.mxu0 0.0
    %1745 = vmatpush1.msra.mxu0 %v1655
    %1746 = vmatprep.subr.mxu0 0.0
    %1747 = vmatpush1.msra.mxu0 0.0
    %1748 = vmatprep.subr.mxu0 0.0
    %1749 = vmatpush1.msra.mxu0 0.0
    %1750 = vmatprep.subr.mxu0 0.0
    %1751 = vmatpush1.msra.mxu0 0.0
    %1752 = vmatprep.subr.mxu0 0.0
    %1753 = vmatpush1.msra.mxu0 0.0
    %1754 = vmatprep.subr.mxu0 0.0
    %1755 = vmatpush1.msra.mxu0 0.0
    %1756 = vmatprep.subr.mxu0 0.0
    %1757 = vmatpush1.msra.mxu0 0.0
    %1758 = vmatprep.subr.mxu0 0.0
    %1759 = vmatpush1.msra.mxu0 0.0
    %1760 = vmatprep.subr.mxu0 0.0
    %1761 = vmatpush1.msra.mxu0 0.0
    %1762 = vmatprep.subr.mxu0 0.0
    %1763 = vmatpush1.msra.mxu0 0.0
    %1764 = vmatprep.subr.mxu0 0.0
    %1765 = vmatpush1.msra.mxu0 0.0
    %1766 = vmatprep.subr.mxu0 0.0
    %1767 = vmatpush1.msra.mxu0 0.0
    %1768 = vmatprep.subr.mxu0 0.0
    %1769 = vmatpush1.msra.mxu0 0.0
    %1770 = vmatprep.subr.mxu0 0.0
    %1771 = vmatpush1.msra.mxu0 0.0
    %1772 = vmatprep.subr.mxu0 0.0
    %1773 = vmatpush1.msra.mxu0 0.0
    %1774 = vmatprep.subr.mxu0 0.0
    %1775 = vmatpush1.msra.mxu0 0.0
    %1776 = vmatprep.subr.mxu0 0.0
    %1777 = vmatpush1.msra.mxu0 0.0
    %1778 = vmatprep.subr.mxu0 0.0
    %1779 = vmatpush1.msra.mxu0 0.0
    %1780 = vmatprep.subr.mxu0 0.0
    %1781 = vmatpush1.msra.mxu0 0.0
    %1782 = vmatprep.subr.mxu0 0.0
    %1783 = vmatpush1.msra.mxu0 0.0
    %1784 = vmatprep.subr.mxu0 0.0
    %1785 = vmatpush1.msra.mxu0 0.0
    %1786 = vmatprep.subr.mxu0 0.0
    %1787 = vmatpush1.msra.mxu0 0.0
    %1788 = vmatprep.subr.mxu0 0.0
    %1789 = vmatpush1.msra.mxu0 0.0
    %1790 = vmatprep.subr.mxu0 0.0
    %1791 = vmatpush1.msra.mxu0 0.0
    %1792 = vmatprep.subr.mxu0 0.0
    %1793 = vmatpush1.msra.mxu0 0.0
    %1794 = vmatprep.subr.mxu0 0.0
    %1795 = vmatpush1.msra.mxu0 0.0
    %1796 = vmatprep.subr.mxu0 0.0
    %1797 = vmatpush1.msra.mxu0 0.0
    %1798 = vmatprep.subr.mxu0 0.0
    %1799 = vmatpush1.msra.mxu0 0.0
    %1800 = vmatprep.subr.mxu0 0.0
    %1801 = vmatpush1.msra.mxu0 0.0
    %1802 = vmatprep.subr.mxu0 0.0
    %1803 = vmatpush1.msra.mxu0 0.0
    %1804 = vmatprep.subr.mxu0 0.0
    %1805 = vmatpush1.msra.mxu0 0.0
    %1806 = vmatprep.subr.mxu0 0.0
    %1807 = vmatpush1.msra.mxu0 0.0
    %1808 = vmatprep.mubr.f32.mxu0 0.0
    %1809 = vmatmul.mubr.f32.gmra.mrb[0].mxu0 %v1739
    %v1810 = vpop.f32.mrb[0].mxu0
    %v1811 = vadd.f32 %v1730, %v1810
    %v1812 = vpop.f32.mrb[0].mxu0
    %1813 = vmatprep.mubr.f32.mxu0 0.0
    %1814 = vmatmul.mubr.f32.gmra.mrb[0].mxu0 %v1742
    %v1815 = vpop.f32.mrb[0].mxu0
    %v1816 = vadd.f32 %v1735, %v1815
    %v1817 = vpop.f32.mrb[0].mxu0
    %1818 = vdwg.mxu0
    %v1819 = vadd.f32 %v1811, %v413
    %v1820 = vadd.f32 %v1816, %v418
    %v1821 = vpack.c.bf16 %v1820, %v1819
    %1823 = vrot.lane.b32.xlu0 %v1821, 16
    %v1824 = vpop.permute.xlu0 %1823
    %vm1826 = vcmask 261248
    %1827 = vst.msk [vmem:[#allocation2 + $0x28] sm:$0xff] %vm1826, %v1824
    %v1828 = vld [vmem:[#allocation7] sm:$0xff]
    %v1829 = vld [vmem:[%s245] sm:$0xff]
    %1830 = vrot.lane.b32.xlu0 %v238, 120
    %v1831 = vpop.permute.xlu0 %1830
    %1832 = vrot.lane.b32.xlu0 %v241, 120
    %v1833 = vpop.permute.xlu0 %1832
    %v1834 = vsel %vm247, %v1831, 0
    %v1836 = vsel %vm247, %v1833, 0
    %1838 = vmatprep.subr.mxu0 0.0
    %1839 = vmatpush1.msra.mxu0 %v1829
    %1840 = vmatprep.subr.mxu0 0.0
    %1841 = vmatpush1.msra.mxu0 0.0
    %1842 = vmatprep.subr.mxu0 0.0
    %1843 = vmatpush1.msra.mxu0 0.0
    %1844 = vmatprep.subr.mxu0 0.0
    %1845 = vmatpush1.msra.mxu0 0.0
    %1846 = vmatprep.subr.mxu0 0.0
    %1847 = vmatpush1.msra.mxu0 0.0
    %1848 = vmatprep.subr.mxu0 0.0
    %1849 = vmatpush1.msra.mxu0 0.0
    %1850 = vmatprep.subr.mxu0 0.0
    %1851 = vmatpush1.msra.mxu0 0.0
    %1852 = vmatprep.subr.mxu0 0.0
    %1853 = vmatpush1.msra.mxu0 0.0
    %1854 = vmatprep.subr.mxu0 0.0
    %1855 = vmatpush1.msra.mxu0 0.0
    %1856 = vmatprep.subr.mxu0 0.0
    %1857 = vmatpush1.msra.mxu0 0.0
    %1858 = vmatprep.subr.mxu0 0.0
    %1859 = vmatpush1.msra.mxu0 0.0
    %1860 = vmatprep.subr.mxu0 0.0
    %1861 = vmatpush1.msra.mxu0 0.0
    %1862 = vmatprep.subr.mxu0 0.0
    %1863 = vmatpush1.msra.mxu0 0.0
    %1864 = vmatprep.subr.mxu0 0.0
    %1865 = vmatpush1.msra.mxu0 0.0
    %1866 = vmatprep.subr.mxu0 0.0
    %1867 = vmatpush1.msra.mxu0 0.0
    %1868 = vmatprep.subr.mxu0 0.0
    %1869 = vmatpush1.msra.mxu0 0.0
    %1870 = vmatprep.subr.mxu0 0.0
    %1871 = vmatpush1.msra.mxu0 0.0
    %1872 = vmatprep.subr.mxu0 0.0
    %1873 = vmatpush1.msra.mxu0 0.0
    %1874 = vmatprep.subr.mxu0 0.0
    %1875 = vmatpush1.msra.mxu0 0.0
    %1876 = vmatprep.subr.mxu0 0.0
    %1877 = vmatpush1.msra.mxu0 0.0
    %1878 = vmatprep.subr.mxu0 0.0
    %1879 = vmatpush1.msra.mxu0 0.0
    %1880 = vmatprep.subr.mxu0 0.0
    %1881 = vmatpush1.msra.mxu0 0.0
    %1882 = vmatprep.subr.mxu0 0.0
    %1883 = vmatpush1.msra.mxu0 0.0
    %1884 = vmatprep.subr.mxu0 0.0
    %1885 = vmatpush1.msra.mxu0 0.0
    %1886 = vmatprep.subr.mxu0 0.0
    %1887 = vmatpush1.msra.mxu0 0.0
    %1888 = vmatprep.subr.mxu0 0.0
    %1889 = vmatpush1.msra.mxu0 0.0
    %1890 = vmatprep.subr.mxu0 0.0
    %1891 = vmatpush1.msra.mxu0 0.0
    %1892 = vmatprep.subr.mxu0 0.0
    %1893 = vmatpush1.msra.mxu0 0.0
    %1894 = vmatprep.subr.mxu0 0.0
    %1895 = vmatpush1.msra.mxu0 0.0
    %1896 = vmatprep.subr.mxu0 0.0
    %1897 = vmatpush1.msra.mxu0 0.0
    %1898 = vmatprep.subr.mxu0 0.0
    %1899 = vmatpush1.msra.mxu0 0.0
    %1900 = vmatprep.subr.mxu0 0.0
    %1901 = vmatpush1.msra.mxu0 0.0
    %1902 = vmatprep.mubr.f32.mxu0 0.0
    %1903 = vmatmul.mubr.f32.gmra.mrb[0].mxu0 %v1834
    %v1904 = vpop.f32.mrb[0].mxu0
    %v1905 = vadd.f32 0.0, %v1904
    %v1906 = vpop.f32.mrb[0].mxu0
    %1907 = vmatprep.mubr.f32.mxu0 0.0
    %1908 = vmatmul.mubr.f32.gmra.mrb[0].mxu0 %v1836
    %v1909 = vpop.f32.mrb[0].mxu0
    %v1910 = vadd.f32 0.0, %v1909
    %v1911 = vpop.f32.mrb[0].mxu0
    %1912 = vdwg.mxu0
    %1913 = vrot.lane.b32.xlu0 %v230, 120
    %v1914 = vpop.permute.xlu0 %1913
    %1915 = vrot.lane.b32.xlu0 %v233, 120
    %v1916 = vpop.permute.xlu0 %1915
    %v1917 = vsel %vm247, %v1914, 0
    %v1919 = vsel %vm247, %v1916, 0
    %1921 = vmatprep.subr.mxu0 0.0
    %1922 = vmatpush1.msra.mxu0 %v1828
    %1923 = vmatprep.subr.mxu0 0.0
    %1924 = vmatpush1.msra.mxu0 0.0
    %1925 = vmatprep.subr.mxu0 0.0
    %1926 = vmatpush1.msra.mxu0 0.0
    %1927 = vmatprep.subr.mxu0 0.0
    %1928 = vmatpush1.msra.mxu0 0.0
    %1929 = vmatprep.subr.mxu0 0.0
    %1930 = vmatpush1.msra.mxu0 0.0
    %1931 = vmatprep.subr.mxu0 0.0
    %1932 = vmatpush1.msra.mxu0 0.0
    %1933 = vmatprep.subr.mxu0 0.0
    %1934 = vmatpush1.msra.mxu0 0.0
    %1935 = vmatprep.subr.mxu0 0.0
    %1936 = vmatpush1.msra.mxu0 0.0
    %1937 = vmatprep.subr.mxu0 0.0
    %1938 = vmatpush1.msra.mxu0 0.0
    %1939 = vmatprep.subr.mxu0 0.0
    %1940 = vmatpush1.msra.mxu0 0.0
    %1941 = vmatprep.subr.mxu0 0.0
    %1942 = vmatpush1.msra.mxu0 0.0
    %1943 = vmatprep.subr.mxu0 0.0
    %1944 = vmatpush1.msra.mxu0 0.0
    %1945 = vmatprep.subr.mxu0 0.0
    %1946 = vmatpush1.msra.mxu0 0.0
    %1947 = vmatprep.subr.mxu0 0.0
    %1948 = vmatpush1.msra.mxu0 0.0
    %1949 = vmatprep.subr.mxu0 0.0
    %1950 = vmatpush1.msra.mxu0 0.0
    %1951 = vmatprep.subr.mxu0 0.0
    %1952 = vmatpush1.msra.mxu0 0.0
    %1953 = vmatprep.subr.mxu0 0.0
    %1954 = vmatpush1.msra.mxu0 0.0
    %1955 = vmatprep.subr.mxu0 0.0
    %1956 = vmatpush1.msra.mxu0 0.0
    %1957 = vmatprep.subr.mxu0 0.0
    %1958 = vmatpush1.msra.mxu0 0.0
    %1959 = vmatprep.subr.mxu0 0.0
    %1960 = vmatpush1.msra.mxu0 0.0
    %1961 = vmatprep.subr.mxu0 0.0
    %1962 = vmatpush1.msra.mxu0 0.0
    %1963 = vmatprep.subr.mxu0 0.0
    %1964 = vmatpush1.msra.mxu0 0.0
    %1965 = vmatprep.subr.mxu0 0.0
    %1966 = vmatpush1.msra.mxu0 0.0
    %1967 = vmatprep.subr.mxu0 0.0
    %1968 = vmatpush1.msra.mxu0 0.0
    %1969 = vmatprep.subr.mxu0 0.0
    %1970 = vmatpush1.msra.mxu0 0.0
    %1971 = vmatprep.subr.mxu0 0.0
    %1972 = vmatpush1.msra.mxu0 0.0
    %1973 = vmatprep.subr.mxu0 0.0
    %1974 = vmatpush1.msra.mxu0 0.0
    %1975 = vmatprep.subr.mxu0 0.0
    %1976 = vmatpush1.msra.mxu0 0.0
    %1977 = vmatprep.subr.mxu0 0.0
    %1978 = vmatpush1.msra.mxu0 0.0
    %1979 = vmatprep.subr.mxu0 0.0
    %1980 = vmatpush1.msra.mxu0 0.0
    %1981 = vmatprep.subr.mxu0 0.0
    %1982 = vmatpush1.msra.mxu0 0.0
    %1983 = vmatprep.subr.mxu0 0.0
    %1984 = vmatpush1.msra.mxu0 0.0
    %1985 = vmatprep.mubr.f32.mxu0 0.0
    %1986 = vmatmul.mubr.f32.gmra.mrb[0].mxu0 %v1917
    %v1987 = vpop.f32.mrb[0].mxu0
    %v1988 = vadd.f32 %v1905, %v1987
    %v1989 = vpop.f32.mrb[0].mxu0
    %1990 = vmatprep.mubr.f32.mxu0 0.0
    %1991 = vmatmul.mubr.f32.gmra.mrb[0].mxu0 %v1919
    %v1992 = vpop.f32.mrb[0].mxu0
    %v1993 = vadd.f32 %v1910, %v1992
    %v1994 = vpop.f32.mrb[0].mxu0
    %1995 = vdwg.mxu0
    %v1996 = vadd.f32 %v1988, %v413
    %v1997 = vadd.f32 %v1993, %v418
    %v1998 = vpack.c.bf16 %v1997, %v1996
    %2000 = vrot.lane.b32.xlu0 %v1998, 48
    %v2001 = vpop.permute.xlu0 %2000
    %vm2003 = vcmask 523648
    %2004 = vst.msk [vmem:[#allocation2 + $0x28] sm:$0xff] %vm2003, %v2001
    %v2005 = vld [vmem:[#allocation7] sm:$0xff]
    %v2006 = vld [vmem:[%s245] sm:$0xff]
    %2007 = vrot.lane.b32.xlu0 %v238, 112
    %v2008 = vpop.permute.xlu0 %2007
    %2009 = vrot.lane.b32.xlu0 %v241, 112
    %v2010 = vpop.permute.xlu0 %2009
    %v2011 = vsel %vm247, %v2008, 0
    %v2013 = vsel %vm247, %v2010, 0
    %2015 = vmatprep.subr.mxu0 0.0
    %2016 = vmatpush1.msra.mxu0 %v2006
    %2017 = vmatprep.subr.mxu0 0.0
    %2018 = vmatpush1.msra.mxu0 0.0
    %2019 = vmatprep.subr.mxu0 0.0
    %2020 = vmatpush1.msra.mxu0 0.0
    %2021 = vmatprep.subr.mxu0 0.0
    %2022 = vmatpush1.msra.mxu0 0.0
    %2023 = vmatprep.subr.mxu0 0.0
    %2024 = vmatpush1.msra.mxu0 0.0
    %2025 = vmatprep.subr.mxu0 0.0
    %2026 = vmatpush1.msra.mxu0 0.0
    %2027 = vmatprep.subr.mxu0 0.0
    %2028 = vmatpush1.msra.mxu0 0.0
    %2029 = vmatprep.subr.mxu0 0.0
    %2030 = vmatpush1.msra.mxu0 0.0
    %2031 = vmatprep.subr.mxu0 0.0
    %2032 = vmatpush1.msra.mxu0 0.0
    %2033 = vmatprep.subr.mxu0 0.0
    %2034 = vmatpush1.msra.mxu0 0.0
    %2035 = vmatprep.subr.mxu0 0.0
    %2036 = vmatpush1.msra.mxu0 0.0
    %2037 = vmatprep.subr.mxu0 0.0
    %2038 = vmatpush1.msra.mxu0 0.0
    %2039 = vmatprep.subr.mxu0 0.0
    %2040 = vmatpush1.msra.mxu0 0.0
    %2041 = vmatprep.subr.mxu0 0.0
    %2042 = vmatpush1.msra.mxu0 0.0
    %2043 = vmatprep.subr.mxu0 0.0
    %2044 = vmatpush1.msra.mxu0 0.0
    %2045 = vmatprep.subr.mxu0 0.0
    %2046 = vmatpush1.msra.mxu0 0.0
    %2047 = vmatprep.subr.mxu0 0.0
    %2048 = vmatpush1.msra.mxu0 0.0
    %2049 = vmatprep.subr.mxu0 0.0
    %2050 = vmatpush1.msra.mxu0 0.0
    %2051 = vmatprep.subr.mxu0 0.0
    %2052 = vmatpush1.msra.mxu0 0.0
    %2053 = vmatprep.subr.mxu0 0.0
    %2054 = vmatpush1.msra.mxu0 0.0
    %2055 = vmatprep.subr.mxu0 0.0
    %2056 = vmatpush1.msra.mxu0 0.0
    %2057 = vmatprep.subr.mxu0 0.0
    %2058 = vmatpush1.msra.mxu0 0.0
    %2059 = vmatprep.subr.mxu0 0.0
    %2060 = vmatpush1.msra.mxu0 0.0
    %2061 = vmatprep.subr.mxu0 0.0
    %2062 = vmatpush1.msra.mxu0 0.0
    %2063 = vmatprep.subr.mxu0 0.0
    %2064 = vmatpush1.msra.mxu0 0.0
    %2065 = vmatprep.subr.mxu0 0.0
    %2066 = vmatpush1.msra.mxu0 0.0
    %2067 = vmatprep.subr.mxu0 0.0
    %2068 = vmatpush1.msra.mxu0 0.0
    %2069 = vmatprep.subr.mxu0 0.0
    %2070 = vmatpush1.msra.mxu0 0.0
    %2071 = vmatprep.subr.mxu0 0.0
    %2072 = vmatpush1.msra.mxu0 0.0
    %2073 = vmatprep.subr.mxu0 0.0
    %2074 = vmatpush1.msra.mxu0 0.0
    %2075 = vmatprep.subr.mxu0 0.0
    %2076 = vmatpush1.msra.mxu0 0.0
    %2077 = vmatprep.subr.mxu0 0.0
    %2078 = vmatpush1.msra.mxu0 0.0
    %2079 = vmatprep.mubr.f32.mxu0 0.0
    %2080 = vmatmul.mubr.f32.gmra.mrb[0].mxu0 %v2011
    %v2081 = vpop.f32.mrb[0].mxu0
    %v2082 = vadd.f32 0.0, %v2081
    %v2083 = vpop.f32.mrb[0].mxu0
    %2084 = vmatprep.mubr.f32.mxu0 0.0
    %2085 = vmatmul.mubr.f32.gmra.mrb[0].mxu0 %v2013
    %v2086 = vpop.f32.mrb[0].mxu0
    %v2087 = vadd.f32 0.0, %v2086
    %v2088 = vpop.f32.mrb[0].mxu0
    %2089 = vdwg.mxu0
    %2090 = vrot.lane.b32.xlu0 %v230, 112
    %v2091 = vpop.permute.xlu0 %2090
    %2092 = vrot.lane.b32.xlu0 %v233, 112
    %v2093 = vpop.permute.xlu0 %2092
    %v2094 = vsel %vm247, %v2091, 0
    %v2096 = vsel %vm247, %v2093, 0
    %2098 = vmatprep.subr.mxu0 0.0
    %2099 = vmatpush1.msra.mxu0 %v2005
    %2100 = vmatprep.subr.mxu0 0.0
    %2101 = vmatpush1.msra.mxu0 0.0
    %2102 = vmatprep.subr.mxu0 0.0
    %2103 = vmatpush1.msra.mxu0 0.0
    %2104 = vmatprep.subr.mxu0 0.0
    %2105 = vmatpush1.msra.mxu0 0.0
    %2106 = vmatprep.subr.mxu0 0.0
    %2107 = vmatpush1.msra.mxu0 0.0
    %2108 = vmatprep.subr.mxu0 0.0
    %2109 = vmatpush1.msra.mxu0 0.0
    %2110 = vmatprep.subr.mxu0 0.0
    %2111 = vmatpush1.msra.mxu0 0.0
    %2112 = vmatprep.subr.mxu0 0.0
    %2113 = vmatpush1.msra.mxu0 0.0
    %2114 = vmatprep.subr.mxu0 0.0
    %2115 = vmatpush1.msra.mxu0 0.0
    %2116 = vmatprep.subr.mxu0 0.0
    %2117 = vmatpush1.msra.mxu0 0.0
    %2118 = vmatprep.subr.mxu0 0.0
    %2119 = vmatpush1.msra.mxu0 0.0
    %2120 = vmatprep.subr.mxu0 0.0
    %2121 = vmatpush1.msra.mxu0 0.0
    %2122 = vmatprep.subr.mxu0 0.0
    %2123 = vmatpush1.msra.mxu0 0.0
    %2124 = vmatprep.subr.mxu0 0.0
    %2125 = vmatpush1.msra.mxu0 0.0
    %2126 = vmatprep.subr.mxu0 0.0
    %2127 = vmatpush1.msra.mxu0 0.0
    %2128 = vmatprep.subr.mxu0 0.0
    %2129 = vmatpush1.msra.mxu0 0.0
    %2130 = vmatprep.subr.mxu0 0.0
    %2131 = vmatpush1.msra.mxu0 0.0
    %2132 = vmatprep.subr.mxu0 0.0
    %2133 = vmatpush1.msra.mxu0 0.0
    %2134 = vmatprep.subr.mxu0 0.0
    %2135 = vmatpush1.msra.mxu0 0.0
    %2136 = vmatprep.subr.mxu0 0.0
    %2137 = vmatpush1.msra.mxu0 0.0
    %2138 = vmatprep.subr.mxu0 0.0
    %2139 = vmatpush1.msra.mxu0 0.0
    %2140 = vmatprep.subr.mxu0 0.0
    %2141 = vmatpush1.msra.mxu0 0.0
    %2142 = vmatprep.subr.mxu0 0.0
    %2143 = vmatpush1.msra.mxu0 0.0
    %2144 = vmatprep.subr.mxu0 0.0
    %2145 = vmatpush1.msra.mxu0 0.0
    %2146 = vmatprep.subr.mxu0 0.0
    %2147 = vmatpush1.msra.mxu0 0.0
    %2148 = vmatprep.subr.mxu0 0.0
    %2149 = vmatpush1.msra.mxu0 0.0
    %2150 = vmatprep.subr.mxu0 0.0
    %2151 = vmatpush1.msra.mxu0 0.0
    %2152 = vmatprep.subr.mxu0 0.0
    %2153 = vmatpush1.msra.mxu0 0.0
    %2154 = vmatprep.subr.mxu0 0.0
    %2155 = vmatpush1.msra.mxu0 0.0
    %2156 = vmatprep.subr.mxu0 0.0
    %2157 = vmatpush1.msra.mxu0 0.0
    %2158 = vmatprep.subr.mxu0 0.0
    %2159 = vmatpush1.msra.mxu0 0.0
    %2160 = vmatprep.subr.mxu0 0.0
    %2161 = vmatpush1.msra.mxu0 0.0
    %2162 = vmatprep.mubr.f32.mxu0 0.0
    %2163 = vmatmul.mubr.f32.gmra.mrb[0].mxu0 %v2094
    %v2164 = vpop.f32.mrb[0].mxu0
    %v2165 = vadd.f32 %v2082, %v2164
    %v2166 = vpop.f32.mrb[0].mxu0
    %2167 = vmatprep.mubr.f32.mxu0 0.0
    %2168 = vmatmul.mubr.f32.gmra.mrb[0].mxu0 %v2096
    %v2169 = vpop.f32.mrb[0].mxu0
    %v2170 = vadd.f32 %v2087, %v2169
    %v2171 = vpop.f32.mrb[0].mxu0
    %2172 = vdwg.mxu0
    %v2173 = vadd.f32 %v2165, %v413
    %v2174 = vadd.f32 %v2170, %v418
    %v2175 = vpack.c.bf16 %v2174, %v2173
    %2177 = vrot.lane.b32.xlu0 %v2175, 80
    %v2178 = vpop.permute.xlu0 %2177
    %vm2180 = vcmask 786048
    %2181 = vst.msk [vmem:[#allocation2 + $0x28] sm:$0xff] %vm2180, %v2178
    %v2182 = vld [vmem:[#allocation7] sm:$0xff]
    %v2183 = vld [vmem:[%s245] sm:$0xff]
    %2184 = vrot.lane.b32.xlu0 %v238, 104
    %v2185 = vpop.permute.xlu0 %2184
    %2186 = vrot.lane.b32.xlu0 %v241, 104
    %v2187 = vpop.permute.xlu0 %2186
    %v2188 = vsel %vm247, %v2185, 0
    %v2190 = vsel %vm247, %v2187, 0
    %2192 = vmatprep.subr.mxu0 0.0
    %2193 = vmatpush1.msra.mxu0 %v2183
    %2194 = vmatprep.subr.mxu0 0.0
    %2195 = vmatpush1.msra.mxu0 0.0
    %2196 = vmatprep.subr.mxu0 0.0
    %2197 = vmatpush1.msra.mxu0 0.0
    %2198 = vmatprep.subr.mxu0 0.0
    %2199 = vmatpush1.msra.mxu0 0.0
    %2200 = vmatprep.subr.mxu0 0.0
    %2201 = vmatpush1.msra.mxu0 0.0
    %2202 = vmatprep.subr.mxu0 0.0
    %2203 = vmatpush1.msra.mxu0 0.0
    %2204 = vmatprep.subr.mxu0 0.0
    %2205 = vmatpush1.msra.mxu0 0.0
    %2206 = vmatprep.subr.mxu0 0.0
    %2207 = vmatpush1.msra.mxu0 0.0
    %2208 = vmatprep.subr.mxu0 0.0
    %2209 = vmatpush1.msra.mxu0 0.0
    %2210 = vmatprep.subr.mxu0 0.0
    %2211 = vmatpush1.msra.mxu0 0.0
    %2212 = vmatprep.subr.mxu0 0.0
    %2213 = vmatpush1.msra.mxu0 0.0
    %2214 = vmatprep.subr.mxu0 0.0
    %2215 = vmatpush1.msra.mxu0 0.0
    %2216 = vmatprep.subr.mxu0 0.0
    %2217 = vmatpush1.msra.mxu0 0.0
    %2218 = vmatprep.subr.mxu0 0.0
    %2219 = vmatpush1.msra.mxu0 0.0
    %2220 = vmatprep.subr.mxu0 0.0
    %2221 = vmatpush1.msra.mxu0 0.0
    %2222 = vmatprep.subr.mxu0 0.0
    %2223 = vmatpush1.msra.mxu0 0.0
    %2224 = vmatprep.subr.mxu0 0.0
    %2225 = vmatpush1.msra.mxu0 0.0
    %2226 = vmatprep.subr.mxu0 0.0
    %2227 = vmatpush1.msra.mxu0 0.0
    %2228 = vmatprep.subr.mxu0 0.0
    %2229 = vmatpush1.msra.mxu0 0.0
    %2230 = vmatprep.subr.mxu0 0.0
    %2231 = vmatpush1.msra.mxu0 0.0
    %2232 = vmatprep.subr.mxu0 0.0
    %2233 = vmatpush1.msra.mxu0 0.0
    %2234 = vmatprep.subr.mxu0 0.0
    %2235 = vmatpush1.msra.mxu0 0.0
    %2236 = vmatprep.subr.mxu0 0.0
    %2237 = vmatpush1.msra.mxu0 0.0
    %2238 = vmatprep.subr.mxu0 0.0
    %2239 = vmatpush1.msra.mxu0 0.0
    %2240 = vmatprep.subr.mxu0 0.0
    %2241 = vmatpush1.msra.mxu0 0.0
    %2242 = vmatprep.subr.mxu0 0.0
    %2243 = vmatpush1.msra.mxu0 0.0
    %2244 = vmatprep.subr.mxu0 0.0
    %2245 = vmatpush1.msra.mxu0 0.0
    %2246 = vmatprep.subr.mxu0 0.0
    %2247 = vmatpush1.msra.mxu0 0.0
    %2248 = vmatprep.subr.mxu0 0.0
    %2249 = vmatpush1.msra.mxu0 0.0
    %2250 = vmatprep.subr.mxu0 0.0
    %2251 = vmatpush1.msra.mxu0 0.0
    %2252 = vmatprep.subr.mxu0 0.0
    %2253 = vmatpush1.msra.mxu0 0.0
    %2254 = vmatprep.subr.mxu0 0.0
    %2255 = vmatpush1.msra.mxu0 0.0
    %2256 = vmatprep.mubr.f32.mxu0 0.0
    %2257 = vmatmul.mubr.f32.gmra.mrb[0].mxu0 %v2188
    %v2258 = vpop.f32.mrb[0].mxu0
    %v2259 = vadd.f32 0.0, %v2258
    %v2260 = vpop.f32.mrb[0].mxu0
    %2261 = vmatprep.mubr.f32.mxu0 0.0
    %2262 = vmatmul.mubr.f32.gmra.mrb[0].mxu0 %v2190
    %v2263 = vpop.f32.mrb[0].mxu0
    %v2264 = vadd.f32 0.0, %v2263
    %v2265 = vpop.f32.mrb[0].mxu0
    %2266 = vdwg.mxu0
    %2267 = vrot.lane.b32.xlu0 %v230, 104
    %v2268 = vpop.permute.xlu0 %2267
    %2269 = vrot.lane.b32.xlu0 %v233, 104
    %v2270 = vpop.permute.xlu0 %2269
    %v2271 = vsel %vm247, %v2268, 0
    %v2273 = vsel %vm247, %v2270, 0
    %2275 = vmatprep.subr.mxu0 0.0
    %2276 = vmatpush1.msra.mxu0 %v2182
    %2277 = vmatprep.subr.mxu0 0.0
    %2278 = vmatpush1.msra.mxu0 0.0
    %2279 = vmatprep.subr.mxu0 0.0
    %2280 = vmatpush1.msra.mxu0 0.0
    %2281 = vmatprep.subr.mxu0 0.0
    %2282 = vmatpush1.msra.mxu0 0.0
    %2283 = vmatprep.subr.mxu0 0.0
    %2284 = vmatpush1.msra.mxu0 0.0
    %2285 = vmatprep.subr.mxu0 0.0
    %2286 = vmatpush1.msra.mxu0 0.0
    %2287 = vmatprep.subr.mxu0 0.0
    %2288 = vmatpush1.msra.mxu0 0.0
    %2289 = vmatprep.subr.mxu0 0.0
    %2290 = vmatpush1.msra.mxu0 0.0
    %2291 = vmatprep.subr.mxu0 0.0
    %2292 = vmatpush1.msra.mxu0 0.0
    %2293 = vmatprep.subr.mxu0 0.0
    %2294 = vmatpush1.msra.mxu0 0.0
    %2295 = vmatprep.subr.mxu0 0.0
    %2296 = vmatpush1.msra.mxu0 0.0
    %2297 = vmatprep.subr.mxu0 0.0
    %2298 = vmatpush1.msra.mxu0 0.0
    %2299 = vmatprep.subr.mxu0 0.0
    %2300 = vmatpush1.msra.mxu0 0.0
    %2301 = vmatprep.subr.mxu0 0.0
    %2302 = vmatpush1.msra.mxu0 0.0
    %2303 = vmatprep.subr.mxu0 0.0
    %2304 = vmatpush1.msra.mxu0 0.0
    %2305 = vmatprep.subr.mxu0 0.0
    %2306 = vmatpush1.msra.mxu0 0.0
    %2307 = vmatprep.subr.mxu0 0.0
    %2308 = vmatpush1.msra.mxu0 0.0
    %2309 = vmatprep.subr.mxu0 0.0
    %2310 = vmatpush1.msra.mxu0 0.0
    %2311 = vmatprep.subr.mxu0 0.0
    %2312 = vmatpush1.msra.mxu0 0.0
    %2313 = vmatprep.subr.mxu0 0.0
    %2314 = vmatpush1.msra.mxu0 0.0
    %2315 = vmatprep.subr.mxu0 0.0
    %2316 = vmatpush1.msra.mxu0 0.0
    %2317 = vmatprep.subr.mxu0 0.0
    %2318 = vmatpush1.msra.mxu0 0.0
    %2319 = vmatprep.subr.mxu0 0.0
    %2320 = vmatpush1.msra.mxu0 0.0
    %2321 = vmatprep.subr.mxu0 0.0
    %2322 = vmatpush1.msra.mxu0 0.0
    %2323 = vmatprep.subr.mxu0 0.0
    %2324 = vmatpush1.msra.mxu0 0.0
    %2325 = vmatprep.subr.mxu0 0.0
    %2326 = vmatpush1.msra.mxu0 0.0
    %2327 = vmatprep.subr.mxu0 0.0
    %2328 = vmatpush1.msra.mxu0 0.0
    %2329 = vmatprep.subr.mxu0 0.0
    %2330 = vmatpush1.msra.mxu0 0.0
    %2331 = vmatprep.subr.mxu0 0.0
    %2332 = vmatpush1.msra.mxu0 0.0
    %2333 = vmatprep.subr.mxu0 0.0
    %2334 = vmatpush1.msra.mxu0 0.0
    %2335 = vmatprep.subr.mxu0 0.0
    %2336 = vmatpush1.msra.mxu0 0.0
    %2337 = vmatprep.subr.mxu0 0.0
    %2338 = vmatpush1.msra.mxu0 0.0
    %2339 = vmatprep.mubr.f32.mxu0 0.0
    %2340 = vmatmul.mubr.f32.gmra.mrb[0].mxu0 %v2271
    %v2341 = vpop.f32.mrb[0].mxu0
    %v2342 = vadd.f32 %v2259, %v2341
    %v2343 = vpop.f32.mrb[0].mxu0
    %2344 = vmatprep.mubr.f32.mxu0 0.0
    %2345 = vmatmul.mubr.f32.gmra.mrb[0].mxu0 %v2273
    %v2346 = vpop.f32.mrb[0].mxu0
    %v2347 = vadd.f32 %v2264, %v2346
    %v2348 = vpop.f32.mrb[0].mxu0
    %2349 = vdwg.mxu0
    %v2350 = vadd.f32 %v2342, %v413
    %v2351 = vadd.f32 %v2347, %v418
    %v2352 = vpack.c.bf16 %v2351, %v2350
    %2354 = vrot.lane.b32.xlu0 %v2352, 112
    %v2355 = vpop.permute.xlu0 %2354
    %vm2357 = vcmask 1048448
    %2358 = vst.msk [vmem:[#allocation2 + $0x28] sm:$0xff] %vm2357, %v2355
    %v2359 = vld [vmem:[#allocation7] sm:$0xff]
    %v2360 = vld [vmem:[%s245] sm:$0xff]
    %2361 = vrot.lane.b32.xlu0 %v238, 96
    %v2362 = vpop.permute.xlu0 %2361
    %2363 = vrot.lane.b32.xlu0 %v241, 96
    %v2364 = vpop.permute.xlu0 %2363
    %v2365 = vsel %vm247, %v2362, 0
    %v2367 = vsel %vm247, %v2364, 0
    %2369 = vmatprep.subr.mxu0 0.0
    %2370 = vmatpush1.msra.mxu0 %v2360
    %2371 = vmatprep.subr.mxu0 0.0
    %2372 = vmatpush1.msra.mxu0 0.0
    %2373 = vmatprep.subr.mxu0 0.0
    %2374 = vmatpush1.msra.mxu0 0.0
    %2375 = vmatprep.subr.mxu0 0.0
    %2376 = vmatpush1.msra.mxu0 0.0
    %2377 = vmatprep.subr.mxu0 0.0
    %2378 = vmatpush1.msra.mxu0 0.0
    %2379 = vmatprep.subr.mxu0 0.0
    %2380 = vmatpush1.msra.mxu0 0.0
    %2381 = vmatprep.subr.mxu0 0.0
    %2382 = vmatpush1.msra.mxu0 0.0
    %2383 = vmatprep.subr.mxu0 0.0
    %2384 = vmatpush1.msra.mxu0 0.0
    %2385 = vmatprep.subr.mxu0 0.0
    %2386 = vmatpush1.msra.mxu0 0.0
    %2387 = vmatprep.subr.mxu0 0.0
    %2388 = vmatpush1.msra.mxu0 0.0
    %2389 = vmatprep.subr.mxu0 0.0
    %2390 = vmatpush1.msra.mxu0 0.0
    %2391 = vmatprep.subr.mxu0 0.0
    %2392 = vmatpush1.msra.mxu0 0.0
    %2393 = vmatprep.subr.mxu0 0.0
    %2394 = vmatpush1.msra.mxu0 0.0
    %2395 = vmatprep.subr.mxu0 0.0
    %2396 = vmatpush1.msra.mxu0 0.0
    %2397 = vmatprep.subr.mxu0 0.0
    %2398 = vmatpush1.msra.mxu0 0.0
    %2399 = vmatprep.subr.mxu0 0.0
    %2400 = vmatpush1.msra.mxu0 0.0
    %2401 = vmatprep.subr.mxu0 0.0
    %2402 = vmatpush1.msra.mxu0 0.0
    %2403 = vmatprep.subr.mxu0 0.0
    %2404 = vmatpush1.msra.mxu0 0.0
    %2405 = vmatprep.subr.mxu0 0.0
    %2406 = vmatpush1.msra.mxu0 0.0
    %2407 = vmatprep.subr.mxu0 0.0
    %2408 = vmatpush1.msra.mxu0 0.0
    %2409 = vmatprep.subr.mxu0 0.0
    %2410 = vmatpush1.msra.mxu0 0.0
    %2411 = vmatprep.subr.mxu0 0.0
    %2412 = vmatpush1.msra.mxu0 0.0
    %2413 = vmatprep.subr.mxu0 0.0
    %2414 = vmatpush1.msra.mxu0 0.0
    %2415 = vmatprep.subr.mxu0 0.0
    %2416 = vmatpush1.msra.mxu0 0.0
    %2417 = vmatprep.subr.mxu0 0.0
    %2418 = vmatpush1.msra.mxu0 0.0
    %2419 = vmatprep.subr.mxu0 0.0
    %2420 = vmatpush1.msra.mxu0 0.0
    %2421 = vmatprep.subr.mxu0 0.0
    %2422 = vmatpush1.msra.mxu0 0.0
    %2423 = vmatprep.subr.mxu0 0.0
    %2424 = vmatpush1.msra.mxu0 0.0
    %2425 = vmatprep.subr.mxu0 0.0
    %2426 = vmatpush1.msra.mxu0 0.0
    %2427 = vmatprep.subr.mxu0 0.0
    %2428 = vmatpush1.msra.mxu0 0.0
    %2429 = vmatprep.subr.mxu0 0.0
    %2430 = vmatpush1.msra.mxu0 0.0
    %2431 = vmatprep.subr.mxu0 0.0
    %2432 = vmatpush1.msra.mxu0 0.0
    %2433 = vmatprep.mubr.f32.mxu0 0.0
    %2434 = vmatmul.mubr.f32.gmra.mrb[0].mxu0 %v2365
    %v2435 = vpop.f32.mrb[0].mxu0
    %v2436 = vadd.f32 0.0, %v2435
    %v2437 = vpop.f32.mrb[0].mxu0
    %2438 = vmatprep.mubr.f32.mxu0 0.0
    %2439 = vmatmul.mubr.f32.gmra.mrb[0].mxu0 %v2367
    %v2440 = vpop.f32.mrb[0].mxu0
    %v2441 = vadd.f32 0.0, %v2440
    %v2442 = vpop.f32.mrb[0].mxu0
    %2443 = vdwg.mxu0
    %2444 = vrot.lane.b32.xlu0 %v230, 96
    %v2445 = vpop.permute.xlu0 %2444
    %2446 = vrot.lane.b32.xlu0 %v233, 96
    %v2447 = vpop.permute.xlu0 %2446
    %v2448 = vsel %vm247, %v2445, 0
    %v2450 = vsel %vm247, %v2447, 0
    %2452 = vmatprep.subr.mxu0 0.0
    %2453 = vmatpush1.msra.mxu0 %v2359
    %2454 = vmatprep.subr.mxu0 0.0
    %2455 = vmatpush1.msra.mxu0 0.0
    %2456 = vmatprep.subr.mxu0 0.0
    %2457 = vmatpush1.msra.mxu0 0.0
    %2458 = vmatprep.subr.mxu0 0.0
    %2459 = vmatpush1.msra.mxu0 0.0
    %2460 = vmatprep.subr.mxu0 0.0
    %2461 = vmatpush1.msra.mxu0 0.0
    %2462 = vmatprep.subr.mxu0 0.0
    %2463 = vmatpush1.msra.mxu0 0.0
    %2464 = vmatprep.subr.mxu0 0.0
    %2465 = vmatpush1.msra.mxu0 0.0
    %2466 = vmatprep.subr.mxu0 0.0
    %2467 = vmatpush1.msra.mxu0 0.0
    %2468 = vmatprep.subr.mxu0 0.0
    %2469 = vmatpush1.msra.mxu0 0.0
    %2470 = vmatprep.subr.mxu0 0.0
    %2471 = vmatpush1.msra.mxu0 0.0
    %2472 = vmatprep.subr.mxu0 0.0
    %2473 = vmatpush1.msra.mxu0 0.0
    %2474 = vmatprep.subr.mxu0 0.0
    %2475 = vmatpush1.msra.mxu0 0.0
    %2476 = vmatprep.subr.mxu0 0.0
    %2477 = vmatpush1.msra.mxu0 0.0
    %2478 = vmatprep.subr.mxu0 0.0
    %2479 = vmatpush1.msra.mxu0 0.0
    %2480 = vmatprep.subr.mxu0 0.0
    %2481 = vmatpush1.msra.mxu0 0.0
    %2482 = vmatprep.subr.mxu0 0.0
    %2483 = vmatpush1.msra.mxu0 0.0
    %2484 = vmatprep.subr.mxu0 0.0
    %2485 = vmatpush1.msra.mxu0 0.0
    %2486 = vmatprep.subr.mxu0 0.0
    %2487 = vmatpush1.msra.mxu0 0.0
    %2488 = vmatprep.subr.mxu0 0.0
    %2489 = vmatpush1.msra.mxu0 0.0
    %2490 = vmatprep.subr.mxu0 0.0
    %2491 = vmatpush1.msra.mxu0 0.0
    %2492 = vmatprep.subr.mxu0 0.0
    %2493 = vmatpush1.msra.mxu0 0.0
    %2494 = vmatprep.subr.mxu0 0.0
    %2495 = vmatpush1.msra.mxu0 0.0
    %2496 = vmatprep.subr.mxu0 0.0
    %2497 = vmatpush1.msra.mxu0 0.0
    %2498 = vmatprep.subr.mxu0 0.0
    %2499 = vmatpush1.msra.mxu0 0.0
    %2500 = vmatprep.subr.mxu0 0.0
    %2501 = vmatpush1.msra.mxu0 0.0
    %2502 = vmatprep.subr.mxu0 0.0
    %2503 = vmatpush1.msra.mxu0 0.0
    %2504 = vmatprep.subr.mxu0 0.0
    %2505 = vmatpush1.msra.mxu0 0.0
    %2506 = vmatprep.subr.mxu0 0.0
    %2507 = vmatpush1.msra.mxu0 0.0
    %2508 = vmatprep.subr.mxu0 0.0
    %2509 = vmatpush1.msra.mxu0 0.0
    %2510 = vmatprep.subr.mxu0 0.0
    %2511 = vmatpush1.msra.mxu0 0.0
    %2512 = vmatprep.subr.mxu0 0.0
    %2513 = vmatpush1.msra.mxu0 0.0
    %2514 = vmatprep.subr.mxu0 0.0
    %2515 = vmatpush1.msra.mxu0 0.0
    %2516 = vmatprep.mubr.f32.mxu0 0.0
    %2517 = vmatmul.mubr.f32.gmra.mrb[0].mxu0 %v2448
    %v2518 = vpop.f32.mrb[0].mxu0
    %v2519 = vadd.f32 %v2436, %v2518
    %v2520 = vpop.f32.mrb[0].mxu0
    %2521 = vmatprep.mubr.f32.mxu0 0.0
    %2522 = vmatmul.mubr.f32.gmra.mrb[0].mxu0 %v2450
    %v2523 = vpop.f32.mrb[0].mxu0
    %v2524 = vadd.f32 %v2441, %v2523
    %v2525 = vpop.f32.mrb[0].mxu0
    %2526 = vdwg.mxu0
    %v2527 = vadd.f32 %v2519, %v413
    %v2528 = vadd.f32 %v2524, %v418
    %v2529 = vpack.c.bf16 %v2528, %v2527
    %2531 = vrot.lane.b32.xlu0 %v2529, 16
    %v2532 = vpop.permute.xlu0 %2531
    %2534 = vst.msk [vmem:[#allocation2 + $0x30] sm:$0xff] %vm1826, %v2532
    %v2535 = vld [vmem:[#allocation7] sm:$0xff]
    %v2536 = vld [vmem:[%s245] sm:$0xff]
    %2537 = vrot.lane.b32.xlu0 %v238, 88
    %v2538 = vpop.permute.xlu0 %2537
    %2539 = vrot.lane.b32.xlu0 %v241, 88
    %v2540 = vpop.permute.xlu0 %2539
    %v2541 = vsel %vm247, %v2538, 0
    %v2543 = vsel %vm247, %v2540, 0
    %2545 = vmatprep.subr.mxu0 0.0
    %2546 = vmatpush1.msra.mxu0 %v2536
    %2547 = vmatprep.subr.mxu0 0.0
    %2548 = vmatpush1.msra.mxu0 0.0
    %2549 = vmatprep.subr.mxu0 0.0
    %2550 = vmatpush1.msra.mxu0 0.0
    %2551 = vmatprep.subr.mxu0 0.0
    %2552 = vmatpush1.msra.mxu0 0.0
    %2553 = vmatprep.subr.mxu0 0.0
    %2554 = vmatpush1.msra.mxu0 0.0
    %2555 = vmatprep.subr.mxu0 0.0
    %2556 = vmatpush1.msra.mxu0 0.0
    %2557 = vmatprep.subr.mxu0 0.0
    %2558 = vmatpush1.msra.mxu0 0.0
    %2559 = vmatprep.subr.mxu0 0.0
    %2560 = vmatpush1.msra.mxu0 0.0
    %2561 = vmatprep.subr.mxu0 0.0
    %2562 = vmatpush1.msra.mxu0 0.0
    %2563 = vmatprep.subr.mxu0 0.0
    %2564 = vmatpush1.msra.mxu0 0.0
    %2565 = vmatprep.subr.mxu0 0.0
    %2566 = vmatpush1.msra.mxu0 0.0
    %2567 = vmatprep.subr.mxu0 0.0
    %2568 = vmatpush1.msra.mxu0 0.0
    %2569 = vmatprep.subr.mxu0 0.0
    %2570 = vmatpush1.msra.mxu0 0.0
    %2571 = vmatprep.subr.mxu0 0.0
    %2572 = vmatpush1.msra.mxu0 0.0
    %2573 = vmatprep.subr.mxu0 0.0
    %2574 = vmatpush1.msra.mxu0 0.0
    %2575 = vmatprep.subr.mxu0 0.0
    %2576 = vmatpush1.msra.mxu0 0.0
    %2577 = vmatprep.subr.mxu0 0.0
    %2578 = vmatpush1.msra.mxu0 0.0
    %2579 = vmatprep.subr.mxu0 0.0
    %2580 = vmatpush1.msra.mxu0 0.0
    %2581 = vmatprep.subr.mxu0 0.0
    %2582 = vmatpush1.msra.mxu0 0.0
    %2583 = vmatprep.subr.mxu0 0.0
    %2584 = vmatpush1.msra.mxu0 0.0
    %2585 = vmatprep.subr.mxu0 0.0
    %2586 = vmatpush1.msra.mxu0 0.0
    %2587 = vmatprep.subr.mxu0 0.0
    %2588 = vmatpush1.msra.mxu0 0.0
    %2589 = vmatprep.subr.mxu0 0.0
    %2590 = vmatpush1.msra.mxu0 0.0
    %2591 = vmatprep.subr.mxu0 0.0
    %2592 = vmatpush1.msra.mxu0 0.0
    %2593 = vmatprep.subr.mxu0 0.0
    %2594 = vmatpush1.msra.mxu0 0.0
    %2595 = vmatprep.subr.mxu0 0.0
    %2596 = vmatpush1.msra.mxu0 0.0
    %2597 = vmatprep.subr.mxu0 0.0
    %2598 = vmatpush1.msra.mxu0 0.0
    %2599 = vmatprep.subr.mxu0 0.0
    %2600 = vmatpush1.msra.mxu0 0.0
    %2601 = vmatprep.subr.mxu0 0.0
    %2602 = vmatpush1.msra.mxu0 0.0
    %2603 = vmatprep.subr.mxu0 0.0
    %2604 = vmatpush1.msra.mxu0 0.0
    %2605 = vmatprep.subr.mxu0 0.0
    %2606 = vmatpush1.msra.mxu0 0.0
    %2607 = vmatprep.subr.mxu0 0.0
    %2608 = vmatpush1.msra.mxu0 0.0
    %2609 = vmatprep.mubr.f32.mxu0 0.0
    %2610 = vmatmul.mubr.f32.gmra.mrb[0].mxu0 %v2541
    %v2611 = vpop.f32.mrb[0].mxu0
    %v2612 = vadd.f32 0.0, %v2611
    %v2613 = vpop.f32.mrb[0].mxu0
    %2614 = vmatprep.mubr.f32.mxu0 0.0
    %2615 = vmatmul.mubr.f32.gmra.mrb[0].mxu0 %v2543
    %v2616 = vpop.f32.mrb[0].mxu0
    %v2617 = vadd.f32 0.0, %v2616
    %v2618 = vpop.f32.mrb[0].mxu0
    %2619 = vdwg.mxu0
    %2620 = vrot.lane.b32.xlu0 %v230, 88
    %v2621 = vpop.permute.xlu0 %2620
    %2622 = vrot.lane.b32.xlu0 %v233, 88
    %v2623 = vpop.permute.xlu0 %2622
    %v2624 = vsel %vm247, %v2621, 0
    %v2626 = vsel %vm247, %v2623, 0
    %2628 = vmatprep.subr.mxu0 0.0
    %2629 = vmatpush1.msra.mxu0 %v2535
    %2630 = vmatprep.subr.mxu0 0.0
    %2631 = vmatpush1.msra.mxu0 0.0
    %2632 = vmatprep.subr.mxu0 0.0
    %2633 = vmatpush1.msra.mxu0 0.0
    %2634 = vmatprep.subr.mxu0 0.0
    %2635 = vmatpush1.msra.mxu0 0.0
    %2636 = vmatprep.subr.mxu0 0.0
    %2637 = vmatpush1.msra.mxu0 0.0
    %2638 = vmatprep.subr.mxu0 0.0
    %2639 = vmatpush1.msra.mxu0 0.0
    %2640 = vmatprep.subr.mxu0 0.0
    %2641 = vmatpush1.msra.mxu0 0.0
    %2642 = vmatprep.subr.mxu0 0.0
    %2643 = vmatpush1.msra.mxu0 0.0
    %2644 = vmatprep.subr.mxu0 0.0
    %2645 = vmatpush1.msra.mxu0 0.0
    %2646 = vmatprep.subr.mxu0 0.0
    %2647 = vmatpush1.msra.mxu0 0.0
    %2648 = vmatprep.subr.mxu0 0.0
    %2649 = vmatpush1.msra.mxu0 0.0
    %2650 = vmatprep.subr.mxu0 0.0
    %2651 = vmatpush1.msra.mxu0 0.0
    %2652 = vmatprep.subr.mxu0 0.0
    %2653 = vmatpush1.msra.mxu0 0.0
    %2654 = vmatprep.subr.mxu0 0.0
    %2655 = vmatpush1.msra.mxu0 0.0
    %2656 = vmatprep.subr.mxu0 0.0
    %2657 = vmatpush1.msra.mxu0 0.0
    %2658 = vmatprep.subr.mxu0 0.0
    %2659 = vmatpush1.msra.mxu0 0.0
    %2660 = vmatprep.subr.mxu0 0.0
    %2661 = vmatpush1.msra.mxu0 0.0
    %2662 = vmatprep.subr.mxu0 0.0
    %2663 = vmatpush1.msra.mxu0 0.0
    %2664 = vmatprep.subr.mxu0 0.0
    %2665 = vmatpush1.msra.mxu0 0.0
    %2666 = vmatprep.subr.mxu0 0.0
    %2667 = vmatpush1.msra.mxu0 0.0
    %2668 = vmatprep.subr.mxu0 0.0
    %2669 = vmatpush1.msra.mxu0 0.0
    %2670 = vmatprep.subr.mxu0 0.0
    %2671 = vmatpush1.msra.mxu0 0.0
    %2672 = vmatprep.subr.mxu0 0.0
    %2673 = vmatpush1.msra.mxu0 0.0
    %2674 = vmatprep.subr.mxu0 0.0
    %2675 = vmatpush1.msra.mxu0 0.0
    %2676 = vmatprep.subr.mxu0 0.0
    %2677 = vmatpush1.msra.mxu0 0.0
    %2678 = vmatprep.subr.mxu0 0.0
    %2679 = vmatpush1.msra.mxu0 0.0
    %2680 = vmatprep.subr.mxu0 0.0
    %2681 = vmatpush1.msra.mxu0 0.0
    %2682 = vmatprep.subr.mxu0 0.0
    %2683 = vmatpush1.msra.mxu0 0.0
    %2684 = vmatprep.subr.mxu0 0.0
    %2685 = vmatpush1.msra.mxu0 0.0
    %2686 = vmatprep.subr.mxu0 0.0
    %2687 = vmatpush1.msra.mxu0 0.0
    %2688 = vmatprep.subr.mxu0 0.0
    %2689 = vmatpush1.msra.mxu0 0.0
    %2690 = vmatprep.subr.mxu0 0.0
    %2691 = vmatpush1.msra.mxu0 0.0
    %2692 = vmatprep.mubr.f32.mxu0 0.0
    %2693 = vmatmul.mubr.f32.gmra.mrb[0].mxu0 %v2624
    %v2694 = vpop.f32.mrb[0].mxu0
    %v2695 = vadd.f32 %v2612, %v2694
    %v2696 = vpop.f32.mrb[0].mxu0
    %2697 = vmatprep.mubr.f32.mxu0 0.0
    %2698 = vmatmul.mubr.f32.gmra.mrb[0].mxu0 %v2626
    %v2699 = vpop.f32.mrb[0].mxu0
    %v2700 = vadd.f32 %v2617, %v2699
    %v2701 = vpop.f32.mrb[0].mxu0
    %2702 = vdwg.mxu0
    %v2703 = vadd.f32 %v2695, %v413
    %v2704 = vadd.f32 %v2700, %v418
    %v2705 = vpack.c.bf16 %v2704, %v2703
    %2707 = vrot.lane.b32.xlu0 %v2705, 48
    %v2708 = vpop.permute.xlu0 %2707
    %2710 = vst.msk [vmem:[#allocation2 + $0x30] sm:$0xff] %vm2003, %v2708
    %v2711 = vld [vmem:[#allocation7] sm:$0xff]
    %v2712 = vld [vmem:[%s245] sm:$0xff]
    %2713 = vrot.lane.b32.xlu0 %v238, 80
    %v2714 = vpop.permute.xlu0 %2713
    %2715 = vrot.lane.b32.xlu0 %v241, 80
    %v2716 = vpop.permute.xlu0 %2715
    %v2717 = vsel %vm247, %v2714, 0
    %v2719 = vsel %vm247, %v2716, 0
    %2721 = vmatprep.subr.mxu0 0.0
    %2722 = vmatpush1.msra.mxu0 %v2712
    %2723 = vmatprep.subr.mxu0 0.0
    %2724 = vmatpush1.msra.mxu0 0.0
    %2725 = vmatprep.subr.mxu0 0.0
    %2726 = vmatpush1.msra.mxu0 0.0
    %2727 = vmatprep.subr.mxu0 0.0
    %2728 = vmatpush1.msra.mxu0 0.0
    %2729 = vmatprep.subr.mxu0 0.0
    %2730 = vmatpush1.msra.mxu0 0.0
    %2731 = vmatprep.subr.mxu0 0.0
    %2732 = vmatpush1.msra.mxu0 0.0
    %2733 = vmatprep.subr.mxu0 0.0
    %2734 = vmatpush1.msra.mxu0 0.0
    %2735 = vmatprep.subr.mxu0 0.0
    %2736 = vmatpush1.msra.mxu0 0.0
    %2737 = vmatprep.subr.mxu0 0.0
    %2738 = vmatpush1.msra.mxu0 0.0
    %2739 = vmatprep.subr.mxu0 0.0
    %2740 = vmatpush1.msra.mxu0 0.0
    %2741 = vmatprep.subr.mxu0 0.0
    %2742 = vmatpush1.msra.mxu0 0.0
    %2743 = vmatprep.subr.mxu0 0.0
    %2744 = vmatpush1.msra.mxu0 0.0
    %2745 = vmatprep.subr.mxu0 0.0
    %2746 = vmatpush1.msra.mxu0 0.0
    %2747 = vmatprep.subr.mxu0 0.0
    %2748 = vmatpush1.msra.mxu0 0.0
    %2749 = vmatprep.subr.mxu0 0.0
    %2750 = vmatpush1.msra.mxu0 0.0
    %2751 = vmatprep.subr.mxu0 0.0
    %2752 = vmatpush1.msra.mxu0 0.0
    %2753 = vmatprep.subr.mxu0 0.0
    %2754 = vmatpush1.msra.mxu0 0.0
    %2755 = vmatprep.subr.mxu0 0.0
    %2756 = vmatpush1.msra.mxu0 0.0
    %2757 = vmatprep.subr.mxu0 0.0
    %2758 = vmatpush1.msra.mxu0 0.0
    %2759 = vmatprep.subr.mxu0 0.0
    %2760 = vmatpush1.msra.mxu0 0.0
    %2761 = vmatprep.subr.mxu0 0.0
    %2762 = vmatpush1.msra.mxu0 0.0
    %2763 = vmatprep.subr.mxu0 0.0
    %2764 = vmatpush1.msra.mxu0 0.0
    %2765 = vmatprep.subr.mxu0 0.0
    %2766 = vmatpush1.msra.mxu0 0.0
    %2767 = vmatprep.subr.mxu0 0.0
    %2768 = vmatpush1.msra.mxu0 0.0
    %2769 = vmatprep.subr.mxu0 0.0
    %2770 = vmatpush1.msra.mxu0 0.0
    %2771 = vmatprep.subr.mxu0 0.0
    %2772 = vmatpush1.msra.mxu0 0.0
    %2773 = vmatprep.subr.mxu0 0.0
    %2774 = vmatpush1.msra.mxu0 0.0
    %2775 = vmatprep.subr.mxu0 0.0
    %2776 = vmatpush1.msra.mxu0 0.0
    %2777 = vmatprep.subr.mxu0 0.0
    %2778 = vmatpush1.msra.mxu0 0.0
    %2779 = vmatprep.subr.mxu0 0.0
    %2780 = vmatpush1.msra.mxu0 0.0
    %2781 = vmatprep.subr.mxu0 0.0
    %2782 = vmatpush1.msra.mxu0 0.0
    %2783 = vmatprep.subr.mxu0 0.0
    %2784 = vmatpush1.msra.mxu0 0.0
    %2785 = vmatprep.mubr.f32.mxu0 0.0
    %2786 = vmatmul.mubr.f32.gmra.mrb[0].mxu0 %v2717
    %v2787 = vpop.f32.mrb[0].mxu0
    %v2788 = vadd.f32 0.0, %v2787
    %v2789 = vpop.f32.mrb[0].mxu0
    %2790 = vmatprep.mubr.f32.mxu0 0.0
    %2791 = vmatmul.mubr.f32.gmra.mrb[0].mxu0 %v2719
    %v2792 = vpop.f32.mrb[0].mxu0
    %v2793 = vadd.f32 0.0, %v2792
    %v2794 = vpop.f32.mrb[0].mxu0
    %2795 = vdwg.mxu0
    %2796 = vrot.lane.b32.xlu0 %v230, 80
    %v2797 = vpop.permute.xlu0 %2796
    %2798 = vrot.lane.b32.xlu0 %v233, 80
    %v2799 = vpop.permute.xlu0 %2798
    %v2800 = vsel %vm247, %v2797, 0
    %v2802 = vsel %vm247, %v2799, 0
    %2804 = vmatprep.subr.mxu0 0.0
    %2805 = vmatpush1.msra.mxu0 %v2711
    %2806 = vmatprep.subr.mxu0 0.0
    %2807 = vmatpush1.msra.mxu0 0.0
    %2808 = vmatprep.subr.mxu0 0.0
    %2809 = vmatpush1.msra.mxu0 0.0
    %2810 = vmatprep.subr.mxu0 0.0
    %2811 = vmatpush1.msra.mxu0 0.0
    %2812 = vmatprep.subr.mxu0 0.0
    %2813 = vmatpush1.msra.mxu0 0.0
    %2814 = vmatprep.subr.mxu0 0.0
    %2815 = vmatpush1.msra.mxu0 0.0
    %2816 = vmatprep.subr.mxu0 0.0
    %2817 = vmatpush1.msra.mxu0 0.0
    %2818 = vmatprep.subr.mxu0 0.0
    %2819 = vmatpush1.msra.mxu0 0.0
    %2820 = vmatprep.subr.mxu0 0.0
    %2821 = vmatpush1.msra.mxu0 0.0
    %2822 = vmatprep.subr.mxu0 0.0
    %2823 = vmatpush1.msra.mxu0 0.0
    %2824 = vmatprep.subr.mxu0 0.0
    %2825 = vmatpush1.msra.mxu0 0.0
    %2826 = vmatprep.subr.mxu0 0.0
    %2827 = vmatpush1.msra.mxu0 0.0
    %2828 = vmatprep.subr.mxu0 0.0
    %2829 = vmatpush1.msra.mxu0 0.0
    %2830 = vmatprep.subr.mxu0 0.0
    %2831 = vmatpush1.msra.mxu0 0.0
    %2832 = vmatprep.subr.mxu0 0.0
    %2833 = vmatpush1.msra.mxu0 0.0
    %2834 = vmatprep.subr.mxu0 0.0
    %2835 = vmatpush1.msra.mxu0 0.0
    %2836 = vmatprep.subr.mxu0 0.0
    %2837 = vmatpush1.msra.mxu0 0.0
    %2838 = vmatprep.subr.mxu0 0.0
    %2839 = vmatpush1.msra.mxu0 0.0
    %2840 = vmatprep.subr.mxu0 0.0
    %2841 = vmatpush1.msra.mxu0 0.0
    %2842 = vmatprep.subr.mxu0 0.0
    %2843 = vmatpush1.msra.mxu0 0.0
    %2844 = vmatprep.subr.mxu0 0.0
    %2845 = vmatpush1.msra.mxu0 0.0
    %2846 = vmatprep.subr.mxu0 0.0
    %2847 = vmatpush1.msra.mxu0 0.0
    %2848 = vmatprep.subr.mxu0 0.0
    %2849 = vmatpush1.msra.mxu0 0.0
    %2850 = vmatprep.subr.mxu0 0.0
    %2851 = vmatpush1.msra.mxu0 0.0
    %2852 = vmatprep.subr.mxu0 0.0
    %2853 = vmatpush1.msra.mxu0 0.0
    %2854 = vmatprep.subr.mxu0 0.0
    %2855 = vmatpush1.msra.mxu0 0.0
    %2856 = vmatprep.subr.mxu0 0.0
    %2857 = vmatpush1.msra.mxu0 0.0
    %2858 = vmatprep.subr.mxu0 0.0
    %2859 = vmatpush1.msra.mxu0 0.0
    %2860 = vmatprep.subr.mxu0 0.0
    %2861 = vmatpush1.msra.mxu0 0.0
    %2862 = vmatprep.subr.mxu0 0.0
    %2863 = vmatpush1.msra.mxu0 0.0
    %2864 = vmatprep.subr.mxu0 0.0
    %2865 = vmatpush1.msra.mxu0 0.0
    %2866 = vmatprep.subr.mxu0 0.0
    %2867 = vmatpush1.msra.mxu0 0.0
    %2868 = vmatprep.mubr.f32.mxu0 0.0
    %2869 = vmatmul.mubr.f32.gmra.mrb[0].mxu0 %v2800
    %v2870 = vpop.f32.mrb[0].mxu0
    %v2871 = vadd.f32 %v2788, %v2870
    %v2872 = vpop.f32.mrb[0].mxu0
    %2873 = vmatprep.mubr.f32.mxu0 0.0
    %2874 = vmatmul.mubr.f32.gmra.mrb[0].mxu0 %v2802
    %v2875 = vpop.f32.mrb[0].mxu0
    %v2876 = vadd.f32 %v2793, %v2875
    %v2877 = vpop.f32.mrb[0].mxu0
    %2878 = vdwg.mxu0
    %v2879 = vadd.f32 %v2871, %v413
    %v2880 = vadd.f32 %v2876, %v418
    %v2881 = vpack.c.bf16 %v2880, %v2879
    %2883 = vrot.lane.b32.xlu0 %v2881, 80
    %v2884 = vpop.permute.xlu0 %2883
    %2886 = vst.msk [vmem:[#allocation2 + $0x30] sm:$0xff] %vm2180, %v2884
    %v2887 = vld [vmem:[#allocation7] sm:$0xff]
    %v2888 = vld [vmem:[%s245] sm:$0xff]
    %2889 = vrot.lane.b32.xlu0 %v238, 72
    %v2890 = vpop.permute.xlu0 %2889
    %2891 = vrot.lane.b32.xlu0 %v241, 72
    %v2892 = vpop.permute.xlu0 %2891
    %v2893 = vsel %vm247, %v2890, 0
    %v2895 = vsel %vm247, %v2892, 0
    %2897 = vmatprep.subr.mxu0 0.0
    %2898 = vmatpush1.msra.mxu0 %v2888
    %2899 = vmatprep.subr.mxu0 0.0
    %2900 = vmatpush1.msra.mxu0 0.0
    %2901 = vmatprep.subr.mxu0 0.0
    %2902 = vmatpush1.msra.mxu0 0.0
    %2903 = vmatprep.subr.mxu0 0.0
    %2904 = vmatpush1.msra.mxu0 0.0
    %2905 = vmatprep.subr.mxu0 0.0
    %2906 = vmatpush1.msra.mxu0 0.0
    %2907 = vmatprep.subr.mxu0 0.0
    %2908 = vmatpush1.msra.mxu0 0.0
    %2909 = vmatprep.subr.mxu0 0.0
    %2910 = vmatpush1.msra.mxu0 0.0
    %2911 = vmatprep.subr.mxu0 0.0
    %2912 = vmatpush1.msra.mxu0 0.0
    %2913 = vmatprep.subr.mxu0 0.0
    %2914 = vmatpush1.msra.mxu0 0.0
    %2915 = vmatprep.subr.mxu0 0.0
    %2916 = vmatpush1.msra.mxu0 0.0
    %2917 = vmatprep.subr.mxu0 0.0
    %2918 = vmatpush1.msra.mxu0 0.0
    %2919 = vmatprep.subr.mxu0 0.0
    %2920 = vmatpush1.msra.mxu0 0.0
    %2921 = vmatprep.subr.mxu0 0.0
    %2922 = vmatpush1.msra.mxu0 0.0
    %2923 = vmatprep.subr.mxu0 0.0
    %2924 = vmatpush1.msra.mxu0 0.0
    %2925 = vmatprep.subr.mxu0 0.0
    %2926 = vmatpush1.msra.mxu0 0.0
    %2927 = vmatprep.subr.mxu0 0.0
    %2928 = vmatpush1.msra.mxu0 0.0
    %2929 = vmatprep.subr.mxu0 0.0
    %2930 = vmatpush1.msra.mxu0 0.0
    %2931 = vmatprep.subr.mxu0 0.0
    %2932 = vmatpush1.msra.mxu0 0.0
    %2933 = vmatprep.subr.mxu0 0.0
    %2934 = vmatpush1.msra.mxu0 0.0
    %2935 = vmatprep.subr.mxu0 0.0
    %2936 = vmatpush1.msra.mxu0 0.0
    %2937 = vmatprep.subr.mxu0 0.0
    %2938 = vmatpush1.msra.mxu0 0.0
    %2939 = vmatprep.subr.mxu0 0.0
    %2940 = vmatpush1.msra.mxu0 0.0
    %2941 = vmatprep.subr.mxu0 0.0
    %2942 = vmatpush1.msra.mxu0 0.0
    %2943 = vmatprep.subr.mxu0 0.0
    %2944 = vmatpush1.msra.mxu0 0.0
    %2945 = vmatprep.subr.mxu0 0.0
    %2946 = vmatpush1.msra.mxu0 0.0
    %2947 = vmatprep.subr.mxu0 0.0
    %2948 = vmatpush1.msra.mxu0 0.0
    %2949 = vmatprep.subr.mxu0 0.0
    %2950 = vmatpush1.msra.mxu0 0.0
    %2951 = vmatprep.subr.mxu0 0.0
    %2952 = vmatpush1.msra.mxu0 0.0
    %2953 = vmatprep.subr.mxu0 0.0
    %2954 = vmatpush1.msra.mxu0 0.0
    %2955 = vmatprep.subr.mxu0 0.0
    %2956 = vmatpush1.msra.mxu0 0.0
    %2957 = vmatprep.subr.mxu0 0.0
    %2958 = vmatpush1.msra.mxu0 0.0
    %2959 = vmatprep.subr.mxu0 0.0
    %2960 = vmatpush1.msra.mxu0 0.0
    %2961 = vmatprep.mubr.f32.mxu0 0.0
    %2962 = vmatmul.mubr.f32.gmra.mrb[0].mxu0 %v2893
    %v2963 = vpop.f32.mrb[0].mxu0
    %v2964 = vadd.f32 0.0, %v2963
    %v2965 = vpop.f32.mrb[0].mxu0
    %2966 = vmatprep.mubr.f32.mxu0 0.0
    %2967 = vmatmul.mubr.f32.gmra.mrb[0].mxu0 %v2895
    %v2968 = vpop.f32.mrb[0].mxu0
    %v2969 = vadd.f32 0.0, %v2968
    %v2970 = vpop.f32.mrb[0].mxu0
    %2971 = vdwg.mxu0
    %2972 = vrot.lane.b32.xlu0 %v230, 72
    %v2973 = vpop.permute.xlu0 %2972
    %2974 = vrot.lane.b32.xlu0 %v233, 72
    %v2975 = vpop.permute.xlu0 %2974
    %v2976 = vsel %vm247, %v2973, 0
    %v2978 = vsel %vm247, %v2975, 0
    %2980 = vmatprep.subr.mxu0 0.0
    %2981 = vmatpush1.msra.mxu0 %v2887
    %2982 = vmatprep.subr.mxu0 0.0
    %2983 = vmatpush1.msra.mxu0 0.0
    %2984 = vmatprep.subr.mxu0 0.0
    %2985 = vmatpush1.msra.mxu0 0.0
    %2986 = vmatprep.subr.mxu0 0.0
    %2987 = vmatpush1.msra.mxu0 0.0
    %2988 = vmatprep.subr.mxu0 0.0
    %2989 = vmatpush1.msra.mxu0 0.0
    %2990 = vmatprep.subr.mxu0 0.0
    %2991 = vmatpush1.msra.mxu0 0.0
    %2992 = vmatprep.subr.mxu0 0.0
    %2993 = vmatpush1.msra.mxu0 0.0
    %2994 = vmatprep.subr.mxu0 0.0
    %2995 = vmatpush1.msra.mxu0 0.0
    %2996 = vmatprep.subr.mxu0 0.0
    %2997 = vmatpush1.msra.mxu0 0.0
    %2998 = vmatprep.subr.mxu0 0.0
    %2999 = vmatpush1.msra.mxu0 0.0
    %3000 = vmatprep.subr.mxu0 0.0
    %3001 = vmatpush1.msra.mxu0 0.0
    %3002 = vmatprep.subr.mxu0 0.0
    %3003 = vmatpush1.msra.mxu0 0.0
    %3004 = vmatprep.subr.mxu0 0.0
    %3005 = vmatpush1.msra.mxu0 0.0
    %3006 = vmatprep.subr.mxu0 0.0
    %3007 = vmatpush1.msra.mxu0 0.0
    %3008 = vmatprep.subr.mxu0 0.0
    %3009 = vmatpush1.msra.mxu0 0.0
    %3010 = vmatprep.subr.mxu0 0.0
    %3011 = vmatpush1.msra.mxu0 0.0
    %3012 = vmatprep.subr.mxu0 0.0
    %3013 = vmatpush1.msra.mxu0 0.0
    %3014 = vmatprep.subr.mxu0 0.0
    %3015 = vmatpush1.msra.mxu0 0.0
    %3016 = vmatprep.subr.mxu0 0.0
    %3017 = vmatpush1.msra.mxu0 0.0
    %3018 = vmatprep.subr.mxu0 0.0
    %3019 = vmatpush1.msra.mxu0 0.0
    %3020 = vmatprep.subr.mxu0 0.0
    %3021 = vmatpush1.msra.mxu0 0.0
    %3022 = vmatprep.subr.mxu0 0.0
    %3023 = vmatpush1.msra.mxu0 0.0
    %3024 = vmatprep.subr.mxu0 0.0
    %3025 = vmatpush1.msra.mxu0 0.0
    %3026 = vmatprep.subr.mxu0 0.0
    %3027 = vmatpush1.msra.mxu0 0.0
    %3028 = vmatprep.subr.mxu0 0.0
    %3029 = vmatpush1.msra.mxu0 0.0
    %3030 = vmatprep.subr.mxu0 0.0
    %3031 = vmatpush1.msra.mxu0 0.0
    %3032 = vmatprep.subr.mxu0 0.0
    %3033 = vmatpush1.msra.mxu0 0.0
    %3034 = vmatprep.subr.mxu0 0.0
    %3035 = vmatpush1.msra.mxu0 0.0
    %3036 = vmatprep.subr.mxu0 0.0
    %3037 = vmatpush1.msra.mxu0 0.0
    %3038 = vmatprep.subr.mxu0 0.0
    %3039 = vmatpush1.msra.mxu0 0.0
    %3040 = vmatprep.subr.mxu0 0.0
    %3041 = vmatpush1.msra.mxu0 0.0
    %3042 = vmatprep.subr.mxu0 0.0
    %3043 = vmatpush1.msra.mxu0 0.0
    %3044 = vmatprep.mubr.f32.mxu0 0.0
    %3045 = vmatmul.mubr.f32.gmra.mrb[0].mxu0 %v2976
    %v3046 = vpop.f32.mrb[0].mxu0
    %v3047 = vadd.f32 %v2964, %v3046
    %v3048 = vpop.f32.mrb[0].mxu0
    %3049 = vmatprep.mubr.f32.mxu0 0.0
    %3050 = vmatmul.mubr.f32.gmra.mrb[0].mxu0 %v2978
    %v3051 = vpop.f32.mrb[0].mxu0
    %v3052 = vadd.f32 %v2969, %v3051
    %v3053 = vpop.f32.mrb[0].mxu0
    %3054 = vdwg.mxu0
    %v3055 = vadd.f32 %v3047, %v413
    %v3056 = vadd.f32 %v3052, %v418
    %v3057 = vpack.c.bf16 %v3056, %v3055
    %3059 = vrot.lane.b32.xlu0 %v3057, 112
    %v3060 = vpop.permute.xlu0 %3059
    %3062 = vst.msk [vmem:[#allocation2 + $0x30] sm:$0xff] %vm2357, %v3060
    %v3063 = vld [vmem:[#allocation2] sm:$0xff]
    %v3064 = vld [vmem:[#allocation2 + $0x8] sm:$0xff]
    %v3065 = vld [vmem:[#allocation2 + $0x10] sm:$0xff]
    %v3066 = vld [vmem:[#allocation2 + $0x20] sm:$0xff]
    %v3067 = vld [vmem:[#allocation2 + $0x28] sm:$0xff]
    %v3068 = vld [vmem:[#allocation2 + $0x30] sm:$0xff]
    %v3069 = vsel %vm104, 1, 0
    %v3070 = vsel %vm105, 1, 0
    %vm3071 = vcmp.eq.s32.totalorder %v3069, 1
    %vm3072 = vcmp.eq.s32.totalorder %v3070, 1
    %vm3073 = vmpackc.low %vm3072, %vm3071
    %v3074 = vsel %vm3073, 65537, 0
    %v3075 = vlaneseq
    %v3076 = vshrl.u32 %v3075, 7
    %v3077 = vsub.s32 0, %v3076
    %v3078 = vrot.slane %v3074, %v3077
    %v3079 = vlaneseq
    %v3080 = vshrl.u32 %v3079, 7
    %v3081 = vsub.s32 4, %v3080
    %v3082 = vrot.slane %v3074, %v3081
    %3083 = vrot.lane.b32.xlu0 %v3078, 111
    %v3084 = vpop.permute.xlu0 %3083
    %3085 = vrot.lane.b32.xlu0 %v3082, 111
    %v3086 = vpop.permute.xlu0 %3085
    %vm3087 = vcmask 908288
    %v3088 = vsel %vm3087, %v3084, %v3086
    %vm3089 = vcmp.ne.s16.totalorder %v3084, 0
    %vm3090 = vcmp.ne.s16.totalorder %v3088, 0
    %vm3091 = vcmp.ne.s16.totalorder %v3086, 0
    %v3092 = vsel %vm3089, %v3063, 0
    %v3093 = vsel %vm3090, %v3064, 0
    %v3094 = vsel %vm3091, %v3065, 0
    %v3095 = vsel %vm3089, %v3066, 0
    %v3096 = vsel %vm3090, %v3067, 0
    %v3097 = vsel %vm3091, %v3068, 0
    %v3098 = vld [vmem:[%s5] sm:$0xf]
    %v3099 = vld [vmem:[%s5 + $0x4] sm:$0xf]
    %s3100 = scalar_lea.vmem %s5, 8
    %v3101 = vld [vmem:[%s3100] sm:$0xf]
    %v3102 = vld [vmem:[%s3100 + $0x4] sm:$0xf]
    %v3105 = vunpack.c.l.b16 %v3101
    %v3106 = vunpack.c.l.b16 %v3102
    %v3107 = vpack.c.b16 %v3106, %v3105
    %3114 = vrot.lane.b32.xlu0 %v3063, 16
    %v3115 = vpop.permute.xlu0 %3114
    %3116 = vrot.lane.b32.xlu0 %v3064, 16
    %v3117 = vpop.permute.xlu0 %3116
    %3118 = vrot.lane.b32.xlu0 %v3065, 16
    %v3119 = vpop.permute.xlu0 %3118
    %3120 = vrot.lane.b32.xlu0 %v3066, 16
    %v3121 = vpop.permute.xlu0 %3120
    %3122 = vrot.lane.b32.xlu0 %v3067, 16
    %v3123 = vpop.permute.xlu0 %3122
    %3124 = vrot.lane.b32.xlu0 %v3068, 16
    %v3125 = vpop.permute.xlu0 %3124
    %vm3126 = vcmask 130048
    %v3127 = vsel %vm3126, %v3115, %v3117
    %v3128 = vsel %vm3126, %v3117, %v3119
    %v3129 = vsel %vm3126, %v3121, %v3123
    %v3130 = vsel %vm3126, %v3123, %v3125
    %vm3135 = vcmask 261120
    %v3137 = vsel %vm3135, %v3107, 0
    %3139 = vmatprep.subr.bf16.mxu0 %v3128
    %3140 = vmatpush1.bf16.msra.mxu0 %v3127
    %3141 = vmatprep.subr.bf16.mxu0 %v3130
    %3142 = vmatpush1.bf16.msra.mxu0 %v3129
    %3143 = vmatprep.subr.bf16.mxu0 0
    %3144 = vmatpush1.bf16.msra.mxu0 0
    %3145 = vmatprep.subr.bf16.mxu0 0
    %3146 = vmatpush1.bf16.msra.mxu0 0
    %3147 = vmatprep.subr.bf16.mxu0 0
    %3148 = vmatpush1.bf16.msra.mxu0 0
    %3149 = vmatprep.subr.bf16.mxu0 0
    %3150 = vmatpush1.bf16.msra.mxu0 0
    %3151 = vmatprep.subr.bf16.mxu0 0
    %3152 = vmatpush1.bf16.msra.mxu0 0
    %3153 = vmatprep.subr.bf16.mxu0 0
    %3154 = vmatpush1.bf16.msra.mxu0 0
    %3155 = vmatprep.subr.bf16.mxu0 0
    %3156 = vmatpush1.bf16.msra.mxu0 0
    %3157 = vmatprep.subr.bf16.mxu0 0
    %3158 = vmatpush1.bf16.msra.mxu0 0
    %3159 = vmatprep.subr.bf16.mxu0 0
    %3160 = vmatpush1.bf16.msra.mxu0 0
    %3161 = vmatprep.subr.bf16.mxu0 0
    %3162 = vmatpush1.bf16.msra.mxu0 0
    %3163 = vmatprep.subr.bf16.mxu0 0
    %3164 = vmatpush1.bf16.msra.mxu0 0
    %3165 = vmatprep.subr.bf16.mxu0 0
    %3166 = vmatpush1.bf16.msra.mxu0 0
    %3167 = vmatprep.subr.bf16.mxu0 0
    %3168 = vmatpush1.bf16.msra.mxu0 0
    %3169 = vmatprep.subr.bf16.mxu0 0
    %3170 = vmatpush1.bf16.msra.mxu0 0
    %3171 = vmatprep.mubr.bf16.mxu0 0
    %3172 = vmatmul.mubr.bf16.gmra.mrb[0].mxu0 %v3137
    %v3173 = vpop.f32.mrb[0].mxu0
    %v3174 = vadd.f32 0.0, %v3173
    %v3175 = vpop.f32.mrb[0].mxu0
    %v3176 = vadd.f32 0.0, %v3175
    %v3177 = vpop.f32.mrb[0].mxu0
    %v3178 = vadd.f32 0.0, %v3177
    %v3179 = vpop.f32.mrb[0].mxu0
    %v3180 = vadd.f32 0.0, %v3179
    %3181 = vdwg.mxu0
    %v3184 = vunpack.c.l.b16 %v3098
    %v3185 = vunpack.c.l.b16 %v3099
    %v3186 = vpack.c.b16 %v3185, %v3184
    %3193 = vrot.lane.b32.xlu0 %v3092, 17
    %v3194 = vpop.permute.xlu0 %3193
    %3195 = vrot.lane.b32.xlu0 %v3093, 17
    %v3196 = vpop.permute.xlu0 %3195
    %3197 = vrot.lane.b32.xlu0 %v3094, 17
    %v3198 = vpop.permute.xlu0 %3197
    %3199 = vrot.lane.b32.xlu0 %v3095, 17
    %v3200 = vpop.permute.xlu0 %3199
    %3201 = vrot.lane.b32.xlu0 %v3096, 17
    %v3202 = vpop.permute.xlu0 %3201
    %3203 = vrot.lane.b32.xlu0 %v3097, 17
    %v3204 = vpop.permute.xlu0 %3203
    %vm3205 = vcmask 138240
    %v3206 = vsel %vm3205, %v3194, %v3196
    %v3207 = vsel %vm3205, %v3196, %v3198
    %v3208 = vsel %vm3205, %v3200, %v3202
    %v3209 = vsel %vm3205, %v3202, %v3204
    %v3215 = vsel %vm3135, %v3186, 0
    %3217 = vmatprep.subr.bf16.mxu0 %v3207
    %3218 = vmatpush1.bf16.msra.mxu0 %v3206
    %3219 = vmatprep.subr.bf16.mxu0 %v3209
    %3220 = vmatpush1.bf16.msra.mxu0 %v3208
    %3221 = vmatprep.subr.bf16.mxu0 0
    %3222 = vmatpush1.bf16.msra.mxu0 0
    %3223 = vmatprep.subr.bf16.mxu0 0
    %3224 = vmatpush1.bf16.msra.mxu0 0
    %3225 = vmatprep.subr.bf16.mxu0 0
    %3226 = vmatpush1.bf16.msra.mxu0 0
    %3227 = vmatprep.subr.bf16.mxu0 0
    %3228 = vmatpush1.bf16.msra.mxu0 0
    %3229 = vmatprep.subr.bf16.mxu0 0
    %3230 = vmatpush1.bf16.msra.mxu0 0
    %3231 = vmatprep.subr.bf16.mxu0 0
    %3232 = vmatpush1.bf16.msra.mxu0 0
    %3233 = vmatprep.subr.bf16.mxu0 0
    %3234 = vmatpush1.bf16.msra.mxu0 0
    %3235 = vmatprep.subr.bf16.mxu0 0
    %3236 = vmatpush1.bf16.msra.mxu0 0
    %3237 = vmatprep.subr.bf16.mxu0 0
    %3238 = vmatpush1.bf16.msra.mxu0 0
    %3239 = vmatprep.subr.bf16.mxu0 0
    %3240 = vmatpush1.bf16.msra.mxu0 0
    %3241 = vmatprep.subr.bf16.mxu0 0
    %3242 = vmatpush1.bf16.msra.mxu0 0
    %3243 = vmatprep.subr.bf16.mxu0 0
    %3244 = vmatpush1.bf16.msra.mxu0 0
    %3245 = vmatprep.subr.bf16.mxu0 0
    %3246 = vmatpush1.bf16.msra.mxu0 0
    %3247 = vmatprep.subr.bf16.mxu0 0
    %3248 = vmatpush1.bf16.msra.mxu0 0
    %3249 = vmatprep.mubr.bf16.mxu0 0
    %3250 = vmatmul.mubr.bf16.gmra.mrb[0].mxu0 %v3215
    %v3251 = vpop.f32.mrb[0].mxu0
    %v3252 = vadd.f32 %v3174, %v3251
    %v3253 = vpop.f32.mrb[0].mxu0
    %v3254 = vadd.f32 %v3176, %v3253
    %v3255 = vpop.f32.mrb[0].mxu0
    %v3256 = vadd.f32 %v3178, %v3255
    %v3257 = vpop.f32.mrb[0].mxu0
    %v3258 = vadd.f32 %v3180, %v3257
    %3259 = vdwg.mxu0
    %v3260 = vsel %vm106, 1, 0
    %v3261 = vsel %vm107, 1, 0
    %vm3262 = vcmp.eq.s32.totalorder %v3260, 1
    %vm3263 = vcmp.eq.s32.totalorder %v3261, 1
    %vm3264 = vmpackc.low %vm3263, %vm3262
    %v3265 = vsel %vm3264, 65537, 0
    %v3266 = vlaneseq
    %v3267 = vshrl.u32 %v3266, 7
    %v3268 = vsub.s32 0, %v3267
    %v3269 = vrot.slane %v3265, %v3268
    %v3270 = vlaneseq
    %v3271 = vshrl.u32 %v3270, 7
    %v3272 = vsub.s32 4, %v3271
    %v3273 = vrot.slane %v3265, %v3272
    %3274 = vrot.lane.b32.xlu0 %v3269, 113
    %v3275 = vpop.permute.xlu0 %3274
    %3276 = vrot.lane.b32.xlu0 %v3273, 113
    %v3277 = vpop.permute.xlu0 %3276
    %vm3278 = vcmask 924672
    %v3279 = vsel %vm3278, %v3275, %v3277
    %vm3280 = vcmp.ne.s16.totalorder %v3275, 0
    %vm3281 = vcmp.ne.s16.totalorder %v3279, 0
    %vm3282 = vcmp.ne.s16.totalorder %v3277, 0
    %v3283 = vsel %vm3280, %v3063, 0
    %v3284 = vsel %vm3281, %v3064, 0
    %v3285 = vsel %vm3282, %v3065, 0
    %v3286 = vsel %vm3280, %v3066, 0
    %v3287 = vsel %vm3281, %v3067, 0
    %v3288 = vsel %vm3282, %v3068, 0
    %s3289 = scalar_lea.vmem %s5, 16
    %v3290 = vld [vmem:[%s3289] sm:$0xf]
    %v3291 = vld [vmem:[%s3289 + $0x4] sm:$0xf]
    %v3294 = vunpack.c.l.b16 %v3290
    %v3295 = vunpack.c.l.b16 %v3291
    %v3296 = vpack.c.b16 %v3295, %v3294
    %3303 = vrot.lane.b32.xlu0 %v3283, 15
    %v3304 = vpop.permute.xlu0 %3303
    %3305 = vrot.lane.b32.xlu0 %v3284, 15
    %v3306 = vpop.permute.xlu0 %3305
    %3307 = vrot.lane.b32.xlu0 %v3285, 15
    %v3308 = vpop.permute.xlu0 %3307
    %3309 = vrot.lane.b32.xlu0 %v3286, 15
    %v3310 = vpop.permute.xlu0 %3309
    %3311 = vrot.lane.b32.xlu0 %v3287, 15
    %v3312 = vpop.permute.xlu0 %3311
    %3313 = vrot.lane.b32.xlu0 %v3288, 15
    %v3314 = vpop.permute.xlu0 %3313
    %vm3315 = vcmask 121856
    %v3316 = vsel %vm3315, %v3304, %v3306
    %v3317 = vsel %vm3315, %v3306, %v3308
    %v3318 = vsel %vm3315, %v3310, %v3312
    %v3319 = vsel %vm3315, %v3312, %v3314
    %v3325 = vsel %vm3135, %v3296, 0
    %3327 = vmatprep.subr.bf16.mxu0 %v3317
    %3328 = vmatpush1.bf16.msra.mxu0 %v3316
    %3329 = vmatprep.subr.bf16.mxu0 %v3319
    %3330 = vmatpush1.bf16.msra.mxu0 %v3318
    %3331 = vmatprep.subr.bf16.mxu0 0
    %3332 = vmatpush1.bf16.msra.mxu0 0
    %3333 = vmatprep.subr.bf16.mxu0 0
    %3334 = vmatpush1.bf16.msra.mxu0 0
    %3335 = vmatprep.subr.bf16.mxu0 0
    %3336 = vmatpush1.bf16.msra.mxu0 0
    %3337 = vmatprep.subr.bf16.mxu0 0
    %3338 = vmatpush1.bf16.msra.mxu0 0
    %3339 = vmatprep.subr.bf16.mxu0 0
    %3340 = vmatpush1.bf16.msra.mxu0 0
    %3341 = vmatprep.subr.bf16.mxu0 0
    %3342 = vmatpush1.bf16.msra.mxu0 0
    %3343 = vmatprep.subr.bf16.mxu0 0
    %3344 = vmatpush1.bf16.msra.mxu0 0
    %3345 = vmatprep.subr.bf16.mxu0 0
    %3346 = vmatpush1.bf16.msra.mxu0 0
    %3347 = vmatprep.subr.bf16.mxu0 0
    %3348 = vmatpush1.bf16.msra.mxu0 0
    %3349 = vmatprep.subr.bf16.mxu0 0
    %3350 = vmatpush1.bf16.msra.mxu0 0
    %3351 = vmatprep.subr.bf16.mxu0 0
    %3352 = vmatpush1.bf16.msra.mxu0 0
    %3353 = vmatprep.subr.bf16.mxu0 0
    %3354 = vmatpush1.bf16.msra.mxu0 0
    %3355 = vmatprep.subr.bf16.mxu0 0
    %3356 = vmatpush1.bf16.msra.mxu0 0
    %3357 = vmatprep.subr.bf16.mxu0 0
    %3358 = vmatpush1.bf16.msra.mxu0 0
    %3359 = vmatprep.mubr.bf16.mxu0 0
    %3360 = vmatmul.mubr.bf16.gmra.mrb[0].mxu0 %v3325
    %v3361 = vpop.f32.mrb[0].mxu0
    %v3362 = vadd.f32 0.0, %v3361
    %v3363 = vpop.f32.mrb[0].mxu0
    %v3364 = vadd.f32 0.0, %v3363
    %v3365 = vpop.f32.mrb[0].mxu0
    %v3366 = vadd.f32 0.0, %v3365
    %v3367 = vpop.f32.mrb[0].mxu0
    %v3368 = vadd.f32 0.0, %v3367
    %3369 = vdwg.mxu0
    %v3370 = vadd.f32 %v3252, %v3362
    %v3371 = vadd.f32 %v3254, %v3364
    %v3372 = vadd.f32 %v3256, %v3366
    %v3373 = vadd.f32 %v3258, %v3368
    %3374 = vrot.lane.b32.xlu0 %v3078, 127
    %v3375 = vpop.permute.xlu0 %3374
    %3376 = vrot.lane.b32.xlu0 %v3082, 127
    %v3377 = vpop.permute.xlu0 %3376
    %vm3378 = vcmask 1039360
    %v3379 = vsel %vm3378, %v3375, %v3377
    %vm3380 = vcmp.ne.s16.totalorder %v3375, 0
    %vm3381 = vcmp.ne.s16.totalorder %v3379, 0
    %vm3382 = vcmp.ne.s16.totalorder %v3377, 0
    %v3383 = vsel %vm3380, %v3063, 0
    %v3384 = vsel %vm3381, %v3064, 0
    %v3385 = vsel %vm3382, %v3065, 0
    %v3386 = vsel %vm3380, %v3066, 0
    %v3387 = vsel %vm3381, %v3067, 0
    %v3388 = vsel %vm3382, %v3068, 0
    %s3389 = scalar_lea.vmem %s5, 24
    %v3390 = vld [vmem:[%s3389] sm:$0xf]
    %v3391 = vld [vmem:[%s3389 + $0x4] sm:$0xf]
    %v3394 = vunpack.c.l.b16 %v3390
    %v3395 = vunpack.c.l.b16 %v3391
    %v3396 = vpack.c.b16 %v3395, %v3394
    %3403 = vrot.lane.b32.xlu0 %v3383, 1
    %v3404 = vpop.permute.xlu0 %3403
    %3405 = vrot.lane.b32.xlu0 %v3384, 1
    %v3406 = vpop.permute.xlu0 %3405
    %3407 = vrot.lane.b32.xlu0 %v3385, 1
    %v3408 = vpop.permute.xlu0 %3407
    %3409 = vrot.lane.b32.xlu0 %v3386, 1
    %v3410 = vpop.permute.xlu0 %3409
    %3411 = vrot.lane.b32.xlu0 %v3387, 1
    %v3412 = vpop.permute.xlu0 %3411
    %3413 = vrot.lane.b32.xlu0 %v3388, 1
    %v3414 = vpop.permute.xlu0 %3413
    %vm3415 = vcmask 7168
    %v3416 = vsel %vm3415, %v3404, %v3406
    %v3417 = vsel %vm3415, %v3406, %v3408
    %v3418 = vsel %vm3415, %v3410, %v3412
    %v3419 = vsel %vm3415, %v3412, %v3414
    %v3425 = vsel %vm3135, %v3396, 0
    %3427 = vmatprep.subr.bf16.mxu0 %v3417
    %3428 = vmatpush1.bf16.msra.mxu0 %v3416
    %3429 = vmatprep.subr.bf16.mxu0 %v3419
    %3430 = vmatpush1.bf16.msra.mxu0 %v3418
    %3431 = vmatprep.subr.bf16.mxu0 0
    %3432 = vmatpush1.bf16.msra.mxu0 0
    %3433 = vmatprep.subr.bf16.mxu0 0
    %3434 = vmatpush1.bf16.msra.mxu0 0
    %3435 = vmatprep.subr.bf16.mxu0 0
    %3436 = vmatpush1.bf16.msra.mxu0 0
    %3437 = vmatprep.subr.bf16.mxu0 0
    %3438 = vmatpush1.bf16.msra.mxu0 0
    %3439 = vmatprep.subr.bf16.mxu0 0
    %3440 = vmatpush1.bf16.msra.mxu0 0
    %3441 = vmatprep.subr.bf16.mxu0 0
    %3442 = vmatpush1.bf16.msra.mxu0 0
    %3443 = vmatprep.subr.bf16.mxu0 0
    %3444 = vmatpush1.bf16.msra.mxu0 0
    %3445 = vmatprep.subr.bf16.mxu0 0
    %3446 = vmatpush1.bf16.msra.mxu0 0
    %3447 = vmatprep.subr.bf16.mxu0 0
    %3448 = vmatpush1.bf16.msra.mxu0 0
    %3449 = vmatprep.subr.bf16.mxu0 0
    %3450 = vmatpush1.bf16.msra.mxu0 0
    %3451 = vmatprep.subr.bf16.mxu0 0
    %3452 = vmatpush1.bf16.msra.mxu0 0
    %3453 = vmatprep.subr.bf16.mxu0 0
    %3454 = vmatpush1.bf16.msra.mxu0 0
    %3455 = vmatprep.subr.bf16.mxu0 0
    %3456 = vmatpush1.bf16.msra.mxu0 0
    %3457 = vmatprep.subr.bf16.mxu0 0
    %3458 = vmatpush1.bf16.msra.mxu0 0
    %3459 = vmatprep.mubr.bf16.mxu0 0
    %3460 = vmatmul.mubr.bf16.gmra.mrb[0].mxu0 %v3425
    %v3461 = vpop.f32.mrb[0].mxu0
    %v3462 = vadd.f32 0.0, %v3461
    %v3463 = vpop.f32.mrb[0].mxu0
    %v3464 = vadd.f32 0.0, %v3463
    %v3465 = vpop.f32.mrb[0].mxu0
    %v3466 = vadd.f32 0.0, %v3465
    %v3467 = vpop.f32.mrb[0].mxu0
    %v3468 = vadd.f32 0.0, %v3467
    %3469 = vdwg.mxu0
    %v3470 = vadd.f32 %v3370, %v3462
    %v3471 = vadd.f32 %v3371, %v3464
    %v3472 = vadd.f32 %v3372, %v3466
    %v3473 = vadd.f32 %v3373, %v3468
    %s3474 = scalar_lea.vmem %s5, 32
    %v3475 = vld [vmem:[%s3474] sm:$0xf]
    %v3476 = vld [vmem:[%s3474 + $0x4] sm:$0xf]
    %v3479 = vunpack.c.l.b16 %v3475
    %v3480 = vunpack.c.l.b16 %v3476
    %v3481 = vpack.c.b16 %v3480, %v3479
    %v3483 = vsel %vm3135, %v3481, 0
    %3485 = vmatprep.subr.bf16.mxu0 %v3065
    %3486 = vmatpush1.bf16.msra.mxu0 %v3064
    %3487 = vmatprep.subr.bf16.mxu0 %v3068
    %3488 = vmatpush1.bf16.msra.mxu0 %v3067
    %3489 = vmatprep.subr.bf16.mxu0 0
    %3490 = vmatpush1.bf16.msra.mxu0 0
    %3491 = vmatprep.subr.bf16.mxu0 0
    %3492 = vmatpush1.bf16.msra.mxu0 0
    %3493 = vmatprep.subr.bf16.mxu0 0
    %3494 = vmatpush1.bf16.msra.mxu0 0
    %3495 = vmatprep.subr.bf16.mxu0 0
    %3496 = vmatpush1.bf16.msra.mxu0 0
    %3497 = vmatprep.subr.bf16.mxu0 0
    %3498 = vmatpush1.bf16.msra.mxu0 0
    %3499 = vmatprep.subr.bf16.mxu0 0
    %3500 = vmatpush1.bf16.msra.mxu0 0
    %3501 = vmatprep.subr.bf16.mxu0 0
    %3502 = vmatpush1.bf16.msra.mxu0 0
    %3503 = vmatprep.subr.bf16.mxu0 0
    %3504 = vmatpush1.bf16.msra.mxu0 0
    %3505 = vmatprep.subr.bf16.mxu0 0
    %3506 = vmatpush1.bf16.msra.mxu0 0
    %3507 = vmatprep.subr.bf16.mxu0 0
    %3508 = vmatpush1.bf16.msra.mxu0 0
    %3509 = vmatprep.subr.bf16.mxu0 0
    %3510 = vmatpush1.bf16.msra.mxu0 0
    %3511 = vmatprep.subr.bf16.mxu0 0
    %3512 = vmatpush1.bf16.msra.mxu0 0
    %3513 = vmatprep.subr.bf16.mxu0 0
    %3514 = vmatpush1.bf16.msra.mxu0 0
    %3515 = vmatprep.subr.bf16.mxu0 0
    %3516 = vmatpush1.bf16.msra.mxu0 0
    %3517 = vmatprep.mubr.bf16.mxu0 0
    %3518 = vmatmul.mubr.bf16.gmra.mrb[0].mxu0 %v3483
    %v3519 = vpop.f32.mrb[0].mxu0
    %v3520 = vadd.f32 0.0, %v3519
    %v3521 = vpop.f32.mrb[0].mxu0
    %v3522 = vadd.f32 0.0, %v3521
    %v3523 = vpop.f32.mrb[0].mxu0
    %v3524 = vadd.f32 0.0, %v3523
    %v3525 = vpop.f32.mrb[0].mxu0
    %v3526 = vadd.f32 0.0, %v3525
    %3527 = vdwg.mxu0
    %v3528 = vadd.f32 %v3470, %v3520
    %v3529 = vadd.f32 %v3471, %v3522
    %v3530 = vadd.f32 %v3472, %v3524
    %v3531 = vadd.f32 %v3473, %v3526
    %v3532 = vld [vmem:[#allocation2 + $0x8] sm:$0xff]
    %v3533 = vld [vmem:[#allocation2 + $0x10] sm:$0xff]
    %v3534 = vld [vmem:[#allocation2 + $0x18] sm:$0xff]
    %v3535 = vld [vmem:[#allocation2 + $0x28] sm:$0xff]
    %v3536 = vld [vmem:[#allocation2 + $0x30] sm:$0xff]
    %v3537 = vld [vmem:[#allocation2 + $0x38] sm:$0xff]
    %3538 = vrot.lane.b32.xlu0 %v3269, 1
    %v3539 = vpop.permute.xlu0 %3538
    %3540 = vrot.lane.b32.xlu0 %v3273, 1
    %v3541 = vpop.permute.xlu0 %3540
    %v3542 = vsel %vm3415, %v3539, %v3541
    %vm3543 = vcmp.ne.s16.totalorder %v3539, 0
    %vm3544 = vcmp.ne.s16.totalorder %v3542, 0
    %vm3545 = vcmp.ne.s16.totalorder %v3541, 0
    %v3546 = vsel %vm3543, %v3532, 0
    %v3547 = vsel %vm3544, %v3533, 0
    %v3548 = vsel %vm3545, %v3534, 0
    %v3549 = vsel %vm3543, %v3535, 0
    %v3550 = vsel %vm3544, %v3536, 0
    %v3551 = vsel %vm3545, %v3537, 0
    %s3552 = scalar_lea.vmem %s5, 40
    %v3553 = vld [vmem:[%s3552] sm:$0xf]
    %v3554 = vld [vmem:[%s3552 + $0x4] sm:$0xf]
    %v3557 = vunpack.c.l.b16 %v3553
    %v3558 = vunpack.c.l.b16 %v3554
    %v3559 = vpack.c.b16 %v3558, %v3557
    %3566 = vrot.lane.b32.xlu0 %v3546, 127
    %v3567 = vpop.permute.xlu0 %3566
    %3568 = vrot.lane.b32.xlu0 %v3547, 127
    %v3569 = vpop.permute.xlu0 %3568
    %3570 = vrot.lane.b32.xlu0 %v3548, 127
    %v3571 = vpop.permute.xlu0 %3570
    %3572 = vrot.lane.b32.xlu0 %v3549, 127
    %v3573 = vpop.permute.xlu0 %3572
    %3574 = vrot.lane.b32.xlu0 %v3550, 127
    %v3575 = vpop.permute.xlu0 %3574
    %3576 = vrot.lane.b32.xlu0 %v3551, 127
    %v3577 = vpop.permute.xlu0 %3576
    %v3578 = vsel %vm3378, %v3567, %v3569
    %v3579 = vsel %vm3378, %v3569, %v3571
    %v3580 = vsel %vm3378, %v3573, %v3575
    %v3581 = vsel %vm3378, %v3575, %v3577
    %v3587 = vsel %vm3135, %v3559, 0
    %3589 = vmatprep.subr.bf16.mxu0 %v3579
    %3590 = vmatpush1.bf16.msra.mxu0 %v3578
    %3591 = vmatprep.subr.bf16.mxu0 %v3581
    %3592 = vmatpush1.bf16.msra.mxu0 %v3580
    %3593 = vmatprep.subr.bf16.mxu0 0
    %3594 = vmatpush1.bf16.msra.mxu0 0
    %3595 = vmatprep.subr.bf16.mxu0 0
    %3596 = vmatpush1.bf16.msra.mxu0 0
    %3597 = vmatprep.subr.bf16.mxu0 0
    %3598 = vmatpush1.bf16.msra.mxu0 0
    %3599 = vmatprep.subr.bf16.mxu0 0
    %3600 = vmatpush1.bf16.msra.mxu0 0
    %3601 = vmatprep.subr.bf16.mxu0 0
    %3602 = vmatpush1.bf16.msra.mxu0 0
    %3603 = vmatprep.subr.bf16.mxu0 0
    %3604 = vmatpush1.bf16.msra.mxu0 0
    %3605 = vmatprep.subr.bf16.mxu0 0
    %3606 = vmatpush1.bf16.msra.mxu0 0
    %3607 = vmatprep.subr.bf16.mxu0 0
    %3608 = vmatpush1.bf16.msra.mxu0 0
    %3609 = vmatprep.subr.bf16.mxu0 0
    %3610 = vmatpush1.bf16.msra.mxu0 0
    %3611 = vmatprep.subr.bf16.mxu0 0
    %3612 = vmatpush1.bf16.msra.mxu0 0
    %3613 = vmatprep.subr.bf16.mxu0 0
    %3614 = vmatpush1.bf16.msra.mxu0 0
    %3615 = vmatprep.subr.bf16.mxu0 0
    %3616 = vmatpush1.bf16.msra.mxu0 0
    %3617 = vmatprep.subr.bf16.mxu0 0
    %3618 = vmatpush1.bf16.msra.mxu0 0
    %3619 = vmatprep.subr.bf16.mxu0 0
    %3620 = vmatpush1.bf16.msra.mxu0 0
    %3621 = vmatprep.mubr.bf16.mxu0 0
    %3622 = vmatmul.mubr.bf16.gmra.mrb[0].mxu0 %v3587
    %v3623 = vpop.f32.mrb[0].mxu0
    %v3624 = vadd.f32 0.0, %v3623
    %v3625 = vpop.f32.mrb[0].mxu0
    %v3626 = vadd.f32 0.0, %v3625
    %v3627 = vpop.f32.mrb[0].mxu0
    %v3628 = vadd.f32 0.0, %v3627
    %v3629 = vpop.f32.mrb[0].mxu0
    %v3630 = vadd.f32 0.0, %v3629
    %3631 = vdwg.mxu0
    %v3632 = vadd.f32 %v3528, %v3624
    %v3633 = vadd.f32 %v3529, %v3626
    %v3634 = vadd.f32 %v3530, %v3628
    %v3635 = vadd.f32 %v3531, %v3630
    %3636 = vrot.lane.b32.xlu0 %v3078, 15
    %v3637 = vpop.permute.xlu0 %3636
    %3638 = vrot.lane.b32.xlu0 %v3082, 15
    %v3639 = vpop.permute.xlu0 %3638
    %v3640 = vsel %vm3315, %v3637, %v3639
    %vm3641 = vcmp.ne.s16.totalorder %v3637, 0
    %vm3642 = vcmp.ne.s16.totalorder %v3640, 0
    %vm3643 = vcmp.ne.s16.totalorder %v3639, 0
    %v3644 = vsel %vm3641, %v3532, 0
    %v3645 = vsel %vm3642, %v3533, 0
    %v3646 = vsel %vm3643, %v3534, 0
    %v3647 = vsel %vm3641, %v3535, 0
    %v3648 = vsel %vm3642, %v3536, 0
    %v3649 = vsel %vm3643, %v3537, 0
    %s3650 = scalar_lea.vmem %s5, 48
    %v3651 = vld [vmem:[%s3650] sm:$0xf]
    %v3652 = vld [vmem:[%s3650 + $0x4] sm:$0xf]
    %v3655 = vunpack.c.l.b16 %v3651
    %v3656 = vunpack.c.l.b16 %v3652
    %v3657 = vpack.c.b16 %v3656, %v3655
    %3664 = vrot.lane.b32.xlu0 %v3644, 113
    %v3665 = vpop.permute.xlu0 %3664
    %3666 = vrot.lane.b32.xlu0 %v3645, 113
    %v3667 = vpop.permute.xlu0 %3666
    %3668 = vrot.lane.b32.xlu0 %v3646, 113
    %v3669 = vpop.permute.xlu0 %3668
    %3670 = vrot.lane.b32.xlu0 %v3647, 113
    %v3671 = vpop.permute.xlu0 %3670
    %3672 = vrot.lane.b32.xlu0 %v3648, 113
    %v3673 = vpop.permute.xlu0 %3672
    %3674 = vrot.lane.b32.xlu0 %v3649, 113
    %v3675 = vpop.permute.xlu0 %3674
    %v3676 = vsel %vm3278, %v3665, %v3667
    %v3677 = vsel %vm3278, %v3667, %v3669
    %v3678 = vsel %vm3278, %v3671, %v3673
    %v3679 = vsel %vm3278, %v3673, %v3675
    %v3685 = vsel %vm3135, %v3657, 0
    %3687 = vmatprep.subr.bf16.mxu0 %v3677
    %3688 = vmatpush1.bf16.msra.mxu0 %v3676
    %3689 = vmatprep.subr.bf16.mxu0 %v3679
    %3690 = vmatpush1.bf16.msra.mxu0 %v3678
    %3691 = vmatprep.subr.bf16.mxu0 0
    %3692 = vmatpush1.bf16.msra.mxu0 0
    %3693 = vmatprep.subr.bf16.mxu0 0
    %3694 = vmatpush1.bf16.msra.mxu0 0
    %3695 = vmatprep.subr.bf16.mxu0 0
    %3696 = vmatpush1.bf16.msra.mxu0 0
    %3697 = vmatprep.subr.bf16.mxu0 0
    %3698 = vmatpush1.bf16.msra.mxu0 0
    %3699 = vmatprep.subr.bf16.mxu0 0
    %3700 = vmatpush1.bf16.msra.mxu0 0
    %3701 = vmatprep.subr.bf16.mxu0 0
    %3702 = vmatpush1.bf16.msra.mxu0 0
    %3703 = vmatprep.subr.bf16.mxu0 0
    %3704 = vmatpush1.bf16.msra.mxu0 0
    %3705 = vmatprep.subr.bf16.mxu0 0
    %3706 = vmatpush1.bf16.msra.mxu0 0
    %3707 = vmatprep.subr.bf16.mxu0 0
    %3708 = vmatpush1.bf16.msra.mxu0 0
    %3709 = vmatprep.subr.bf16.mxu0 0
    %3710 = vmatpush1.bf16.msra.mxu0 0
    %3711 = vmatprep.subr.bf16.mxu0 0
    %3712 = vmatpush1.bf16.msra.mxu0 0
    %3713 = vmatprep.subr.bf16.mxu0 0
    %3714 = vmatpush1.bf16.msra.mxu0 0
    %3715 = vmatprep.subr.bf16.mxu0 0
    %3716 = vmatpush1.bf16.msra.mxu0 0
    %3717 = vmatprep.subr.bf16.mxu0 0
    %3718 = vmatpush1.bf16.msra.mxu0 0
    %3719 = vmatprep.mubr.bf16.mxu0 0
    %3720 = vmatmul.mubr.bf16.gmra.mrb[0].mxu0 %v3685
    %v3721 = vpop.f32.mrb[0].mxu0
    %v3722 = vadd.f32 0.0, %v3721
    %v3723 = vpop.f32.mrb[0].mxu0
    %v3724 = vadd.f32 0.0, %v3723
    %v3725 = vpop.f32.mrb[0].mxu0
    %v3726 = vadd.f32 0.0, %v3725
    %v3727 = vpop.f32.mrb[0].mxu0
    %v3728 = vadd.f32 0.0, %v3727
    %3729 = vdwg.mxu0
    %v3730 = vadd.f32 %v3632, %v3722
    %v3731 = vadd.f32 %v3633, %v3724
    %v3732 = vadd.f32 %v3634, %v3726
    %v3733 = vadd.f32 %v3635, %v3728
    %s3734 = scalar_lea.vmem %s5, 56
    %v3735 = vld [vmem:[%s3734] sm:$0xf]
    %v3736 = vld [vmem:[%s3734 + $0x4] sm:$0xf]
    %v3739 = vunpack.c.l.b16 %v3735
    %v3740 = vunpack.c.l.b16 %v3736
    %v3741 = vpack.c.b16 %v3740, %v3739
    %3748 = vrot.lane.b32.xlu0 %v3532, 112
    %v3749 = vpop.permute.xlu0 %3748
    %3750 = vrot.lane.b32.xlu0 %v3533, 112
    %v3751 = vpop.permute.xlu0 %3750
    %3752 = vrot.lane.b32.xlu0 %v3534, 112
    %v3753 = vpop.permute.xlu0 %3752
    %3754 = vrot.lane.b32.xlu0 %v3535, 112
    %v3755 = vpop.permute.xlu0 %3754
    %3756 = vrot.lane.b32.xlu0 %v3536, 112
    %v3757 = vpop.permute.xlu0 %3756
    %3758 = vrot.lane.b32.xlu0 %v3537, 112
    %v3759 = vpop.permute.xlu0 %3758
    %vm3760 = vcmask 916480
    %v3761 = vsel %vm3760, %v3749, %v3751
    %v3762 = vsel %vm3760, %v3751, %v3753
    %v3763 = vsel %vm3760, %v3755, %v3757
    %v3764 = vsel %vm3760, %v3757, %v3759
    %v3770 = vsel %vm3135, %v3741, 0
    %3772 = vmatprep.subr.bf16.mxu0 %v3762
    %3773 = vmatpush1.bf16.msra.mxu0 %v3761
    %3774 = vmatprep.subr.bf16.mxu0 %v3764
    %3775 = vmatpush1.bf16.msra.mxu0 %v3763
    %3776 = vmatprep.subr.bf16.mxu0 0
    %3777 = vmatpush1.bf16.msra.mxu0 0
    %3778 = vmatprep.subr.bf16.mxu0 0
    %3779 = vmatpush1.bf16.msra.mxu0 0
    %3780 = vmatprep.subr.bf16.mxu0 0
    %3781 = vmatpush1.bf16.msra.mxu0 0
    %3782 = vmatprep.subr.bf16.mxu0 0
    %3783 = vmatpush1.bf16.msra.mxu0 0
    %3784 = vmatprep.subr.bf16.mxu0 0
    %3785 = vmatpush1.bf16.msra.mxu0 0
    %3786 = vmatprep.subr.bf16.mxu0 0
    %3787 = vmatpush1.bf16.msra.mxu0 0
    %3788 = vmatprep.subr.bf16.mxu0 0
    %3789 = vmatpush1.bf16.msra.mxu0 0
    %3790 = vmatprep.subr.bf16.mxu0 0
    %3791 = vmatpush1.bf16.msra.mxu0 0
    %3792 = vmatprep.subr.bf16.mxu0 0
    %3793 = vmatpush1.bf16.msra.mxu0 0
    %3794 = vmatprep.subr.bf16.mxu0 0
    %3795 = vmatpush1.bf16.msra.mxu0 0
    %3796 = vmatprep.subr.bf16.mxu0 0
    %3797 = vmatpush1.bf16.msra.mxu0 0
    %3798 = vmatprep.subr.bf16.mxu0 0
    %3799 = vmatpush1.bf16.msra.mxu0 0
    %3800 = vmatprep.subr.bf16.mxu0 0
    %3801 = vmatpush1.bf16.msra.mxu0 0
    %3802 = vmatprep.subr.bf16.mxu0 0
    %3803 = vmatpush1.bf16.msra.mxu0 0
    %3804 = vmatprep.mubr.bf16.mxu0 0
    %3805 = vmatmul.mubr.bf16.gmra.mrb[0].mxu0 %v3770
    %v3806 = vpop.f32.mrb[0].mxu0
    %v3807 = vadd.f32 0.0, %v3806
    %v3808 = vpop.f32.mrb[0].mxu0
    %v3809 = vadd.f32 0.0, %v3808
    %v3810 = vpop.f32.mrb[0].mxu0
    %v3811 = vadd.f32 0.0, %v3810
    %v3812 = vpop.f32.mrb[0].mxu0
    %v3813 = vadd.f32 0.0, %v3812
    %3814 = vdwg.mxu0
    %v3815 = vadd.f32 %v3730, %v3807
    %v3816 = vadd.f32 %v3731, %v3809
    %v3817 = vadd.f32 %v3732, %v3811
    %v3818 = vadd.f32 %v3733, %v3813
    %3819 = vrot.lane.b32.xlu0 %v3269, 17
    %v3820 = vpop.permute.xlu0 %3819
    %3821 = vrot.lane.b32.xlu0 %v3273, 17
    %v3822 = vpop.permute.xlu0 %3821
    %v3823 = vsel %vm3205, %v3820, %v3822
    %vm3824 = vcmp.ne.s16.totalorder %v3820, 0
    %vm3825 = vcmp.ne.s16.totalorder %v3823, 0
    %vm3826 = vcmp.ne.s16.totalorder %v3822, 0
    %v3827 = vsel %vm3824, %v3532, 0
    %v3828 = vsel %vm3825, %v3533, 0
    %v3829 = vsel %vm3826, %v3534, 0
    %v3830 = vsel %vm3824, %v3535, 0
    %v3831 = vsel %vm3825, %v3536, 0
    %v3832 = vsel %vm3826, %v3537, 0
    %s3833 = scalar_lea.vmem %s5, 64
    %v3834 = vld [vmem:[%s3833] sm:$0xf]
    %v3835 = vld [vmem:[%s3833 + $0x4] sm:$0xf]
    %v3838 = vunpack.c.l.b16 %v3834
    %v3839 = vunpack.c.l.b16 %v3835
    %v3840 = vpack.c.b16 %v3839, %v3838
    %3847 = vrot.lane.b32.xlu0 %v3827, 111
    %v3848 = vpop.permute.xlu0 %3847
    %3849 = vrot.lane.b32.xlu0 %v3828, 111
    %v3850 = vpop.permute.xlu0 %3849
    %3851 = vrot.lane.b32.xlu0 %v3829, 111
    %v3852 = vpop.permute.xlu0 %3851
    %3853 = vrot.lane.b32.xlu0 %v3830, 111
    %v3854 = vpop.permute.xlu0 %3853
    %3855 = vrot.lane.b32.xlu0 %v3831, 111
    %v3856 = vpop.permute.xlu0 %3855
    %3857 = vrot.lane.b32.xlu0 %v3832, 111
    %v3858 = vpop.permute.xlu0 %3857
    %v3859 = vsel %vm3087, %v3848, %v3850
    %v3860 = vsel %vm3087, %v3850, %v3852
    %v3861 = vsel %vm3087, %v3854, %v3856
    %v3862 = vsel %vm3087, %v3856, %v3858
    %v3868 = vsel %vm3135, %v3840, 0
    %3870 = vmatprep.subr.bf16.mxu0 %v3860
    %3871 = vmatpush1.bf16.msra.mxu0 %v3859
    %3872 = vmatprep.subr.bf16.mxu0 %v3862
    %3873 = vmatpush1.bf16.msra.mxu0 %v3861
    %3874 = vmatprep.subr.bf16.mxu0 0
    %3875 = vmatpush1.bf16.msra.mxu0 0
    %3876 = vmatprep.subr.bf16.mxu0 0
    %3877 = vmatpush1.bf16.msra.mxu0 0
    %3878 = vmatprep.subr.bf16.mxu0 0
    %3879 = vmatpush1.bf16.msra.mxu0 0
    %3880 = vmatprep.subr.bf16.mxu0 0
    %3881 = vmatpush1.bf16.msra.mxu0 0
    %3882 = vmatprep.subr.bf16.mxu0 0
    %3883 = vmatpush1.bf16.msra.mxu0 0
    %3884 = vmatprep.subr.bf16.mxu0 0
    %3885 = vmatpush1.bf16.msra.mxu0 0
    %3886 = vmatprep.subr.bf16.mxu0 0
    %3887 = vmatpush1.bf16.msra.mxu0 0
    %3888 = vmatprep.subr.bf16.mxu0 0
    %3889 = vmatpush1.bf16.msra.mxu0 0
    %3890 = vmatprep.subr.bf16.mxu0 0
    %3891 = vmatpush1.bf16.msra.mxu0 0
    %3892 = vmatprep.subr.bf16.mxu0 0
    %3893 = vmatpush1.bf16.msra.mxu0 0
    %3894 = vmatprep.subr.bf16.mxu0 0
    %3895 = vmatpush1.bf16.msra.mxu0 0
    %3896 = vmatprep.subr.bf16.mxu0 0
    %3897 = vmatpush1.bf16.msra.mxu0 0
    %3898 = vmatprep.subr.bf16.mxu0 0
    %3899 = vmatpush1.bf16.msra.mxu0 0
    %3900 = vmatprep.subr.bf16.mxu0 0
    %3901 = vmatpush1.bf16.msra.mxu0 0
    %3902 = vmatprep.mubr.bf16.mxu0 0
    %3903 = vmatmul.mubr.bf16.gmra.mrb[0].mxu0 %v3868
    %v3904 = vpop.f32.mrb[0].mxu0
    %v3905 = vadd.f32 0.0, %v3904
    %v3906 = vpop.f32.mrb[0].mxu0
    %v3907 = vadd.f32 0.0, %v3906
    %v3908 = vpop.f32.mrb[0].mxu0
    %v3909 = vadd.f32 0.0, %v3908
    %v3910 = vpop.f32.mrb[0].mxu0
    %v3911 = vadd.f32 0.0, %v3910
    %3912 = vdwg.mxu0
    %v3913 = vadd.f32 %v3815, %v3905
    %v3914 = vadd.f32 %v3816, %v3907
    %v3915 = vadd.f32 %v3817, %v3909
    %v3916 = vadd.f32 %v3818, %v3911
    %v3917 = vld [vmem:[%s6] sm:$0xff]
    %v3918 = vld [vmem:[%s6 + $0x8] sm:$0xff]
    %3920 = vset.pattern.permute.xlu0 0
    %3921 = vperm.xlu0 %3920, %v3917
    %v3922 = vpop.permute.xlu0 %3921
    %3925 = vset.pattern.permute.xlu0 0
    %3926 = vperm.xlu0 %3925, %v3918
    %v3927 = vpop.permute.xlu0 %3926
    %v3929 = vadd.f32 %v3913, %v3922
    %v3930 = vadd.f32 %v3914, %v3922
    %v3931 = vadd.f32 %v3915, %v3927
    %v3932 = vadd.f32 %v3916, %v3927
    %v3933 = vmax.f32 %v3929, 0.0
    %v3934 = vmax.f32 %v3930, 0.0
    %v3935 = vmax.f32 %v3931, 0.0
    %v3936 = vmax.f32 %v3932, 0.0
    %v3937 = vpack.c.bf16 %v3935, %v3933
    %v3938 = vpack.c.bf16 %v3936, %v3934
    %3939 = vst [vmem:[#allocation3 + $0x8] sm:$0xff] %v3937
    %3940 = vst [vmem:[#allocation3 + $0x10] sm:$0xff] %v3938
    %v3941 = vld [vmem:[#allocation3] sm:$0xff]
    %v3942 = vld [vmem:[#allocation3 + $0x8] sm:$0xff]
    %v3943 = vld [vmem:[#allocation3 + $0x10] sm:$0xff]
    %v3944 = vsel %vm3089, %v3941, 0
    %v3945 = vsel %vm3090, %v3942, 0
    %v3946 = vsel %vm3091, %v3943, 0
    %v3947 = vld [vmem:[#allocation9] sm:$0xf]
    %v3948 = vld [vmem:[#allocation9 + $0x4] sm:$0xf]
    %s3949 = scalar_lea.vmem [#allocation9], 8
    %v3950 = vld [vmem:[%s3949] sm:$0xf]
    %v3951 = vld [vmem:[%s3949 + $0x4] sm:$0xf]
    %v3954 = vunpack.c.l.b16 %v3950
    %v3955 = vunpack.c.l.b16 %v3951
    %v3956 = vpack.c.b16 %v3955, %v3954
    %3960 = vrot.lane.b32.xlu0 %v3941, 16
    %v3961 = vpop.permute.xlu0 %3960
    %3962 = vrot.lane.b32.xlu0 %v3942, 16
    %v3963 = vpop.permute.xlu0 %3962
    %3964 = vrot.lane.b32.xlu0 %v3943, 16
    %v3965 = vpop.permute.xlu0 %3964
    %v3966 = vsel %vm3126, %v3961, %v3963
    %v3967 = vsel %vm3126, %v3963, %v3965
    %v3971 = vsel %vm166, %v3956, 0
    %3973 = vmatprep.subr.bf16.mxu0 %v3967
    %3974 = vmatpush1.bf16.msra.mxu0 %v3966
    %3975 = vmatprep.subr.bf16.mxu0 0
    %3976 = vmatpush1.bf16.msra.mxu0 0
    %3977 = vmatprep.subr.bf16.mxu0 0
    %3978 = vmatpush1.bf16.msra.mxu0 0
    %3979 = vmatprep.subr.bf16.mxu0 0
    %3980 = vmatpush1.bf16.msra.mxu0 0
    %3981 = vmatprep.subr.bf16.mxu0 0
    %3982 = vmatpush1.bf16.msra.mxu0 0
    %3983 = vmatprep.subr.bf16.mxu0 0
    %3984 = vmatpush1.bf16.msra.mxu0 0
    %3985 = vmatprep.subr.bf16.mxu0 0
    %3986 = vmatpush1.bf16.msra.mxu0 0
    %3987 = vmatprep.subr.bf16.mxu0 0
    %3988 = vmatpush1.bf16.msra.mxu0 0
    %3989 = vmatprep.subr.bf16.mxu0 0
    %3990 = vmatpush1.bf16.msra.mxu0 0
    %3991 = vmatprep.subr.bf16.mxu0 0
    %3992 = vmatpush1.bf16.msra.mxu0 0
    %3993 = vmatprep.subr.bf16.mxu0 0
    %3994 = vmatpush1.bf16.msra.mxu0 0
    %3995 = vmatprep.subr.bf16.mxu0 0
    %3996 = vmatpush1.bf16.msra.mxu0 0
    %3997 = vmatprep.subr.bf16.mxu0 0
    %3998 = vmatpush1.bf16.msra.mxu0 0
    %3999 = vmatprep.subr.bf16.mxu0 0
    %4000 = vmatpush1.bf16.msra.mxu0 0
    %4001 = vmatprep.subr.bf16.mxu0 0
    %4002 = vmatpush1.bf16.msra.mxu0 0
    %4003 = vmatprep.subr.bf16.mxu0 0
    %4004 = vmatpush1.bf16.msra.mxu0 0
    %4005 = vmatprep.mubr.bf16.mxu0 0
    %4006 = vmatmul.mubr.bf16.gmra.mrb[0].mxu0 %v3971
    %v4007 = vpop.f32.mrb[0].mxu0
    %v4008 = vadd.f32 0.0, %v4007
    %v4009 = vpop.f32.mrb[0].mxu0
    %v4010 = vadd.f32 0.0, %v4009
    %v4011 = vpop.f32.mrb[0].mxu0
    %v4012 = vadd.f32 0.0, %v4011
    %v4013 = vpop.f32.mrb[0].mxu0
    %v4014 = vadd.f32 0.0, %v4013
    %4015 = vdwg.mxu0
    %v4018 = vunpack.c.l.b16 %v3947
    %v4019 = vunpack.c.l.b16 %v3948
    %v4020 = vpack.c.b16 %v4019, %v4018
    %4024 = vrot.lane.b32.xlu0 %v3944, 17
    %v4025 = vpop.permute.xlu0 %4024
    %4026 = vrot.lane.b32.xlu0 %v3945, 17
    %v4027 = vpop.permute.xlu0 %4026
    %4028 = vrot.lane.b32.xlu0 %v3946, 17
    %v4029 = vpop.permute.xlu0 %4028
    %v4030 = vsel %vm3205, %v4025, %v4027
    %v4031 = vsel %vm3205, %v4027, %v4029
    %v4035 = vsel %vm166, %v4020, 0
    %4037 = vmatprep.subr.bf16.mxu0 %v4031
    %4038 = vmatpush1.bf16.msra.mxu0 %v4030
    %4039 = vmatprep.subr.bf16.mxu0 0
    %4040 = vmatpush1.bf16.msra.mxu0 0
    %4041 = vmatprep.subr.bf16.mxu0 0
    %4042 = vmatpush1.bf16.msra.mxu0 0
    %4043 = vmatprep.subr.bf16.mxu0 0
    %4044 = vmatpush1.bf16.msra.mxu0 0
    %4045 = vmatprep.subr.bf16.mxu0 0
    %4046 = vmatpush1.bf16.msra.mxu0 0
    %4047 = vmatprep.subr.bf16.mxu0 0
    %4048 = vmatpush1.bf16.msra.mxu0 0
    %4049 = vmatprep.subr.bf16.mxu0 0
    %4050 = vmatpush1.bf16.msra.mxu0 0
    %4051 = vmatprep.subr.bf16.mxu0 0
    %4052 = vmatpush1.bf16.msra.mxu0 0
    %4053 = vmatprep.subr.bf16.mxu0 0
    %4054 = vmatpush1.bf16.msra.mxu0 0
    %4055 = vmatprep.subr.bf16.mxu0 0
    %4056 = vmatpush1.bf16.msra.mxu0 0
    %4057 = vmatprep.subr.bf16.mxu0 0
    %4058 = vmatpush1.bf16.msra.mxu0 0
    %4059 = vmatprep.subr.bf16.mxu0 0
    %4060 = vmatpush1.bf16.msra.mxu0 0
    %4061 = vmatprep.subr.bf16.mxu0 0
    %4062 = vmatpush1.bf16.msra.mxu0 0
    %4063 = vmatprep.subr.bf16.mxu0 0
    %4064 = vmatpush1.bf16.msra.mxu0 0
    %4065 = vmatprep.subr.bf16.mxu0 0
    %4066 = vmatpush1.bf16.msra.mxu0 0
    %4067 = vmatprep.subr.bf16.mxu0 0
    %4068 = vmatpush1.bf16.msra.mxu0 0
    %4069 = vmatprep.mubr.bf16.mxu0 0
    %4070 = vmatmul.mubr.bf16.gmra.mrb[0].mxu0 %v4035
    %v4071 = vpop.f32.mrb[0].mxu0
    %v4072 = vadd.f32 %v4008, %v4071
    %v4073 = vpop.f32.mrb[0].mxu0
    %v4074 = vadd.f32 %v4010, %v4073
    %v4075 = vpop.f32.mrb[0].mxu0
    %v4076 = vadd.f32 %v4012, %v4075
    %v4077 = vpop.f32.mrb[0].mxu0
    %v4078 = vadd.f32 %v4014, %v4077
    %4079 = vdwg.mxu0
    %v4080 = vsel %vm3280, %v3941, 0
    %v4081 = vsel %vm3281, %v3942, 0
    %v4082 = vsel %vm3282, %v3943, 0
    %s4083 = scalar_lea.vmem [#allocation9], 16
    %v4084 = vld [vmem:[%s4083] sm:$0xf]
    %v4085 = vld [vmem:[%s4083 + $0x4] sm:$0xf]
    %v4088 = vunpack.c.l.b16 %v4084
    %v4089 = vunpack.c.l.b16 %v4085
    %v4090 = vpack.c.b16 %v4089, %v4088
    %4094 = vrot.lane.b32.xlu0 %v4080, 15
    %v4095 = vpop.permute.xlu0 %4094
    %4096 = vrot.lane.b32.xlu0 %v4081, 15
    %v4097 = vpop.permute.xlu0 %4096
    %4098 = vrot.lane.b32.xlu0 %v4082, 15
    %v4099 = vpop.permute.xlu0 %4098
    %v4100 = vsel %vm3315, %v4095, %v4097
    %v4101 = vsel %vm3315, %v4097, %v4099
    %v4105 = vsel %vm166, %v4090, 0
    %4107 = vmatprep.subr.bf16.mxu0 %v4101
    %4108 = vmatpush1.bf16.msra.mxu0 %v4100
    %4109 = vmatprep.subr.bf16.mxu0 0
    %4110 = vmatpush1.bf16.msra.mxu0 0
    %4111 = vmatprep.subr.bf16.mxu0 0
    %4112 = vmatpush1.bf16.msra.mxu0 0
    %4113 = vmatprep.subr.bf16.mxu0 0
    %4114 = vmatpush1.bf16.msra.mxu0 0
    %4115 = vmatprep.subr.bf16.mxu0 0
    %4116 = vmatpush1.bf16.msra.mxu0 0
    %4117 = vmatprep.subr.bf16.mxu0 0
    %4118 = vmatpush1.bf16.msra.mxu0 0
    %4119 = vmatprep.subr.bf16.mxu0 0
    %4120 = vmatpush1.bf16.msra.mxu0 0
    %4121 = vmatprep.subr.bf16.mxu0 0
    %4122 = vmatpush1.bf16.msra.mxu0 0
    %4123 = vmatprep.subr.bf16.mxu0 0
    %4124 = vmatpush1.bf16.msra.mxu0 0
    %4125 = vmatprep.subr.bf16.mxu0 0
    %4126 = vmatpush1.bf16.msra.mxu0 0
    %4127 = vmatprep.subr.bf16.mxu0 0
    %4128 = vmatpush1.bf16.msra.mxu0 0
    %4129 = vmatprep.subr.bf16.mxu0 0
    %4130 = vmatpush1.bf16.msra.mxu0 0
    %4131 = vmatprep.subr.bf16.mxu0 0
    %4132 = vmatpush1.bf16.msra.mxu0 0
    %4133 = vmatprep.subr.bf16.mxu0 0
    %4134 = vmatpush1.bf16.msra.mxu0 0
    %4135 = vmatprep.subr.bf16.mxu0 0
    %4136 = vmatpush1.bf16.msra.mxu0 0
    %4137 = vmatprep.subr.bf16.mxu0 0
    %4138 = vmatpush1.bf16.msra.mxu0 0
    %4139 = vmatprep.mubr.bf16.mxu0 0
    %4140 = vmatmul.mubr.bf16.gmra.mrb[0].mxu0 %v4105
    %v4141 = vpop.f32.mrb[0].mxu0
    %v4142 = vadd.f32 0.0, %v4141
    %v4143 = vpop.f32.mrb[0].mxu0
    %v4144 = vadd.f32 0.0, %v4143
    %v4145 = vpop.f32.mrb[0].mxu0
    %v4146 = vadd.f32 0.0, %v4145
    %v4147 = vpop.f32.mrb[0].mxu0
    %v4148 = vadd.f32 0.0, %v4147
    %4149 = vdwg.mxu0
    %v4150 = vadd.f32 %v4072, %v4142
    %v4151 = vadd.f32 %v4074, %v4144
    %v4152 = vadd.f32 %v4076, %v4146
    %v4153 = vadd.f32 %v4078, %v4148
    %v4154 = vsel %vm3380, %v3941, 0
    %v4155 = vsel %vm3381, %v3942, 0
    %v4156 = vsel %vm3382, %v3943, 0
    %s4157 = scalar_lea.vmem [#allocation9], 24
    %v4158 = vld [vmem:[%s4157] sm:$0xf]
    %v4159 = vld [vmem:[%s4157 + $0x4] sm:$0xf]
    %v4162 = vunpack.c.l.b16 %v4158
    %v4163 = vunpack.c.l.b16 %v4159
    %v4164 = vpack.c.b16 %v4163, %v4162
    %4168 = vrot.lane.b32.xlu0 %v4154, 1
    %v4169 = vpop.permute.xlu0 %4168
    %4170 = vrot.lane.b32.xlu0 %v4155, 1
    %v4171 = vpop.permute.xlu0 %4170
    %4172 = vrot.lane.b32.xlu0 %v4156, 1
    %v4173 = vpop.permute.xlu0 %4172
    %v4174 = vsel %vm3415, %v4169, %v4171
    %v4175 = vsel %vm3415, %v4171, %v4173
    %v4179 = vsel %vm166, %v4164, 0
    %4181 = vmatprep.subr.bf16.mxu0 %v4175
    %4182 = vmatpush1.bf16.msra.mxu0 %v4174
    %4183 = vmatprep.subr.bf16.mxu0 0
    %4184 = vmatpush1.bf16.msra.mxu0 0
    %4185 = vmatprep.subr.bf16.mxu0 0
    %4186 = vmatpush1.bf16.msra.mxu0 0
    %4187 = vmatprep.subr.bf16.mxu0 0
    %4188 = vmatpush1.bf16.msra.mxu0 0
    %4189 = vmatprep.subr.bf16.mxu0 0
    %4190 = vmatpush1.bf16.msra.mxu0 0
    %4191 = vmatprep.subr.bf16.mxu0 0
    %4192 = vmatpush1.bf16.msra.mxu0 0
    %4193 = vmatprep.subr.bf16.mxu0 0
    %4194 = vmatpush1.bf16.msra.mxu0 0
    %4195 = vmatprep.subr.bf16.mxu0 0
    %4196 = vmatpush1.bf16.msra.mxu0 0
    %4197 = vmatprep.subr.bf16.mxu0 0
    %4198 = vmatpush1.bf16.msra.mxu0 0
    %4199 = vmatprep.subr.bf16.mxu0 0
    %4200 = vmatpush1.bf16.msra.mxu0 0
    %4201 = vmatprep.subr.bf16.mxu0 0
    %4202 = vmatpush1.bf16.msra.mxu0 0
    %4203 = vmatprep.subr.bf16.mxu0 0
    %4204 = vmatpush1.bf16.msra.mxu0 0
    %4205 = vmatprep.subr.bf16.mxu0 0
    %4206 = vmatpush1.bf16.msra.mxu0 0
    %4207 = vmatprep.subr.bf16.mxu0 0
    %4208 = vmatpush1.bf16.msra.mxu0 0
    %4209 = vmatprep.subr.bf16.mxu0 0
    %4210 = vmatpush1.bf16.msra.mxu0 0
    %4211 = vmatprep.subr.bf16.mxu0 0
    %4212 = vmatpush1.bf16.msra.mxu0 0
    %4213 = vmatprep.mubr.bf16.mxu0 0
    %4214 = vmatmul.mubr.bf16.gmra.mrb[0].mxu0 %v4179
    %v4215 = vpop.f32.mrb[0].mxu0
    %v4216 = vadd.f32 0.0, %v4215
    %v4217 = vpop.f32.mrb[0].mxu0
    %v4218 = vadd.f32 0.0, %v4217
    %v4219 = vpop.f32.mrb[0].mxu0
    %v4220 = vadd.f32 0.0, %v4219
    %v4221 = vpop.f32.mrb[0].mxu0
    %v4222 = vadd.f32 0.0, %v4221
    %4223 = vdwg.mxu0
    %v4224 = vadd.f32 %v4150, %v4216
    %v4225 = vadd.f32 %v4151, %v4218
    %v4226 = vadd.f32 %v4152, %v4220
    %v4227 = vadd.f32 %v4153, %v4222
    %s4228 = scalar_lea.vmem [#allocation9], 32
    %v4229 = vld [vmem:[%s4228] sm:$0xf]
    %v4230 = vld [vmem:[%s4228 + $0x4] sm:$0xf]
    %v4233 = vunpack.c.l.b16 %v4229
    %v4234 = vunpack.c.l.b16 %v4230
    %v4235 = vpack.c.b16 %v4234, %v4233
    %v4237 = vsel %vm166, %v4235, 0
    %4239 = vmatprep.subr.bf16.mxu0 %v3943
    %4240 = vmatpush1.bf16.msra.mxu0 %v3942
    %4241 = vmatprep.subr.bf16.mxu0 0
    %4242 = vmatpush1.bf16.msra.mxu0 0
    %4243 = vmatprep.subr.bf16.mxu0 0
    %4244 = vmatpush1.bf16.msra.mxu0 0
    %4245 = vmatprep.subr.bf16.mxu0 0
    %4246 = vmatpush1.bf16.msra.mxu0 0
    %4247 = vmatprep.subr.bf16.mxu0 0
    %4248 = vmatpush1.bf16.msra.mxu0 0
    %4249 = vmatprep.subr.bf16.mxu0 0
    %4250 = vmatpush1.bf16.msra.mxu0 0
    %4251 = vmatprep.subr.bf16.mxu0 0
    %4252 = vmatpush1.bf16.msra.mxu0 0
    %4253 = vmatprep.subr.bf16.mxu0 0
    %4254 = vmatpush1.bf16.msra.mxu0 0
    %4255 = vmatprep.subr.bf16.mxu0 0
    %4256 = vmatpush1.bf16.msra.mxu0 0
    %4257 = vmatprep.subr.bf16.mxu0 0
    %4258 = vmatpush1.bf16.msra.mxu0 0
    %4259 = vmatprep.subr.bf16.mxu0 0
    %4260 = vmatpush1.bf16.msra.mxu0 0
    %4261 = vmatprep.subr.bf16.mxu0 0
    %4262 = vmatpush1.bf16.msra.mxu0 0
    %4263 = vmatprep.subr.bf16.mxu0 0
    %4264 = vmatpush1.bf16.msra.mxu0 0
    %4265 = vmatprep.subr.bf16.mxu0 0
    %4266 = vmatpush1.bf16.msra.mxu0 0
    %4267 = vmatprep.subr.bf16.mxu0 0
    %4268 = vmatpush1.bf16.msra.mxu0 0
    %4269 = vmatprep.subr.bf16.mxu0 0
    %4270 = vmatpush1.bf16.msra.mxu0 0
    %4271 = vmatprep.mubr.bf16.mxu0 0
    %4272 = vmatmul.mubr.bf16.gmra.mrb[0].mxu0 %v4237
    %v4273 = vpop.f32.mrb[0].mxu0
    %v4274 = vadd.f32 0.0, %v4273
    %v4275 = vpop.f32.mrb[0].mxu0
    %v4276 = vadd.f32 0.0, %v4275
    %v4277 = vpop.f32.mrb[0].mxu0
    %v4278 = vadd.f32 0.0, %v4277
    %v4279 = vpop.f32.mrb[0].mxu0
    %v4280 = vadd.f32 0.0, %v4279
    %4281 = vdwg.mxu0
    %v4282 = vadd.f32 %v4224, %v4274
    %v4283 = vadd.f32 %v4225, %v4276
    %v4284 = vadd.f32 %v4226, %v4278
    %v4285 = vadd.f32 %v4227, %v4280
    %v4286 = vld [vmem:[#allocation3 + $0x8] sm:$0xff]
    %v4287 = vld [vmem:[#allocation3 + $0x10] sm:$0xff]
    %v4288 = vld [vmem:[#allocation3 + $0x18] sm:$0xff]
    %v4289 = vsel %vm3543, %v4286, 0
    %v4290 = vsel %vm3544, %v4287, 0
    %v4291 = vsel %vm3545, %v4288, 0
    %s4292 = scalar_lea.vmem [#allocation9], 40
    %v4293 = vld [vmem:[%s4292] sm:$0xf]
    %v4294 = vld [vmem:[%s4292 + $0x4] sm:$0xf]
    %v4297 = vunpack.c.l.b16 %v4293
    %v4298 = vunpack.c.l.b16 %v4294
    %v4299 = vpack.c.b16 %v4298, %v4297
    %4303 = vrot.lane.b32.xlu0 %v4289, 127
    %v4304 = vpop.permute.xlu0 %4303
    %4305 = vrot.lane.b32.xlu0 %v4290, 127
    %v4306 = vpop.permute.xlu0 %4305
    %4307 = vrot.lane.b32.xlu0 %v4291, 127
    %v4308 = vpop.permute.xlu0 %4307
    %v4309 = vsel %vm3378, %v4304, %v4306
    %v4310 = vsel %vm3378, %v4306, %v4308
    %v4314 = vsel %vm166, %v4299, 0
    %4316 = vmatprep.subr.bf16.mxu0 %v4310
    %4317 = vmatpush1.bf16.msra.mxu0 %v4309
    %4318 = vmatprep.subr.bf16.mxu0 0
    %4319 = vmatpush1.bf16.msra.mxu0 0
    %4320 = vmatprep.subr.bf16.mxu0 0
    %4321 = vmatpush1.bf16.msra.mxu0 0
    %4322 = vmatprep.subr.bf16.mxu0 0
    %4323 = vmatpush1.bf16.msra.mxu0 0
    %4324 = vmatprep.subr.bf16.mxu0 0
    %4325 = vmatpush1.bf16.msra.mxu0 0
    %4326 = vmatprep.subr.bf16.mxu0 0
    %4327 = vmatpush1.bf16.msra.mxu0 0
    %4328 = vmatprep.subr.bf16.mxu0 0
    %4329 = vmatpush1.bf16.msra.mxu0 0
    %4330 = vmatprep.subr.bf16.mxu0 0
    %4331 = vmatpush1.bf16.msra.mxu0 0
    %4332 = vmatprep.subr.bf16.mxu0 0
    %4333 = vmatpush1.bf16.msra.mxu0 0
    %4334 = vmatprep.subr.bf16.mxu0 0
    %4335 = vmatpush1.bf16.msra.mxu0 0
    %4336 = vmatprep.subr.bf16.mxu0 0
    %4337 = vmatpush1.bf16.msra.mxu0 0
    %4338 = vmatprep.subr.bf16.mxu0 0
    %4339 = vmatpush1.bf16.msra.mxu0 0
    %4340 = vmatprep.subr.bf16.mxu0 0
    %4341 = vmatpush1.bf16.msra.mxu0 0
    %4342 = vmatprep.subr.bf16.mxu0 0
    %4343 = vmatpush1.bf16.msra.mxu0 0
    %4344 = vmatprep.subr.bf16.mxu0 0
    %4345 = vmatpush1.bf16.msra.mxu0 0
    %4346 = vmatprep.subr.bf16.mxu0 0
    %4347 = vmatpush1.bf16.msra.mxu0 0
    %4348 = vmatprep.mubr.bf16.mxu0 0
    %4349 = vmatmul.mubr.bf16.gmra.mrb[0].mxu0 %v4314
    %v4350 = vpop.f32.mrb[0].mxu0
    %v4351 = vadd.f32 0.0, %v4350
    %v4352 = vpop.f32.mrb[0].mxu0
    %v4353 = vadd.f32 0.0, %v4352
    %v4354 = vpop.f32.mrb[0].mxu0
    %v4355 = vadd.f32 0.0, %v4354
    %v4356 = vpop.f32.mrb[0].mxu0
    %v4357 = vadd.f32 0.0, %v4356
    %4358 = vdwg.mxu0
    %v4359 = vadd.f32 %v4282, %v4351
    %v4360 = vadd.f32 %v4283, %v4353
    %v4361 = vadd.f32 %v4284, %v4355
    %v4362 = vadd.f32 %v4285, %v4357
    %v4363 = vsel %vm3641, %v4286, 0
    %v4364 = vsel %vm3642, %v4287, 0
    %v4365 = vsel %vm3643, %v4288, 0
    %s4366 = scalar_lea.vmem [#allocation9], 48
    %v4367 = vld [vmem:[%s4366] sm:$0xf]
    %v4368 = vld [vmem:[%s4366 + $0x4] sm:$0xf]
    %v4371 = vunpack.c.l.b16 %v4367
    %v4372 = vunpack.c.l.b16 %v4368
    %v4373 = vpack.c.b16 %v4372, %v4371
    %4377 = vrot.lane.b32.xlu0 %v4363, 113
    %v4378 = vpop.permute.xlu0 %4377
    %4379 = vrot.lane.b32.xlu0 %v4364, 113
    %v4380 = vpop.permute.xlu0 %4379
    %4381 = vrot.lane.b32.xlu0 %v4365, 113
    %v4382 = vpop.permute.xlu0 %4381
    %v4383 = vsel %vm3278, %v4378, %v4380
    %v4384 = vsel %vm3278, %v4380, %v4382
    %v4388 = vsel %vm166, %v4373, 0
    %4390 = vmatprep.subr.bf16.mxu0 %v4384
    %4391 = vmatpush1.bf16.msra.mxu0 %v4383
    %4392 = vmatprep.subr.bf16.mxu0 0
    %4393 = vmatpush1.bf16.msra.mxu0 0
    %4394 = vmatprep.subr.bf16.mxu0 0
    %4395 = vmatpush1.bf16.msra.mxu0 0
    %4396 = vmatprep.subr.bf16.mxu0 0
    %4397 = vmatpush1.bf16.msra.mxu0 0
    %4398 = vmatprep.subr.bf16.mxu0 0
    %4399 = vmatpush1.bf16.msra.mxu0 0
    %4400 = vmatprep.subr.bf16.mxu0 0
    %4401 = vmatpush1.bf16.msra.mxu0 0
    %4402 = vmatprep.subr.bf16.mxu0 0
    %4403 = vmatpush1.bf16.msra.mxu0 0
    %4404 = vmatprep.subr.bf16.mxu0 0
    %4405 = vmatpush1.bf16.msra.mxu0 0
    %4406 = vmatprep.subr.bf16.mxu0 0
    %4407 = vmatpush1.bf16.msra.mxu0 0
    %4408 = vmatprep.subr.bf16.mxu0 0
    %4409 = vmatpush1.bf16.msra.mxu0 0
    %4410 = vmatprep.subr.bf16.mxu0 0
    %4411 = vmatpush1.bf16.msra.mxu0 0
    %4412 = vmatprep.subr.bf16.mxu0 0
    %4413 = vmatpush1.bf16.msra.mxu0 0
    %4414 = vmatprep.subr.bf16.mxu0 0
    %4415 = vmatpush1.bf16.msra.mxu0 0
    %4416 = vmatprep.subr.bf16.mxu0 0
    %4417 = vmatpush1.bf16.msra.mxu0 0
    %4418 = vmatprep.subr.bf16.mxu0 0
    %4419 = vmatpush1.bf16.msra.mxu0 0
    %4420 = vmatprep.subr.bf16.mxu0 0
    %4421 = vmatpush1.bf16.msra.mxu0 0
    %4422 = vmatprep.mubr.bf16.mxu0 0
    %4423 = vmatmul.mubr.bf16.gmra.mrb[0].mxu0 %v4388
    %v4424 = vpop.f32.mrb[0].mxu0
    %v4425 = vadd.f32 0.0, %v4424
    %v4426 = vpop.f32.mrb[0].mxu0
    %v4427 = vadd.f32 0.0, %v4426
    %v4428 = vpop.f32.mrb[0].mxu0
    %v4429 = vadd.f32 0.0, %v4428
    %v4430 = vpop.f32.mrb[0].mxu0
    %v4431 = vadd.f32 0.0, %v4430
    %4432 = vdwg.mxu0
    %v4433 = vadd.f32 %v4359, %v4425
    %v4434 = vadd.f32 %v4360, %v4427
    %v4435 = vadd.f32 %v4361, %v4429
    %v4436 = vadd.f32 %v4362, %v4431
    %s4437 = scalar_lea.vmem [#allocation9], 56
    %v4438 = vld [vmem:[%s4437] sm:$0xf]
    %v4439 = vld [vmem:[%s4437 + $0x4] sm:$0xf]
    %v4442 = vunpack.c.l.b16 %v4438
    %v4443 = vunpack.c.l.b16 %v4439
    %v4444 = vpack.c.b16 %v4443, %v4442
    %4448 = vrot.lane.b32.xlu0 %v4286, 112
    %v4449 = vpop.permute.xlu0 %4448
    %4450 = vrot.lane.b32.xlu0 %v4287, 112
    %v4451 = vpop.permute.xlu0 %4450
    %4452 = vrot.lane.b32.xlu0 %v4288, 112
    %v4453 = vpop.permute.xlu0 %4452
    %v4454 = vsel %vm3760, %v4449, %v4451
    %v4455 = vsel %vm3760, %v4451, %v4453
    %v4459 = vsel %vm166, %v4444, 0
    %4461 = vmatprep.subr.bf16.mxu0 %v4455
    %4462 = vmatpush1.bf16.msra.mxu0 %v4454
    %4463 = vmatprep.subr.bf16.mxu0 0
    %4464 = vmatpush1.bf16.msra.mxu0 0
    %4465 = vmatprep.subr.bf16.mxu0 0
    %4466 = vmatpush1.bf16.msra.mxu0 0
    %4467 = vmatprep.subr.bf16.mxu0 0
    %4468 = vmatpush1.bf16.msra.mxu0 0
    %4469 = vmatprep.subr.bf16.mxu0 0
    %4470 = vmatpush1.bf16.msra.mxu0 0
    %4471 = vmatprep.subr.bf16.mxu0 0
    %4472 = vmatpush1.bf16.msra.mxu0 0
    %4473 = vmatprep.subr.bf16.mxu0 0
    %4474 = vmatpush1.bf16.msra.mxu0 0
    %4475 = vmatprep.subr.bf16.mxu0 0
    %4476 = vmatpush1.bf16.msra.mxu0 0
    %4477 = vmatprep.subr.bf16.mxu0 0
    %4478 = vmatpush1.bf16.msra.mxu0 0
    %4479 = vmatprep.subr.bf16.mxu0 0
    %4480 = vmatpush1.bf16.msra.mxu0 0
    %4481 = vmatprep.subr.bf16.mxu0 0
    %4482 = vmatpush1.bf16.msra.mxu0 0
    %4483 = vmatprep.subr.bf16.mxu0 0
    %4484 = vmatpush1.bf16.msra.mxu0 0
    %4485 = vmatprep.subr.bf16.mxu0 0
    %4486 = vmatpush1.bf16.msra.mxu0 0
    %4487 = vmatprep.subr.bf16.mxu0 0
    %4488 = vmatpush1.bf16.msra.mxu0 0
    %4489 = vmatprep.subr.bf16.mxu0 0
    %4490 = vmatpush1.bf16.msra.mxu0 0
    %4491 = vmatprep.subr.bf16.mxu0 0
    %4492 = vmatpush1.bf16.msra.mxu0 0
    %4493 = vmatprep.mubr.bf16.mxu0 0
    %4494 = vmatmul.mubr.bf16.gmra.mrb[0].mxu0 %v4459
    %v4495 = vpop.f32.mrb[0].mxu0
    %v4496 = vadd.f32 0.0, %v4495
    %v4497 = vpop.f32.mrb[0].mxu0
    %v4498 = vadd.f32 0.0, %v4497
    %v4499 = vpop.f32.mrb[0].mxu0
    %v4500 = vadd.f32 0.0, %v4499
    %v4501 = vpop.f32.mrb[0].mxu0
    %v4502 = vadd.f32 0.0, %v4501
    %4503 = vdwg.mxu0
    %v4504 = vadd.f32 %v4433, %v4496
    %v4505 = vadd.f32 %v4434, %v4498
    %v4506 = vadd.f32 %v4435, %v4500
    %v4507 = vadd.f32 %v4436, %v4502
    %v4508 = vsel %vm3824, %v4286, 0
    %v4509 = vsel %vm3825, %v4287, 0
    %v4510 = vsel %vm3826, %v4288, 0
    %s4511 = scalar_lea.vmem [#allocation9], 64
    %v4512 = vld [vmem:[%s4511] sm:$0xf]
    %v4513 = vld [vmem:[%s4511 + $0x4] sm:$0xf]
    %v4516 = vunpack.c.l.b16 %v4512
    %v4517 = vunpack.c.l.b16 %v4513
    %v4518 = vpack.c.b16 %v4517, %v4516
    %4522 = vrot.lane.b32.xlu0 %v4508, 111
    %v4523 = vpop.permute.xlu0 %4522
    %4524 = vrot.lane.b32.xlu0 %v4509, 111
    %v4525 = vpop.permute.xlu0 %4524
    %4526 = vrot.lane.b32.xlu0 %v4510, 111
    %v4527 = vpop.permute.xlu0 %4526
    %v4528 = vsel %vm3087, %v4523, %v4525
    %v4529 = vsel %vm3087, %v4525, %v4527
    %v4533 = vsel %vm166, %v4518, 0
    %4535 = vmatprep.subr.bf16.mxu0 %v4529
    %4536 = vmatpush1.bf16.msra.mxu0 %v4528
    %4537 = vmatprep.subr.bf16.mxu0 0
    %4538 = vmatpush1.bf16.msra.mxu0 0
    %4539 = vmatprep.subr.bf16.mxu0 0
    %4540 = vmatpush1.bf16.msra.mxu0 0
    %4541 = vmatprep.subr.bf16.mxu0 0
    %4542 = vmatpush1.bf16.msra.mxu0 0
    %4543 = vmatprep.subr.bf16.mxu0 0
    %4544 = vmatpush1.bf16.msra.mxu0 0
    %4545 = vmatprep.subr.bf16.mxu0 0
    %4546 = vmatpush1.bf16.msra.mxu0 0
    %4547 = vmatprep.subr.bf16.mxu0 0
    %4548 = vmatpush1.bf16.msra.mxu0 0
    %4549 = vmatprep.subr.bf16.mxu0 0
    %4550 = vmatpush1.bf16.msra.mxu0 0
    %4551 = vmatprep.subr.bf16.mxu0 0
    %4552 = vmatpush1.bf16.msra.mxu0 0
    %4553 = vmatprep.subr.bf16.mxu0 0
    %4554 = vmatpush1.bf16.msra.mxu0 0
    %4555 = vmatprep.subr.bf16.mxu0 0
    %4556 = vmatpush1.bf16.msra.mxu0 0
    %4557 = vmatprep.subr.bf16.mxu0 0
    %4558 = vmatpush1.bf16.msra.mxu0 0
    %4559 = vmatprep.subr.bf16.mxu0 0
    %4560 = vmatpush1.bf16.msra.mxu0 0
    %4561 = vmatprep.subr.bf16.mxu0 0
    %4562 = vmatpush1.bf16.msra.mxu0 0
    %4563 = vmatprep.subr.bf16.mxu0 0
    %4564 = vmatpush1.bf16.msra.mxu0 0
    %4565 = vmatprep.subr.bf16.mxu0 0
    %4566 = vmatpush1.bf16.msra.mxu0 0
    %4567 = vmatprep.mubr.bf16.mxu0 0
    %4568 = vmatmul.mubr.bf16.gmra.mrb[0].mxu0 %v4533
    %v4569 = vpop.f32.mrb[0].mxu0
    %v4570 = vadd.f32 0.0, %v4569
    %v4571 = vpop.f32.mrb[0].mxu0
    %v4572 = vadd.f32 0.0, %v4571
    %v4573 = vpop.f32.mrb[0].mxu0
    %v4574 = vadd.f32 0.0, %v4573
    %v4575 = vpop.f32.mrb[0].mxu0
    %v4576 = vadd.f32 0.0, %v4575
    %4577 = vdwg.mxu0
    %v4578 = vadd.f32 %v4504, %v4570
    %v4579 = vadd.f32 %v4505, %v4572
    %v4580 = vadd.f32 %v4506, %v4574
    %v4581 = vadd.f32 %v4507, %v4576
    %v4582 = vld [vmem:[%s8] sm:$0xff]
    %v4583 = vld [vmem:[%s8 + $0x8] sm:$0xff]
    %4585 = vset.pattern.permute.xlu0 0
    %4586 = vperm.xlu0 %4585, %v4582
    %v4587 = vpop.permute.xlu0 %4586
    %4590 = vset.pattern.permute.xlu0 0
    %4591 = vperm.xlu0 %4590, %v4583
    %v4592 = vpop.permute.xlu0 %4591
    %v4594 = vadd.f32 %v4578, %v4587
    %v4595 = vadd.f32 %v4579, %v4587
    %v4596 = vadd.f32 %v4580, %v4592
    %v4597 = vadd.f32 %v4581, %v4592
    %v4598 = vmax.f32 %v4594, 0.0
    %v4599 = vmax.f32 %v4595, 0.0
    %v4600 = vmax.f32 %v4596, 0.0
    %v4601 = vmax.f32 %v4597, 0.0
    %4602 = vst [vmem:[#allocation10] sm:$0xff] %v4598
    %4603 = vst [vmem:[#allocation10 + $0x8] sm:$0xff] %v4599
    %4604 = vst [vmem:[#allocation10 + $0x10] sm:$0xff] %v4600
    %4605 = vst [vmem:[#allocation10 + $0x18] sm:$0xff] %v4601
    %s4606 = scalar_lea.vmem %s1, 16
    %v4607 = vld [vmem:[%s4606] sm:$0xff]
    %v4608 = vld [vmem:[%s4606 + $0x8] sm:$0xff]
    %v4611 = vunpack.c.l.b16 %v4607
    %v4612 = vunpack.c.h.b16 %v4607
    %v4613 = vunpack.c.l.b16 %v4608
    %v4614 = vunpack.c.h.b16 %v4608
    %v4615 = vpack.c.b16 %v4613, %v4611
    %v4616 = vpack.c.b16 %v4614, %v4612
    %4619 = vst [vmem:[#allocation2 + $0x8] sm:$0xff] %v4615
    %4620 = vst [vmem:[#allocation2 + $0x10] sm:$0xff] %v4616
    %v4621 = vld [vmem:[%s2] sm:$0xf]
    %v4622 = vld [vmem:[%s2 + $0x4] sm:$0xf]
    %v4623 = vld [vmem:[%s2 + $0x8] sm:$0xf]
    %v4624 = vld [vmem:[%s2 + $0xc] sm:$0xf]
    %v4625 = vld [vmem:[%s2 + $0x10] sm:$0xf]
    %v4626 = vld [vmem:[%s2 + $0x14] sm:$0xf]
    %v4627 = vld [vmem:[%s2 + $0x18] sm:$0xf]
    %v4628 = vld [vmem:[%s2 + $0x1c] sm:$0xf]
    %s4629 = scalar_lea.vmem [#allocation4], 8
    %v4630 = vld [vmem:[%s4629] sm:$0xf]
    %v4631 = vld [vmem:[%s4629 + $0x4] sm:$0xf]
    %v4640 = vunpack.c.l.b16 %v4621
    %v4641 = vunpack.c.l.b16 %v4622
    %v4642 = vunpack.c.l.b16 %v4623
    %v4643 = vunpack.c.l.b16 %v4624
    %v4644 = vunpack.c.l.b16 %v4625
    %v4645 = vunpack.c.l.b16 %v4626
    %v4646 = vunpack.c.l.b16 %v4627
    %v4647 = vunpack.c.l.b16 %v4628
    %v4648 = vpack.c.b16 %v4641, %v4640
    %v4649 = vpack.c.b16 %v4643, %v4642
    %v4650 = vpack.c.b16 %v4645, %v4644
    %v4651 = vpack.c.b16 %v4647, %v4646
    %v4654 = vunpack.c.l.b16 %v4630
    %v4655 = vunpack.c.l.b16 %v4631
    %v4656 = vpack.c.b16 %v4655, %v4654
    %v4659 = vsel %vm166, %v4648, 0
    %v4662 = vsel %vm166, %v4649, 0
    %v4665 = vsel %vm166, %v4650, 0
    %v4668 = vsel %vm166, %v4651, 0
    %4670 = vmatprep.subr.bf16.mxu0 0
    %4671 = vmatpush1.bf16.msra.mxu0 %v4656
    %4672 = vmatprep.subr.bf16.mxu0 0
    %4673 = vmatpush1.bf16.msra.mxu0 0
    %4674 = vmatprep.subr.bf16.mxu0 0
    %4675 = vmatpush1.bf16.msra.mxu0 0
    %4676 = vmatprep.subr.bf16.mxu0 0
    %4677 = vmatpush1.bf16.msra.mxu0 0
    %4678 = vmatprep.subr.bf16.mxu0 0
    %4679 = vmatpush1.bf16.msra.mxu0 0
    %4680 = vmatprep.subr.bf16.mxu0 0
    %4681 = vmatpush1.bf16.msra.mxu0 0
    %4682 = vmatprep.subr.bf16.mxu0 0
    %4683 = vmatpush1.bf16.msra.mxu0 0
    %4684 = vmatprep.subr.bf16.mxu0 0
    %4685 = vmatpush1.bf16.msra.mxu0 0
    %4686 = vmatprep.subr.bf16.mxu0 0
    %4687 = vmatpush1.bf16.msra.mxu0 0
    %4688 = vmatprep.subr.bf16.mxu0 0
    %4689 = vmatpush1.bf16.msra.mxu0 0
    %4690 = vmatprep.subr.bf16.mxu0 0
    %4691 = vmatpush1.bf16.msra.mxu0 0
    %4692 = vmatprep.subr.bf16.mxu0 0
    %4693 = vmatpush1.bf16.msra.mxu0 0
    %4694 = vmatprep.subr.bf16.mxu0 0
    %4695 = vmatpush1.bf16.msra.mxu0 0
    %4696 = vmatprep.subr.bf16.mxu0 0
    %4697 = vmatpush1.bf16.msra.mxu0 0
    %4698 = vmatprep.subr.bf16.mxu0 0
    %4699 = vmatpush1.bf16.msra.mxu0 0
    %4700 = vmatprep.subr.bf16.mxu0 0
    %4701 = vmatpush1.bf16.msra.mxu0 0
    %4702 = vmatprep.mubr.bf16.mxu0 0
    %4703 = vmatmul.mubr.bf16.gmra.mrb[0].mxu0 %v4659
    %v4704 = vpop.f32.mrb[0].mxu0
    %v4705 = vadd.f32 0.0, %v4704
    %v4706 = vpop.f32.mrb[0].mxu0
    %v4707 = vpop.f32.mrb[0].mxu0
    %v4708 = vadd.f32 0.0, %v4707
    %v4709 = vpop.f32.mrb[0].mxu0
    %4710 = vmatprep.mubr.bf16.mxu0 0
    %4711 = vmatmul.mubr.bf16.gmra.mrb[0].mxu0 %v4662
    %v4712 = vpop.f32.mrb[0].mxu0
    %v4713 = vadd.f32 0.0, %v4712
    %v4714 = vpop.f32.mrb[0].mxu0
    %v4715 = vpop.f32.mrb[0].mxu0
    %v4716 = vadd.f32 0.0, %v4715
    %v4717 = vpop.f32.mrb[0].mxu0
    %4718 = vmatprep.mubr.bf16.mxu0 0
    %4719 = vmatmul.mubr.bf16.gmra.mrb[0].mxu0 %v4665
    %v4720 = vpop.f32.mrb[0].mxu0
    %v4721 = vadd.f32 0.0, %v4720
    %v4722 = vpop.f32.mrb[0].mxu0
    %v4723 = vpop.f32.mrb[0].mxu0
    %v4724 = vadd.f32 0.0, %v4723
    %v4725 = vpop.f32.mrb[0].mxu0
    %4726 = vmatprep.mubr.bf16.mxu0 0
    %4727 = vmatmul.mubr.bf16.gmra.mrb[0].mxu0 %v4668
    %v4728 = vpop.f32.mrb[0].mxu0
    %v4729 = vadd.f32 0.0, %v4728
    %v4730 = vpop.f32.mrb[0].mxu0
    %v4731 = vpop.f32.mrb[0].mxu0
    %v4732 = vadd.f32 0.0, %v4731
    %v4733 = vpop.f32.mrb[0].mxu0
    %4734 = vdwg.mxu0
    %v4735 = vld [vmem:[#allocation7] sm:$0xff]
    %v4736 = vld [vmem:[%s245] sm:$0xff]
    %v4738 = vsel %vm247, %v4713, 0
    %v4741 = vsel %vm247, %v4716, 0
    %4743 = vmatprep.subr.mxu0 0.0
    %4744 = vmatpush1.msra.mxu0 %v4736
    %4745 = vmatprep.subr.mxu0 0.0
    %4746 = vmatpush1.msra.mxu0 0.0
    %4747 = vmatprep.subr.mxu0 0.0
    %4748 = vmatpush1.msra.mxu0 0.0
    %4749 = vmatprep.subr.mxu0 0.0
    %4750 = vmatpush1.msra.mxu0 0.0
    %4751 = vmatprep.subr.mxu0 0.0
    %4752 = vmatpush1.msra.mxu0 0.0
    %4753 = vmatprep.subr.mxu0 0.0
    %4754 = vmatpush1.msra.mxu0 0.0
    %4755 = vmatprep.subr.mxu0 0.0
    %4756 = vmatpush1.msra.mxu0 0.0
    %4757 = vmatprep.subr.mxu0 0.0
    %4758 = vmatpush1.msra.mxu0 0.0
    %4759 = vmatprep.subr.mxu0 0.0
    %4760 = vmatpush1.msra.mxu0 0.0
    %4761 = vmatprep.subr.mxu0 0.0
    %4762 = vmatpush1.msra.mxu0 0.0
    %4763 = vmatprep.subr.mxu0 0.0
    %4764 = vmatpush1.msra.mxu0 0.0
    %4765 = vmatprep.subr.mxu0 0.0
    %4766 = vmatpush1.msra.mxu0 0.0
    %4767 = vmatprep.subr.mxu0 0.0
    %4768 = vmatpush1.msra.mxu0 0.0
    %4769 = vmatprep.subr.mxu0 0.0
    %4770 = vmatpush1.msra.mxu0 0.0
    %4771 = vmatprep.subr.mxu0 0.0
    %4772 = vmatpush1.msra.mxu0 0.0
    %4773 = vmatprep.subr.mxu0 0.0
    %4774 = vmatpush1.msra.mxu0 0.0
    %4775 = vmatprep.subr.mxu0 0.0
    %4776 = vmatpush1.msra.mxu0 0.0
    %4777 = vmatprep.subr.mxu0 0.0
    %4778 = vmatpush1.msra.mxu0 0.0
    %4779 = vmatprep.subr.mxu0 0.0
    %4780 = vmatpush1.msra.mxu0 0.0
    %4781 = vmatprep.subr.mxu0 0.0
    %4782 = vmatpush1.msra.mxu0 0.0
    %4783 = vmatprep.subr.mxu0 0.0
    %4784 = vmatpush1.msra.mxu0 0.0
    %4785 = vmatprep.subr.mxu0 0.0
    %4786 = vmatpush1.msra.mxu0 0.0
    %4787 = vmatprep.subr.mxu0 0.0
    %4788 = vmatpush1.msra.mxu0 0.0
    %4789 = vmatprep.subr.mxu0 0.0
    %4790 = vmatpush1.msra.mxu0 0.0
    %4791 = vmatprep.subr.mxu0 0.0
    %4792 = vmatpush1.msra.mxu0 0.0
    %4793 = vmatprep.subr.mxu0 0.0
    %4794 = vmatpush1.msra.mxu0 0.0
    %4795 = vmatprep.subr.mxu0 0.0
    %4796 = vmatpush1.msra.mxu0 0.0
    %4797 = vmatprep.subr.mxu0 0.0
    %4798 = vmatpush1.msra.mxu0 0.0
    %4799 = vmatprep.subr.mxu0 0.0
    %4800 = vmatpush1.msra.mxu0 0.0
    %4801 = vmatprep.subr.mxu0 0.0
    %4802 = vmatpush1.msra.mxu0 0.0
    %4803 = vmatprep.subr.mxu0 0.0
    %4804 = vmatpush1.msra.mxu0 0.0
    %4805 = vmatprep.subr.mxu0 0.0
    %4806 = vmatpush1.msra.mxu0 0.0
    %4807 = vmatprep.mubr.f32.mxu0 0.0
    %4808 = vmatmul.mubr.f32.gmra.mrb[0].mxu0 %v4738
    %v4809 = vpop.f32.mrb[0].mxu0
    %v4810 = vadd.f32 0.0, %v4809
    %v4811 = vpop.f32.mrb[0].mxu0
    %4812 = vmatprep.mubr.f32.mxu0 0.0
    %4813 = vmatmul.mubr.f32.gmra.mrb[0].mxu0 %v4741
    %v4814 = vpop.f32.mrb[0].mxu0
    %v4815 = vadd.f32 0.0, %v4814
    %v4816 = vpop.f32.mrb[0].mxu0
    %4817 = vdwg.mxu0
    %v4819 = vsel %vm247, %v4705, 0
    %v4822 = vsel %vm247, %v4708, 0
    %4824 = vmatprep.subr.mxu0 0.0
    %4825 = vmatpush1.msra.mxu0 %v4735
    %4826 = vmatprep.subr.mxu0 0.0
    %4827 = vmatpush1.msra.mxu0 0.0
    %4828 = vmatprep.subr.mxu0 0.0
    %4829 = vmatpush1.msra.mxu0 0.0
    %4830 = vmatprep.subr.mxu0 0.0
    %4831 = vmatpush1.msra.mxu0 0.0
    %4832 = vmatprep.subr.mxu0 0.0
    %4833 = vmatpush1.msra.mxu0 0.0
    %4834 = vmatprep.subr.mxu0 0.0
    %4835 = vmatpush1.msra.mxu0 0.0
    %4836 = vmatprep.subr.mxu0 0.0
    %4837 = vmatpush1.msra.mxu0 0.0
    %4838 = vmatprep.subr.mxu0 0.0
    %4839 = vmatpush1.msra.mxu0 0.0
    %4840 = vmatprep.subr.mxu0 0.0
    %4841 = vmatpush1.msra.mxu0 0.0
    %4842 = vmatprep.subr.mxu0 0.0
    %4843 = vmatpush1.msra.mxu0 0.0
    %4844 = vmatprep.subr.mxu0 0.0
    %4845 = vmatpush1.msra.mxu0 0.0
    %4846 = vmatprep.subr.mxu0 0.0
    %4847 = vmatpush1.msra.mxu0 0.0
    %4848 = vmatprep.subr.mxu0 0.0
    %4849 = vmatpush1.msra.mxu0 0.0
    %4850 = vmatprep.subr.mxu0 0.0
    %4851 = vmatpush1.msra.mxu0 0.0
    %4852 = vmatprep.subr.mxu0 0.0
    %4853 = vmatpush1.msra.mxu0 0.0
    %4854 = vmatprep.subr.mxu0 0.0
    %4855 = vmatpush1.msra.mxu0 0.0
    %4856 = vmatprep.subr.mxu0 0.0
    %4857 = vmatpush1.msra.mxu0 0.0
    %4858 = vmatprep.subr.mxu0 0.0
    %4859 = vmatpush1.msra.mxu0 0.0
    %4860 = vmatprep.subr.mxu0 0.0
    %4861 = vmatpush1.msra.mxu0 0.0
    %4862 = vmatprep.subr.mxu0 0.0
    %4863 = vmatpush1.msra.mxu0 0.0
    %4864 = vmatprep.subr.mxu0 0.0
    %4865 = vmatpush1.msra.mxu0 0.0
    %4866 = vmatprep.subr.mxu0 0.0
    %4867 = vmatpush1.msra.mxu0 0.0
    %4868 = vmatprep.subr.mxu0 0.0
    %4869 = vmatpush1.msra.mxu0 0.0
    %4870 = vmatprep.subr.mxu0 0.0
    %4871 = vmatpush1.msra.mxu0 0.0
    %4872 = vmatprep.subr.mxu0 0.0
    %4873 = vmatpush1.msra.mxu0 0.0
    %4874 = vmatprep.subr.mxu0 0.0
    %4875 = vmatpush1.msra.mxu0 0.0
    %4876 = vmatprep.subr.mxu0 0.0
    %4877 = vmatpush1.msra.mxu0 0.0
    %4878 = vmatprep.subr.mxu0 0.0
    %4879 = vmatpush1.msra.mxu0 0.0
    %4880 = vmatprep.subr.mxu0 0.0
    %4881 = vmatpush1.msra.mxu0 0.0
    %4882 = vmatprep.subr.mxu0 0.0
    %4883 = vmatpush1.msra.mxu0 0.0
    %4884 = vmatprep.subr.mxu0 0.0
    %4885 = vmatpush1.msra.mxu0 0.0
    %4886 = vmatprep.subr.mxu0 0.0
    %4887 = vmatpush1.msra.mxu0 0.0
    %4888 = vmatprep.mubr.f32.mxu0 0.0
    %4889 = vmatmul.mubr.f32.gmra.mrb[0].mxu0 %v4819
    %v4890 = vpop.f32.mrb[0].mxu0
    %v4891 = vadd.f32 %v4810, %v4890
    %v4892 = vpop.f32.mrb[0].mxu0
    %4893 = vmatprep.mubr.f32.mxu0 0.0
    %4894 = vmatmul.mubr.f32.gmra.mrb[0].mxu0 %v4822
    %v4895 = vpop.f32.mrb[0].mxu0
    %v4896 = vadd.f32 %v4815, %v4895
    %v4897 = vpop.f32.mrb[0].mxu0
    %4898 = vdwg.mxu0
    %v4899 = vadd.f32 %v4891, %v413
    %v4900 = vadd.f32 %v4896, %v418
    %v4901 = vpack.c.bf16 %v4900, %v4899
    %4902 = vst.msk [vmem:[#allocation2 + $0x28] sm:$0xff] %vm166, %v4901
    %v4903 = vld [vmem:[#allocation7] sm:$0xff]
    %v4904 = vld [vmem:[%s245] sm:$0xff]
    %4905 = vrot.lane.b32.xlu0 %v4713, 120
    %v4906 = vpop.permute.xlu0 %4905
    %4907 = vrot.lane.b32.xlu0 %v4716, 120
    %v4908 = vpop.permute.xlu0 %4907
    %v4909 = vsel %vm247, %v4906, 0
    %v4911 = vsel %vm247, %v4908, 0
    %4913 = vmatprep.subr.mxu0 0.0
    %4914 = vmatpush1.msra.mxu0 %v4904
    %4915 = vmatprep.subr.mxu0 0.0
    %4916 = vmatpush1.msra.mxu0 0.0
    %4917 = vmatprep.subr.mxu0 0.0
    %4918 = vmatpush1.msra.mxu0 0.0
    %4919 = vmatprep.subr.mxu0 0.0
    %4920 = vmatpush1.msra.mxu0 0.0
    %4921 = vmatprep.subr.mxu0 0.0
    %4922 = vmatpush1.msra.mxu0 0.0
    %4923 = vmatprep.subr.mxu0 0.0
    %4924 = vmatpush1.msra.mxu0 0.0
    %4925 = vmatprep.subr.mxu0 0.0
    %4926 = vmatpush1.msra.mxu0 0.0
    %4927 = vmatprep.subr.mxu0 0.0
    %4928 = vmatpush1.msra.mxu0 0.0
    %4929 = vmatprep.subr.mxu0 0.0
    %4930 = vmatpush1.msra.mxu0 0.0
    %4931 = vmatprep.subr.mxu0 0.0
    %4932 = vmatpush1.msra.mxu0 0.0
    %4933 = vmatprep.subr.mxu0 0.0
    %4934 = vmatpush1.msra.mxu0 0.0
    %4935 = vmatprep.subr.mxu0 0.0
    %4936 = vmatpush1.msra.mxu0 0.0
    %4937 = vmatprep.subr.mxu0 0.0
    %4938 = vmatpush1.msra.mxu0 0.0
    %4939 = vmatprep.subr.mxu0 0.0
    %4940 = vmatpush1.msra.mxu0 0.0
    %4941 = vmatprep.subr.mxu0 0.0
    %4942 = vmatpush1.msra.mxu0 0.0
    %4943 = vmatprep.subr.mxu0 0.0
    %4944 = vmatpush1.msra.mxu0 0.0
    %4945 = vmatprep.subr.mxu0 0.0
    %4946 = vmatpush1.msra.mxu0 0.0
    %4947 = vmatprep.subr.mxu0 0.0
    %4948 = vmatpush1.msra.mxu0 0.0
    %4949 = vmatprep.subr.mxu0 0.0
    %4950 = vmatpush1.msra.mxu0 0.0
    %4951 = vmatprep.subr.mxu0 0.0
    %4952 = vmatpush1.msra.mxu0 0.0
    %4953 = vmatprep.subr.mxu0 0.0
    %4954 = vmatpush1.msra.mxu0 0.0
    %4955 = vmatprep.subr.mxu0 0.0
    %4956 = vmatpush1.msra.mxu0 0.0
    %4957 = vmatprep.subr.mxu0 0.0
    %4958 = vmatpush1.msra.mxu0 0.0
    %4959 = vmatprep.subr.mxu0 0.0
    %4960 = vmatpush1.msra.mxu0 0.0
    %4961 = vmatprep.subr.mxu0 0.0
    %4962 = vmatpush1.msra.mxu0 0.0
    %4963 = vmatprep.subr.mxu0 0.0
    %4964 = vmatpush1.msra.mxu0 0.0
    %4965 = vmatprep.subr.mxu0 0.0
    %4966 = vmatpush1.msra.mxu0 0.0
    %4967 = vmatprep.subr.mxu0 0.0
    %4968 = vmatpush1.msra.mxu0 0.0
    %4969 = vmatprep.subr.mxu0 0.0
    %4970 = vmatpush1.msra.mxu0 0.0
    %4971 = vmatprep.subr.mxu0 0.0
    %4972 = vmatpush1.msra.mxu0 0.0
    %4973 = vmatprep.subr.mxu0 0.0
    %4974 = vmatpush1.msra.mxu0 0.0
    %4975 = vmatprep.subr.mxu0 0.0
    %4976 = vmatpush1.msra.mxu0 0.0
    %4977 = vmatprep.mubr.f32.mxu0 0.0
    %4978 = vmatmul.mubr.f32.gmra.mrb[0].mxu0 %v4909
    %v4979 = vpop.f32.mrb[0].mxu0
    %v4980 = vadd.f32 0.0, %v4979
    %v4981 = vpop.f32.mrb[0].mxu0
    %4982 = vmatprep.mubr.f32.mxu0 0.0
    %4983 = vmatmul.mubr.f32.gmra.mrb[0].mxu0 %v4911
    %v4984 = vpop.f32.mrb[0].mxu0
    %v4985 = vadd.f32 0.0, %v4984
    %v4986 = vpop.f32.mrb[0].mxu0
    %4987 = vdwg.mxu0
    %4988 = vrot.lane.b32.xlu0 %v4705, 120
    %v4989 = vpop.permute.xlu0 %4988
    %4990 = vrot.lane.b32.xlu0 %v4708, 120
    %v4991 = vpop.permute.xlu0 %4990
    %v4992 = vsel %vm247, %v4989, 0
    %v4994 = vsel %vm247, %v4991, 0
    %4996 = vmatprep.subr.mxu0 0.0
    %4997 = vmatpush1.msra.mxu0 %v4903
    %4998 = vmatprep.subr.mxu0 0.0
    %4999 = vmatpush1.msra.mxu0 0.0
    %5000 = vmatprep.subr.mxu0 0.0
    %5001 = vmatpush1.msra.mxu0 0.0
    %5002 = vmatprep.subr.mxu0 0.0
    %5003 = vmatpush1.msra.mxu0 0.0
    %5004 = vmatprep.subr.mxu0 0.0
    %5005 = vmatpush1.msra.mxu0 0.0
    %5006 = vmatprep.subr.mxu0 0.0
    %5007 = vmatpush1.msra.mxu0 0.0
    %5008 = vmatprep.subr.mxu0 0.0
    %5009 = vmatpush1.msra.mxu0 0.0
    %5010 = vmatprep.subr.mxu0 0.0
    %5011 = vmatpush1.msra.mxu0 0.0
    %5012 = vmatprep.subr.mxu0 0.0
    %5013 = vmatpush1.msra.mxu0 0.0
    %5014 = vmatprep.subr.mxu0 0.0
    %5015 = vmatpush1.msra.mxu0 0.0
    %5016 = vmatprep.subr.mxu0 0.0
    %5017 = vmatpush1.msra.mxu0 0.0
    %5018 = vmatprep.subr.mxu0 0.0
    %5019 = vmatpush1.msra.mxu0 0.0
    %5020 = vmatprep.subr.mxu0 0.0
    %5021 = vmatpush1.msra.mxu0 0.0
    %5022 = vmatprep.subr.mxu0 0.0
    %5023 = vmatpush1.msra.mxu0 0.0
    %5024 = vmatprep.subr.mxu0 0.0
    %5025 = vmatpush1.msra.mxu0 0.0
    %5026 = vmatprep.subr.mxu0 0.0
    %5027 = vmatpush1.msra.mxu0 0.0
    %5028 = vmatprep.subr.mxu0 0.0
    %5029 = vmatpush1.msra.mxu0 0.0
    %5030 = vmatprep.subr.mxu0 0.0
    %5031 = vmatpush1.msra.mxu0 0.0
    %5032 = vmatprep.subr.mxu0 0.0
    %5033 = vmatpush1.msra.mxu0 0.0
    %5034 = vmatprep.subr.mxu0 0.0
    %5035 = vmatpush1.msra.mxu0 0.0
    %5036 = vmatprep.subr.mxu0 0.0
    %5037 = vmatpush1.msra.mxu0 0.0
    %5038 = vmatprep.subr.mxu0 0.0
    %5039 = vmatpush1.msra.mxu0 0.0
    %5040 = vmatprep.subr.mxu0 0.0
    %5041 = vmatpush1.msra.mxu0 0.0
    %5042 = vmatprep.subr.mxu0 0.0
    %5043 = vmatpush1.msra.mxu0 0.0
    %5044 = vmatprep.subr.mxu0 0.0
    %5045 = vmatpush1.msra.mxu0 0.0
    %5046 = vmatprep.subr.mxu0 0.0
    %5047 = vmatpush1.msra.mxu0 0.0
    %5048 = vmatprep.subr.mxu0 0.0
    %5049 = vmatpush1.msra.mxu0 0.0
    %5050 = vmatprep.subr.mxu0 0.0
    %5051 = vmatpush1.msra.mxu0 0.0
    %5052 = vmatprep.subr.mxu0 0.0
    %5053 = vmatpush1.msra.mxu0 0.0
    %5054 = vmatprep.subr.mxu0 0.0
    %5055 = vmatpush1.msra.mxu0 0.0
    %5056 = vmatprep.subr.mxu0 0.0
    %5057 = vmatpush1.msra.mxu0 0.0
    %5058 = vmatprep.subr.mxu0 0.0
    %5059 = vmatpush1.msra.mxu0 0.0
    %5060 = vmatprep.mubr.f32.mxu0 0.0
    %5061 = vmatmul.mubr.f32.gmra.mrb[0].mxu0 %v4992
    %v5062 = vpop.f32.mrb[0].mxu0
    %v5063 = vadd.f32 %v4980, %v5062
    %v5064 = vpop.f32.mrb[0].mxu0
    %5065 = vmatprep.mubr.f32.mxu0 0.0
    %5066 = vmatmul.mubr.f32.gmra.mrb[0].mxu0 %v4994
    %v5067 = vpop.f32.mrb[0].mxu0
    %v5068 = vadd.f32 %v4985, %v5067
    %v5069 = vpop.f32.mrb[0].mxu0
    %5070 = vdwg.mxu0
    %v5071 = vadd.f32 %v5063, %v413
    %v5072 = vadd.f32 %v5068, %v418
    %v5073 = vpack.c.bf16 %v5072, %v5071
    %5075 = vrot.lane.b32.xlu0 %v5073, 32
    %v5076 = vpop.permute.xlu0 %5075
    %5078 = vst.msk [vmem:[#allocation2 + $0x28] sm:$0xff] %vm599, %v5076
    %v5079 = vld [vmem:[#allocation7] sm:$0xff]
    %v5080 = vld [vmem:[%s245] sm:$0xff]
    %5081 = vrot.lane.b32.xlu0 %v4713, 112
    %v5082 = vpop.permute.xlu0 %5081
    %5083 = vrot.lane.b32.xlu0 %v4716, 112
    %v5084 = vpop.permute.xlu0 %5083
    %v5085 = vsel %vm247, %v5082, 0
    %v5087 = vsel %vm247, %v5084, 0
    %5089 = vmatprep.subr.mxu0 0.0
    %5090 = vmatpush1.msra.mxu0 %v5080
    %5091 = vmatprep.subr.mxu0 0.0
    %5092 = vmatpush1.msra.mxu0 0.0
    %5093 = vmatprep.subr.mxu0 0.0
    %5094 = vmatpush1.msra.mxu0 0.0
    %5095 = vmatprep.subr.mxu0 0.0
    %5096 = vmatpush1.msra.mxu0 0.0
    %5097 = vmatprep.subr.mxu0 0.0
    %5098 = vmatpush1.msra.mxu0 0.0
    %5099 = vmatprep.subr.mxu0 0.0
    %5100 = vmatpush1.msra.mxu0 0.0
    %5101 = vmatprep.subr.mxu0 0.0
    %5102 = vmatpush1.msra.mxu0 0.0
    %5103 = vmatprep.subr.mxu0 0.0
    %5104 = vmatpush1.msra.mxu0 0.0
    %5105 = vmatprep.subr.mxu0 0.0
    %5106 = vmatpush1.msra.mxu0 0.0
    %5107 = vmatprep.subr.mxu0 0.0
    %5108 = vmatpush1.msra.mxu0 0.0
    %5109 = vmatprep.subr.mxu0 0.0
    %5110 = vmatpush1.msra.mxu0 0.0
    %5111 = vmatprep.subr.mxu0 0.0
    %5112 = vmatpush1.msra.mxu0 0.0
    %5113 = vmatprep.subr.mxu0 0.0
    %5114 = vmatpush1.msra.mxu0 0.0
    %5115 = vmatprep.subr.mxu0 0.0
    %5116 = vmatpush1.msra.mxu0 0.0
    %5117 = vmatprep.subr.mxu0 0.0
    %5118 = vmatpush1.msra.mxu0 0.0
    %5119 = vmatprep.subr.mxu0 0.0
    %5120 = vmatpush1.msra.mxu0 0.0
    %5121 = vmatprep.subr.mxu0 0.0
    %5122 = vmatpush1.msra.mxu0 0.0
    %5123 = vmatprep.subr.mxu0 0.0
    %5124 = vmatpush1.msra.mxu0 0.0
    %5125 = vmatprep.subr.mxu0 0.0
    %5126 = vmatpush1.msra.mxu0 0.0
    %5127 = vmatprep.subr.mxu0 0.0
    %5128 = vmatpush1.msra.mxu0 0.0
    %5129 = vmatprep.subr.mxu0 0.0
    %5130 = vmatpush1.msra.mxu0 0.0
    %5131 = vmatprep.subr.mxu0 0.0
    %5132 = vmatpush1.msra.mxu0 0.0
    %5133 = vmatprep.subr.mxu0 0.0
    %5134 = vmatpush1.msra.mxu0 0.0
    %5135 = vmatprep.subr.mxu0 0.0
    %5136 = vmatpush1.msra.mxu0 0.0
    %5137 = vmatprep.subr.mxu0 0.0
    %5138 = vmatpush1.msra.mxu0 0.0
    %5139 = vmatprep.subr.mxu0 0.0
    %5140 = vmatpush1.msra.mxu0 0.0
    %5141 = vmatprep.subr.mxu0 0.0
    %5142 = vmatpush1.msra.mxu0 0.0
    %5143 = vmatprep.subr.mxu0 0.0
    %5144 = vmatpush1.msra.mxu0 0.0
    %5145 = vmatprep.subr.mxu0 0.0
    %5146 = vmatpush1.msra.mxu0 0.0
    %5147 = vmatprep.subr.mxu0 0.0
    %5148 = vmatpush1.msra.mxu0 0.0
    %5149 = vmatprep.subr.mxu0 0.0
    %5150 = vmatpush1.msra.mxu0 0.0
    %5151 = vmatprep.subr.mxu0 0.0
    %5152 = vmatpush1.msra.mxu0 0.0
    %5153 = vmatprep.mubr.f32.mxu0 0.0
    %5154 = vmatmul.mubr.f32.gmra.mrb[0].mxu0 %v5085
    %v5155 = vpop.f32.mrb[0].mxu0
    %v5156 = vadd.f32 0.0, %v5155
    %v5157 = vpop.f32.mrb[0].mxu0
    %5158 = vmatprep.mubr.f32.mxu0 0.0
    %5159 = vmatmul.mubr.f32.gmra.mrb[0].mxu0 %v5087
    %v5160 = vpop.f32.mrb[0].mxu0
    %v5161 = vadd.f32 0.0, %v5160
    %v5162 = vpop.f32.mrb[0].mxu0
    %5163 = vdwg.mxu0
    %5164 = vrot.lane.b32.xlu0 %v4705, 112
    %v5165 = vpop.permute.xlu0 %5164
    %5166 = vrot.lane.b32.xlu0 %v4708, 112
    %v5167 = vpop.permute.xlu0 %5166
    %v5168 = vsel %vm247, %v5165, 0
    %v5170 = vsel %vm247, %v5167, 0
    %5172 = vmatprep.subr.mxu0 0.0
    %5173 = vmatpush1.msra.mxu0 %v5079
    %5174 = vmatprep.subr.mxu0 0.0
    %5175 = vmatpush1.msra.mxu0 0.0
    %5176 = vmatprep.subr.mxu0 0.0
    %5177 = vmatpush1.msra.mxu0 0.0
    %5178 = vmatprep.subr.mxu0 0.0
    %5179 = vmatpush1.msra.mxu0 0.0
    %5180 = vmatprep.subr.mxu0 0.0
    %5181 = vmatpush1.msra.mxu0 0.0
    %5182 = vmatprep.subr.mxu0 0.0
    %5183 = vmatpush1.msra.mxu0 0.0
    %5184 = vmatprep.subr.mxu0 0.0
    %5185 = vmatpush1.msra.mxu0 0.0
    %5186 = vmatprep.subr.mxu0 0.0
    %5187 = vmatpush1.msra.mxu0 0.0
    %5188 = vmatprep.subr.mxu0 0.0
    %5189 = vmatpush1.msra.mxu0 0.0
    %5190 = vmatprep.subr.mxu0 0.0
    %5191 = vmatpush1.msra.mxu0 0.0
    %5192 = vmatprep.subr.mxu0 0.0
    %5193 = vmatpush1.msra.mxu0 0.0
    %5194 = vmatprep.subr.mxu0 0.0
    %5195 = vmatpush1.msra.mxu0 0.0
    %5196 = vmatprep.subr.mxu0 0.0
    %5197 = vmatpush1.msra.mxu0 0.0
    %5198 = vmatprep.subr.mxu0 0.0
    %5199 = vmatpush1.msra.mxu0 0.0
    %5200 = vmatprep.subr.mxu0 0.0
    %5201 = vmatpush1.msra.mxu0 0.0
    %5202 = vmatprep.subr.mxu0 0.0
    %5203 = vmatpush1.msra.mxu0 0.0
    %5204 = vmatprep.subr.mxu0 0.0
    %5205 = vmatpush1.msra.mxu0 0.0
    %5206 = vmatprep.subr.mxu0 0.0
    %5207 = vmatpush1.msra.mxu0 0.0
    %5208 = vmatprep.subr.mxu0 0.0
    %5209 = vmatpush1.msra.mxu0 0.0
    %5210 = vmatprep.subr.mxu0 0.0
    %5211 = vmatpush1.msra.mxu0 0.0
    %5212 = vmatprep.subr.mxu0 0.0
    %5213 = vmatpush1.msra.mxu0 0.0
    %5214 = vmatprep.subr.mxu0 0.0
    %5215 = vmatpush1.msra.mxu0 0.0
    %5216 = vmatprep.subr.mxu0 0.0
    %5217 = vmatpush1.msra.mxu0 0.0
    %5218 = vmatprep.subr.mxu0 0.0
    %5219 = vmatpush1.msra.mxu0 0.0
    %5220 = vmatprep.subr.mxu0 0.0
    %5221 = vmatpush1.msra.mxu0 0.0
    %5222 = vmatprep.subr.mxu0 0.0
    %5223 = vmatpush1.msra.mxu0 0.0
    %5224 = vmatprep.subr.mxu0 0.0
    %5225 = vmatpush1.msra.mxu0 0.0
    %5226 = vmatprep.subr.mxu0 0.0
    %5227 = vmatpush1.msra.mxu0 0.0
    %5228 = vmatprep.subr.mxu0 0.0
    %5229 = vmatpush1.msra.mxu0 0.0
    %5230 = vmatprep.subr.mxu0 0.0
    %5231 = vmatpush1.msra.mxu0 0.0
    %5232 = vmatprep.subr.mxu0 0.0
    %5233 = vmatpush1.msra.mxu0 0.0
    %5234 = vmatprep.subr.mxu0 0.0
    %5235 = vmatpush1.msra.mxu0 0.0
    %5236 = vmatprep.mubr.f32.mxu0 0.0
    %5237 = vmatmul.mubr.f32.gmra.mrb[0].mxu0 %v5168
    %v5238 = vpop.f32.mrb[0].mxu0
    %v5239 = vadd.f32 %v5156, %v5238
    %v5240 = vpop.f32.mrb[0].mxu0
    %5241 = vmatprep.mubr.f32.mxu0 0.0
    %5242 = vmatmul.mubr.f32.gmra.mrb[0].mxu0 %v5170
    %v5243 = vpop.f32.mrb[0].mxu0
    %v5244 = vadd.f32 %v5161, %v5243
    %v5245 = vpop.f32.mrb[0].mxu0
    %5246 = vdwg.mxu0
    %v5247 = vadd.f32 %v5239, %v413
    %v5248 = vadd.f32 %v5244, %v418
    %v5249 = vpack.c.bf16 %v5248, %v5247
    %5251 = vrot.lane.b32.xlu0 %v5249, 64
    %v5252 = vpop.permute.xlu0 %5251
    %5254 = vst.msk [vmem:[#allocation2 + $0x28] sm:$0xff] %vm776, %v5252
    %v5255 = vld [vmem:[#allocation7] sm:$0xff]
    %v5256 = vld [vmem:[%s245] sm:$0xff]
    %5257 = vrot.lane.b32.xlu0 %v4713, 104
    %v5258 = vpop.permute.xlu0 %5257
    %5259 = vrot.lane.b32.xlu0 %v4716, 104
    %v5260 = vpop.permute.xlu0 %5259
    %v5261 = vsel %vm247, %v5258, 0
    %v5263 = vsel %vm247, %v5260, 0
    %5265 = vmatprep.subr.mxu0 0.0
    %5266 = vmatpush1.msra.mxu0 %v5256
    %5267 = vmatprep.subr.mxu0 0.0
    %5268 = vmatpush1.msra.mxu0 0.0
    %5269 = vmatprep.subr.mxu0 0.0
    %5270 = vmatpush1.msra.mxu0 0.0
    %5271 = vmatprep.subr.mxu0 0.0
    %5272 = vmatpush1.msra.mxu0 0.0
    %5273 = vmatprep.subr.mxu0 0.0
    %5274 = vmatpush1.msra.mxu0 0.0
    %5275 = vmatprep.subr.mxu0 0.0
    %5276 = vmatpush1.msra.mxu0 0.0
    %5277 = vmatprep.subr.mxu0 0.0
    %5278 = vmatpush1.msra.mxu0 0.0
    %5279 = vmatprep.subr.mxu0 0.0
    %5280 = vmatpush1.msra.mxu0 0.0
    %5281 = vmatprep.subr.mxu0 0.0
    %5282 = vmatpush1.msra.mxu0 0.0
    %5283 = vmatprep.subr.mxu0 0.0
    %5284 = vmatpush1.msra.mxu0 0.0
    %5285 = vmatprep.subr.mxu0 0.0
    %5286 = vmatpush1.msra.mxu0 0.0
    %5287 = vmatprep.subr.mxu0 0.0
    %5288 = vmatpush1.msra.mxu0 0.0
    %5289 = vmatprep.subr.mxu0 0.0
    %5290 = vmatpush1.msra.mxu0 0.0
    %5291 = vmatprep.subr.mxu0 0.0
    %5292 = vmatpush1.msra.mxu0 0.0
    %5293 = vmatprep.subr.mxu0 0.0
    %5294 = vmatpush1.msra.mxu0 0.0
    %5295 = vmatprep.subr.mxu0 0.0
    %5296 = vmatpush1.msra.mxu0 0.0
    %5297 = vmatprep.subr.mxu0 0.0
    %5298 = vmatpush1.msra.mxu0 0.0
    %5299 = vmatprep.subr.mxu0 0.0
    %5300 = vmatpush1.msra.mxu0 0.0
    %5301 = vmatprep.subr.mxu0 0.0
    %5302 = vmatpush1.msra.mxu0 0.0
    %5303 = vmatprep.subr.mxu0 0.0
    %5304 = vmatpush1.msra.mxu0 0.0
    %5305 = vmatprep.subr.mxu0 0.0
    %5306 = vmatpush1.msra.mxu0 0.0
    %5307 = vmatprep.subr.mxu0 0.0
    %5308 = vmatpush1.msra.mxu0 0.0
    %5309 = vmatprep.subr.mxu0 0.0
    %5310 = vmatpush1.msra.mxu0 0.0
    %5311 = vmatprep.subr.mxu0 0.0
    %5312 = vmatpush1.msra.mxu0 0.0
    %5313 = vmatprep.subr.mxu0 0.0
    %5314 = vmatpush1.msra.mxu0 0.0
    %5315 = vmatprep.subr.mxu0 0.0
    %5316 = vmatpush1.msra.mxu0 0.0
    %5317 = vmatprep.subr.mxu0 0.0
    %5318 = vmatpush1.msra.mxu0 0.0
    %5319 = vmatprep.subr.mxu0 0.0
    %5320 = vmatpush1.msra.mxu0 0.0
    %5321 = vmatprep.subr.mxu0 0.0
    %5322 = vmatpush1.msra.mxu0 0.0
    %5323 = vmatprep.subr.mxu0 0.0
    %5324 = vmatpush1.msra.mxu0 0.0
    %5325 = vmatprep.subr.mxu0 0.0
    %5326 = vmatpush1.msra.mxu0 0.0
    %5327 = vmatprep.subr.mxu0 0.0
    %5328 = vmatpush1.msra.mxu0 0.0
    %5329 = vmatprep.mubr.f32.mxu0 0.0
    %5330 = vmatmul.mubr.f32.gmra.mrb[0].mxu0 %v5261
    %v5331 = vpop.f32.mrb[0].mxu0
    %v5332 = vadd.f32 0.0, %v5331
    %v5333 = vpop.f32.mrb[0].mxu0
    %5334 = vmatprep.mubr.f32.mxu0 0.0
    %5335 = vmatmul.mubr.f32.gmra.mrb[0].mxu0 %v5263
    %v5336 = vpop.f32.mrb[0].mxu0
    %v5337 = vadd.f32 0.0, %v5336
    %v5338 = vpop.f32.mrb[0].mxu0
    %5339 = vdwg.mxu0
    %5340 = vrot.lane.b32.xlu0 %v4705, 104
    %v5341 = vpop.permute.xlu0 %5340
    %5342 = vrot.lane.b32.xlu0 %v4708, 104
    %v5343 = vpop.permute.xlu0 %5342
    %v5344 = vsel %vm247, %v5341, 0
    %v5346 = vsel %vm247, %v5343, 0
    %5348 = vmatprep.subr.mxu0 0.0
    %5349 = vmatpush1.msra.mxu0 %v5255
    %5350 = vmatprep.subr.mxu0 0.0
    %5351 = vmatpush1.msra.mxu0 0.0
    %5352 = vmatprep.subr.mxu0 0.0
    %5353 = vmatpush1.msra.mxu0 0.0
    %5354 = vmatprep.subr.mxu0 0.0
    %5355 = vmatpush1.msra.mxu0 0.0
    %5356 = vmatprep.subr.mxu0 0.0
    %5357 = vmatpush1.msra.mxu0 0.0
    %5358 = vmatprep.subr.mxu0 0.0
    %5359 = vmatpush1.msra.mxu0 0.0
    %5360 = vmatprep.subr.mxu0 0.0
    %5361 = vmatpush1.msra.mxu0 0.0
    %5362 = vmatprep.subr.mxu0 0.0
    %5363 = vmatpush1.msra.mxu0 0.0
    %5364 = vmatprep.subr.mxu0 0.0
    %5365 = vmatpush1.msra.mxu0 0.0
    %5366 = vmatprep.subr.mxu0 0.0
    %5367 = vmatpush1.msra.mxu0 0.0
    %5368 = vmatprep.subr.mxu0 0.0
    %5369 = vmatpush1.msra.mxu0 0.0
    %5370 = vmatprep.subr.mxu0 0.0
    %5371 = vmatpush1.msra.mxu0 0.0
    %5372 = vmatprep.subr.mxu0 0.0
    %5373 = vmatpush1.msra.mxu0 0.0
    %5374 = vmatprep.subr.mxu0 0.0
    %5375 = vmatpush1.msra.mxu0 0.0
    %5376 = vmatprep.subr.mxu0 0.0
    %5377 = vmatpush1.msra.mxu0 0.0
    %5378 = vmatprep.subr.mxu0 0.0
    %5379 = vmatpush1.msra.mxu0 0.0
    %5380 = vmatprep.subr.mxu0 0.0
    %5381 = vmatpush1.msra.mxu0 0.0
    %5382 = vmatprep.subr.mxu0 0.0
    %5383 = vmatpush1.msra.mxu0 0.0
    %5384 = vmatprep.subr.mxu0 0.0
    %5385 = vmatpush1.msra.mxu0 0.0
    %5386 = vmatprep.subr.mxu0 0.0
    %5387 = vmatpush1.msra.mxu0 0.0
    %5388 = vmatprep.subr.mxu0 0.0
    %5389 = vmatpush1.msra.mxu0 0.0
    %5390 = vmatprep.subr.mxu0 0.0
    %5391 = vmatpush1.msra.mxu0 0.0
    %5392 = vmatprep.subr.mxu0 0.0
    %5393 = vmatpush1.msra.mxu0 0.0
    %5394 = vmatprep.subr.mxu0 0.0
    %5395 = vmatpush1.msra.mxu0 0.0
    %5396 = vmatprep.subr.mxu0 0.0
    %5397 = vmatpush1.msra.mxu0 0.0
    %5398 = vmatprep.subr.mxu0 0.0
    %5399 = vmatpush1.msra.mxu0 0.0
    %5400 = vmatprep.subr.mxu0 0.0
    %5401 = vmatpush1.msra.mxu0 0.0
    %5402 = vmatprep.subr.mxu0 0.0
    %5403 = vmatpush1.msra.mxu0 0.0
    %5404 = vmatprep.subr.mxu0 0.0
    %5405 = vmatpush1.msra.mxu0 0.0
    %5406 = vmatprep.subr.mxu0 0.0
    %5407 = vmatpush1.msra.mxu0 0.0
    %5408 = vmatprep.subr.mxu0 0.0
    %5409 = vmatpush1.msra.mxu0 0.0
    %5410 = vmatprep.subr.mxu0 0.0
    %5411 = vmatpush1.msra.mxu0 0.0
    %5412 = vmatprep.mubr.f32.mxu0 0.0
    %5413 = vmatmul.mubr.f32.gmra.mrb[0].mxu0 %v5344
    %v5414 = vpop.f32.mrb[0].mxu0
    %v5415 = vadd.f32 %v5332, %v5414
    %v5416 = vpop.f32.mrb[0].mxu0
    %5417 = vmatprep.mubr.f32.mxu0 0.0
    %5418 = vmatmul.mubr.f32.gmra.mrb[0].mxu0 %v5346
    %v5419 = vpop.f32.mrb[0].mxu0
    %v5420 = vadd.f32 %v5337, %v5419
    %v5421 = vpop.f32.mrb[0].mxu0
    %5422 = vdwg.mxu0
    %v5423 = vadd.f32 %v5415, %v413
    %v5424 = vadd.f32 %v5420, %v418
    %v5425 = vpack.c.bf16 %v5424, %v5423
    %5427 = vrot.lane.b32.xlu0 %v5425, 96
    %v5428 = vpop.permute.xlu0 %5427
    %5430 = vst.msk [vmem:[#allocation2 + $0x28] sm:$0xff] %vm953, %v5428
    %v5431 = vld [vmem:[#allocation7] sm:$0xff]
    %v5432 = vld [vmem:[%s245] sm:$0xff]
    %5433 = vrot.lane.b32.xlu0 %v4713, 96
    %v5434 = vpop.permute.xlu0 %5433
    %5435 = vrot.lane.b32.xlu0 %v4716, 96
    %v5436 = vpop.permute.xlu0 %5435
    %v5437 = vsel %vm247, %v5434, 0
    %v5439 = vsel %vm247, %v5436, 0
    %5441 = vmatprep.subr.mxu0 0.0
    %5442 = vmatpush1.msra.mxu0 %v5432
    %5443 = vmatprep.subr.mxu0 0.0
    %5444 = vmatpush1.msra.mxu0 0.0
    %5445 = vmatprep.subr.mxu0 0.0
    %5446 = vmatpush1.msra.mxu0 0.0
    %5447 = vmatprep.subr.mxu0 0.0
    %5448 = vmatpush1.msra.mxu0 0.0
    %5449 = vmatprep.subr.mxu0 0.0
    %5450 = vmatpush1.msra.mxu0 0.0
    %5451 = vmatprep.subr.mxu0 0.0
    %5452 = vmatpush1.msra.mxu0 0.0
    %5453 = vmatprep.subr.mxu0 0.0
    %5454 = vmatpush1.msra.mxu0 0.0
    %5455 = vmatprep.subr.mxu0 0.0
    %5456 = vmatpush1.msra.mxu0 0.0
    %5457 = vmatprep.subr.mxu0 0.0
    %5458 = vmatpush1.msra.mxu0 0.0
    %5459 = vmatprep.subr.mxu0 0.0
    %5460 = vmatpush1.msra.mxu0 0.0
    %5461 = vmatprep.subr.mxu0 0.0
    %5462 = vmatpush1.msra.mxu0 0.0
    %5463 = vmatprep.subr.mxu0 0.0
    %5464 = vmatpush1.msra.mxu0 0.0
    %5465 = vmatprep.subr.mxu0 0.0
    %5466 = vmatpush1.msra.mxu0 0.0
    %5467 = vmatprep.subr.mxu0 0.0
    %5468 = vmatpush1.msra.mxu0 0.0
    %5469 = vmatprep.subr.mxu0 0.0
    %5470 = vmatpush1.msra.mxu0 0.0
    %5471 = vmatprep.subr.mxu0 0.0
    %5472 = vmatpush1.msra.mxu0 0.0
    %5473 = vmatprep.subr.mxu0 0.0
    %5474 = vmatpush1.msra.mxu0 0.0
    %5475 = vmatprep.subr.mxu0 0.0
    %5476 = vmatpush1.msra.mxu0 0.0
    %5477 = vmatprep.subr.mxu0 0.0
    %5478 = vmatpush1.msra.mxu0 0.0
    %5479 = vmatprep.subr.mxu0 0.0
    %5480 = vmatpush1.msra.mxu0 0.0
    %5481 = vmatprep.subr.mxu0 0.0
    %5482 = vmatpush1.msra.mxu0 0.0
    %5483 = vmatprep.subr.mxu0 0.0
    %5484 = vmatpush1.msra.mxu0 0.0
    %5485 = vmatprep.subr.mxu0 0.0
    %5486 = vmatpush1.msra.mxu0 0.0
    %5487 = vmatprep.subr.mxu0 0.0
    %5488 = vmatpush1.msra.mxu0 0.0
    %5489 = vmatprep.subr.mxu0 0.0
    %5490 = vmatpush1.msra.mxu0 0.0
    %5491 = vmatprep.subr.mxu0 0.0
    %5492 = vmatpush1.msra.mxu0 0.0
    %5493 = vmatprep.subr.mxu0 0.0
    %5494 = vmatpush1.msra.mxu0 0.0
    %5495 = vmatprep.subr.mxu0 0.0
    %5496 = vmatpush1.msra.mxu0 0.0
    %5497 = vmatprep.subr.mxu0 0.0
    %5498 = vmatpush1.msra.mxu0 0.0
    %5499 = vmatprep.subr.mxu0 0.0
    %5500 = vmatpush1.msra.mxu0 0.0
    %5501 = vmatprep.subr.mxu0 0.0
    %5502 = vmatpush1.msra.mxu0 0.0
    %5503 = vmatprep.subr.mxu0 0.0
    %5504 = vmatpush1.msra.mxu0 0.0
    %5505 = vmatprep.mubr.f32.mxu0 0.0
    %5506 = vmatmul.mubr.f32.gmra.mrb[0].mxu0 %v5437
    %v5507 = vpop.f32.mrb[0].mxu0
    %v5508 = vadd.f32 0.0, %v5507
    %v5509 = vpop.f32.mrb[0].mxu0
    %5510 = vmatprep.mubr.f32.mxu0 0.0
    %5511 = vmatmul.mubr.f32.gmra.mrb[0].mxu0 %v5439
    %v5512 = vpop.f32.mrb[0].mxu0
    %v5513 = vadd.f32 0.0, %v5512
    %v5514 = vpop.f32.mrb[0].mxu0
    %5515 = vdwg.mxu0
    %5516 = vrot.lane.b32.xlu0 %v4705, 96
    %v5517 = vpop.permute.xlu0 %5516
    %5518 = vrot.lane.b32.xlu0 %v4708, 96
    %v5519 = vpop.permute.xlu0 %5518
    %v5520 = vsel %vm247, %v5517, 0
    %v5522 = vsel %vm247, %v5519, 0
    %5524 = vmatprep.subr.mxu0 0.0
    %5525 = vmatpush1.msra.mxu0 %v5431
    %5526 = vmatprep.subr.mxu0 0.0
    %5527 = vmatpush1.msra.mxu0 0.0
    %5528 = vmatprep.subr.mxu0 0.0
    %5529 = vmatpush1.msra.mxu0 0.0
    %5530 = vmatprep.subr.mxu0 0.0
    %5531 = vmatpush1.msra.mxu0 0.0
    %5532 = vmatprep.subr.mxu0 0.0
    %5533 = vmatpush1.msra.mxu0 0.0
    %5534 = vmatprep.subr.mxu0 0.0
    %5535 = vmatpush1.msra.mxu0 0.0
    %5536 = vmatprep.subr.mxu0 0.0
    %5537 = vmatpush1.msra.mxu0 0.0
    %5538 = vmatprep.subr.mxu0 0.0
    %5539 = vmatpush1.msra.mxu0 0.0
    %5540 = vmatprep.subr.mxu0 0.0
    %5541 = vmatpush1.msra.mxu0 0.0
    %5542 = vmatprep.subr.mxu0 0.0
    %5543 = vmatpush1.msra.mxu0 0.0
    %5544 = vmatprep.subr.mxu0 0.0
    %5545 = vmatpush1.msra.mxu0 0.0
    %5546 = vmatprep.subr.mxu0 0.0
    %5547 = vmatpush1.msra.mxu0 0.0
    %5548 = vmatprep.subr.mxu0 0.0
    %5549 = vmatpush1.msra.mxu0 0.0
    %5550 = vmatprep.subr.mxu0 0.0
    %5551 = vmatpush1.msra.mxu0 0.0
    %5552 = vmatprep.subr.mxu0 0.0
    %5553 = vmatpush1.msra.mxu0 0.0
    %5554 = vmatprep.subr.mxu0 0.0
    %5555 = vmatpush1.msra.mxu0 0.0
    %5556 = vmatprep.subr.mxu0 0.0
    %5557 = vmatpush1.msra.mxu0 0.0
    %5558 = vmatprep.subr.mxu0 0.0
    %5559 = vmatpush1.msra.mxu0 0.0
    %5560 = vmatprep.subr.mxu0 0.0
    %5561 = vmatpush1.msra.mxu0 0.0
    %5562 = vmatprep.subr.mxu0 0.0
    %5563 = vmatpush1.msra.mxu0 0.0
    %5564 = vmatprep.subr.mxu0 0.0
    %5565 = vmatpush1.msra.mxu0 0.0
    %5566 = vmatprep.subr.mxu0 0.0
    %5567 = vmatpush1.msra.mxu0 0.0
    %5568 = vmatprep.subr.mxu0 0.0
    %5569 = vmatpush1.msra.mxu0 0.0
    %5570 = vmatprep.subr.mxu0 0.0
    %5571 = vmatpush1.msra.mxu0 0.0
    %5572 = vmatprep.subr.mxu0 0.0
    %5573 = vmatpush1.msra.mxu0 0.0
    %5574 = vmatprep.subr.mxu0 0.0
    %5575 = vmatpush1.msra.mxu0 0.0
    %5576 = vmatprep.subr.mxu0 0.0
    %5577 = vmatpush1.msra.mxu0 0.0
    %5578 = vmatprep.subr.mxu0 0.0
    %5579 = vmatpush1.msra.mxu0 0.0
    %5580 = vmatprep.subr.mxu0 0.0
    %5581 = vmatpush1.msra.mxu0 0.0
    %5582 = vmatprep.subr.mxu0 0.0
    %5583 = vmatpush1.msra.mxu0 0.0
    %5584 = vmatprep.subr.mxu0 0.0
    %5585 = vmatpush1.msra.mxu0 0.0
    %5586 = vmatprep.subr.mxu0 0.0
    %5587 = vmatpush1.msra.mxu0 0.0
    %5588 = vmatprep.mubr.f32.mxu0 0.0
    %5589 = vmatmul.mubr.f32.gmra.mrb[0].mxu0 %v5520
    %v5590 = vpop.f32.mrb[0].mxu0
    %v5591 = vadd.f32 %v5508, %v5590
    %v5592 = vpop.f32.mrb[0].mxu0
    %5593 = vmatprep.mubr.f32.mxu0 0.0
    %5594 = vmatmul.mubr.f32.gmra.mrb[0].mxu0 %v5522
    %v5595 = vpop.f32.mrb[0].mxu0
    %v5596 = vadd.f32 %v5513, %v5595
    %v5597 = vpop.f32.mrb[0].mxu0
    %5598 = vdwg.mxu0
    %v5599 = vadd.f32 %v5591, %v413
    %v5600 = vadd.f32 %v5596, %v418
    %v5601 = vpack.c.bf16 %v5600, %v5599
    %5602 = vst.msk [vmem:[#allocation2 + $0x30] sm:$0xff] %vm166, %v5601
    %v5603 = vld [vmem:[#allocation7] sm:$0xff]
    %v5604 = vld [vmem:[%s245] sm:$0xff]
    %5605 = vrot.lane.b32.xlu0 %v4713, 88
    %v5606 = vpop.permute.xlu0 %5605
    %5607 = vrot.lane.b32.xlu0 %v4716, 88
    %v5608 = vpop.permute.xlu0 %5607
    %v5609 = vsel %vm247, %v5606, 0
    %v5611 = vsel %vm247, %v5608, 0
    %5613 = vmatprep.subr.mxu0 0.0
    %5614 = vmatpush1.msra.mxu0 %v5604
    %5615 = vmatprep.subr.mxu0 0.0
    %5616 = vmatpush1.msra.mxu0 0.0
    %5617 = vmatprep.subr.mxu0 0.0
    %5618 = vmatpush1.msra.mxu0 0.0
    %5619 = vmatprep.subr.mxu0 0.0
    %5620 = vmatpush1.msra.mxu0 0.0
    %5621 = vmatprep.subr.mxu0 0.0
    %5622 = vmatpush1.msra.mxu0 0.0
    %5623 = vmatprep.subr.mxu0 0.0
    %5624 = vmatpush1.msra.mxu0 0.0
    %5625 = vmatprep.subr.mxu0 0.0
    %5626 = vmatpush1.msra.mxu0 0.0
    %5627 = vmatprep.subr.mxu0 0.0
    %5628 = vmatpush1.msra.mxu0 0.0
    %5629 = vmatprep.subr.mxu0 0.0
    %5630 = vmatpush1.msra.mxu0 0.0
    %5631 = vmatprep.subr.mxu0 0.0
    %5632 = vmatpush1.msra.mxu0 0.0
    %5633 = vmatprep.subr.mxu0 0.0
    %5634 = vmatpush1.msra.mxu0 0.0
    %5635 = vmatprep.subr.mxu0 0.0
    %5636 = vmatpush1.msra.mxu0 0.0
    %5637 = vmatprep.subr.mxu0 0.0
    %5638 = vmatpush1.msra.mxu0 0.0
    %5639 = vmatprep.subr.mxu0 0.0
    %5640 = vmatpush1.msra.mxu0 0.0
    %5641 = vmatprep.subr.mxu0 0.0
    %5642 = vmatpush1.msra.mxu0 0.0
    %5643 = vmatprep.subr.mxu0 0.0
    %5644 = vmatpush1.msra.mxu0 0.0
    %5645 = vmatprep.subr.mxu0 0.0
    %5646 = vmatpush1.msra.mxu0 0.0
    %5647 = vmatprep.subr.mxu0 0.0
    %5648 = vmatpush1.msra.mxu0 0.0
    %5649 = vmatprep.subr.mxu0 0.0
    %5650 = vmatpush1.msra.mxu0 0.0
    %5651 = vmatprep.subr.mxu0 0.0
    %5652 = vmatpush1.msra.mxu0 0.0
    %5653 = vmatprep.subr.mxu0 0.0
    %5654 = vmatpush1.msra.mxu0 0.0
    %5655 = vmatprep.subr.mxu0 0.0
    %5656 = vmatpush1.msra.mxu0 0.0
    %5657 = vmatprep.subr.mxu0 0.0
    %5658 = vmatpush1.msra.mxu0 0.0
    %5659 = vmatprep.subr.mxu0 0.0
    %5660 = vmatpush1.msra.mxu0 0.0
    %5661 = vmatprep.subr.mxu0 0.0
    %5662 = vmatpush1.msra.mxu0 0.0
    %5663 = vmatprep.subr.mxu0 0.0
    %5664 = vmatpush1.msra.mxu0 0.0
    %5665 = vmatprep.subr.mxu0 0.0
    %5666 = vmatpush1.msra.mxu0 0.0
    %5667 = vmatprep.subr.mxu0 0.0
    %5668 = vmatpush1.msra.mxu0 0.0
    %5669 = vmatprep.subr.mxu0 0.0
    %5670 = vmatpush1.msra.mxu0 0.0
    %5671 = vmatprep.subr.mxu0 0.0
    %5672 = vmatpush1.msra.mxu0 0.0
    %5673 = vmatprep.subr.mxu0 0.0
    %5674 = vmatpush1.msra.mxu0 0.0
    %5675 = vmatprep.subr.mxu0 0.0
    %5676 = vmatpush1.msra.mxu0 0.0
    %5677 = vmatprep.mubr.f32.mxu0 0.0
    %5678 = vmatmul.mubr.f32.gmra.mrb[0].mxu0 %v5609
    %v5679 = vpop.f32.mrb[0].mxu0
    %v5680 = vadd.f32 0.0, %v5679
    %v5681 = vpop.f32.mrb[0].mxu0
    %5682 = vmatprep.mubr.f32.mxu0 0.0
    %5683 = vmatmul.mubr.f32.gmra.mrb[0].mxu0 %v5611
    %v5684 = vpop.f32.mrb[0].mxu0
    %v5685 = vadd.f32 0.0, %v5684
    %v5686 = vpop.f32.mrb[0].mxu0
    %5687 = vdwg.mxu0
    %5688 = vrot.lane.b32.xlu0 %v4705, 88
    %v5689 = vpop.permute.xlu0 %5688
    %5690 = vrot.lane.b32.xlu0 %v4708, 88
    %v5691 = vpop.permute.xlu0 %5690
    %v5692 = vsel %vm247, %v5689, 0
    %v5694 = vsel %vm247, %v5691, 0
    %5696 = vmatprep.subr.mxu0 0.0
    %5697 = vmatpush1.msra.mxu0 %v5603
    %5698 = vmatprep.subr.mxu0 0.0
    %5699 = vmatpush1.msra.mxu0 0.0
    %5700 = vmatprep.subr.mxu0 0.0
    %5701 = vmatpush1.msra.mxu0 0.0
    %5702 = vmatprep.subr.mxu0 0.0
    %5703 = vmatpush1.msra.mxu0 0.0
    %5704 = vmatprep.subr.mxu0 0.0
    %5705 = vmatpush1.msra.mxu0 0.0
    %5706 = vmatprep.subr.mxu0 0.0
    %5707 = vmatpush1.msra.mxu0 0.0
    %5708 = vmatprep.subr.mxu0 0.0
    %5709 = vmatpush1.msra.mxu0 0.0
    %5710 = vmatprep.subr.mxu0 0.0
    %5711 = vmatpush1.msra.mxu0 0.0
    %5712 = vmatprep.subr.mxu0 0.0
    %5713 = vmatpush1.msra.mxu0 0.0
    %5714 = vmatprep.subr.mxu0 0.0
    %5715 = vmatpush1.msra.mxu0 0.0
    %5716 = vmatprep.subr.mxu0 0.0
    %5717 = vmatpush1.msra.mxu0 0.0
    %5718 = vmatprep.subr.mxu0 0.0
    %5719 = vmatpush1.msra.mxu0 0.0
    %5720 = vmatprep.subr.mxu0 0.0
    %5721 = vmatpush1.msra.mxu0 0.0
    %5722 = vmatprep.subr.mxu0 0.0
    %5723 = vmatpush1.msra.mxu0 0.0
    %5724 = vmatprep.subr.mxu0 0.0
    %5725 = vmatpush1.msra.mxu0 0.0
    %5726 = vmatprep.subr.mxu0 0.0
    %5727 = vmatpush1.msra.mxu0 0.0
    %5728 = vmatprep.subr.mxu0 0.0
    %5729 = vmatpush1.msra.mxu0 0.0
    %5730 = vmatprep.subr.mxu0 0.0
    %5731 = vmatpush1.msra.mxu0 0.0
    %5732 = vmatprep.subr.mxu0 0.0
    %5733 = vmatpush1.msra.mxu0 0.0
    %5734 = vmatprep.subr.mxu0 0.0
    %5735 = vmatpush1.msra.mxu0 0.0
    %5736 = vmatprep.subr.mxu0 0.0
    %5737 = vmatpush1.msra.mxu0 0.0
    %5738 = vmatprep.subr.mxu0 0.0
    %5739 = vmatpush1.msra.mxu0 0.0
    %5740 = vmatprep.subr.mxu0 0.0
    %5741 = vmatpush1.msra.mxu0 0.0
    %5742 = vmatprep.subr.mxu0 0.0
    %5743 = vmatpush1.msra.mxu0 0.0
    %5744 = vmatprep.subr.mxu0 0.0
    %5745 = vmatpush1.msra.mxu0 0.0
    %5746 = vmatprep.subr.mxu0 0.0
    %5747 = vmatpush1.msra.mxu0 0.0
    %5748 = vmatprep.subr.mxu0 0.0
    %5749 = vmatpush1.msra.mxu0 0.0
    %5750 = vmatprep.subr.mxu0 0.0
    %5751 = vmatpush1.msra.mxu0 0.0
    %5752 = vmatprep.subr.mxu0 0.0
    %5753 = vmatpush1.msra.mxu0 0.0
    %5754 = vmatprep.subr.mxu0 0.0
    %5755 = vmatpush1.msra.mxu0 0.0
    %5756 = vmatprep.subr.mxu0 0.0
    %5757 = vmatpush1.msra.mxu0 0.0
    %5758 = vmatprep.subr.mxu0 0.0
    %5759 = vmatpush1.msra.mxu0 0.0
    %5760 = vmatprep.mubr.f32.mxu0 0.0
    %5761 = vmatmul.mubr.f32.gmra.mrb[0].mxu0 %v5692
    %v5762 = vpop.f32.mrb[0].mxu0
    %v5763 = vadd.f32 %v5680, %v5762
    %v5764 = vpop.f32.mrb[0].mxu0
    %5765 = vmatprep.mubr.f32.mxu0 0.0
    %5766 = vmatmul.mubr.f32.gmra.mrb[0].mxu0 %v5694
    %v5767 = vpop.f32.mrb[0].mxu0
    %v5768 = vadd.f32 %v5685, %v5767
    %v5769 = vpop.f32.mrb[0].mxu0
    %5770 = vdwg.mxu0
    %v5771 = vadd.f32 %v5763, %v413
    %v5772 = vadd.f32 %v5768, %v418
    %v5773 = vpack.c.bf16 %v5772, %v5771
    %5775 = vrot.lane.b32.xlu0 %v5773, 32
    %v5776 = vpop.permute.xlu0 %5775
    %5778 = vst.msk [vmem:[#allocation2 + $0x30] sm:$0xff] %vm599, %v5776
    %v5779 = vld [vmem:[#allocation7] sm:$0xff]
    %v5780 = vld [vmem:[%s245] sm:$0xff]
    %5781 = vrot.lane.b32.xlu0 %v4713, 80
    %v5782 = vpop.permute.xlu0 %5781
    %5783 = vrot.lane.b32.xlu0 %v4716, 80
    %v5784 = vpop.permute.xlu0 %5783
    %v5785 = vsel %vm247, %v5782, 0
    %v5787 = vsel %vm247, %v5784, 0
    %5789 = vmatprep.subr.mxu0 0.0
    %5790 = vmatpush1.msra.mxu0 %v5780
    %5791 = vmatprep.subr.mxu0 0.0
    %5792 = vmatpush1.msra.mxu0 0.0
    %5793 = vmatprep.subr.mxu0 0.0
    %5794 = vmatpush1.msra.mxu0 0.0
    %5795 = vmatprep.subr.mxu0 0.0
    %5796 = vmatpush1.msra.mxu0 0.0
    %5797 = vmatprep.subr.mxu0 0.0
    %5798 = vmatpush1.msra.mxu0 0.0
    %5799 = vmatprep.subr.mxu0 0.0
    %5800 = vmatpush1.msra.mxu0 0.0
    %5801 = vmatprep.subr.mxu0 0.0
    %5802 = vmatpush1.msra.mxu0 0.0
    %5803 = vmatprep.subr.mxu0 0.0
    %5804 = vmatpush1.msra.mxu0 0.0
    %5805 = vmatprep.subr.mxu0 0.0
    %5806 = vmatpush1.msra.mxu0 0.0
    %5807 = vmatprep.subr.mxu0 0.0
    %5808 = vmatpush1.msra.mxu0 0.0
    %5809 = vmatprep.subr.mxu0 0.0
    %5810 = vmatpush1.msra.mxu0 0.0
    %5811 = vmatprep.subr.mxu0 0.0
    %5812 = vmatpush1.msra.mxu0 0.0
    %5813 = vmatprep.subr.mxu0 0.0
    %5814 = vmatpush1.msra.mxu0 0.0
    %5815 = vmatprep.subr.mxu0 0.0
    %5816 = vmatpush1.msra.mxu0 0.0
    %5817 = vmatprep.subr.mxu0 0.0
    %5818 = vmatpush1.msra.mxu0 0.0
    %5819 = vmatprep.subr.mxu0 0.0
    %5820 = vmatpush1.msra.mxu0 0.0
    %5821 = vmatprep.subr.mxu0 0.0
    %5822 = vmatpush1.msra.mxu0 0.0
    %5823 = vmatprep.subr.mxu0 0.0
    %5824 = vmatpush1.msra.mxu0 0.0
    %5825 = vmatprep.subr.mxu0 0.0
    %5826 = vmatpush1.msra.mxu0 0.0
    %5827 = vmatprep.subr.mxu0 0.0
    %5828 = vmatpush1.msra.mxu0 0.0
    %5829 = vmatprep.subr.mxu0 0.0
    %5830 = vmatpush1.msra.mxu0 0.0
    %5831 = vmatprep.subr.mxu0 0.0
    %5832 = vmatpush1.msra.mxu0 0.0
    %5833 = vmatprep.subr.mxu0 0.0
    %5834 = vmatpush1.msra.mxu0 0.0
    %5835 = vmatprep.subr.mxu0 0.0
    %5836 = vmatpush1.msra.mxu0 0.0
    %5837 = vmatprep.subr.mxu0 0.0
    %5838 = vmatpush1.msra.mxu0 0.0
    %5839 = vmatprep.subr.mxu0 0.0
    %5840 = vmatpush1.msra.mxu0 0.0
    %5841 = vmatprep.subr.mxu0 0.0
    %5842 = vmatpush1.msra.mxu0 0.0
    %5843 = vmatprep.subr.mxu0 0.0
    %5844 = vmatpush1.msra.mxu0 0.0
    %5845 = vmatprep.subr.mxu0 0.0
    %5846 = vmatpush1.msra.mxu0 0.0
    %5847 = vmatprep.subr.mxu0 0.0
    %5848 = vmatpush1.msra.mxu0 0.0
    %5849 = vmatprep.subr.mxu0 0.0
    %5850 = vmatpush1.msra.mxu0 0.0
    %5851 = vmatprep.subr.mxu0 0.0
    %5852 = vmatpush1.msra.mxu0 0.0
    %5853 = vmatprep.mubr.f32.mxu0 0.0
    %5854 = vmatmul.mubr.f32.gmra.mrb[0].mxu0 %v5785
    %v5855 = vpop.f32.mrb[0].mxu0
    %v5856 = vadd.f32 0.0, %v5855
    %v5857 = vpop.f32.mrb[0].mxu0
    %5858 = vmatprep.mubr.f32.mxu0 0.0
    %5859 = vmatmul.mubr.f32.gmra.mrb[0].mxu0 %v5787
    %v5860 = vpop.f32.mrb[0].mxu0
    %v5861 = vadd.f32 0.0, %v5860
    %v5862 = vpop.f32.mrb[0].mxu0
    %5863 = vdwg.mxu0
    %5864 = vrot.lane.b32.xlu0 %v4705, 80
    %v5865 = vpop.permute.xlu0 %5864
    %5866 = vrot.lane.b32.xlu0 %v4708, 80
    %v5867 = vpop.permute.xlu0 %5866
    %v5868 = vsel %vm247, %v5865, 0
    %v5870 = vsel %vm247, %v5867, 0
    %5872 = vmatprep.subr.mxu0 0.0
    %5873 = vmatpush1.msra.mxu0 %v5779
    %5874 = vmatprep.subr.mxu0 0.0
    %5875 = vmatpush1.msra.mxu0 0.0
    %5876 = vmatprep.subr.mxu0 0.0
    %5877 = vmatpush1.msra.mxu0 0.0
    %5878 = vmatprep.subr.mxu0 0.0
    %5879 = vmatpush1.msra.mxu0 0.0
    %5880 = vmatprep.subr.mxu0 0.0
    %5881 = vmatpush1.msra.mxu0 0.0
    %5882 = vmatprep.subr.mxu0 0.0
    %5883 = vmatpush1.msra.mxu0 0.0
    %5884 = vmatprep.subr.mxu0 0.0
    %5885 = vmatpush1.msra.mxu0 0.0
    %5886 = vmatprep.subr.mxu0 0.0
    %5887 = vmatpush1.msra.mxu0 0.0
    %5888 = vmatprep.subr.mxu0 0.0
    %5889 = vmatpush1.msra.mxu0 0.0
    %5890 = vmatprep.subr.mxu0 0.0
    %5891 = vmatpush1.msra.mxu0 0.0
    %5892 = vmatprep.subr.mxu0 0.0
    %5893 = vmatpush1.msra.mxu0 0.0
    %5894 = vmatprep.subr.mxu0 0.0
    %5895 = vmatpush1.msra.mxu0 0.0
    %5896 = vmatprep.subr.mxu0 0.0
    %5897 = vmatpush1.msra.mxu0 0.0
    %5898 = vmatprep.subr.mxu0 0.0
    %5899 = vmatpush1.msra.mxu0 0.0
    %5900 = vmatprep.subr.mxu0 0.0
    %5901 = vmatpush1.msra.mxu0 0.0
    %5902 = vmatprep.subr.mxu0 0.0
    %5903 = vmatpush1.msra.mxu0 0.0
    %5904 = vmatprep.subr.mxu0 0.0
    %5905 = vmatpush1.msra.mxu0 0.0
    %5906 = vmatprep.subr.mxu0 0.0
    %5907 = vmatpush1.msra.mxu0 0.0
    %5908 = vmatprep.subr.mxu0 0.0
    %5909 = vmatpush1.msra.mxu0 0.0
    %5910 = vmatprep.subr.mxu0 0.0
    %5911 = vmatpush1.msra.mxu0 0.0
    %5912 = vmatprep.subr.mxu0 0.0
    %5913 = vmatpush1.msra.mxu0 0.0
    %5914 = vmatprep.subr.mxu0 0.0
    %5915 = vmatpush1.msra.mxu0 0.0
    %5916 = vmatprep.subr.mxu0 0.0
    %5917 = vmatpush1.msra.mxu0 0.0
    %5918 = vmatprep.subr.mxu0 0.0
    %5919 = vmatpush1.msra.mxu0 0.0
    %5920 = vmatprep.subr.mxu0 0.0
    %5921 = vmatpush1.msra.mxu0 0.0
    %5922 = vmatprep.subr.mxu0 0.0
    %5923 = vmatpush1.msra.mxu0 0.0
    %5924 = vmatprep.subr.mxu0 0.0
    %5925 = vmatpush1.msra.mxu0 0.0
    %5926 = vmatprep.subr.mxu0 0.0
    %5927 = vmatpush1.msra.mxu0 0.0
    %5928 = vmatprep.subr.mxu0 0.0
    %5929 = vmatpush1.msra.mxu0 0.0
    %5930 = vmatprep.subr.mxu0 0.0
    %5931 = vmatpush1.msra.mxu0 0.0
    %5932 = vmatprep.subr.mxu0 0.0
    %5933 = vmatpush1.msra.mxu0 0.0
    %5934 = vmatprep.subr.mxu0 0.0
    %5935 = vmatpush1.msra.mxu0 0.0
    %5936 = vmatprep.mubr.f32.mxu0 0.0
    %5937 = vmatmul.mubr.f32.gmra.mrb[0].mxu0 %v5868
    %v5938 = vpop.f32.mrb[0].mxu0
    %v5939 = vadd.f32 %v5856, %v5938
    %v5940 = vpop.f32.mrb[0].mxu0
    %5941 = vmatprep.mubr.f32.mxu0 0.0
    %5942 = vmatmul.mubr.f32.gmra.mrb[0].mxu0 %v5870
    %v5943 = vpop.f32.mrb[0].mxu0
    %v5944 = vadd.f32 %v5861, %v5943
    %v5945 = vpop.f32.mrb[0].mxu0
    %5946 = vdwg.mxu0
    %v5947 = vadd.f32 %v5939, %v413
    %v5948 = vadd.f32 %v5944, %v418
    %v5949 = vpack.c.bf16 %v5948, %v5947
    %5951 = vrot.lane.b32.xlu0 %v5949, 64
    %v5952 = vpop.permute.xlu0 %5951
    %5954 = vst.msk [vmem:[#allocation2 + $0x30] sm:$0xff] %vm776, %v5952
    %v5955 = vld [vmem:[#allocation7] sm:$0xff]
    %v5956 = vld [vmem:[%s245] sm:$0xff]
    %5957 = vrot.lane.b32.xlu0 %v4713, 72
    %v5958 = vpop.permute.xlu0 %5957
    %5959 = vrot.lane.b32.xlu0 %v4716, 72
    %v5960 = vpop.permute.xlu0 %5959
    %v5961 = vsel %vm247, %v5958, 0
    %v5963 = vsel %vm247, %v5960, 0
    %5965 = vmatprep.subr.mxu0 0.0
    %5966 = vmatpush1.msra.mxu0 %v5956
    %5967 = vmatprep.subr.mxu0 0.0
    %5968 = vmatpush1.msra.mxu0 0.0
    %5969 = vmatprep.subr.mxu0 0.0
    %5970 = vmatpush1.msra.mxu0 0.0
    %5971 = vmatprep.subr.mxu0 0.0
    %5972 = vmatpush1.msra.mxu0 0.0
    %5973 = vmatprep.subr.mxu0 0.0
    %5974 = vmatpush1.msra.mxu0 0.0
    %5975 = vmatprep.subr.mxu0 0.0
    %5976 = vmatpush1.msra.mxu0 0.0
    %5977 = vmatprep.subr.mxu0 0.0
    %5978 = vmatpush1.msra.mxu0 0.0
    %5979 = vmatprep.subr.mxu0 0.0
    %5980 = vmatpush1.msra.mxu0 0.0
    %5981 = vmatprep.subr.mxu0 0.0
    %5982 = vmatpush1.msra.mxu0 0.0
    %5983 = vmatprep.subr.mxu0 0.0
    %5984 = vmatpush1.msra.mxu0 0.0
    %5985 = vmatprep.subr.mxu0 0.0
    %5986 = vmatpush1.msra.mxu0 0.0
    %5987 = vmatprep.subr.mxu0 0.0
    %5988 = vmatpush1.msra.mxu0 0.0
    %5989 = vmatprep.subr.mxu0 0.0
    %5990 = vmatpush1.msra.mxu0 0.0
    %5991 = vmatprep.subr.mxu0 0.0
    %5992 = vmatpush1.msra.mxu0 0.0
    %5993 = vmatprep.subr.mxu0 0.0
    %5994 = vmatpush1.msra.mxu0 0.0
    %5995 = vmatprep.subr.mxu0 0.0
    %5996 = vmatpush1.msra.mxu0 0.0
    %5997 = vmatprep.subr.mxu0 0.0
    %5998 = vmatpush1.msra.mxu0 0.0
    %5999 = vmatprep.subr.mxu0 0.0
    %6000 = vmatpush1.msra.mxu0 0.0
    %6001 = vmatprep.subr.mxu0 0.0
    %6002 = vmatpush1.msra.mxu0 0.0
    %6003 = vmatprep.subr.mxu0 0.0
    %6004 = vmatpush1.msra.mxu0 0.0
    %6005 = vmatprep.subr.mxu0 0.0
    %6006 = vmatpush1.msra.mxu0 0.0
    %6007 = vmatprep.subr.mxu0 0.0
    %6008 = vmatpush1.msra.mxu0 0.0
    %6009 = vmatprep.subr.mxu0 0.0
    %6010 = vmatpush1.msra.mxu0 0.0
    %6011 = vmatprep.subr.mxu0 0.0
    %6012 = vmatpush1.msra.mxu0 0.0
    %6013 = vmatprep.subr.mxu0 0.0
    %6014 = vmatpush1.msra.mxu0 0.0
    %6015 = vmatprep.subr.mxu0 0.0
    %6016 = vmatpush1.msra.mxu0 0.0
    %6017 = vmatprep.subr.mxu0 0.0
    %6018 = vmatpush1.msra.mxu0 0.0
    %6019 = vmatprep.subr.mxu0 0.0
    %6020 = vmatpush1.msra.mxu0 0.0
    %6021 = vmatprep.subr.mxu0 0.0
    %6022 = vmatpush1.msra.mxu0 0.0
    %6023 = vmatprep.subr.mxu0 0.0
    %6024 = vmatpush1.msra.mxu0 0.0
    %6025 = vmatprep.subr.mxu0 0.0
    %6026 = vmatpush1.msra.mxu0 0.0
    %6027 = vmatprep.subr.mxu0 0.0
    %6028 = vmatpush1.msra.mxu0 0.0
    %6029 = vmatprep.mubr.f32.mxu0 0.0
    %6030 = vmatmul.mubr.f32.gmra.mrb[0].mxu0 %v5961
    %v6031 = vpop.f32.mrb[0].mxu0
    %v6032 = vadd.f32 0.0, %v6031
    %v6033 = vpop.f32.mrb[0].mxu0
    %6034 = vmatprep.mubr.f32.mxu0 0.0
    %6035 = vmatmul.mubr.f32.gmra.mrb[0].mxu0 %v5963
    %v6036 = vpop.f32.mrb[0].mxu0
    %v6037 = vadd.f32 0.0, %v6036
    %v6038 = vpop.f32.mrb[0].mxu0
    %6039 = vdwg.mxu0
    %6040 = vrot.lane.b32.xlu0 %v4705, 72
    %v6041 = vpop.permute.xlu0 %6040
    %6042 = vrot.lane.b32.xlu0 %v4708, 72
    %v6043 = vpop.permute.xlu0 %6042
    %v6044 = vsel %vm247, %v6041, 0
    %v6046 = vsel %vm247, %v6043, 0
    %6048 = vmatprep.subr.mxu0 0.0
    %6049 = vmatpush1.msra.mxu0 %v5955
    %6050 = vmatprep.subr.mxu0 0.0
    %6051 = vmatpush1.msra.mxu0 0.0
    %6052 = vmatprep.subr.mxu0 0.0
    %6053 = vmatpush1.msra.mxu0 0.0
    %6054 = vmatprep.subr.mxu0 0.0
    %6055 = vmatpush1.msra.mxu0 0.0
    %6056 = vmatprep.subr.mxu0 0.0
    %6057 = vmatpush1.msra.mxu0 0.0
    %6058 = vmatprep.subr.mxu0 0.0
    %6059 = vmatpush1.msra.mxu0 0.0
    %6060 = vmatprep.subr.mxu0 0.0
    %6061 = vmatpush1.msra.mxu0 0.0
    %6062 = vmatprep.subr.mxu0 0.0
    %6063 = vmatpush1.msra.mxu0 0.0
    %6064 = vmatprep.subr.mxu0 0.0
    %6065 = vmatpush1.msra.mxu0 0.0
    %6066 = vmatprep.subr.mxu0 0.0
    %6067 = vmatpush1.msra.mxu0 0.0
    %6068 = vmatprep.subr.mxu0 0.0
    %6069 = vmatpush1.msra.mxu0 0.0
    %6070 = vmatprep.subr.mxu0 0.0
    %6071 = vmatpush1.msra.mxu0 0.0
    %6072 = vmatprep.subr.mxu0 0.0
    %6073 = vmatpush1.msra.mxu0 0.0
    %6074 = vmatprep.subr.mxu0 0.0
    %6075 = vmatpush1.msra.mxu0 0.0
    %6076 = vmatprep.subr.mxu0 0.0
    %6077 = vmatpush1.msra.mxu0 0.0
    %6078 = vmatprep.subr.mxu0 0.0
    %6079 = vmatpush1.msra.mxu0 0.0
    %6080 = vmatprep.subr.mxu0 0.0
    %6081 = vmatpush1.msra.mxu0 0.0
    %6082 = vmatprep.subr.mxu0 0.0
    %6083 = vmatpush1.msra.mxu0 0.0
    %6084 = vmatprep.subr.mxu0 0.0
    %6085 = vmatpush1.msra.mxu0 0.0
    %6086 = vmatprep.subr.mxu0 0.0
    %6087 = vmatpush1.msra.mxu0 0.0
    %6088 = vmatprep.subr.mxu0 0.0
    %6089 = vmatpush1.msra.mxu0 0.0
    %6090 = vmatprep.subr.mxu0 0.0
    %6091 = vmatpush1.msra.mxu0 0.0
    %6092 = vmatprep.subr.mxu0 0.0
    %6093 = vmatpush1.msra.mxu0 0.0
    %6094 = vmatprep.subr.mxu0 0.0
    %6095 = vmatpush1.msra.mxu0 0.0
    %6096 = vmatprep.subr.mxu0 0.0
    %6097 = vmatpush1.msra.mxu0 0.0
    %6098 = vmatprep.subr.mxu0 0.0
    %6099 = vmatpush1.msra.mxu0 0.0
    %6100 = vmatprep.subr.mxu0 0.0
    %6101 = vmatpush1.msra.mxu0 0.0
    %6102 = vmatprep.subr.mxu0 0.0
    %6103 = vmatpush1.msra.mxu0 0.0
    %6104 = vmatprep.subr.mxu0 0.0
    %6105 = vmatpush1.msra.mxu0 0.0
    %6106 = vmatprep.subr.mxu0 0.0
    %6107 = vmatpush1.msra.mxu0 0.0
    %6108 = vmatprep.subr.mxu0 0.0
    %6109 = vmatpush1.msra.mxu0 0.0
    %6110 = vmatprep.subr.mxu0 0.0
    %6111 = vmatpush1.msra.mxu0 0.0
    %6112 = vmatprep.mubr.f32.mxu0 0.0
    %6113 = vmatmul.mubr.f32.gmra.mrb[0].mxu0 %v6044
    %v6114 = vpop.f32.mrb[0].mxu0
    %v6115 = vadd.f32 %v6032, %v6114
    %v6116 = vpop.f32.mrb[0].mxu0
    %6117 = vmatprep.mubr.f32.mxu0 0.0
    %6118 = vmatmul.mubr.f32.gmra.mrb[0].mxu0 %v6046
    %v6119 = vpop.f32.mrb[0].mxu0
    %v6120 = vadd.f32 %v6037, %v6119
    %v6121 = vpop.f32.mrb[0].mxu0
    %6122 = vdwg.mxu0
    %v6123 = vadd.f32 %v6115, %v413
    %v6124 = vadd.f32 %v6120, %v418
    %v6125 = vpack.c.bf16 %v6124, %v6123
    %6127 = vrot.lane.b32.xlu0 %v6125, 96
    %v6128 = vpop.permute.xlu0 %6127
    %6130 = vst.msk [vmem:[#allocation2 + $0x30] sm:$0xff] %vm953, %v6128
    %v6131 = vld [vmem:[#allocation7] sm:$0xff]
    %v6132 = vld [vmem:[%s245] sm:$0xff]
    %v6134 = vsel %vm247, %v4729, 0
    %v6137 = vsel %vm247, %v4732, 0
    %6139 = vmatprep.subr.mxu0 0.0
    %6140 = vmatpush1.msra.mxu0 %v6132
    %6141 = vmatprep.subr.mxu0 0.0
    %6142 = vmatpush1.msra.mxu0 0.0
    %6143 = vmatprep.subr.mxu0 0.0
    %6144 = vmatpush1.msra.mxu0 0.0
    %6145 = vmatprep.subr.mxu0 0.0
    %6146 = vmatpush1.msra.mxu0 0.0
    %6147 = vmatprep.subr.mxu0 0.0
    %6148 = vmatpush1.msra.mxu0 0.0
    %6149 = vmatprep.subr.mxu0 0.0
    %6150 = vmatpush1.msra.mxu0 0.0
    %6151 = vmatprep.subr.mxu0 0.0
    %6152 = vmatpush1.msra.mxu0 0.0
    %6153 = vmatprep.subr.mxu0 0.0
    %6154 = vmatpush1.msra.mxu0 0.0
    %6155 = vmatprep.subr.mxu0 0.0
    %6156 = vmatpush1.msra.mxu0 0.0
    %6157 = vmatprep.subr.mxu0 0.0
    %6158 = vmatpush1.msra.mxu0 0.0
    %6159 = vmatprep.subr.mxu0 0.0
    %6160 = vmatpush1.msra.mxu0 0.0
    %6161 = vmatprep.subr.mxu0 0.0
    %6162 = vmatpush1.msra.mxu0 0.0
    %6163 = vmatprep.subr.mxu0 0.0
    %6164 = vmatpush1.msra.mxu0 0.0
    %6165 = vmatprep.subr.mxu0 0.0
    %6166 = vmatpush1.msra.mxu0 0.0
    %6167 = vmatprep.subr.mxu0 0.0
    %6168 = vmatpush1.msra.mxu0 0.0
    %6169 = vmatprep.subr.mxu0 0.0
    %6170 = vmatpush1.msra.mxu0 0.0
    %6171 = vmatprep.subr.mxu0 0.0
    %6172 = vmatpush1.msra.mxu0 0.0
    %6173 = vmatprep.subr.mxu0 0.0
    %6174 = vmatpush1.msra.mxu0 0.0
    %6175 = vmatprep.subr.mxu0 0.0
    %6176 = vmatpush1.msra.mxu0 0.0
    %6177 = vmatprep.subr.mxu0 0.0
    %6178 = vmatpush1.msra.mxu0 0.0
    %6179 = vmatprep.subr.mxu0 0.0
    %6180 = vmatpush1.msra.mxu0 0.0
    %6181 = vmatprep.subr.mxu0 0.0
    %6182 = vmatpush1.msra.mxu0 0.0
    %6183 = vmatprep.subr.mxu0 0.0
    %6184 = vmatpush1.msra.mxu0 0.0
    %6185 = vmatprep.subr.mxu0 0.0
    %6186 = vmatpush1.msra.mxu0 0.0
    %6187 = vmatprep.subr.mxu0 0.0
    %6188 = vmatpush1.msra.mxu0 0.0
    %6189 = vmatprep.subr.mxu0 0.0
    %6190 = vmatpush1.msra.mxu0 0.0
    %6191 = vmatprep.subr.mxu0 0.0
    %6192 = vmatpush1.msra.mxu0 0.0
    %6193 = vmatprep.subr.mxu0 0.0
    %6194 = vmatpush1.msra.mxu0 0.0
    %6195 = vmatprep.subr.mxu0 0.0
    %6196 = vmatpush1.msra.mxu0 0.0
    %6197 = vmatprep.subr.mxu0 0.0
    %6198 = vmatpush1.msra.mxu0 0.0
    %6199 = vmatprep.subr.mxu0 0.0
    %6200 = vmatpush1.msra.mxu0 0.0
    %6201 = vmatprep.subr.mxu0 0.0
    %6202 = vmatpush1.msra.mxu0 0.0
    %6203 = vmatprep.mubr.f32.mxu0 0.0
    %6204 = vmatmul.mubr.f32.gmra.mrb[0].mxu0 %v6134
    %v6205 = vpop.f32.mrb[0].mxu0
    %v6206 = vadd.f32 0.0, %v6205
    %v6207 = vpop.f32.mrb[0].mxu0
    %6208 = vmatprep.mubr.f32.mxu0 0.0
    %6209 = vmatmul.mubr.f32.gmra.mrb[0].mxu0 %v6137
    %v6210 = vpop.f32.mrb[0].mxu0
    %v6211 = vadd.f32 0.0, %v6210
    %v6212 = vpop.f32.mrb[0].mxu0
    %6213 = vdwg.mxu0
    %v6215 = vsel %vm247, %v4721, 0
    %v6218 = vsel %vm247, %v4724, 0
    %6220 = vmatprep.subr.mxu0 0.0
    %6221 = vmatpush1.msra.mxu0 %v6131
    %6222 = vmatprep.subr.mxu0 0.0
    %6223 = vmatpush1.msra.mxu0 0.0
    %6224 = vmatprep.subr.mxu0 0.0
    %6225 = vmatpush1.msra.mxu0 0.0
    %6226 = vmatprep.subr.mxu0 0.0
    %6227 = vmatpush1.msra.mxu0 0.0
    %6228 = vmatprep.subr.mxu0 0.0
    %6229 = vmatpush1.msra.mxu0 0.0
    %6230 = vmatprep.subr.mxu0 0.0
    %6231 = vmatpush1.msra.mxu0 0.0
    %6232 = vmatprep.subr.mxu0 0.0
    %6233 = vmatpush1.msra.mxu0 0.0
    %6234 = vmatprep.subr.mxu0 0.0
    %6235 = vmatpush1.msra.mxu0 0.0
    %6236 = vmatprep.subr.mxu0 0.0
    %6237 = vmatpush1.msra.mxu0 0.0
    %6238 = vmatprep.subr.mxu0 0.0
    %6239 = vmatpush1.msra.mxu0 0.0
    %6240 = vmatprep.subr.mxu0 0.0
    %6241 = vmatpush1.msra.mxu0 0.0
    %6242 = vmatprep.subr.mxu0 0.0
    %6243 = vmatpush1.msra.mxu0 0.0
    %6244 = vmatprep.subr.mxu0 0.0
    %6245 = vmatpush1.msra.mxu0 0.0
    %6246 = vmatprep.subr.mxu0 0.0
    %6247 = vmatpush1.msra.mxu0 0.0
    %6248 = vmatprep.subr.mxu0 0.0
    %6249 = vmatpush1.msra.mxu0 0.0
    %6250 = vmatprep.subr.mxu0 0.0
    %6251 = vmatpush1.msra.mxu0 0.0
    %6252 = vmatprep.subr.mxu0 0.0
    %6253 = vmatpush1.msra.mxu0 0.0
    %6254 = vmatprep.subr.mxu0 0.0
    %6255 = vmatpush1.msra.mxu0 0.0
    %6256 = vmatprep.subr.mxu0 0.0
    %6257 = vmatpush1.msra.mxu0 0.0
    %6258 = vmatprep.subr.mxu0 0.0
    %6259 = vmatpush1.msra.mxu0 0.0
    %6260 = vmatprep.subr.mxu0 0.0
    %6261 = vmatpush1.msra.mxu0 0.0
    %6262 = vmatprep.subr.mxu0 0.0
    %6263 = vmatpush1.msra.mxu0 0.0
    %6264 = vmatprep.subr.mxu0 0.0
    %6265 = vmatpush1.msra.mxu0 0.0
    %6266 = vmatprep.subr.mxu0 0.0
    %6267 = vmatpush1.msra.mxu0 0.0
    %6268 = vmatprep.subr.mxu0 0.0
    %6269 = vmatpush1.msra.mxu0 0.0
    %6270 = vmatprep.subr.mxu0 0.0
    %6271 = vmatpush1.msra.mxu0 0.0
    %6272 = vmatprep.subr.mxu0 0.0
    %6273 = vmatpush1.msra.mxu0 0.0
    %6274 = vmatprep.subr.mxu0 0.0
    %6275 = vmatpush1.msra.mxu0 0.0
    %6276 = vmatprep.subr.mxu0 0.0
    %6277 = vmatpush1.msra.mxu0 0.0
    %6278 = vmatprep.subr.mxu0 0.0
    %6279 = vmatpush1.msra.mxu0 0.0
    %6280 = vmatprep.subr.mxu0 0.0
    %6281 = vmatpush1.msra.mxu0 0.0
    %6282 = vmatprep.subr.mxu0 0.0
    %6283 = vmatpush1.msra.mxu0 0.0
    %6284 = vmatprep.mubr.f32.mxu0 0.0
    %6285 = vmatmul.mubr.f32.gmra.mrb[0].mxu0 %v6215
    %v6286 = vpop.f32.mrb[0].mxu0
    %v6287 = vadd.f32 %v6206, %v6286
    %v6288 = vpop.f32.mrb[0].mxu0
    %6289 = vmatprep.mubr.f32.mxu0 0.0
    %6290 = vmatmul.mubr.f32.gmra.mrb[0].mxu0 %v6218
    %v6291 = vpop.f32.mrb[0].mxu0
    %v6292 = vadd.f32 %v6211, %v6291
    %v6293 = vpop.f32.mrb[0].mxu0
    %6294 = vdwg.mxu0
    %v6295 = vadd.f32 %v6287, %v413
    %v6296 = vadd.f32 %v6292, %v418
    %v6297 = vpack.c.bf16 %v6296, %v6295
    %6299 = vrot.lane.b32.xlu0 %v6297, 16
    %v6300 = vpop.permute.xlu0 %6299
    %6302 = vst.msk [vmem:[#allocation2 + $0x28] sm:$0xff] %vm1826, %v6300
    %v6303 = vld [vmem:[#allocation7] sm:$0xff]
    %v6304 = vld [vmem:[%s245] sm:$0xff]
    %6305 = vrot.lane.b32.xlu0 %v4729, 120
    %v6306 = vpop.permute.xlu0 %6305
    %6307 = vrot.lane.b32.xlu0 %v4732, 120
    %v6308 = vpop.permute.xlu0 %6307
    %v6309 = vsel %vm247, %v6306, 0
    %v6311 = vsel %vm247, %v6308, 0
    %6313 = vmatprep.subr.mxu0 0.0
    %6314 = vmatpush1.msra.mxu0 %v6304
    %6315 = vmatprep.subr.mxu0 0.0
    %6316 = vmatpush1.msra.mxu0 0.0
    %6317 = vmatprep.subr.mxu0 0.0
    %6318 = vmatpush1.msra.mxu0 0.0
    %6319 = vmatprep.subr.mxu0 0.0
    %6320 = vmatpush1.msra.mxu0 0.0
    %6321 = vmatprep.subr.mxu0 0.0
    %6322 = vmatpush1.msra.mxu0 0.0
    %6323 = vmatprep.subr.mxu0 0.0
    %6324 = vmatpush1.msra.mxu0 0.0
    %6325 = vmatprep.subr.mxu0 0.0
    %6326 = vmatpush1.msra.mxu0 0.0
    %6327 = vmatprep.subr.mxu0 0.0
    %6328 = vmatpush1.msra.mxu0 0.0
    %6329 = vmatprep.subr.mxu0 0.0
    %6330 = vmatpush1.msra.mxu0 0.0
    %6331 = vmatprep.subr.mxu0 0.0
    %6332 = vmatpush1.msra.mxu0 0.0
    %6333 = vmatprep.subr.mxu0 0.0
    %6334 = vmatpush1.msra.mxu0 0.0
    %6335 = vmatprep.subr.mxu0 0.0
    %6336 = vmatpush1.msra.mxu0 0.0
    %6337 = vmatprep.subr.mxu0 0.0
    %6338 = vmatpush1.msra.mxu0 0.0
    %6339 = vmatprep.subr.mxu0 0.0
    %6340 = vmatpush1.msra.mxu0 0.0
    %6341 = vmatprep.subr.mxu0 0.0
    %6342 = vmatpush1.msra.mxu0 0.0
    %6343 = vmatprep.subr.mxu0 0.0
    %6344 = vmatpush1.msra.mxu0 0.0
    %6345 = vmatprep.subr.mxu0 0.0
    %6346 = vmatpush1.msra.mxu0 0.0
    %6347 = vmatprep.subr.mxu0 0.0
    %6348 = vmatpush1.msra.mxu0 0.0
    %6349 = vmatprep.subr.mxu0 0.0
    %6350 = vmatpush1.msra.mxu0 0.0
    %6351 = vmatprep.subr.mxu0 0.0
    %6352 = vmatpush1.msra.mxu0 0.0
    %6353 = vmatprep.subr.mxu0 0.0
    %6354 = vmatpush1.msra.mxu0 0.0
    %6355 = vmatprep.subr.mxu0 0.0
    %6356 = vmatpush1.msra.mxu0 0.0
    %6357 = vmatprep.subr.mxu0 0.0
    %6358 = vmatpush1.msra.mxu0 0.0
    %6359 = vmatprep.subr.mxu0 0.0
    %6360 = vmatpush1.msra.mxu0 0.0
    %6361 = vmatprep.subr.mxu0 0.0
    %6362 = vmatpush1.msra.mxu0 0.0
    %6363 = vmatprep.subr.mxu0 0.0
    %6364 = vmatpush1.msra.mxu0 0.0
    %6365 = vmatprep.subr.mxu0 0.0
    %6366 = vmatpush1.msra.mxu0 0.0
    %6367 = vmatprep.subr.mxu0 0.0
    %6368 = vmatpush1.msra.mxu0 0.0
    %6369 = vmatprep.subr.mxu0 0.0
    %6370 = vmatpush1.msra.mxu0 0.0
    %6371 = vmatprep.subr.mxu0 0.0
    %6372 = vmatpush1.msra.mxu0 0.0
    %6373 = vmatprep.subr.mxu0 0.0
    %6374 = vmatpush1.msra.mxu0 0.0
    %6375 = vmatprep.subr.mxu0 0.0
    %6376 = vmatpush1.msra.mxu0 0.0
    %6377 = vmatprep.mubr.f32.mxu0 0.0
    %6378 = vmatmul.mubr.f32.gmra.mrb[0].mxu0 %v6309
    %v6379 = vpop.f32.mrb[0].mxu0
    %v6380 = vadd.f32 0.0, %v6379
    %v6381 = vpop.f32.mrb[0].mxu0
    %6382 = vmatprep.mubr.f32.mxu0 0.0
    %6383 = vmatmul.mubr.f32.gmra.mrb[0].mxu0 %v6311
    %v6384 = vpop.f32.mrb[0].mxu0
    %v6385 = vadd.f32 0.0, %v6384
    %v6386 = vpop.f32.mrb[0].mxu0
    %6387 = vdwg.mxu0
    %6388 = vrot.lane.b32.xlu0 %v4721, 120
    %v6389 = vpop.permute.xlu0 %6388
    %6390 = vrot.lane.b32.xlu0 %v4724, 120
    %v6391 = vpop.permute.xlu0 %6390
    %v6392 = vsel %vm247, %v6389, 0
    %v6394 = vsel %vm247, %v6391, 0
    %6396 = vmatprep.subr.mxu0 0.0
    %6397 = vmatpush1.msra.mxu0 %v6303
    %6398 = vmatprep.subr.mxu0 0.0
    %6399 = vmatpush1.msra.mxu0 0.0
    %6400 = vmatprep.subr.mxu0 0.0
    %6401 = vmatpush1.msra.mxu0 0.0
    %6402 = vmatprep.subr.mxu0 0.0
    %6403 = vmatpush1.msra.mxu0 0.0
    %6404 = vmatprep.subr.mxu0 0.0
    %6405 = vmatpush1.msra.mxu0 0.0
    %6406 = vmatprep.subr.mxu0 0.0
    %6407 = vmatpush1.msra.mxu0 0.0
    %6408 = vmatprep.subr.mxu0 0.0
    %6409 = vmatpush1.msra.mxu0 0.0
    %6410 = vmatprep.subr.mxu0 0.0
    %6411 = vmatpush1.msra.mxu0 0.0
    %6412 = vmatprep.subr.mxu0 0.0
    %6413 = vmatpush1.msra.mxu0 0.0
    %6414 = vmatprep.subr.mxu0 0.0
    %6415 = vmatpush1.msra.mxu0 0.0
    %6416 = vmatprep.subr.mxu0 0.0
    %6417 = vmatpush1.msra.mxu0 0.0
    %6418 = vmatprep.subr.mxu0 0.0
    %6419 = vmatpush1.msra.mxu0 0.0
    %6420 = vmatprep.subr.mxu0 0.0
    %6421 = vmatpush1.msra.mxu0 0.0
    %6422 = vmatprep.subr.mxu0 0.0
    %6423 = vmatpush1.msra.mxu0 0.0
    %6424 = vmatprep.subr.mxu0 0.0
    %6425 = vmatpush1.msra.mxu0 0.0
    %6426 = vmatprep.subr.mxu0 0.0
    %6427 = vmatpush1.msra.mxu0 0.0
    %6428 = vmatprep.subr.mxu0 0.0
    %6429 = vmatpush1.msra.mxu0 0.0
    %6430 = vmatprep.subr.mxu0 0.0
    %6431 = vmatpush1.msra.mxu0 0.0
    %6432 = vmatprep.subr.mxu0 0.0
    %6433 = vmatpush1.msra.mxu0 0.0
    %6434 = vmatprep.subr.mxu0 0.0
    %6435 = vmatpush1.msra.mxu0 0.0
    %6436 = vmatprep.subr.mxu0 0.0
    %6437 = vmatpush1.msra.mxu0 0.0
    %6438 = vmatprep.subr.mxu0 0.0
    %6439 = vmatpush1.msra.mxu0 0.0
    %6440 = vmatprep.subr.mxu0 0.0
    %6441 = vmatpush1.msra.mxu0 0.0
    %6442 = vmatprep.subr.mxu0 0.0
    %6443 = vmatpush1.msra.mxu0 0.0
    %6444 = vmatprep.subr.mxu0 0.0
    %6445 = vmatpush1.msra.mxu0 0.0
    %6446 = vmatprep.subr.mxu0 0.0
    %6447 = vmatpush1.msra.mxu0 0.0
    %6448 = vmatprep.subr.mxu0 0.0
    %6449 = vmatpush1.msra.mxu0 0.0
    %6450 = vmatprep.subr.mxu0 0.0
    %6451 = vmatpush1.msra.mxu0 0.0
    %6452 = vmatprep.subr.mxu0 0.0
    %6453 = vmatpush1.msra.mxu0 0.0
    %6454 = vmatprep.subr.mxu0 0.0
    %6455 = vmatpush1.msra.mxu0 0.0
    %6456 = vmatprep.subr.mxu0 0.0
    %6457 = vmatpush1.msra.mxu0 0.0
    %6458 = vmatprep.subr.mxu0 0.0
    %6459 = vmatpush1.msra.mxu0 0.0
    %6460 = vmatprep.mubr.f32.mxu0 0.0
    %6461 = vmatmul.mubr.f32.gmra.mrb[0].mxu0 %v6392
    %v6462 = vpop.f32.mrb[0].mxu0
    %v6463 = vadd.f32 %v6380, %v6462
    %v6464 = vpop.f32.mrb[0].mxu0
    %6465 = vmatprep.mubr.f32.mxu0 0.0
    %6466 = vmatmul.mubr.f32.gmra.mrb[0].mxu0 %v6394
    %v6467 = vpop.f32.mrb[0].mxu0
    %v6468 = vadd.f32 %v6385, %v6467
    %v6469 = vpop.f32.mrb[0].mxu0
    %6470 = vdwg.mxu0
    %v6471 = vadd.f32 %v6463, %v413
    %v6472 = vadd.f32 %v6468, %v418
    %v6473 = vpack.c.bf16 %v6472, %v6471
    %6475 = vrot.lane.b32.xlu0 %v6473, 48
    %v6476 = vpop.permute.xlu0 %6475
    %6478 = vst.msk [vmem:[#allocation2 + $0x28] sm:$0xff] %vm2003, %v6476
    %v6479 = vld [vmem:[#allocation7] sm:$0xff]
    %v6480 = vld [vmem:[%s245] sm:$0xff]
    %6481 = vrot.lane.b32.xlu0 %v4729, 112
    %v6482 = vpop.permute.xlu0 %6481
    %6483 = vrot.lane.b32.xlu0 %v4732, 112
    %v6484 = vpop.permute.xlu0 %6483
    %v6485 = vsel %vm247, %v6482, 0
    %v6487 = vsel %vm247, %v6484, 0
    %6489 = vmatprep.subr.mxu0 0.0
    %6490 = vmatpush1.msra.mxu0 %v6480
    %6491 = vmatprep.subr.mxu0 0.0
    %6492 = vmatpush1.msra.mxu0 0.0
    %6493 = vmatprep.subr.mxu0 0.0
    %6494 = vmatpush1.msra.mxu0 0.0
    %6495 = vmatprep.subr.mxu0 0.0
    %6496 = vmatpush1.msra.mxu0 0.0
    %6497 = vmatprep.subr.mxu0 0.0
    %6498 = vmatpush1.msra.mxu0 0.0
    %6499 = vmatprep.subr.mxu0 0.0
    %6500 = vmatpush1.msra.mxu0 0.0
    %6501 = vmatprep.subr.mxu0 0.0
    %6502 = vmatpush1.msra.mxu0 0.0
    %6503 = vmatprep.subr.mxu0 0.0
    %6504 = vmatpush1.msra.mxu0 0.0
    %6505 = vmatprep.subr.mxu0 0.0
    %6506 = vmatpush1.msra.mxu0 0.0
    %6507 = vmatprep.subr.mxu0 0.0
    %6508 = vmatpush1.msra.mxu0 0.0
    %6509 = vmatprep.subr.mxu0 0.0
    %6510 = vmatpush1.msra.mxu0 0.0
    %6511 = vmatprep.subr.mxu0 0.0
    %6512 = vmatpush1.msra.mxu0 0.0
    %6513 = vmatprep.subr.mxu0 0.0
    %6514 = vmatpush1.msra.mxu0 0.0
    %6515 = vmatprep.subr.mxu0 0.0
    %6516 = vmatpush1.msra.mxu0 0.0
    %6517 = vmatprep.subr.mxu0 0.0
    %6518 = vmatpush1.msra.mxu0 0.0
    %6519 = vmatprep.subr.mxu0 0.0
    %6520 = vmatpush1.msra.mxu0 0.0
    %6521 = vmatprep.subr.mxu0 0.0
    %6522 = vmatpush1.msra.mxu0 0.0
    %6523 = vmatprep.subr.mxu0 0.0
    %6524 = vmatpush1.msra.mxu0 0.0
    %6525 = vmatprep.subr.mxu0 0.0
    %6526 = vmatpush1.msra.mxu0 0.0
    %6527 = vmatprep.subr.mxu0 0.0
    %6528 = vmatpush1.msra.mxu0 0.0
    %6529 = vmatprep.subr.mxu0 0.0
    %6530 = vmatpush1.msra.mxu0 0.0
    %6531 = vmatprep.subr.mxu0 0.0
    %6532 = vmatpush1.msra.mxu0 0.0
    %6533 = vmatprep.subr.mxu0 0.0
    %6534 = vmatpush1.msra.mxu0 0.0
    %6535 = vmatprep.subr.mxu0 0.0
    %6536 = vmatpush1.msra.mxu0 0.0
    %6537 = vmatprep.subr.mxu0 0.0
    %6538 = vmatpush1.msra.mxu0 0.0
    %6539 = vmatprep.subr.mxu0 0.0
    %6540 = vmatpush1.msra.mxu0 0.0
    %6541 = vmatprep.subr.mxu0 0.0
    %6542 = vmatpush1.msra.mxu0 0.0
    %6543 = vmatprep.subr.mxu0 0.0
    %6544 = vmatpush1.msra.mxu0 0.0
    %6545 = vmatprep.subr.mxu0 0.0
    %6546 = vmatpush1.msra.mxu0 0.0
    %6547 = vmatprep.subr.mxu0 0.0
    %6548 = vmatpush1.msra.mxu0 0.0
    %6549 = vmatprep.subr.mxu0 0.0
    %6550 = vmatpush1.msra.mxu0 0.0
    %6551 = vmatprep.subr.mxu0 0.0
    %6552 = vmatpush1.msra.mxu0 0.0
    %6553 = vmatprep.mubr.f32.mxu0 0.0
    %6554 = vmatmul.mubr.f32.gmra.mrb[0].mxu0 %v6485
    %v6555 = vpop.f32.mrb[0].mxu0
    %v6556 = vadd.f32 0.0, %v6555
    %v6557 = vpop.f32.mrb[0].mxu0
    %6558 = vmatprep.mubr.f32.mxu0 0.0
    %6559 = vmatmul.mubr.f32.gmra.mrb[0].mxu0 %v6487
    %v6560 = vpop.f32.mrb[0].mxu0
    %v6561 = vadd.f32 0.0, %v6560
    %v6562 = vpop.f32.mrb[0].mxu0
    %6563 = vdwg.mxu0
    %6564 = vrot.lane.b32.xlu0 %v4721, 112
    %v6565 = vpop.permute.xlu0 %6564
    %6566 = vrot.lane.b32.xlu0 %v4724, 112
    %v6567 = vpop.permute.xlu0 %6566
    %v6568 = vsel %vm247, %v6565, 0
    %v6570 = vsel %vm247, %v6567, 0
    %6572 = vmatprep.subr.mxu0 0.0
    %6573 = vmatpush1.msra.mxu0 %v6479
    %6574 = vmatprep.subr.mxu0 0.0
    %6575 = vmatpush1.msra.mxu0 0.0
    %6576 = vmatprep.subr.mxu0 0.0
    %6577 = vmatpush1.msra.mxu0 0.0
    %6578 = vmatprep.subr.mxu0 0.0
    %6579 = vmatpush1.msra.mxu0 0.0
    %6580 = vmatprep.subr.mxu0 0.0
    %6581 = vmatpush1.msra.mxu0 0.0
    %6582 = vmatprep.subr.mxu0 0.0
    %6583 = vmatpush1.msra.mxu0 0.0
    %6584 = vmatprep.subr.mxu0 0.0
    %6585 = vmatpush1.msra.mxu0 0.0
    %6586 = vmatprep.subr.mxu0 0.0
    %6587 = vmatpush1.msra.mxu0 0.0
    %6588 = vmatprep.subr.mxu0 0.0
    %6589 = vmatpush1.msra.mxu0 0.0
    %6590 = vmatprep.subr.mxu0 0.0
    %6591 = vmatpush1.msra.mxu0 0.0
    %6592 = vmatprep.subr.mxu0 0.0
    %6593 = vmatpush1.msra.mxu0 0.0
    %6594 = vmatprep.subr.mxu0 0.0
    %6595 = vmatpush1.msra.mxu0 0.0
    %6596 = vmatprep.subr.mxu0 0.0
    %6597 = vmatpush1.msra.mxu0 0.0
    %6598 = vmatprep.subr.mxu0 0.0
    %6599 = vmatpush1.msra.mxu0 0.0
    %6600 = vmatprep.subr.mxu0 0.0
    %6601 = vmatpush1.msra.mxu0 0.0
    %6602 = vmatprep.subr.mxu0 0.0
    %6603 = vmatpush1.msra.mxu0 0.0
    %6604 = vmatprep.subr.mxu0 0.0
    %6605 = vmatpush1.msra.mxu0 0.0
    %6606 = vmatprep.subr.mxu0 0.0
    %6607 = vmatpush1.msra.mxu0 0.0
    %6608 = vmatprep.subr.mxu0 0.0
    %6609 = vmatpush1.msra.mxu0 0.0
    %6610 = vmatprep.subr.mxu0 0.0
    %6611 = vmatpush1.msra.mxu0 0.0
    %6612 = vmatprep.subr.mxu0 0.0
    %6613 = vmatpush1.msra.mxu0 0.0
    %6614 = vmatprep.subr.mxu0 0.0
    %6615 = vmatpush1.msra.mxu0 0.0
    %6616 = vmatprep.subr.mxu0 0.0
    %6617 = vmatpush1.msra.mxu0 0.0
    %6618 = vmatprep.subr.mxu0 0.0
    %6619 = vmatpush1.msra.mxu0 0.0
    %6620 = vmatprep.subr.mxu0 0.0
    %6621 = vmatpush1.msra.mxu0 0.0
    %6622 = vmatprep.subr.mxu0 0.0
    %6623 = vmatpush1.msra.mxu0 0.0
    %6624 = vmatprep.subr.mxu0 0.0
    %6625 = vmatpush1.msra.mxu0 0.0
    %6626 = vmatprep.subr.mxu0 0.0
    %6627 = vmatpush1.msra.mxu0 0.0
    %6628 = vmatprep.subr.mxu0 0.0
    %6629 = vmatpush1.msra.mxu0 0.0
    %6630 = vmatprep.subr.mxu0 0.0
    %6631 = vmatpush1.msra.mxu0 0.0
    %6632 = vmatprep.subr.mxu0 0.0
    %6633 = vmatpush1.msra.mxu0 0.0
    %6634 = vmatprep.subr.mxu0 0.0
    %6635 = vmatpush1.msra.mxu0 0.0
    %6636 = vmatprep.mubr.f32.mxu0 0.0
    %6637 = vmatmul.mubr.f32.gmra.mrb[0].mxu0 %v6568
    %v6638 = vpop.f32.mrb[0].mxu0
    %v6639 = vadd.f32 %v6556, %v6638
    %v6640 = vpop.f32.mrb[0].mxu0
    %6641 = vmatprep.mubr.f32.mxu0 0.0
    %6642 = vmatmul.mubr.f32.gmra.mrb[0].mxu0 %v6570
    %v6643 = vpop.f32.mrb[0].mxu0
    %v6644 = vadd.f32 %v6561, %v6643
    %v6645 = vpop.f32.mrb[0].mxu0
    %6646 = vdwg.mxu0
    %v6647 = vadd.f32 %v6639, %v413
    %v6648 = vadd.f32 %v6644, %v418
    %v6649 = vpack.c.bf16 %v6648, %v6647
    %6651 = vrot.lane.b32.xlu0 %v6649, 80
    %v6652 = vpop.permute.xlu0 %6651
    %6654 = vst.msk [vmem:[#allocation2 + $0x28] sm:$0xff] %vm2180, %v6652
    %v6655 = vld [vmem:[#allocation7] sm:$0xff]
    %v6656 = vld [vmem:[%s245] sm:$0xff]
    %6657 = vrot.lane.b32.xlu0 %v4729, 104
    %v6658 = vpop.permute.xlu0 %6657
    %6659 = vrot.lane.b32.xlu0 %v4732, 104
    %v6660 = vpop.permute.xlu0 %6659
    %v6661 = vsel %vm247, %v6658, 0
    %v6663 = vsel %vm247, %v6660, 0
    %6665 = vmatprep.subr.mxu0 0.0
    %6666 = vmatpush1.msra.mxu0 %v6656
    %6667 = vmatprep.subr.mxu0 0.0
    %6668 = vmatpush1.msra.mxu0 0.0
    %6669 = vmatprep.subr.mxu0 0.0
    %6670 = vmatpush1.msra.mxu0 0.0
    %6671 = vmatprep.subr.mxu0 0.0
    %6672 = vmatpush1.msra.mxu0 0.0
    %6673 = vmatprep.subr.mxu0 0.0
    %6674 = vmatpush1.msra.mxu0 0.0
    %6675 = vmatprep.subr.mxu0 0.0
    %6676 = vmatpush1.msra.mxu0 0.0
    %6677 = vmatprep.subr.mxu0 0.0
    %6678 = vmatpush1.msra.mxu0 0.0
    %6679 = vmatprep.subr.mxu0 0.0
    %6680 = vmatpush1.msra.mxu0 0.0
    %6681 = vmatprep.subr.mxu0 0.0
    %6682 = vmatpush1.msra.mxu0 0.0
    %6683 = vmatprep.subr.mxu0 0.0
    %6684 = vmatpush1.msra.mxu0 0.0
    %6685 = vmatprep.subr.mxu0 0.0
    %6686 = vmatpush1.msra.mxu0 0.0
    %6687 = vmatprep.subr.mxu0 0.0
    %6688 = vmatpush1.msra.mxu0 0.0
    %6689 = vmatprep.subr.mxu0 0.0
    %6690 = vmatpush1.msra.mxu0 0.0
    %6691 = vmatprep.subr.mxu0 0.0
    %6692 = vmatpush1.msra.mxu0 0.0
    %6693 = vmatprep.subr.mxu0 0.0
    %6694 = vmatpush1.msra.mxu0 0.0
    %6695 = vmatprep.subr.mxu0 0.0
    %6696 = vmatpush1.msra.mxu0 0.0
    %6697 = vmatprep.subr.mxu0 0.0
    %6698 = vmatpush1.msra.mxu0 0.0
    %6699 = vmatprep.subr.mxu0 0.0
    %6700 = vmatpush1.msra.mxu0 0.0
    %6701 = vmatprep.subr.mxu0 0.0
    %6702 = vmatpush1.msra.mxu0 0.0
    %6703 = vmatprep.subr.mxu0 0.0
    %6704 = vmatpush1.msra.mxu0 0.0
    %6705 = vmatprep.subr.mxu0 0.0
    %6706 = vmatpush1.msra.mxu0 0.0
    %6707 = vmatprep.subr.mxu0 0.0
    %6708 = vmatpush1.msra.mxu0 0.0
    %6709 = vmatprep.subr.mxu0 0.0
    %6710 = vmatpush1.msra.mxu0 0.0
    %6711 = vmatprep.subr.mxu0 0.0
    %6712 = vmatpush1.msra.mxu0 0.0
    %6713 = vmatprep.subr.mxu0 0.0
    %6714 = vmatpush1.msra.mxu0 0.0
    %6715 = vmatprep.subr.mxu0 0.0
    %6716 = vmatpush1.msra.mxu0 0.0
    %6717 = vmatprep.subr.mxu0 0.0
    %6718 = vmatpush1.msra.mxu0 0.0
    %6719 = vmatprep.subr.mxu0 0.0
    %6720 = vmatpush1.msra.mxu0 0.0
    %6721 = vmatprep.subr.mxu0 0.0
    %6722 = vmatpush1.msra.mxu0 0.0
    %6723 = vmatprep.subr.mxu0 0.0
    %6724 = vmatpush1.msra.mxu0 0.0
    %6725 = vmatprep.subr.mxu0 0.0
    %6726 = vmatpush1.msra.mxu0 0.0
    %6727 = vmatprep.subr.mxu0 0.0
    %6728 = vmatpush1.msra.mxu0 0.0
    %6729 = vmatprep.mubr.f32.mxu0 0.0
    %6730 = vmatmul.mubr.f32.gmra.mrb[0].mxu0 %v6661
    %v6731 = vpop.f32.mrb[0].mxu0
    %v6732 = vadd.f32 0.0, %v6731
    %v6733 = vpop.f32.mrb[0].mxu0
    %6734 = vmatprep.mubr.f32.mxu0 0.0
    %6735 = vmatmul.mubr.f32.gmra.mrb[0].mxu0 %v6663
    %v6736 = vpop.f32.mrb[0].mxu0
    %v6737 = vadd.f32 0.0, %v6736
    %v6738 = vpop.f32.mrb[0].mxu0
    %6739 = vdwg.mxu0
    %6740 = vrot.lane.b32.xlu0 %v4721, 104
    %v6741 = vpop.permute.xlu0 %6740
    %6742 = vrot.lane.b32.xlu0 %v4724, 104
    %v6743 = vpop.permute.xlu0 %6742
    %v6744 = vsel %vm247, %v6741, 0
    %v6746 = vsel %vm247, %v6743, 0
    %6748 = vmatprep.subr.mxu0 0.0
    %6749 = vmatpush1.msra.mxu0 %v6655
    %6750 = vmatprep.subr.mxu0 0.0
    %6751 = vmatpush1.msra.mxu0 0.0
    %6752 = vmatprep.subr.mxu0 0.0
    %6753 = vmatpush1.msra.mxu0 0.0
    %6754 = vmatprep.subr.mxu0 0.0
    %6755 = vmatpush1.msra.mxu0 0.0
    %6756 = vmatprep.subr.mxu0 0.0
    %6757 = vmatpush1.msra.mxu0 0.0
    %6758 = vmatprep.subr.mxu0 0.0
    %6759 = vmatpush1.msra.mxu0 0.0
    %6760 = vmatprep.subr.mxu0 0.0
    %6761 = vmatpush1.msra.mxu0 0.0
    %6762 = vmatprep.subr.mxu0 0.0
    %6763 = vmatpush1.msra.mxu0 0.0
    %6764 = vmatprep.subr.mxu0 0.0
    %6765 = vmatpush1.msra.mxu0 0.0
    %6766 = vmatprep.subr.mxu0 0.0
    %6767 = vmatpush1.msra.mxu0 0.0
    %6768 = vmatprep.subr.mxu0 0.0
    %6769 = vmatpush1.msra.mxu0 0.0
    %6770 = vmatprep.subr.mxu0 0.0
    %6771 = vmatpush1.msra.mxu0 0.0
    %6772 = vmatprep.subr.mxu0 0.0
    %6773 = vmatpush1.msra.mxu0 0.0
    %6774 = vmatprep.subr.mxu0 0.0
    %6775 = vmatpush1.msra.mxu0 0.0
    %6776 = vmatprep.subr.mxu0 0.0
    %6777 = vmatpush1.msra.mxu0 0.0
    %6778 = vmatprep.subr.mxu0 0.0
    %6779 = vmatpush1.msra.mxu0 0.0
    %6780 = vmatprep.subr.mxu0 0.0
    %6781 = vmatpush1.msra.mxu0 0.0
    %6782 = vmatprep.subr.mxu0 0.0
    %6783 = vmatpush1.msra.mxu0 0.0
    %6784 = vmatprep.subr.mxu0 0.0
    %6785 = vmatpush1.msra.mxu0 0.0
    %6786 = vmatprep.subr.mxu0 0.0
    %6787 = vmatpush1.msra.mxu0 0.0
    %6788 = vmatprep.subr.mxu0 0.0
    %6789 = vmatpush1.msra.mxu0 0.0
    %6790 = vmatprep.subr.mxu0 0.0
    %6791 = vmatpush1.msra.mxu0 0.0
    %6792 = vmatprep.subr.mxu0 0.0
    %6793 = vmatpush1.msra.mxu0 0.0
    %6794 = vmatprep.subr.mxu0 0.0
    %6795 = vmatpush1.msra.mxu0 0.0
    %6796 = vmatprep.subr.mxu0 0.0
    %6797 = vmatpush1.msra.mxu0 0.0
    %6798 = vmatprep.subr.mxu0 0.0
    %6799 = vmatpush1.msra.mxu0 0.0
    %6800 = vmatprep.subr.mxu0 0.0
    %6801 = vmatpush1.msra.mxu0 0.0
    %6802 = vmatprep.subr.mxu0 0.0
    %6803 = vmatpush1.msra.mxu0 0.0
    %6804 = vmatprep.subr.mxu0 0.0
    %6805 = vmatpush1.msra.mxu0 0.0
    %6806 = vmatprep.subr.mxu0 0.0
    %6807 = vmatpush1.msra.mxu0 0.0
    %6808 = vmatprep.subr.mxu0 0.0
    %6809 = vmatpush1.msra.mxu0 0.0
    %6810 = vmatprep.subr.mxu0 0.0
    %6811 = vmatpush1.msra.mxu0 0.0
    %6812 = vmatprep.mubr.f32.mxu0 0.0
    %6813 = vmatmul.mubr.f32.gmra.mrb[0].mxu0 %v6744
    %v6814 = vpop.f32.mrb[0].mxu0
    %v6815 = vadd.f32 %v6732, %v6814
    %v6816 = vpop.f32.mrb[0].mxu0
    %6817 = vmatprep.mubr.f32.mxu0 0.0
    %6818 = vmatmul.mubr.f32.gmra.mrb[0].mxu0 %v6746
    %v6819 = vpop.f32.mrb[0].mxu0
    %v6820 = vadd.f32 %v6737, %v6819
    %v6821 = vpop.f32.mrb[0].mxu0
    %6822 = vdwg.mxu0
    %v6823 = vadd.f32 %v6815, %v413
    %v6824 = vadd.f32 %v6820, %v418
    %v6825 = vpack.c.bf16 %v6824, %v6823
    %6827 = vrot.lane.b32.xlu0 %v6825, 112
    %v6828 = vpop.permute.xlu0 %6827
    %6830 = vst.msk [vmem:[#allocation2 + $0x28] sm:$0xff] %vm2357, %v6828
    %v6831 = vld [vmem:[#allocation7] sm:$0xff]
    %v6832 = vld [vmem:[%s245] sm:$0xff]
    %6833 = vrot.lane.b32.xlu0 %v4729, 96
    %v6834 = vpop.permute.xlu0 %6833
    %6835 = vrot.lane.b32.xlu0 %v4732, 96
    %v6836 = vpop.permute.xlu0 %6835
    %v6837 = vsel %vm247, %v6834, 0
    %v6839 = vsel %vm247, %v6836, 0
    %6841 = vmatprep.subr.mxu0 0.0
    %6842 = vmatpush1.msra.mxu0 %v6832
    %6843 = vmatprep.subr.mxu0 0.0
    %6844 = vmatpush1.msra.mxu0 0.0
    %6845 = vmatprep.subr.mxu0 0.0
    %6846 = vmatpush1.msra.mxu0 0.0
    %6847 = vmatprep.subr.mxu0 0.0
    %6848 = vmatpush1.msra.mxu0 0.0
    %6849 = vmatprep.subr.mxu0 0.0
    %6850 = vmatpush1.msra.mxu0 0.0
    %6851 = vmatprep.subr.mxu0 0.0
    %6852 = vmatpush1.msra.mxu0 0.0
    %6853 = vmatprep.subr.mxu0 0.0
    %6854 = vmatpush1.msra.mxu0 0.0
    %6855 = vmatprep.subr.mxu0 0.0
    %6856 = vmatpush1.msra.mxu0 0.0
    %6857 = vmatprep.subr.mxu0 0.0
    %6858 = vmatpush1.msra.mxu0 0.0
    %6859 = vmatprep.subr.mxu0 0.0
    %6860 = vmatpush1.msra.mxu0 0.0
    %6861 = vmatprep.subr.mxu0 0.0
    %6862 = vmatpush1.msra.mxu0 0.0
    %6863 = vmatprep.subr.mxu0 0.0
    %6864 = vmatpush1.msra.mxu0 0.0
    %6865 = vmatprep.subr.mxu0 0.0
    %6866 = vmatpush1.msra.mxu0 0.0
    %6867 = vmatprep.subr.mxu0 0.0
    %6868 = vmatpush1.msra.mxu0 0.0
    %6869 = vmatprep.subr.mxu0 0.0
    %6870 = vmatpush1.msra.mxu0 0.0
    %6871 = vmatprep.subr.mxu0 0.0
    %6872 = vmatpush1.msra.mxu0 0.0
    %6873 = vmatprep.subr.mxu0 0.0
    %6874 = vmatpush1.msra.mxu0 0.0
    %6875 = vmatprep.subr.mxu0 0.0
    %6876 = vmatpush1.msra.mxu0 0.0
    %6877 = vmatprep.subr.mxu0 0.0
    %6878 = vmatpush1.msra.mxu0 0.0
    %6879 = vmatprep.subr.mxu0 0.0
    %6880 = vmatpush1.msra.mxu0 0.0
    %6881 = vmatprep.subr.mxu0 0.0
    %6882 = vmatpush1.msra.mxu0 0.0
    %6883 = vmatprep.subr.mxu0 0.0
    %6884 = vmatpush1.msra.mxu0 0.0
    %6885 = vmatprep.subr.mxu0 0.0
    %6886 = vmatpush1.msra.mxu0 0.0
    %6887 = vmatprep.subr.mxu0 0.0
    %6888 = vmatpush1.msra.mxu0 0.0
    %6889 = vmatprep.subr.mxu0 0.0
    %6890 = vmatpush1.msra.mxu0 0.0
    %6891 = vmatprep.subr.mxu0 0.0
    %6892 = vmatpush1.msra.mxu0 0.0
    %6893 = vmatprep.subr.mxu0 0.0
    %6894 = vmatpush1.msra.mxu0 0.0
    %6895 = vmatprep.subr.mxu0 0.0
    %6896 = vmatpush1.msra.mxu0 0.0
    %6897 = vmatprep.subr.mxu0 0.0
    %6898 = vmatpush1.msra.mxu0 0.0
    %6899 = vmatprep.subr.mxu0 0.0
    %6900 = vmatpush1.msra.mxu0 0.0
    %6901 = vmatprep.subr.mxu0 0.0
    %6902 = vmatpush1.msra.mxu0 0.0
    %6903 = vmatprep.subr.mxu0 0.0
    %6904 = vmatpush1.msra.mxu0 0.0
    %6905 = vmatprep.mubr.f32.mxu0 0.0
    %6906 = vmatmul.mubr.f32.gmra.mrb[0].mxu0 %v6837
    %v6907 = vpop.f32.mrb[0].mxu0
    %v6908 = vadd.f32 0.0, %v6907
    %v6909 = vpop.f32.mrb[0].mxu0
    %6910 = vmatprep.mubr.f32.mxu0 0.0
    %6911 = vmatmul.mubr.f32.gmra.mrb[0].mxu0 %v6839
    %v6912 = vpop.f32.mrb[0].mxu0
    %v6913 = vadd.f32 0.0, %v6912
    %v6914 = vpop.f32.mrb[0].mxu0
    %6915 = vdwg.mxu0
    %6916 = vrot.lane.b32.xlu0 %v4721, 96
    %v6917 = vpop.permute.xlu0 %6916
    %6918 = vrot.lane.b32.xlu0 %v4724, 96
    %v6919 = vpop.permute.xlu0 %6918
    %v6920 = vsel %vm247, %v6917, 0
    %v6922 = vsel %vm247, %v6919, 0
    %6924 = vmatprep.subr.mxu0 0.0
    %6925 = vmatpush1.msra.mxu0 %v6831
    %6926 = vmatprep.subr.mxu0 0.0
    %6927 = vmatpush1.msra.mxu0 0.0
    %6928 = vmatprep.subr.mxu0 0.0
    %6929 = vmatpush1.msra.mxu0 0.0
    %6930 = vmatprep.subr.mxu0 0.0
    %6931 = vmatpush1.msra.mxu0 0.0
    %6932 = vmatprep.subr.mxu0 0.0
    %6933 = vmatpush1.msra.mxu0 0.0
    %6934 = vmatprep.subr.mxu0 0.0
    %6935 = vmatpush1.msra.mxu0 0.0
    %6936 = vmatprep.subr.mxu0 0.0
    %6937 = vmatpush1.msra.mxu0 0.0
    %6938 = vmatprep.subr.mxu0 0.0
    %6939 = vmatpush1.msra.mxu0 0.0
    %6940 = vmatprep.subr.mxu0 0.0
    %6941 = vmatpush1.msra.mxu0 0.0
    %6942 = vmatprep.subr.mxu0 0.0
    %6943 = vmatpush1.msra.mxu0 0.0
    %6944 = vmatprep.subr.mxu0 0.0
    %6945 = vmatpush1.msra.mxu0 0.0
    %6946 = vmatprep.subr.mxu0 0.0
    %6947 = vmatpush1.msra.mxu0 0.0
    %6948 = vmatprep.subr.mxu0 0.0
    %6949 = vmatpush1.msra.mxu0 0.0
    %6950 = vmatprep.subr.mxu0 0.0
    %6951 = vmatpush1.msra.mxu0 0.0
    %6952 = vmatprep.subr.mxu0 0.0
    %6953 = vmatpush1.msra.mxu0 0.0
    %6954 = vmatprep.subr.mxu0 0.0
    %6955 = vmatpush1.msra.mxu0 0.0
    %6956 = vmatprep.subr.mxu0 0.0
    %6957 = vmatpush1.msra.mxu0 0.0
    %6958 = vmatprep.subr.mxu0 0.0
    %6959 = vmatpush1.msra.mxu0 0.0
    %6960 = vmatprep.subr.mxu0 0.0
    %6961 = vmatpush1.msra.mxu0 0.0
    %6962 = vmatprep.subr.mxu0 0.0
    %6963 = vmatpush1.msra.mxu0 0.0
    %6964 = vmatprep.subr.mxu0 0.0
    %6965 = vmatpush1.msra.mxu0 0.0
    %6966 = vmatprep.subr.mxu0 0.0
    %6967 = vmatpush1.msra.mxu0 0.0
    %6968 = vmatprep.subr.mxu0 0.0
    %6969 = vmatpush1.msra.mxu0 0.0
    %6970 = vmatprep.subr.mxu0 0.0
    %6971 = vmatpush1.msra.mxu0 0.0
    %6972 = vmatprep.subr.mxu0 0.0
    %6973 = vmatpush1.msra.mxu0 0.0
    %6974 = vmatprep.subr.mxu0 0.0
    %6975 = vmatpush1.msra.mxu0 0.0
    %6976 = vmatprep.subr.mxu0 0.0
    %6977 = vmatpush1.msra.mxu0 0.0
    %6978 = vmatprep.subr.mxu0 0.0
    %6979 = vmatpush1.msra.mxu0 0.0
    %6980 = vmatprep.subr.mxu0 0.0
    %6981 = vmatpush1.msra.mxu0 0.0
    %6982 = vmatprep.subr.mxu0 0.0
    %6983 = vmatpush1.msra.mxu0 0.0
    %6984 = vmatprep.subr.mxu0 0.0
    %6985 = vmatpush1.msra.mxu0 0.0
    %6986 = vmatprep.subr.mxu0 0.0
    %6987 = vmatpush1.msra.mxu0 0.0
    %6988 = vmatprep.mubr.f32.mxu0 0.0
    %6989 = vmatmul.mubr.f32.gmra.mrb[0].mxu0 %v6920
    %v6990 = vpop.f32.mrb[0].mxu0
    %v6991 = vadd.f32 %v6908, %v6990
    %v6992 = vpop.f32.mrb[0].mxu0
    %6993 = vmatprep.mubr.f32.mxu0 0.0
    %6994 = vmatmul.mubr.f32.gmra.mrb[0].mxu0 %v6922
    %v6995 = vpop.f32.mrb[0].mxu0
    %v6996 = vadd.f32 %v6913, %v6995
    %v6997 = vpop.f32.mrb[0].mxu0
    %6998 = vdwg.mxu0
    %v6999 = vadd.f32 %v6991, %v413
    %v7000 = vadd.f32 %v6996, %v418
    %v7001 = vpack.c.bf16 %v7000, %v6999
    %7003 = vrot.lane.b32.xlu0 %v7001, 16
    %v7004 = vpop.permute.xlu0 %7003
    %7006 = vst.msk [vmem:[#allocation2 + $0x30] sm:$0xff] %vm1826, %v7004
    %v7007 = vld [vmem:[#allocation7] sm:$0xff]
    %v7008 = vld [vmem:[%s245] sm:$0xff]
    %7009 = vrot.lane.b32.xlu0 %v4729, 88
    %v7010 = vpop.permute.xlu0 %7009
    %7011 = vrot.lane.b32.xlu0 %v4732, 88
    %v7012 = vpop.permute.xlu0 %7011
    %v7013 = vsel %vm247, %v7010, 0
    %v7015 = vsel %vm247, %v7012, 0
    %7017 = vmatprep.subr.mxu0 0.0
    %7018 = vmatpush1.msra.mxu0 %v7008
    %7019 = vmatprep.subr.mxu0 0.0
    %7020 = vmatpush1.msra.mxu0 0.0
    %7021 = vmatprep.subr.mxu0 0.0
    %7022 = vmatpush1.msra.mxu0 0.0
    %7023 = vmatprep.subr.mxu0 0.0
    %7024 = vmatpush1.msra.mxu0 0.0
    %7025 = vmatprep.subr.mxu0 0.0
    %7026 = vmatpush1.msra.mxu0 0.0
    %7027 = vmatprep.subr.mxu0 0.0
    %7028 = vmatpush1.msra.mxu0 0.0
    %7029 = vmatprep.subr.mxu0 0.0
    %7030 = vmatpush1.msra.mxu0 0.0
    %7031 = vmatprep.subr.mxu0 0.0
    %7032 = vmatpush1.msra.mxu0 0.0
    %7033 = vmatprep.subr.mxu0 0.0
    %7034 = vmatpush1.msra.mxu0 0.0
    %7035 = vmatprep.subr.mxu0 0.0
    %7036 = vmatpush1.msra.mxu0 0.0
    %7037 = vmatprep.subr.mxu0 0.0
    %7038 = vmatpush1.msra.mxu0 0.0
    %7039 = vmatprep.subr.mxu0 0.0
    %7040 = vmatpush1.msra.mxu0 0.0
    %7041 = vmatprep.subr.mxu0 0.0
    %7042 = vmatpush1.msra.mxu0 0.0
    %7043 = vmatprep.subr.mxu0 0.0
    %7044 = vmatpush1.msra.mxu0 0.0
    %7045 = vmatprep.subr.mxu0 0.0
    %7046 = vmatpush1.msra.mxu0 0.0
    %7047 = vmatprep.subr.mxu0 0.0
    %7048 = vmatpush1.msra.mxu0 0.0
    %7049 = vmatprep.subr.mxu0 0.0
    %7050 = vmatpush1.msra.mxu0 0.0
    %7051 = vmatprep.subr.mxu0 0.0
    %7052 = vmatpush1.msra.mxu0 0.0
    %7053 = vmatprep.subr.mxu0 0.0
    %7054 = vmatpush1.msra.mxu0 0.0
    %7055 = vmatprep.subr.mxu0 0.0
    %7056 = vmatpush1.msra.mxu0 0.0
    %7057 = vmatprep.subr.mxu0 0.0
    %7058 = vmatpush1.msra.mxu0 0.0
    %7059 = vmatprep.subr.mxu0 0.0
    %7060 = vmatpush1.msra.mxu0 0.0
    %7061 = vmatprep.subr.mxu0 0.0
    %7062 = vmatpush1.msra.mxu0 0.0
    %7063 = vmatprep.subr.mxu0 0.0
    %7064 = vmatpush1.msra.mxu0 0.0
    %7065 = vmatprep.subr.mxu0 0.0
    %7066 = vmatpush1.msra.mxu0 0.0
    %7067 = vmatprep.subr.mxu0 0.0
    %7068 = vmatpush1.msra.mxu0 0.0
    %7069 = vmatprep.subr.mxu0 0.0
    %7070 = vmatpush1.msra.mxu0 0.0
    %7071 = vmatprep.subr.mxu0 0.0
    %7072 = vmatpush1.msra.mxu0 0.0
    %7073 = vmatprep.subr.mxu0 0.0
    %7074 = vmatpush1.msra.mxu0 0.0
    %7075 = vmatprep.subr.mxu0 0.0
    %7076 = vmatpush1.msra.mxu0 0.0
    %7077 = vmatprep.subr.mxu0 0.0
    %7078 = vmatpush1.msra.mxu0 0.0
    %7079 = vmatprep.subr.mxu0 0.0
    %7080 = vmatpush1.msra.mxu0 0.0
    %7081 = vmatprep.mubr.f32.mxu0 0.0
    %7082 = vmatmul.mubr.f32.gmra.mrb[0].mxu0 %v7013
    %v7083 = vpop.f32.mrb[0].mxu0
    %v7084 = vadd.f32 0.0, %v7083
    %v7085 = vpop.f32.mrb[0].mxu0
    %7086 = vmatprep.mubr.f32.mxu0 0.0
    %7087 = vmatmul.mubr.f32.gmra.mrb[0].mxu0 %v7015
    %v7088 = vpop.f32.mrb[0].mxu0
    %v7089 = vadd.f32 0.0, %v7088
    %v7090 = vpop.f32.mrb[0].mxu0
    %7091 = vdwg.mxu0
    %7092 = vrot.lane.b32.xlu0 %v4721, 88
    %v7093 = vpop.permute.xlu0 %7092
    %7094 = vrot.lane.b32.xlu0 %v4724, 88
    %v7095 = vpop.permute.xlu0 %7094
    %v7096 = vsel %vm247, %v7093, 0
    %v7098 = vsel %vm247, %v7095, 0
    %7100 = vmatprep.subr.mxu0 0.0
    %7101 = vmatpush1.msra.mxu0 %v7007
    %7102 = vmatprep.subr.mxu0 0.0
    %7103 = vmatpush1.msra.mxu0 0.0
    %7104 = vmatprep.subr.mxu0 0.0
    %7105 = vmatpush1.msra.mxu0 0.0
    %7106 = vmatprep.subr.mxu0 0.0
    %7107 = vmatpush1.msra.mxu0 0.0
    %7108 = vmatprep.subr.mxu0 0.0
    %7109 = vmatpush1.msra.mxu0 0.0
    %7110 = vmatprep.subr.mxu0 0.0
    %7111 = vmatpush1.msra.mxu0 0.0
    %7112 = vmatprep.subr.mxu0 0.0
    %7113 = vmatpush1.msra.mxu0 0.0
    %7114 = vmatprep.subr.mxu0 0.0
    %7115 = vmatpush1.msra.mxu0 0.0
    %7116 = vmatprep.subr.mxu0 0.0
    %7117 = vmatpush1.msra.mxu0 0.0
    %7118 = vmatprep.subr.mxu0 0.0
    %7119 = vmatpush1.msra.mxu0 0.0
    %7120 = vmatprep.subr.mxu0 0.0
    %7121 = vmatpush1.msra.mxu0 0.0
    %7122 = vmatprep.subr.mxu0 0.0
    %7123 = vmatpush1.msra.mxu0 0.0
    %7124 = vmatprep.subr.mxu0 0.0
    %7125 = vmatpush1.msra.mxu0 0.0
    %7126 = vmatprep.subr.mxu0 0.0
    %7127 = vmatpush1.msra.mxu0 0.0
    %7128 = vmatprep.subr.mxu0 0.0
    %7129 = vmatpush1.msra.mxu0 0.0
    %7130 = vmatprep.subr.mxu0 0.0
    %7131 = vmatpush1.msra.mxu0 0.0
    %7132 = vmatprep.subr.mxu0 0.0
    %7133 = vmatpush1.msra.mxu0 0.0
    %7134 = vmatprep.subr.mxu0 0.0
    %7135 = vmatpush1.msra.mxu0 0.0
    %7136 = vmatprep.subr.mxu0 0.0
    %7137 = vmatpush1.msra.mxu0 0.0
    %7138 = vmatprep.subr.mxu0 0.0
    %7139 = vmatpush1.msra.mxu0 0.0
    %7140 = vmatprep.subr.mxu0 0.0
    %7141 = vmatpush1.msra.mxu0 0.0
    %7142 = vmatprep.subr.mxu0 0.0
    %7143 = vmatpush1.msra.mxu0 0.0
    %7144 = vmatprep.subr.mxu0 0.0
    %7145 = vmatpush1.msra.mxu0 0.0
    %7146 = vmatprep.subr.mxu0 0.0
    %7147 = vmatpush1.msra.mxu0 0.0
    %7148 = vmatprep.subr.mxu0 0.0
    %7149 = vmatpush1.msra.mxu0 0.0
    %7150 = vmatprep.subr.mxu0 0.0
    %7151 = vmatpush1.msra.mxu0 0.0
    %7152 = vmatprep.subr.mxu0 0.0
    %7153 = vmatpush1.msra.mxu0 0.0
    %7154 = vmatprep.subr.mxu0 0.0
    %7155 = vmatpush1.msra.mxu0 0.0
    %7156 = vmatprep.subr.mxu0 0.0
    %7157 = vmatpush1.msra.mxu0 0.0
    %7158 = vmatprep.subr.mxu0 0.0
    %7159 = vmatpush1.msra.mxu0 0.0
    %7160 = vmatprep.subr.mxu0 0.0
    %7161 = vmatpush1.msra.mxu0 0.0
    %7162 = vmatprep.subr.mxu0 0.0
    %7163 = vmatpush1.msra.mxu0 0.0
    %7164 = vmatprep.mubr.f32.mxu0 0.0
    %7165 = vmatmul.mubr.f32.gmra.mrb[0].mxu0 %v7096
    %v7166 = vpop.f32.mrb[0].mxu0
    %v7167 = vadd.f32 %v7084, %v7166
    %v7168 = vpop.f32.mrb[0].mxu0
    %7169 = vmatprep.mubr.f32.mxu0 0.0
    %7170 = vmatmul.mubr.f32.gmra.mrb[0].mxu0 %v7098
    %v7171 = vpop.f32.mrb[0].mxu0
    %v7172 = vadd.f32 %v7089, %v7171
    %v7173 = vpop.f32.mrb[0].mxu0
    %7174 = vdwg.mxu0
    %v7175 = vadd.f32 %v7167, %v413
    %v7176 = vadd.f32 %v7172, %v418
    %v7177 = vpack.c.bf16 %v7176, %v7175
    %7179 = vrot.lane.b32.xlu0 %v7177, 48
    %v7180 = vpop.permute.xlu0 %7179
    %7182 = vst.msk [vmem:[#allocation2 + $0x30] sm:$0xff] %vm2003, %v7180
    %v7183 = vld [vmem:[#allocation7] sm:$0xff]
    %v7184 = vld [vmem:[%s245] sm:$0xff]
    %7185 = vrot.lane.b32.xlu0 %v4729, 80
    %v7186 = vpop.permute.xlu0 %7185
    %7187 = vrot.lane.b32.xlu0 %v4732, 80
    %v7188 = vpop.permute.xlu0 %7187
    %v7189 = vsel %vm247, %v7186, 0
    %v7191 = vsel %vm247, %v7188, 0
    %7193 = vmatprep.subr.mxu0 0.0
    %7194 = vmatpush1.msra.mxu0 %v7184
    %7195 = vmatprep.subr.mxu0 0.0
    %7196 = vmatpush1.msra.mxu0 0.0
    %7197 = vmatprep.subr.mxu0 0.0
    %7198 = vmatpush1.msra.mxu0 0.0
    %7199 = vmatprep.subr.mxu0 0.0
    %7200 = vmatpush1.msra.mxu0 0.0
    %7201 = vmatprep.subr.mxu0 0.0
    %7202 = vmatpush1.msra.mxu0 0.0
    %7203 = vmatprep.subr.mxu0 0.0
    %7204 = vmatpush1.msra.mxu0 0.0
    %7205 = vmatprep.subr.mxu0 0.0
    %7206 = vmatpush1.msra.mxu0 0.0
    %7207 = vmatprep.subr.mxu0 0.0
    %7208 = vmatpush1.msra.mxu0 0.0
    %7209 = vmatprep.subr.mxu0 0.0
    %7210 = vmatpush1.msra.mxu0 0.0
    %7211 = vmatprep.subr.mxu0 0.0
    %7212 = vmatpush1.msra.mxu0 0.0
    %7213 = vmatprep.subr.mxu0 0.0
    %7214 = vmatpush1.msra.mxu0 0.0
    %7215 = vmatprep.subr.mxu0 0.0
    %7216 = vmatpush1.msra.mxu0 0.0
    %7217 = vmatprep.subr.mxu0 0.0
    %7218 = vmatpush1.msra.mxu0 0.0
    %7219 = vmatprep.subr.mxu0 0.0
    %7220 = vmatpush1.msra.mxu0 0.0
    %7221 = vmatprep.subr.mxu0 0.0
    %7222 = vmatpush1.msra.mxu0 0.0
    %7223 = vmatprep.subr.mxu0 0.0
    %7224 = vmatpush1.msra.mxu0 0.0
    %7225 = vmatprep.subr.mxu0 0.0
    %7226 = vmatpush1.msra.mxu0 0.0
    %7227 = vmatprep.subr.mxu0 0.0
    %7228 = vmatpush1.msra.mxu0 0.0
    %7229 = vmatprep.subr.mxu0 0.0
    %7230 = vmatpush1.msra.mxu0 0.0
    %7231 = vmatprep.subr.mxu0 0.0
    %7232 = vmatpush1.msra.mxu0 0.0
    %7233 = vmatprep.subr.mxu0 0.0
    %7234 = vmatpush1.msra.mxu0 0.0
    %7235 = vmatprep.subr.mxu0 0.0
    %7236 = vmatpush1.msra.mxu0 0.0
    %7237 = vmatprep.subr.mxu0 0.0
    %7238 = vmatpush1.msra.mxu0 0.0
    %7239 = vmatprep.subr.mxu0 0.0
    %7240 = vmatpush1.msra.mxu0 0.0
    %7241 = vmatprep.subr.mxu0 0.0
    %7242 = vmatpush1.msra.mxu0 0.0
    %7243 = vmatprep.subr.mxu0 0.0
    %7244 = vmatpush1.msra.mxu0 0.0
    %7245 = vmatprep.subr.mxu0 0.0
    %7246 = vmatpush1.msra.mxu0 0.0
    %7247 = vmatprep.subr.mxu0 0.0
    %7248 = vmatpush1.msra.mxu0 0.0
    %7249 = vmatprep.subr.mxu0 0.0
    %7250 = vmatpush1.msra.mxu0 0.0
    %7251 = vmatprep.subr.mxu0 0.0
    %7252 = vmatpush1.msra.mxu0 0.0
    %7253 = vmatprep.subr.mxu0 0.0
    %7254 = vmatpush1.msra.mxu0 0.0
    %7255 = vmatprep.subr.mxu0 0.0
    %7256 = vmatpush1.msra.mxu0 0.0
    %7257 = vmatprep.mubr.f32.mxu0 0.0
    %7258 = vmatmul.mubr.f32.gmra.mrb[0].mxu0 %v7189
    %v7259 = vpop.f32.mrb[0].mxu0
    %v7260 = vadd.f32 0.0, %v7259
    %v7261 = vpop.f32.mrb[0].mxu0
    %7262 = vmatprep.mubr.f32.mxu0 0.0
    %7263 = vmatmul.mubr.f32.gmra.mrb[0].mxu0 %v7191
    %v7264 = vpop.f32.mrb[0].mxu0
    %v7265 = vadd.f32 0.0, %v7264
    %v7266 = vpop.f32.mrb[0].mxu0
    %7267 = vdwg.mxu0
    %7268 = vrot.lane.b32.xlu0 %v4721, 80
    %v7269 = vpop.permute.xlu0 %7268
    %7270 = vrot.lane.b32.xlu0 %v4724, 80
    %v7271 = vpop.permute.xlu0 %7270
    %v7272 = vsel %vm247, %v7269, 0
    %v7274 = vsel %vm247, %v7271, 0
    %7276 = vmatprep.subr.mxu0 0.0
    %7277 = vmatpush1.msra.mxu0 %v7183
    %7278 = vmatprep.subr.mxu0 0.0
    %7279 = vmatpush1.msra.mxu0 0.0
    %7280 = vmatprep.subr.mxu0 0.0
    %7281 = vmatpush1.msra.mxu0 0.0
    %7282 = vmatprep.subr.mxu0 0.0
    %7283 = vmatpush1.msra.mxu0 0.0
    %7284 = vmatprep.subr.mxu0 0.0
    %7285 = vmatpush1.msra.mxu0 0.0
    %7286 = vmatprep.subr.mxu0 0.0
    %7287 = vmatpush1.msra.mxu0 0.0
    %7288 = vmatprep.subr.mxu0 0.0
    %7289 = vmatpush1.msra.mxu0 0.0
    %7290 = vmatprep.subr.mxu0 0.0
    %7291 = vmatpush1.msra.mxu0 0.0
    %7292 = vmatprep.subr.mxu0 0.0
    %7293 = vmatpush1.msra.mxu0 0.0
    %7294 = vmatprep.subr.mxu0 0.0
    %7295 = vmatpush1.msra.mxu0 0.0
    %7296 = vmatprep.subr.mxu0 0.0
    %7297 = vmatpush1.msra.mxu0 0.0
    %7298 = vmatprep.subr.mxu0 0.0
    %7299 = vmatpush1.msra.mxu0 0.0
    %7300 = vmatprep.subr.mxu0 0.0
    %7301 = vmatpush1.msra.mxu0 0.0
    %7302 = vmatprep.subr.mxu0 0.0
    %7303 = vmatpush1.msra.mxu0 0.0
    %7304 = vmatprep.subr.mxu0 0.0
    %7305 = vmatpush1.msra.mxu0 0.0
    %7306 = vmatprep.subr.mxu0 0.0
    %7307 = vmatpush1.msra.mxu0 0.0
    %7308 = vmatprep.subr.mxu0 0.0
    %7309 = vmatpush1.msra.mxu0 0.0
    %7310 = vmatprep.subr.mxu0 0.0
    %7311 = vmatpush1.msra.mxu0 0.0
    %7312 = vmatprep.subr.mxu0 0.0
    %7313 = vmatpush1.msra.mxu0 0.0
    %7314 = vmatprep.subr.mxu0 0.0
    %7315 = vmatpush1.msra.mxu0 0.0
    %7316 = vmatprep.subr.mxu0 0.0
    %7317 = vmatpush1.msra.mxu0 0.0
    %7318 = vmatprep.subr.mxu0 0.0
    %7319 = vmatpush1.msra.mxu0 0.0
    %7320 = vmatprep.subr.mxu0 0.0
    %7321 = vmatpush1.msra.mxu0 0.0
    %7322 = vmatprep.subr.mxu0 0.0
    %7323 = vmatpush1.msra.mxu0 0.0
    %7324 = vmatprep.subr.mxu0 0.0
    %7325 = vmatpush1.msra.mxu0 0.0
    %7326 = vmatprep.subr.mxu0 0.0
    %7327 = vmatpush1.msra.mxu0 0.0
    %7328 = vmatprep.subr.mxu0 0.0
    %7329 = vmatpush1.msra.mxu0 0.0
    %7330 = vmatprep.subr.mxu0 0.0
    %7331 = vmatpush1.msra.mxu0 0.0
    %7332 = vmatprep.subr.mxu0 0.0
    %7333 = vmatpush1.msra.mxu0 0.0
    %7334 = vmatprep.subr.mxu0 0.0
    %7335 = vmatpush1.msra.mxu0 0.0
    %7336 = vmatprep.subr.mxu0 0.0
    %7337 = vmatpush1.msra.mxu0 0.0
    %7338 = vmatprep.subr.mxu0 0.0
    %7339 = vmatpush1.msra.mxu0 0.0
    %7340 = vmatprep.mubr.f32.mxu0 0.0
    %7341 = vmatmul.mubr.f32.gmra.mrb[0].mxu0 %v7272
    %v7342 = vpop.f32.mrb[0].mxu0
    %v7343 = vadd.f32 %v7260, %v7342
    %v7344 = vpop.f32.mrb[0].mxu0
    %7345 = vmatprep.mubr.f32.mxu0 0.0
    %7346 = vmatmul.mubr.f32.gmra.mrb[0].mxu0 %v7274
    %v7347 = vpop.f32.mrb[0].mxu0
    %v7348 = vadd.f32 %v7265, %v7347
    %v7349 = vpop.f32.mrb[0].mxu0
    %7350 = vdwg.mxu0
    %v7351 = vadd.f32 %v7343, %v413
    %v7352 = vadd.f32 %v7348, %v418
    %v7353 = vpack.c.bf16 %v7352, %v7351
    %7355 = vrot.lane.b32.xlu0 %v7353, 80
    %v7356 = vpop.permute.xlu0 %7355
    %7358 = vst.msk [vmem:[#allocation2 + $0x30] sm:$0xff] %vm2180, %v7356
    %v7359 = vld [vmem:[#allocation7] sm:$0xff]
    %v7360 = vld [vmem:[%s245] sm:$0xff]
    %7361 = vrot.lane.b32.xlu0 %v4729, 72
    %v7362 = vpop.permute.xlu0 %7361
    %7363 = vrot.lane.b32.xlu0 %v4732, 72
    %v7364 = vpop.permute.xlu0 %7363
    %v7365 = vsel %vm247, %v7362, 0
    %v7367 = vsel %vm247, %v7364, 0
    %7369 = vmatprep.subr.mxu0 0.0
    %7370 = vmatpush1.msra.mxu0 %v7360
    %7371 = vmatprep.subr.mxu0 0.0
    %7372 = vmatpush1.msra.mxu0 0.0
    %7373 = vmatprep.subr.mxu0 0.0
    %7374 = vmatpush1.msra.mxu0 0.0
    %7375 = vmatprep.subr.mxu0 0.0
    %7376 = vmatpush1.msra.mxu0 0.0
    %7377 = vmatprep.subr.mxu0 0.0
    %7378 = vmatpush1.msra.mxu0 0.0
    %7379 = vmatprep.subr.mxu0 0.0
    %7380 = vmatpush1.msra.mxu0 0.0
    %7381 = vmatprep.subr.mxu0 0.0
    %7382 = vmatpush1.msra.mxu0 0.0
    %7383 = vmatprep.subr.mxu0 0.0
    %7384 = vmatpush1.msra.mxu0 0.0
    %7385 = vmatprep.subr.mxu0 0.0
    %7386 = vmatpush1.msra.mxu0 0.0
    %7387 = vmatprep.subr.mxu0 0.0
    %7388 = vmatpush1.msra.mxu0 0.0
    %7389 = vmatprep.subr.mxu0 0.0
    %7390 = vmatpush1.msra.mxu0 0.0
    %7391 = vmatprep.subr.mxu0 0.0
    %7392 = vmatpush1.msra.mxu0 0.0
    %7393 = vmatprep.subr.mxu0 0.0
    %7394 = vmatpush1.msra.mxu0 0.0
    %7395 = vmatprep.subr.mxu0 0.0
    %7396 = vmatpush1.msra.mxu0 0.0
    %7397 = vmatprep.subr.mxu0 0.0
    %7398 = vmatpush1.msra.mxu0 0.0
    %7399 = vmatprep.subr.mxu0 0.0
    %7400 = vmatpush1.msra.mxu0 0.0
    %7401 = vmatprep.subr.mxu0 0.0
    %7402 = vmatpush1.msra.mxu0 0.0
    %7403 = vmatprep.subr.mxu0 0.0
    %7404 = vmatpush1.msra.mxu0 0.0
    %7405 = vmatprep.subr.mxu0 0.0
    %7406 = vmatpush1.msra.mxu0 0.0
    %7407 = vmatprep.subr.mxu0 0.0
    %7408 = vmatpush1.msra.mxu0 0.0
    %7409 = vmatprep.subr.mxu0 0.0
    %7410 = vmatpush1.msra.mxu0 0.0
    %7411 = vmatprep.subr.mxu0 0.0
    %7412 = vmatpush1.msra.mxu0 0.0
    %7413 = vmatprep.subr.mxu0 0.0
    %7414 = vmatpush1.msra.mxu0 0.0
    %7415 = vmatprep.subr.mxu0 0.0
    %7416 = vmatpush1.msra.mxu0 0.0
    %7417 = vmatprep.subr.mxu0 0.0
    %7418 = vmatpush1.msra.mxu0 0.0
    %7419 = vmatprep.subr.mxu0 0.0
    %7420 = vmatpush1.msra.mxu0 0.0
    %7421 = vmatprep.subr.mxu0 0.0
    %7422 = vmatpush1.msra.mxu0 0.0
    %7423 = vmatprep.subr.mxu0 0.0
    %7424 = vmatpush1.msra.mxu0 0.0
    %7425 = vmatprep.subr.mxu0 0.0
    %7426 = vmatpush1.msra.mxu0 0.0
    %7427 = vmatprep.subr.mxu0 0.0
    %7428 = vmatpush1.msra.mxu0 0.0
    %7429 = vmatprep.subr.mxu0 0.0
    %7430 = vmatpush1.msra.mxu0 0.0
    %7431 = vmatprep.subr.mxu0 0.0
    %7432 = vmatpush1.msra.mxu0 0.0
    %7433 = vmatprep.mubr.f32.mxu0 0.0
    %7434 = vmatmul.mubr.f32.gmra.mrb[0].mxu0 %v7365
    %v7435 = vpop.f32.mrb[0].mxu0
    %v7436 = vadd.f32 0.0, %v7435
    %v7437 = vpop.f32.mrb[0].mxu0
    %7438 = vmatprep.mubr.f32.mxu0 0.0
    %7439 = vmatmul.mubr.f32.gmra.mrb[0].mxu0 %v7367
    %v7440 = vpop.f32.mrb[0].mxu0
    %v7441 = vadd.f32 0.0, %v7440
    %v7442 = vpop.f32.mrb[0].mxu0
    %7443 = vdwg.mxu0
    %7444 = vrot.lane.b32.xlu0 %v4721, 72
    %v7445 = vpop.permute.xlu0 %7444
    %7446 = vrot.lane.b32.xlu0 %v4724, 72
    %v7447 = vpop.permute.xlu0 %7446
    %v7448 = vsel %vm247, %v7445, 0
    %v7450 = vsel %vm247, %v7447, 0
    %7452 = vmatprep.subr.mxu0 0.0
    %7453 = vmatpush1.msra.mxu0 %v7359
    %7454 = vmatprep.subr.mxu0 0.0
    %7455 = vmatpush1.msra.mxu0 0.0
    %7456 = vmatprep.subr.mxu0 0.0
    %7457 = vmatpush1.msra.mxu0 0.0
    %7458 = vmatprep.subr.mxu0 0.0
    %7459 = vmatpush1.msra.mxu0 0.0
    %7460 = vmatprep.subr.mxu0 0.0
    %7461 = vmatpush1.msra.mxu0 0.0
    %7462 = vmatprep.subr.mxu0 0.0
    %7463 = vmatpush1.msra.mxu0 0.0
    %7464 = vmatprep.subr.mxu0 0.0
    %7465 = vmatpush1.msra.mxu0 0.0
    %7466 = vmatprep.subr.mxu0 0.0
    %7467 = vmatpush1.msra.mxu0 0.0
    %7468 = vmatprep.subr.mxu0 0.0
    %7469 = vmatpush1.msra.mxu0 0.0
    %7470 = vmatprep.subr.mxu0 0.0
    %7471 = vmatpush1.msra.mxu0 0.0
    %7472 = vmatprep.subr.mxu0 0.0
    %7473 = vmatpush1.msra.mxu0 0.0
    %7474 = vmatprep.subr.mxu0 0.0
    %7475 = vmatpush1.msra.mxu0 0.0
    %7476 = vmatprep.subr.mxu0 0.0
    %7477 = vmatpush1.msra.mxu0 0.0
    %7478 = vmatprep.subr.mxu0 0.0
    %7479 = vmatpush1.msra.mxu0 0.0
    %7480 = vmatprep.subr.mxu0 0.0
    %7481 = vmatpush1.msra.mxu0 0.0
    %7482 = vmatprep.subr.mxu0 0.0
    %7483 = vmatpush1.msra.mxu0 0.0
    %7484 = vmatprep.subr.mxu0 0.0
    %7485 = vmatpush1.msra.mxu0 0.0
    %7486 = vmatprep.subr.mxu0 0.0
    %7487 = vmatpush1.msra.mxu0 0.0
    %7488 = vmatprep.subr.mxu0 0.0
    %7489 = vmatpush1.msra.mxu0 0.0
    %7490 = vmatprep.subr.mxu0 0.0
    %7491 = vmatpush1.msra.mxu0 0.0
    %7492 = vmatprep.subr.mxu0 0.0
    %7493 = vmatpush1.msra.mxu0 0.0
    %7494 = vmatprep.subr.mxu0 0.0
    %7495 = vmatpush1.msra.mxu0 0.0
    %7496 = vmatprep.subr.mxu0 0.0
    %7497 = vmatpush1.msra.mxu0 0.0
    %7498 = vmatprep.subr.mxu0 0.0
    %7499 = vmatpush1.msra.mxu0 0.0
    %7500 = vmatprep.subr.mxu0 0.0
    %7501 = vmatpush1.msra.mxu0 0.0
    %7502 = vmatprep.subr.mxu0 0.0
    %7503 = vmatpush1.msra.mxu0 0.0
    %7504 = vmatprep.subr.mxu0 0.0
    %7505 = vmatpush1.msra.mxu0 0.0
    %7506 = vmatprep.subr.mxu0 0.0
    %7507 = vmatpush1.msra.mxu0 0.0
    %7508 = vmatprep.subr.mxu0 0.0
    %7509 = vmatpush1.msra.mxu0 0.0
    %7510 = vmatprep.subr.mxu0 0.0
    %7511 = vmatpush1.msra.mxu0 0.0
    %7512 = vmatprep.subr.mxu0 0.0
    %7513 = vmatpush1.msra.mxu0 0.0
    %7514 = vmatprep.subr.mxu0 0.0
    %7515 = vmatpush1.msra.mxu0 0.0
    %7516 = vmatprep.mubr.f32.mxu0 0.0
    %7517 = vmatmul.mubr.f32.gmra.mrb[0].mxu0 %v7448
    %v7518 = vpop.f32.mrb[0].mxu0
    %v7519 = vadd.f32 %v7436, %v7518
    %v7520 = vpop.f32.mrb[0].mxu0
    %7521 = vmatprep.mubr.f32.mxu0 0.0
    %7522 = vmatmul.mubr.f32.gmra.mrb[0].mxu0 %v7450
    %v7523 = vpop.f32.mrb[0].mxu0
    %v7524 = vadd.f32 %v7441, %v7523
    %v7525 = vpop.f32.mrb[0].mxu0
    %7526 = vdwg.mxu0
    %v7527 = vadd.f32 %v7519, %v413
    %v7528 = vadd.f32 %v7524, %v418
    %v7529 = vpack.c.bf16 %v7528, %v7527
    %7531 = vrot.lane.b32.xlu0 %v7529, 112
    %v7532 = vpop.permute.xlu0 %7531
    %7534 = vst.msk [vmem:[#allocation2 + $0x30] sm:$0xff] %vm2357, %v7532
    %v7535 = vld [vmem:[#allocation2] sm:$0xff]
    %v7536 = vld [vmem:[#allocation2 + $0x8] sm:$0xff]
    %v7537 = vld [vmem:[#allocation2 + $0x10] sm:$0xff]
    %v7538 = vld [vmem:[#allocation2 + $0x20] sm:$0xff]
    %v7539 = vld [vmem:[#allocation2 + $0x28] sm:$0xff]
    %v7540 = vld [vmem:[#allocation2 + $0x30] sm:$0xff]
    %v7541 = vsel %vm3089, %v7535, 0
    %v7542 = vsel %vm3090, %v7536, 0
    %v7543 = vsel %vm3091, %v7537, 0
    %v7544 = vsel %vm3089, %v7538, 0
    %v7545 = vsel %vm3090, %v7539, 0
    %v7546 = vsel %vm3091, %v7540, 0
    %v7547 = vld [vmem:[%s5] sm:$0xf]
    %v7548 = vld [vmem:[%s5 + $0x4] sm:$0xf]
    %v7549 = vld [vmem:[%s3100] sm:$0xf]
    %v7550 = vld [vmem:[%s3100 + $0x4] sm:$0xf]
    %v7553 = vunpack.c.l.b16 %v7549
    %v7554 = vunpack.c.l.b16 %v7550
    %v7555 = vpack.c.b16 %v7554, %v7553
    %7562 = vrot.lane.b32.xlu0 %v7535, 16
    %v7563 = vpop.permute.xlu0 %7562
    %7564 = vrot.lane.b32.xlu0 %v7536, 16
    %v7565 = vpop.permute.xlu0 %7564
    %7566 = vrot.lane.b32.xlu0 %v7537, 16
    %v7567 = vpop.permute.xlu0 %7566
    %7568 = vrot.lane.b32.xlu0 %v7538, 16
    %v7569 = vpop.permute.xlu0 %7568
    %7570 = vrot.lane.b32.xlu0 %v7539, 16
    %v7571 = vpop.permute.xlu0 %7570
    %7572 = vrot.lane.b32.xlu0 %v7540, 16
    %v7573 = vpop.permute.xlu0 %7572
    %v7574 = vsel %vm3126, %v7563, %v7565
    %v7575 = vsel %vm3126, %v7565, %v7567
    %v7576 = vsel %vm3126, %v7569, %v7571
    %v7577 = vsel %vm3126, %v7571, %v7573
    %v7583 = vsel %vm3135, %v7555, 0
    %7585 = vmatprep.subr.bf16.mxu0 %v7575
    %7586 = vmatpush1.bf16.msra.mxu0 %v7574
    %7587 = vmatprep.subr.bf16.mxu0 %v7577
    %7588 = vmatpush1.bf16.msra.mxu0 %v7576
    %7589 = vmatprep.subr.bf16.mxu0 0
    %7590 = vmatpush1.bf16.msra.mxu0 0
    %7591 = vmatprep.subr.bf16.mxu0 0
    %7592 = vmatpush1.bf16.msra.mxu0 0
    %7593 = vmatprep.subr.bf16.mxu0 0
    %7594 = vmatpush1.bf16.msra.mxu0 0
    %7595 = vmatprep.subr.bf16.mxu0 0
    %7596 = vmatpush1.bf16.msra.mxu0 0
    %7597 = vmatprep.subr.bf16.mxu0 0
    %7598 = vmatpush1.bf16.msra.mxu0 0
    %7599 = vmatprep.subr.bf16.mxu0 0
    %7600 = vmatpush1.bf16.msra.mxu0 0
    %7601 = vmatprep.subr.bf16.mxu0 0
    %7602 = vmatpush1.bf16.msra.mxu0 0
    %7603 = vmatprep.subr.bf16.mxu0 0
    %7604 = vmatpush1.bf16.msra.mxu0 0
    %7605 = vmatprep.subr.bf16.mxu0 0
    %7606 = vmatpush1.bf16.msra.mxu0 0
    %7607 = vmatprep.subr.bf16.mxu0 0
    %7608 = vmatpush1.bf16.msra.mxu0 0
    %7609 = vmatprep.subr.bf16.mxu0 0
    %7610 = vmatpush1.bf16.msra.mxu0 0
    %7611 = vmatprep.subr.bf16.mxu0 0
    %7612 = vmatpush1.bf16.msra.mxu0 0
    %7613 = vmatprep.subr.bf16.mxu0 0
    %7614 = vmatpush1.bf16.msra.mxu0 0
    %7615 = vmatprep.subr.bf16.mxu0 0
    %7616 = vmatpush1.bf16.msra.mxu0 0
    %7617 = vmatprep.mubr.bf16.mxu0 0
    %7618 = vmatmul.mubr.bf16.gmra.mrb[0].mxu0 %v7583
    %v7619 = vpop.f32.mrb[0].mxu0
    %v7620 = vadd.f32 0.0, %v7619
    %v7621 = vpop.f32.mrb[0].mxu0
    %v7622 = vadd.f32 0.0, %v7621
    %v7623 = vpop.f32.mrb[0].mxu0
    %v7624 = vadd.f32 0.0, %v7623
    %v7625 = vpop.f32.mrb[0].mxu0
    %v7626 = vadd.f32 0.0, %v7625
    %7627 = vdwg.mxu0
    %v7630 = vunpack.c.l.b16 %v7547
    %v7631 = vunpack.c.l.b16 %v7548
    %v7632 = vpack.c.b16 %v7631, %v7630
    %7639 = vrot.lane.b32.xlu0 %v7541, 17
    %v7640 = vpop.permute.xlu0 %7639
    %7641 = vrot.lane.b32.xlu0 %v7542, 17
    %v7642 = vpop.permute.xlu0 %7641
    %7643 = vrot.lane.b32.xlu0 %v7543, 17
    %v7644 = vpop.permute.xlu0 %7643
    %7645 = vrot.lane.b32.xlu0 %v7544, 17
    %v7646 = vpop.permute.xlu0 %7645
    %7647 = vrot.lane.b32.xlu0 %v7545, 17
    %v7648 = vpop.permute.xlu0 %7647
    %7649 = vrot.lane.b32.xlu0 %v7546, 17
    %v7650 = vpop.permute.xlu0 %7649
    %v7651 = vsel %vm3205, %v7640, %v7642
    %v7652 = vsel %vm3205, %v7642, %v7644
    %v7653 = vsel %vm3205, %v7646, %v7648
    %v7654 = vsel %vm3205, %v7648, %v7650
    %v7660 = vsel %vm3135, %v7632, 0
    %7662 = vmatprep.subr.bf16.mxu0 %v7652
    %7663 = vmatpush1.bf16.msra.mxu0 %v7651
    %7664 = vmatprep.subr.bf16.mxu0 %v7654
    %7665 = vmatpush1.bf16.msra.mxu0 %v7653
    %7666 = vmatprep.subr.bf16.mxu0 0
    %7667 = vmatpush1.bf16.msra.mxu0 0
    %7668 = vmatprep.subr.bf16.mxu0 0
    %7669 = vmatpush1.bf16.msra.mxu0 0
    %7670 = vmatprep.subr.bf16.mxu0 0
    %7671 = vmatpush1.bf16.msra.mxu0 0
    %7672 = vmatprep.subr.bf16.mxu0 0
    %7673 = vmatpush1.bf16.msra.mxu0 0
    %7674 = vmatprep.subr.bf16.mxu0 0
    %7675 = vmatpush1.bf16.msra.mxu0 0
    %7676 = vmatprep.subr.bf16.mxu0 0
    %7677 = vmatpush1.bf16.msra.mxu0 0
    %7678 = vmatprep.subr.bf16.mxu0 0
    %7679 = vmatpush1.bf16.msra.mxu0 0
    %7680 = vmatprep.subr.bf16.mxu0 0
    %7681 = vmatpush1.bf16.msra.mxu0 0
    %7682 = vmatprep.subr.bf16.mxu0 0
    %7683 = vmatpush1.bf16.msra.mxu0 0
    %7684 = vmatprep.subr.bf16.mxu0 0
    %7685 = vmatpush1.bf16.msra.mxu0 0
    %7686 = vmatprep.subr.bf16.mxu0 0
    %7687 = vmatpush1.bf16.msra.mxu0 0
    %7688 = vmatprep.subr.bf16.mxu0 0
    %7689 = vmatpush1.bf16.msra.mxu0 0
    %7690 = vmatprep.subr.bf16.mxu0 0
    %7691 = vmatpush1.bf16.msra.mxu0 0
    %7692 = vmatprep.subr.bf16.mxu0 0
    %7693 = vmatpush1.bf16.msra.mxu0 0
    %7694 = vmatprep.mubr.bf16.mxu0 0
    %7695 = vmatmul.mubr.bf16.gmra.mrb[0].mxu0 %v7660
    %v7696 = vpop.f32.mrb[0].mxu0
    %v7697 = vadd.f32 %v7620, %v7696
    %v7698 = vpop.f32.mrb[0].mxu0
    %v7699 = vadd.f32 %v7622, %v7698
    %v7700 = vpop.f32.mrb[0].mxu0
    %v7701 = vadd.f32 %v7624, %v7700
    %v7702 = vpop.f32.mrb[0].mxu0
    %v7703 = vadd.f32 %v7626, %v7702
    %7704 = vdwg.mxu0
    %v7705 = vsel %vm3280, %v7535, 0
    %v7706 = vsel %vm3281, %v7536, 0
    %v7707 = vsel %vm3282, %v7537, 0
    %v7708 = vsel %vm3280, %v7538, 0
    %v7709 = vsel %vm3281, %v7539, 0
    %v7710 = vsel %vm3282, %v7540, 0
    %v7711 = vld [vmem:[%s3289] sm:$0xf]
    %v7712 = vld [vmem:[%s3289 + $0x4] sm:$0xf]
    %v7715 = vunpack.c.l.b16 %v7711
    %v7716 = vunpack.c.l.b16 %v7712
    %v7717 = vpack.c.b16 %v7716, %v7715
    %7724 = vrot.lane.b32.xlu0 %v7705, 15
    %v7725 = vpop.permute.xlu0 %7724
    %7726 = vrot.lane.b32.xlu0 %v7706, 15
    %v7727 = vpop.permute.xlu0 %7726
    %7728 = vrot.lane.b32.xlu0 %v7707, 15
    %v7729 = vpop.permute.xlu0 %7728
    %7730 = vrot.lane.b32.xlu0 %v7708, 15
    %v7731 = vpop.permute.xlu0 %7730
    %7732 = vrot.lane.b32.xlu0 %v7709, 15
    %v7733 = vpop.permute.xlu0 %7732
    %7734 = vrot.lane.b32.xlu0 %v7710, 15
    %v7735 = vpop.permute.xlu0 %7734
    %v7736 = vsel %vm3315, %v7725, %v7727
    %v7737 = vsel %vm3315, %v7727, %v7729
    %v7738 = vsel %vm3315, %v7731, %v7733
    %v7739 = vsel %vm3315, %v7733, %v7735
    %v7745 = vsel %vm3135, %v7717, 0
    %7747 = vmatprep.subr.bf16.mxu0 %v7737
    %7748 = vmatpush1.bf16.msra.mxu0 %v7736
    %7749 = vmatprep.subr.bf16.mxu0 %v7739
    %7750 = vmatpush1.bf16.msra.mxu0 %v7738
    %7751 = vmatprep.subr.bf16.mxu0 0
    %7752 = vmatpush1.bf16.msra.mxu0 0
    %7753 = vmatprep.subr.bf16.mxu0 0
    %7754 = vmatpush1.bf16.msra.mxu0 0
    %7755 = vmatprep.subr.bf16.mxu0 0
    %7756 = vmatpush1.bf16.msra.mxu0 0
    %7757 = vmatprep.subr.bf16.mxu0 0
    %7758 = vmatpush1.bf16.msra.mxu0 0
    %7759 = vmatprep.subr.bf16.mxu0 0
    %7760 = vmatpush1.bf16.msra.mxu0 0
    %7761 = vmatprep.subr.bf16.mxu0 0
    %7762 = vmatpush1.bf16.msra.mxu0 0
    %7763 = vmatprep.subr.bf16.mxu0 0
    %7764 = vmatpush1.bf16.msra.mxu0 0
    %7765 = vmatprep.subr.bf16.mxu0 0
    %7766 = vmatpush1.bf16.msra.mxu0 0
    %7767 = vmatprep.subr.bf16.mxu0 0
    %7768 = vmatpush1.bf16.msra.mxu0 0
    %7769 = vmatprep.subr.bf16.mxu0 0
    %7770 = vmatpush1.bf16.msra.mxu0 0
    %7771 = vmatprep.subr.bf16.mxu0 0
    %7772 = vmatpush1.bf16.msra.mxu0 0
    %7773 = vmatprep.subr.bf16.mxu0 0
    %7774 = vmatpush1.bf16.msra.mxu0 0
    %7775 = vmatprep.subr.bf16.mxu0 0
    %7776 = vmatpush1.bf16.msra.mxu0 0
    %7777 = vmatprep.subr.bf16.mxu0 0
    %7778 = vmatpush1.bf16.msra.mxu0 0
    %7779 = vmatprep.mubr.bf16.mxu0 0
    %7780 = vmatmul.mubr.bf16.gmra.mrb[0].mxu0 %v7745
    %v7781 = vpop.f32.mrb[0].mxu0
    %v7782 = vadd.f32 0.0, %v7781
    %v7783 = vpop.f32.mrb[0].mxu0
    %v7784 = vadd.f32 0.0, %v7783
    %v7785 = vpop.f32.mrb[0].mxu0
    %v7786 = vadd.f32 0.0, %v7785
    %v7787 = vpop.f32.mrb[0].mxu0
    %v7788 = vadd.f32 0.0, %v7787
    %7789 = vdwg.mxu0
    %v7790 = vadd.f32 %v7697, %v7782
    %v7791 = vadd.f32 %v7699, %v7784
    %v7792 = vadd.f32 %v7701, %v7786
    %v7793 = vadd.f32 %v7703, %v7788
    %v7794 = vsel %vm3380, %v7535, 0
    %v7795 = vsel %vm3381, %v7536, 0
    %v7796 = vsel %vm3382, %v7537, 0
    %v7797 = vsel %vm3380, %v7538, 0
    %v7798 = vsel %vm3381, %v7539, 0
    %v7799 = vsel %vm3382, %v7540, 0
    %v7800 = vld [vmem:[%s3389] sm:$0xf]
    %v7801 = vld [vmem:[%s3389 + $0x4] sm:$0xf]
    %v7804 = vunpack.c.l.b16 %v7800
    %v7805 = vunpack.c.l.b16 %v7801
    %v7806 = vpack.c.b16 %v7805, %v7804
    %7813 = vrot.lane.b32.xlu0 %v7794, 1
    %v7814 = vpop.permute.xlu0 %7813
    %7815 = vrot.lane.b32.xlu0 %v7795, 1
    %v7816 = vpop.permute.xlu0 %7815
    %7817 = vrot.lane.b32.xlu0 %v7796, 1
    %v7818 = vpop.permute.xlu0 %7817
    %7819 = vrot.lane.b32.xlu0 %v7797, 1
    %v7820 = vpop.permute.xlu0 %7819
    %7821 = vrot.lane.b32.xlu0 %v7798, 1
    %v7822 = vpop.permute.xlu0 %7821
    %7823 = vrot.lane.b32.xlu0 %v7799, 1
    %v7824 = vpop.permute.xlu0 %7823
    %v7825 = vsel %vm3415, %v7814, %v7816
    %v7826 = vsel %vm3415, %v7816, %v7818
    %v7827 = vsel %vm3415, %v7820, %v7822
    %v7828 = vsel %vm3415, %v7822, %v7824
    %v7834 = vsel %vm3135, %v7806, 0
    %7836 = vmatprep.subr.bf16.mxu0 %v7826
    %7837 = vmatpush1.bf16.msra.mxu0 %v7825
    %7838 = vmatprep.subr.bf16.mxu0 %v7828
    %7839 = vmatpush1.bf16.msra.mxu0 %v7827
    %7840 = vmatprep.subr.bf16.mxu0 0
    %7841 = vmatpush1.bf16.msra.mxu0 0
    %7842 = vmatprep.subr.bf16.mxu0 0
    %7843 = vmatpush1.bf16.msra.mxu0 0
    %7844 = vmatprep.subr.bf16.mxu0 0
    %7845 = vmatpush1.bf16.msra.mxu0 0
    %7846 = vmatprep.subr.bf16.mxu0 0
    %7847 = vmatpush1.bf16.msra.mxu0 0
    %7848 = vmatprep.subr.bf16.mxu0 0
    %7849 = vmatpush1.bf16.msra.mxu0 0
    %7850 = vmatprep.subr.bf16.mxu0 0
    %7851 = vmatpush1.bf16.msra.mxu0 0
    %7852 = vmatprep.subr.bf16.mxu0 0
    %7853 = vmatpush1.bf16.msra.mxu0 0
    %7854 = vmatprep.subr.bf16.mxu0 0
    %7855 = vmatpush1.bf16.msra.mxu0 0
    %7856 = vmatprep.subr.bf16.mxu0 0
    %7857 = vmatpush1.bf16.msra.mxu0 0
    %7858 = vmatprep.subr.bf16.mxu0 0
    %7859 = vmatpush1.bf16.msra.mxu0 0
    %7860 = vmatprep.subr.bf16.mxu0 0
    %7861 = vmatpush1.bf16.msra.mxu0 0
    %7862 = vmatprep.subr.bf16.mxu0 0
    %7863 = vmatpush1.bf16.msra.mxu0 0
    %7864 = vmatprep.subr.bf16.mxu0 0
    %7865 = vmatpush1.bf16.msra.mxu0 0
    %7866 = vmatprep.subr.bf16.mxu0 0
    %7867 = vmatpush1.bf16.msra.mxu0 0
    %7868 = vmatprep.mubr.bf16.mxu0 0
    %7869 = vmatmul.mubr.bf16.gmra.mrb[0].mxu0 %v7834
    %v7870 = vpop.f32.mrb[0].mxu0
    %v7871 = vadd.f32 0.0, %v7870
    %v7872 = vpop.f32.mrb[0].mxu0
    %v7873 = vadd.f32 0.0, %v7872
    %v7874 = vpop.f32.mrb[0].mxu0
    %v7875 = vadd.f32 0.0, %v7874
    %v7876 = vpop.f32.mrb[0].mxu0
    %v7877 = vadd.f32 0.0, %v7876
    %7878 = vdwg.mxu0
    %v7879 = vadd.f32 %v7790, %v7871
    %v7880 = vadd.f32 %v7791, %v7873
    %v7881 = vadd.f32 %v7792, %v7875
    %v7882 = vadd.f32 %v7793, %v7877
    %v7883 = vld [vmem:[%s3474] sm:$0xf]
    %v7884 = vld [vmem:[%s3474 + $0x4] sm:$0xf]
    %v7887 = vunpack.c.l.b16 %v7883
    %v7888 = vunpack.c.l.b16 %v7884
    %v7889 = vpack.c.b16 %v7888, %v7887
    %v7891 = vsel %vm3135, %v7889, 0
    %7893 = vmatprep.subr.bf16.mxu0 %v7537
    %7894 = vmatpush1.bf16.msra.mxu0 %v7536
    %7895 = vmatprep.subr.bf16.mxu0 %v7540
    %7896 = vmatpush1.bf16.msra.mxu0 %v7539
    %7897 = vmatprep.subr.bf16.mxu0 0
    %7898 = vmatpush1.bf16.msra.mxu0 0
    %7899 = vmatprep.subr.bf16.mxu0 0
    %7900 = vmatpush1.bf16.msra.mxu0 0
    %7901 = vmatprep.subr.bf16.mxu0 0
    %7902 = vmatpush1.bf16.msra.mxu0 0
    %7903 = vmatprep.subr.bf16.mxu0 0
    %7904 = vmatpush1.bf16.msra.mxu0 0
    %7905 = vmatprep.subr.bf16.mxu0 0
    %7906 = vmatpush1.bf16.msra.mxu0 0
    %7907 = vmatprep.subr.bf16.mxu0 0
    %7908 = vmatpush1.bf16.msra.mxu0 0
    %7909 = vmatprep.subr.bf16.mxu0 0
    %7910 = vmatpush1.bf16.msra.mxu0 0
    %7911 = vmatprep.subr.bf16.mxu0 0
    %7912 = vmatpush1.bf16.msra.mxu0 0
    %7913 = vmatprep.subr.bf16.mxu0 0
    %7914 = vmatpush1.bf16.msra.mxu0 0
    %7915 = vmatprep.subr.bf16.mxu0 0
    %7916 = vmatpush1.bf16.msra.mxu0 0
    %7917 = vmatprep.subr.bf16.mxu0 0
    %7918 = vmatpush1.bf16.msra.mxu0 0
    %7919 = vmatprep.subr.bf16.mxu0 0
    %7920 = vmatpush1.bf16.msra.mxu0 0
    %7921 = vmatprep.subr.bf16.mxu0 0
    %7922 = vmatpush1.bf16.msra.mxu0 0
    %7923 = vmatprep.subr.bf16.mxu0 0
    %7924 = vmatpush1.bf16.msra.mxu0 0
    %7925 = vmatprep.mubr.bf16.mxu0 0
    %7926 = vmatmul.mubr.bf16.gmra.mrb[0].mxu0 %v7891
    %v7927 = vpop.f32.mrb[0].mxu0
    %v7928 = vadd.f32 0.0, %v7927
    %v7929 = vpop.f32.mrb[0].mxu0
    %v7930 = vadd.f32 0.0, %v7929
    %v7931 = vpop.f32.mrb[0].mxu0
    %v7932 = vadd.f32 0.0, %v7931
    %v7933 = vpop.f32.mrb[0].mxu0
    %v7934 = vadd.f32 0.0, %v7933
    %7935 = vdwg.mxu0
    %v7936 = vadd.f32 %v7879, %v7928
    %v7937 = vadd.f32 %v7880, %v7930
    %v7938 = vadd.f32 %v7881, %v7932
    %v7939 = vadd.f32 %v7882, %v7934
    %v7940 = vld [vmem:[#allocation2 + $0x8] sm:$0xff]
    %v7941 = vld [vmem:[#allocation2 + $0x10] sm:$0xff]
    %v7942 = vld [vmem:[#allocation2 + $0x18] sm:$0xff]
    %v7943 = vld [vmem:[#allocation2 + $0x28] sm:$0xff]
    %v7944 = vld [vmem:[#allocation2 + $0x30] sm:$0xff]
    %v7945 = vld [vmem:[#allocation2 + $0x38] sm:$0xff]
    %v7946 = vsel %vm3543, %v7940, 0
    %v7947 = vsel %vm3544, %v7941, 0
    %v7948 = vsel %vm3545, %v7942, 0
    %v7949 = vsel %vm3543, %v7943, 0
    %v7950 = vsel %vm3544, %v7944, 0
    %v7951 = vsel %vm3545, %v7945, 0
    %v7952 = vld [vmem:[%s3552] sm:$0xf]
    %v7953 = vld [vmem:[%s3552 + $0x4] sm:$0xf]
    %v7956 = vunpack.c.l.b16 %v7952
    %v7957 = vunpack.c.l.b16 %v7953
    %v7958 = vpack.c.b16 %v7957, %v7956
    %7965 = vrot.lane.b32.xlu0 %v7946, 127
    %v7966 = vpop.permute.xlu0 %7965
    %7967 = vrot.lane.b32.xlu0 %v7947, 127
    %v7968 = vpop.permute.xlu0 %7967
    %7969 = vrot.lane.b32.xlu0 %v7948, 127
    %v7970 = vpop.permute.xlu0 %7969
    %7971 = vrot.lane.b32.xlu0 %v7949, 127
    %v7972 = vpop.permute.xlu0 %7971
    %7973 = vrot.lane.b32.xlu0 %v7950, 127
    %v7974 = vpop.permute.xlu0 %7973
    %7975 = vrot.lane.b32.xlu0 %v7951, 127
    %v7976 = vpop.permute.xlu0 %7975
    %v7977 = vsel %vm3378, %v7966, %v7968
    %v7978 = vsel %vm3378, %v7968, %v7970
    %v7979 = vsel %vm3378, %v7972, %v7974
    %v7980 = vsel %vm3378, %v7974, %v7976
    %v7986 = vsel %vm3135, %v7958, 0
    %7988 = vmatprep.subr.bf16.mxu0 %v7978
    %7989 = vmatpush1.bf16.msra.mxu0 %v7977
    %7990 = vmatprep.subr.bf16.mxu0 %v7980
    %7991 = vmatpush1.bf16.msra.mxu0 %v7979
    %7992 = vmatprep.subr.bf16.mxu0 0
    %7993 = vmatpush1.bf16.msra.mxu0 0
    %7994 = vmatprep.subr.bf16.mxu0 0
    %7995 = vmatpush1.bf16.msra.mxu0 0
    %7996 = vmatprep.subr.bf16.mxu0 0
    %7997 = vmatpush1.bf16.msra.mxu0 0
    %7998 = vmatprep.subr.bf16.mxu0 0
    %7999 = vmatpush1.bf16.msra.mxu0 0
    %8000 = vmatprep.subr.bf16.mxu0 0
    %8001 = vmatpush1.bf16.msra.mxu0 0
    %8002 = vmatprep.subr.bf16.mxu0 0
    %8003 = vmatpush1.bf16.msra.mxu0 0
    %8004 = vmatprep.subr.bf16.mxu0 0
    %8005 = vmatpush1.bf16.msra.mxu0 0
    %8006 = vmatprep.subr.bf16.mxu0 0
    %8007 = vmatpush1.bf16.msra.mxu0 0
    %8008 = vmatprep.subr.bf16.mxu0 0
    %8009 = vmatpush1.bf16.msra.mxu0 0
    %8010 = vmatprep.subr.bf16.mxu0 0
    %8011 = vmatpush1.bf16.msra.mxu0 0
    %8012 = vmatprep.subr.bf16.mxu0 0
    %8013 = vmatpush1.bf16.msra.mxu0 0
    %8014 = vmatprep.subr.bf16.mxu0 0
    %8015 = vmatpush1.bf16.msra.mxu0 0
    %8016 = vmatprep.subr.bf16.mxu0 0
    %8017 = vmatpush1.bf16.msra.mxu0 0
    %8018 = vmatprep.subr.bf16.mxu0 0
    %8019 = vmatpush1.bf16.msra.mxu0 0
    %8020 = vmatprep.mubr.bf16.mxu0 0
    %8021 = vmatmul.mubr.bf16.gmra.mrb[0].mxu0 %v7986
    %v8022 = vpop.f32.mrb[0].mxu0
    %v8023 = vadd.f32 0.0, %v8022
    %v8024 = vpop.f32.mrb[0].mxu0
    %v8025 = vadd.f32 0.0, %v8024
    %v8026 = vpop.f32.mrb[0].mxu0
    %v8027 = vadd.f32 0.0, %v8026
    %v8028 = vpop.f32.mrb[0].mxu0
    %v8029 = vadd.f32 0.0, %v8028
    %8030 = vdwg.mxu0
    %v8031 = vadd.f32 %v7936, %v8023
    %v8032 = vadd.f32 %v7937, %v8025
    %v8033 = vadd.f32 %v7938, %v8027
    %v8034 = vadd.f32 %v7939, %v8029
    %v8035 = vsel %vm3641, %v7940, 0
    %v8036 = vsel %vm3642, %v7941, 0
    %v8037 = vsel %vm3643, %v7942, 0
    %v8038 = vsel %vm3641, %v7943, 0
    %v8039 = vsel %vm3642, %v7944, 0
    %v8040 = vsel %vm3643, %v7945, 0
    %v8041 = vld [vmem:[%s3650] sm:$0xf]
    %v8042 = vld [vmem:[%s3650 + $0x4] sm:$0xf]
    %v8045 = vunpack.c.l.b16 %v8041
    %v8046 = vunpack.c.l.b16 %v8042
    %v8047 = vpack.c.b16 %v8046, %v8045
    %8054 = vrot.lane.b32.xlu0 %v8035, 113
    %v8055 = vpop.permute.xlu0 %8054
    %8056 = vrot.lane.b32.xlu0 %v8036, 113
    %v8057 = vpop.permute.xlu0 %8056
    %8058 = vrot.lane.b32.xlu0 %v8037, 113
    %v8059 = vpop.permute.xlu0 %8058
    %8060 = vrot.lane.b32.xlu0 %v8038, 113
    %v8061 = vpop.permute.xlu0 %8060
    %8062 = vrot.lane.b32.xlu0 %v8039, 113
    %v8063 = vpop.permute.xlu0 %8062
    %8064 = vrot.lane.b32.xlu0 %v8040, 113
    %v8065 = vpop.permute.xlu0 %8064
    %v8066 = vsel %vm3278, %v8055, %v8057
    %v8067 = vsel %vm3278, %v8057, %v8059
    %v8068 = vsel %vm3278, %v8061, %v8063
    %v8069 = vsel %vm3278, %v8063, %v8065
    %v8075 = vsel %vm3135, %v8047, 0
    %8077 = vmatprep.subr.bf16.mxu0 %v8067
    %8078 = vmatpush1.bf16.msra.mxu0 %v8066
    %8079 = vmatprep.subr.bf16.mxu0 %v8069
    %8080 = vmatpush1.bf16.msra.mxu0 %v8068
    %8081 = vmatprep.subr.bf16.mxu0 0
    %8082 = vmatpush1.bf16.msra.mxu0 0
    %8083 = vmatprep.subr.bf16.mxu0 0
    %8084 = vmatpush1.bf16.msra.mxu0 0
    %8085 = vmatprep.subr.bf16.mxu0 0
    %8086 = vmatpush1.bf16.msra.mxu0 0
    %8087 = vmatprep.subr.bf16.mxu0 0
    %8088 = vmatpush1.bf16.msra.mxu0 0
    %8089 = vmatprep.subr.bf16.mxu0 0
    %8090 = vmatpush1.bf16.msra.mxu0 0
    %8091 = vmatprep.subr.bf16.mxu0 0
    %8092 = vmatpush1.bf16.msra.mxu0 0
    %8093 = vmatprep.subr.bf16.mxu0 0
    %8094 = vmatpush1.bf16.msra.mxu0 0
    %8095 = vmatprep.subr.bf16.mxu0 0
    %8096 = vmatpush1.bf16.msra.mxu0 0
    %8097 = vmatprep.subr.bf16.mxu0 0
    %8098 = vmatpush1.bf16.msra.mxu0 0
    %8099 = vmatprep.subr.bf16.mxu0 0
    %8100 = vmatpush1.bf16.msra.mxu0 0
    %8101 = vmatprep.subr.bf16.mxu0 0
    %8102 = vmatpush1.bf16.msra.mxu0 0
    %8103 = vmatprep.subr.bf16.mxu0 0
    %8104 = vmatpush1.bf16.msra.mxu0 0
    %8105 = vmatprep.subr.bf16.mxu0 0
    %8106 = vmatpush1.bf16.msra.mxu0 0
    %8107 = vmatprep.subr.bf16.mxu0 0
    %8108 = vmatpush1.bf16.msra.mxu0 0
    %8109 = vmatprep.mubr.bf16.mxu0 0
    %8110 = vmatmul.mubr.bf16.gmra.mrb[0].mxu0 %v8075
    %v8111 = vpop.f32.mrb[0].mxu0
    %v8112 = vadd.f32 0.0, %v8111
    %v8113 = vpop.f32.mrb[0].mxu0
    %v8114 = vadd.f32 0.0, %v8113
    %v8115 = vpop.f32.mrb[0].mxu0
    %v8116 = vadd.f32 0.0, %v8115
    %v8117 = vpop.f32.mrb[0].mxu0
    %v8118 = vadd.f32 0.0, %v8117
    %8119 = vdwg.mxu0
    %v8120 = vadd.f32 %v8031, %v8112
    %v8121 = vadd.f32 %v8032, %v8114
    %v8122 = vadd.f32 %v8033, %v8116
    %v8123 = vadd.f32 %v8034, %v8118
    %v8124 = vld [vmem:[%s3734] sm:$0xf]
    %v8125 = vld [vmem:[%s3734 + $0x4] sm:$0xf]
    %v8128 = vunpack.c.l.b16 %v8124
    %v8129 = vunpack.c.l.b16 %v8125
    %v8130 = vpack.c.b16 %v8129, %v8128
    %8137 = vrot.lane.b32.xlu0 %v7940, 112
    %v8138 = vpop.permute.xlu0 %8137
    %8139 = vrot.lane.b32.xlu0 %v7941, 112
    %v8140 = vpop.permute.xlu0 %8139
    %8141 = vrot.lane.b32.xlu0 %v7942, 112
    %v8142 = vpop.permute.xlu0 %8141
    %8143 = vrot.lane.b32.xlu0 %v7943, 112
    %v8144 = vpop.permute.xlu0 %8143
    %8145 = vrot.lane.b32.xlu0 %v7944, 112
    %v8146 = vpop.permute.xlu0 %8145
    %8147 = vrot.lane.b32.xlu0 %v7945, 112
    %v8148 = vpop.permute.xlu0 %8147
    %v8149 = vsel %vm3760, %v8138, %v8140
    %v8150 = vsel %vm3760, %v8140, %v8142
    %v8151 = vsel %vm3760, %v8144, %v8146
    %v8152 = vsel %vm3760, %v8146, %v8148
    %v8158 = vsel %vm3135, %v8130, 0
    %8160 = vmatprep.subr.bf16.mxu0 %v8150
    %8161 = vmatpush1.bf16.msra.mxu0 %v8149
    %8162 = vmatprep.subr.bf16.mxu0 %v8152
    %8163 = vmatpush1.bf16.msra.mxu0 %v8151
    %8164 = vmatprep.subr.bf16.mxu0 0
    %8165 = vmatpush1.bf16.msra.mxu0 0
    %8166 = vmatprep.subr.bf16.mxu0 0
    %8167 = vmatpush1.bf16.msra.mxu0 0
    %8168 = vmatprep.subr.bf16.mxu0 0
    %8169 = vmatpush1.bf16.msra.mxu0 0
    %8170 = vmatprep.subr.bf16.mxu0 0
    %8171 = vmatpush1.bf16.msra.mxu0 0
    %8172 = vmatprep.subr.bf16.mxu0 0
    %8173 = vmatpush1.bf16.msra.mxu0 0
    %8174 = vmatprep.subr.bf16.mxu0 0
    %8175 = vmatpush1.bf16.msra.mxu0 0
    %8176 = vmatprep.subr.bf16.mxu0 0
    %8177 = vmatpush1.bf16.msra.mxu0 0
    %8178 = vmatprep.subr.bf16.mxu0 0
    %8179 = vmatpush1.bf16.msra.mxu0 0
    %8180 = vmatprep.subr.bf16.mxu0 0
    %8181 = vmatpush1.bf16.msra.mxu0 0
    %8182 = vmatprep.subr.bf16.mxu0 0
    %8183 = vmatpush1.bf16.msra.mxu0 0
    %8184 = vmatprep.subr.bf16.mxu0 0
    %8185 = vmatpush1.bf16.msra.mxu0 0
    %8186 = vmatprep.subr.bf16.mxu0 0
    %8187 = vmatpush1.bf16.msra.mxu0 0
    %8188 = vmatprep.subr.bf16.mxu0 0
    %8189 = vmatpush1.bf16.msra.mxu0 0
    %8190 = vmatprep.subr.bf16.mxu0 0
    %8191 = vmatpush1.bf16.msra.mxu0 0
    %8192 = vmatprep.mubr.bf16.mxu0 0
    %8193 = vmatmul.mubr.bf16.gmra.mrb[0].mxu0 %v8158
    %v8194 = vpop.f32.mrb[0].mxu0
    %v8195 = vadd.f32 0.0, %v8194
    %v8196 = vpop.f32.mrb[0].mxu0
    %v8197 = vadd.f32 0.0, %v8196
    %v8198 = vpop.f32.mrb[0].mxu0
    %v8199 = vadd.f32 0.0, %v8198
    %v8200 = vpop.f32.mrb[0].mxu0
    %v8201 = vadd.f32 0.0, %v8200
    %8202 = vdwg.mxu0
    %v8203 = vadd.f32 %v8120, %v8195
    %v8204 = vadd.f32 %v8121, %v8197
    %v8205 = vadd.f32 %v8122, %v8199
    %v8206 = vadd.f32 %v8123, %v8201
    %v8207 = vsel %vm3824, %v7940, 0
    %v8208 = vsel %vm3825, %v7941, 0
    %v8209 = vsel %vm3826, %v7942, 0
    %v8210 = vsel %vm3824, %v7943, 0
    %v8211 = vsel %vm3825, %v7944, 0
    %v8212 = vsel %vm3826, %v7945, 0
    %v8213 = vld [vmem:[%s3833] sm:$0xf]
    %v8214 = vld [vmem:[%s3833 + $0x4] sm:$0xf]
    %v8217 = vunpack.c.l.b16 %v8213
    %v8218 = vunpack.c.l.b16 %v8214
    %v8219 = vpack.c.b16 %v8218, %v8217
    %8226 = vrot.lane.b32.xlu0 %v8207, 111
    %v8227 = vpop.permute.xlu0 %8226
    %8228 = vrot.lane.b32.xlu0 %v8208, 111
    %v8229 = vpop.permute.xlu0 %8228
    %8230 = vrot.lane.b32.xlu0 %v8209, 111
    %v8231 = vpop.permute.xlu0 %8230
    %8232 = vrot.lane.b32.xlu0 %v8210, 111
    %v8233 = vpop.permute.xlu0 %8232
    %8234 = vrot.lane.b32.xlu0 %v8211, 111
    %v8235 = vpop.permute.xlu0 %8234
    %8236 = vrot.lane.b32.xlu0 %v8212, 111
    %v8237 = vpop.permute.xlu0 %8236
    %v8238 = vsel %vm3087, %v8227, %v8229
    %v8239 = vsel %vm3087, %v8229, %v8231
    %v8240 = vsel %vm3087, %v8233, %v8235
    %v8241 = vsel %vm3087, %v8235, %v8237
    %v8247 = vsel %vm3135, %v8219, 0
    %8249 = vmatprep.subr.bf16.mxu0 %v8239
    %8250 = vmatpush1.bf16.msra.mxu0 %v8238
    %8251 = vmatprep.subr.bf16.mxu0 %v8241
    %8252 = vmatpush1.bf16.msra.mxu0 %v8240
    %8253 = vmatprep.subr.bf16.mxu0 0
    %8254 = vmatpush1.bf16.msra.mxu0 0
    %8255 = vmatprep.subr.bf16.mxu0 0
    %8256 = vmatpush1.bf16.msra.mxu0 0
    %8257 = vmatprep.subr.bf16.mxu0 0
    %8258 = vmatpush1.bf16.msra.mxu0 0
    %8259 = vmatprep.subr.bf16.mxu0 0
    %8260 = vmatpush1.bf16.msra.mxu0 0
    %8261 = vmatprep.subr.bf16.mxu0 0
    %8262 = vmatpush1.bf16.msra.mxu0 0
    %8263 = vmatprep.subr.bf16.mxu0 0
    %8264 = vmatpush1.bf16.msra.mxu0 0
    %8265 = vmatprep.subr.bf16.mxu0 0
    %8266 = vmatpush1.bf16.msra.mxu0 0
    %8267 = vmatprep.subr.bf16.mxu0 0
    %8268 = vmatpush1.bf16.msra.mxu0 0
    %8269 = vmatprep.subr.bf16.mxu0 0
    %8270 = vmatpush1.bf16.msra.mxu0 0
    %8271 = vmatprep.subr.bf16.mxu0 0
    %8272 = vmatpush1.bf16.msra.mxu0 0
    %8273 = vmatprep.subr.bf16.mxu0 0
    %8274 = vmatpush1.bf16.msra.mxu0 0
    %8275 = vmatprep.subr.bf16.mxu0 0
    %8276 = vmatpush1.bf16.msra.mxu0 0
    %8277 = vmatprep.subr.bf16.mxu0 0
    %8278 = vmatpush1.bf16.msra.mxu0 0
    %8279 = vmatprep.subr.bf16.mxu0 0
    %8280 = vmatpush1.bf16.msra.mxu0 0
    %8281 = vmatprep.mubr.bf16.mxu0 0
    %8282 = vmatmul.mubr.bf16.gmra.mrb[0].mxu0 %v8247
    %v8283 = vpop.f32.mrb[0].mxu0
    %v8284 = vadd.f32 0.0, %v8283
    %v8285 = vpop.f32.mrb[0].mxu0
    %v8286 = vadd.f32 0.0, %v8285
    %v8287 = vpop.f32.mrb[0].mxu0
    %v8288 = vadd.f32 0.0, %v8287
    %v8289 = vpop.f32.mrb[0].mxu0
    %v8290 = vadd.f32 0.0, %v8289
    %8291 = vdwg.mxu0
    %v8292 = vadd.f32 %v8203, %v8284
    %v8293 = vadd.f32 %v8204, %v8286
    %v8294 = vadd.f32 %v8205, %v8288
    %v8295 = vadd.f32 %v8206, %v8290
    %v8296 = vld [vmem:[%s6] sm:$0xff]
    %v8297 = vld [vmem:[%s6 + $0x8] sm:$0xff]
    %8299 = vset.pattern.permute.xlu0 0
    %8300 = vperm.xlu0 %8299, %v8296
    %v8301 = vpop.permute.xlu0 %8300
    %8304 = vset.pattern.permute.xlu0 0
    %8305 = vperm.xlu0 %8304, %v8297
    %v8306 = vpop.permute.xlu0 %8305
    %v8308 = vadd.f32 %v8292, %v8301
    %v8309 = vadd.f32 %v8293, %v8301
    %v8310 = vadd.f32 %v8294, %v8306
    %v8311 = vadd.f32 %v8295, %v8306
    %v8312 = vmax.f32 %v8308, 0.0
    %v8313 = vmax.f32 %v8309, 0.0
    %v8314 = vmax.f32 %v8310, 0.0
    %v8315 = vmax.f32 %v8311, 0.0
    %v8316 = vpack.c.bf16 %v8314, %v8312
    %v8317 = vpack.c.bf16 %v8315, %v8313
    %8318 = vst [vmem:[#allocation3 + $0x8] sm:$0xff] %v8316
    %8319 = vst [vmem:[#allocation3 + $0x10] sm:$0xff] %v8317
    %v8320 = vld [vmem:[#allocation3] sm:$0xff]
    %v8321 = vld [vmem:[#allocation3 + $0x8] sm:$0xff]
    %v8322 = vld [vmem:[#allocation3 + $0x10] sm:$0xff]
    %v8323 = vsel %vm3089, %v8320, 0
    %v8324 = vsel %vm3090, %v8321, 0
    %v8325 = vsel %vm3091, %v8322, 0
    %v8326 = vld [vmem:[#allocation9] sm:$0xf]
    %v8327 = vld [vmem:[#allocation9 + $0x4] sm:$0xf]
    %v8328 = vld [vmem:[%s3949] sm:$0xf]
    %v8329 = vld [vmem:[%s3949 + $0x4] sm:$0xf]
    %v8332 = vunpack.c.l.b16 %v8328
    %v8333 = vunpack.c.l.b16 %v8329
    %v8334 = vpack.c.b16 %v8333, %v8332
    %8338 = vrot.lane.b32.xlu0 %v8320, 16
    %v8339 = vpop.permute.xlu0 %8338
    %8340 = vrot.lane.b32.xlu0 %v8321, 16
    %v8341 = vpop.permute.xlu0 %8340
    %8342 = vrot.lane.b32.xlu0 %v8322, 16
    %v8343 = vpop.permute.xlu0 %8342
    %v8344 = vsel %vm3126, %v8339, %v8341
    %v8345 = vsel %vm3126, %v8341, %v8343
    %v8349 = vsel %vm166, %v8334, 0
    %8351 = vmatprep.subr.bf16.mxu0 %v8345
    %8352 = vmatpush1.bf16.msra.mxu0 %v8344
    %8353 = vmatprep.subr.bf16.mxu0 0
    %8354 = vmatpush1.bf16.msra.mxu0 0
    %8355 = vmatprep.subr.bf16.mxu0 0
    %8356 = vmatpush1.bf16.msra.mxu0 0
    %8357 = vmatprep.subr.bf16.mxu0 0
    %8358 = vmatpush1.bf16.msra.mxu0 0
    %8359 = vmatprep.subr.bf16.mxu0 0
    %8360 = vmatpush1.bf16.msra.mxu0 0
    %8361 = vmatprep.subr.bf16.mxu0 0
    %8362 = vmatpush1.bf16.msra.mxu0 0
    %8363 = vmatprep.subr.bf16.mxu0 0
    %8364 = vmatpush1.bf16.msra.mxu0 0
    %8365 = vmatprep.subr.bf16.mxu0 0
    %8366 = vmatpush1.bf16.msra.mxu0 0
    %8367 = vmatprep.subr.bf16.mxu0 0
    %8368 = vmatpush1.bf16.msra.mxu0 0
    %8369 = vmatprep.subr.bf16.mxu0 0
    %8370 = vmatpush1.bf16.msra.mxu0 0
    %8371 = vmatprep.subr.bf16.mxu0 0
    %8372 = vmatpush1.bf16.msra.mxu0 0
    %8373 = vmatprep.subr.bf16.mxu0 0
    %8374 = vmatpush1.bf16.msra.mxu0 0
    %8375 = vmatprep.subr.bf16.mxu0 0
    %8376 = vmatpush1.bf16.msra.mxu0 0
    %8377 = vmatprep.subr.bf16.mxu0 0
    %8378 = vmatpush1.bf16.msra.mxu0 0
    %8379 = vmatprep.subr.bf16.mxu0 0
    %8380 = vmatpush1.bf16.msra.mxu0 0
    %8381 = vmatprep.subr.bf16.mxu0 0
    %8382 = vmatpush1.bf16.msra.mxu0 0
    %8383 = vmatprep.mubr.bf16.mxu0 0
    %8384 = vmatmul.mubr.bf16.gmra.mrb[0].mxu0 %v8349
    %v8385 = vpop.f32.mrb[0].mxu0
    %v8386 = vadd.f32 0.0, %v8385
    %v8387 = vpop.f32.mrb[0].mxu0
    %v8388 = vadd.f32 0.0, %v8387
    %v8389 = vpop.f32.mrb[0].mxu0
    %v8390 = vadd.f32 0.0, %v8389
    %v8391 = vpop.f32.mrb[0].mxu0
    %v8392 = vadd.f32 0.0, %v8391
    %8393 = vdwg.mxu0
    %v8396 = vunpack.c.l.b16 %v8326
    %v8397 = vunpack.c.l.b16 %v8327
    %v8398 = vpack.c.b16 %v8397, %v8396
    %8402 = vrot.lane.b32.xlu0 %v8323, 17
    %v8403 = vpop.permute.xlu0 %8402
    %8404 = vrot.lane.b32.xlu0 %v8324, 17
    %v8405 = vpop.permute.xlu0 %8404
    %8406 = vrot.lane.b32.xlu0 %v8325, 17
    %v8407 = vpop.permute.xlu0 %8406
    %v8408 = vsel %vm3205, %v8403, %v8405
    %v8409 = vsel %vm3205, %v8405, %v8407
    %v8413 = vsel %vm166, %v8398, 0
    %8415 = vmatprep.subr.bf16.mxu0 %v8409
    %8416 = vmatpush1.bf16.msra.mxu0 %v8408
    %8417 = vmatprep.subr.bf16.mxu0 0
    %8418 = vmatpush1.bf16.msra.mxu0 0
    %8419 = vmatprep.subr.bf16.mxu0 0
    %8420 = vmatpush1.bf16.msra.mxu0 0
    %8421 = vmatprep.subr.bf16.mxu0 0
    %8422 = vmatpush1.bf16.msra.mxu0 0
    %8423 = vmatprep.subr.bf16.mxu0 0
    %8424 = vmatpush1.bf16.msra.mxu0 0
    %8425 = vmatprep.subr.bf16.mxu0 0
    %8426 = vmatpush1.bf16.msra.mxu0 0
    %8427 = vmatprep.subr.bf16.mxu0 0
    %8428 = vmatpush1.bf16.msra.mxu0 0
    %8429 = vmatprep.subr.bf16.mxu0 0
    %8430 = vmatpush1.bf16.msra.mxu0 0
    %8431 = vmatprep.subr.bf16.mxu0 0
    %8432 = vmatpush1.bf16.msra.mxu0 0
    %8433 = vmatprep.subr.bf16.mxu0 0
    %8434 = vmatpush1.bf16.msra.mxu0 0
    %8435 = vmatprep.subr.bf16.mxu0 0
    %8436 = vmatpush1.bf16.msra.mxu0 0
    %8437 = vmatprep.subr.bf16.mxu0 0
    %8438 = vmatpush1.bf16.msra.mxu0 0
    %8439 = vmatprep.subr.bf16.mxu0 0
    %8440 = vmatpush1.bf16.msra.mxu0 0
    %8441 = vmatprep.subr.bf16.mxu0 0
    %8442 = vmatpush1.bf16.msra.mxu0 0
    %8443 = vmatprep.subr.bf16.mxu0 0
    %8444 = vmatpush1.bf16.msra.mxu0 0
    %8445 = vmatprep.subr.bf16.mxu0 0
    %8446 = vmatpush1.bf16.msra.mxu0 0
    %8447 = vmatprep.mubr.bf16.mxu0 0
    %8448 = vmatmul.mubr.bf16.gmra.mrb[0].mxu0 %v8413
    %v8449 = vpop.f32.mrb[0].mxu0
    %v8450 = vadd.f32 %v8386, %v8449
    %v8451 = vpop.f32.mrb[0].mxu0
    %v8452 = vadd.f32 %v8388, %v8451
    %v8453 = vpop.f32.mrb[0].mxu0
    %v8454 = vadd.f32 %v8390, %v8453
    %v8455 = vpop.f32.mrb[0].mxu0
    %v8456 = vadd.f32 %v8392, %v8455
    %8457 = vdwg.mxu0
    %v8458 = vsel %vm3280, %v8320, 0
    %v8459 = vsel %vm3281, %v8321, 0
    %v8460 = vsel %vm3282, %v8322, 0
    %v8461 = vld [vmem:[%s4083] sm:$0xf]
    %v8462 = vld [vmem:[%s4083 + $0x4] sm:$0xf]
    %v8465 = vunpack.c.l.b16 %v8461
    %v8466 = vunpack.c.l.b16 %v8462
    %v8467 = vpack.c.b16 %v8466, %v8465
    %8471 = vrot.lane.b32.xlu0 %v8458, 15
    %v8472 = vpop.permute.xlu0 %8471
    %8473 = vrot.lane.b32.xlu0 %v8459, 15
    %v8474 = vpop.permute.xlu0 %8473
    %8475 = vrot.lane.b32.xlu0 %v8460, 15
    %v8476 = vpop.permute.xlu0 %8475
    %v8477 = vsel %vm3315, %v8472, %v8474
    %v8478 = vsel %vm3315, %v8474, %v8476
    %v8482 = vsel %vm166, %v8467, 0
    %8484 = vmatprep.subr.bf16.mxu0 %v8478
    %8485 = vmatpush1.bf16.msra.mxu0 %v8477
    %8486 = vmatprep.subr.bf16.mxu0 0
    %8487 = vmatpush1.bf16.msra.mxu0 0
    %8488 = vmatprep.subr.bf16.mxu0 0
    %8489 = vmatpush1.bf16.msra.mxu0 0
    %8490 = vmatprep.subr.bf16.mxu0 0
    %8491 = vmatpush1.bf16.msra.mxu0 0
    %8492 = vmatprep.subr.bf16.mxu0 0
    %8493 = vmatpush1.bf16.msra.mxu0 0
    %8494 = vmatprep.subr.bf16.mxu0 0
    %8495 = vmatpush1.bf16.msra.mxu0 0
    %8496 = vmatprep.subr.bf16.mxu0 0
    %8497 = vmatpush1.bf16.msra.mxu0 0
    %8498 = vmatprep.subr.bf16.mxu0 0
    %8499 = vmatpush1.bf16.msra.mxu0 0
    %8500 = vmatprep.subr.bf16.mxu0 0
    %8501 = vmatpush1.bf16.msra.mxu0 0
    %8502 = vmatprep.subr.bf16.mxu0 0
    %8503 = vmatpush1.bf16.msra.mxu0 0
    %8504 = vmatprep.subr.bf16.mxu0 0
    %8505 = vmatpush1.bf16.msra.mxu0 0
    %8506 = vmatprep.subr.bf16.mxu0 0
    %8507 = vmatpush1.bf16.msra.mxu0 0
    %8508 = vmatprep.subr.bf16.mxu0 0
    %8509 = vmatpush1.bf16.msra.mxu0 0
    %8510 = vmatprep.subr.bf16.mxu0 0
    %8511 = vmatpush1.bf16.msra.mxu0 0
    %8512 = vmatprep.subr.bf16.mxu0 0
    %8513 = vmatpush1.bf16.msra.mxu0 0
    %8514 = vmatprep.subr.bf16.mxu0 0
    %8515 = vmatpush1.bf16.msra.mxu0 0
    %8516 = vmatprep.mubr.bf16.mxu0 0
    %8517 = vmatmul.mubr.bf16.gmra.mrb[0].mxu0 %v8482
    %v8518 = vpop.f32.mrb[0].mxu0
    %v8519 = vadd.f32 0.0, %v8518
    %v8520 = vpop.f32.mrb[0].mxu0
    %v8521 = vadd.f32 0.0, %v8520
    %v8522 = vpop.f32.mrb[0].mxu0
    %v8523 = vadd.f32 0.0, %v8522
    %v8524 = vpop.f32.mrb[0].mxu0
    %v8525 = vadd.f32 0.0, %v8524
    %8526 = vdwg.mxu0
    %v8527 = vadd.f32 %v8450, %v8519
    %v8528 = vadd.f32 %v8452, %v8521
    %v8529 = vadd.f32 %v8454, %v8523
    %v8530 = vadd.f32 %v8456, %v8525
    %v8531 = vsel %vm3380, %v8320, 0
    %v8532 = vsel %vm3381, %v8321, 0
    %v8533 = vsel %vm3382, %v8322, 0
    %v8534 = vld [vmem:[%s4157] sm:$0xf]
    %v8535 = vld [vmem:[%s4157 + $0x4] sm:$0xf]
    %v8538 = vunpack.c.l.b16 %v8534
    %v8539 = vunpack.c.l.b16 %v8535
    %v8540 = vpack.c.b16 %v8539, %v8538
    %8544 = vrot.lane.b32.xlu0 %v8531, 1
    %v8545 = vpop.permute.xlu0 %8544
    %8546 = vrot.lane.b32.xlu0 %v8532, 1
    %v8547 = vpop.permute.xlu0 %8546
    %8548 = vrot.lane.b32.xlu0 %v8533, 1
    %v8549 = vpop.permute.xlu0 %8548
    %v8550 = vsel %vm3415, %v8545, %v8547
    %v8551 = vsel %vm3415, %v8547, %v8549
    %v8555 = vsel %vm166, %v8540, 0
    %8557 = vmatprep.subr.bf16.mxu0 %v8551
    %8558 = vmatpush1.bf16.msra.mxu0 %v8550
    %8559 = vmatprep.subr.bf16.mxu0 0
    %8560 = vmatpush1.bf16.msra.mxu0 0
    %8561 = vmatprep.subr.bf16.mxu0 0
    %8562 = vmatpush1.bf16.msra.mxu0 0
    %8563 = vmatprep.subr.bf16.mxu0 0
    %8564 = vmatpush1.bf16.msra.mxu0 0
    %8565 = vmatprep.subr.bf16.mxu0 0
    %8566 = vmatpush1.bf16.msra.mxu0 0
    %8567 = vmatprep.subr.bf16.mxu0 0
    %8568 = vmatpush1.bf16.msra.mxu0 0
    %8569 = vmatprep.subr.bf16.mxu0 0
    %8570 = vmatpush1.bf16.msra.mxu0 0
    %8571 = vmatprep.subr.bf16.mxu0 0
    %8572 = vmatpush1.bf16.msra.mxu0 0
    %8573 = vmatprep.subr.bf16.mxu0 0
    %8574 = vmatpush1.bf16.msra.mxu0 0
    %8575 = vmatprep.subr.bf16.mxu0 0
    %8576 = vmatpush1.bf16.msra.mxu0 0
    %8577 = vmatprep.subr.bf16.mxu0 0
    %8578 = vmatpush1.bf16.msra.mxu0 0
    %8579 = vmatprep.subr.bf16.mxu0 0
    %8580 = vmatpush1.bf16.msra.mxu0 0
    %8581 = vmatprep.subr.bf16.mxu0 0
    %8582 = vmatpush1.bf16.msra.mxu0 0
    %8583 = vmatprep.subr.bf16.mxu0 0
    %8584 = vmatpush1.bf16.msra.mxu0 0
    %8585 = vmatprep.subr.bf16.mxu0 0
    %8586 = vmatpush1.bf16.msra.mxu0 0
    %8587 = vmatprep.subr.bf16.mxu0 0
    %8588 = vmatpush1.bf16.msra.mxu0 0
    %8589 = vmatprep.mubr.bf16.mxu0 0
    %8590 = vmatmul.mubr.bf16.gmra.mrb[0].mxu0 %v8555
    %v8591 = vpop.f32.mrb[0].mxu0
    %v8592 = vadd.f32 0.0, %v8591
    %v8593 = vpop.f32.mrb[0].mxu0
    %v8594 = vadd.f32 0.0, %v8593
    %v8595 = vpop.f32.mrb[0].mxu0
    %v8596 = vadd.f32 0.0, %v8595
    %v8597 = vpop.f32.mrb[0].mxu0
    %v8598 = vadd.f32 0.0, %v8597
    %8599 = vdwg.mxu0
    %v8600 = vadd.f32 %v8527, %v8592
    %v8601 = vadd.f32 %v8528, %v8594
    %v8602 = vadd.f32 %v8529, %v8596
    %v8603 = vadd.f32 %v8530, %v8598
    %v8604 = vld [vmem:[%s4228] sm:$0xf]
    %v8605 = vld [vmem:[%s4228 + $0x4] sm:$0xf]
    %v8608 = vunpack.c.l.b16 %v8604
    %v8609 = vunpack.c.l.b16 %v8605
    %v8610 = vpack.c.b16 %v8609, %v8608
    %v8612 = vsel %vm166, %v8610, 0
    %8614 = vmatprep.subr.bf16.mxu0 %v8322
    %8615 = vmatpush1.bf16.msra.mxu0 %v8321
    %8616 = vmatprep.subr.bf16.mxu0 0
    %8617 = vmatpush1.bf16.msra.mxu0 0
    %8618 = vmatprep.subr.bf16.mxu0 0
    %8619 = vmatpush1.bf16.msra.mxu0 0
    %8620 = vmatprep.subr.bf16.mxu0 0
    %8621 = vmatpush1.bf16.msra.mxu0 0
    %8622 = vmatprep.subr.bf16.mxu0 0
    %8623 = vmatpush1.bf16.msra.mxu0 0
    %8624 = vmatprep.subr.bf16.mxu0 0
    %8625 = vmatpush1.bf16.msra.mxu0 0
    %8626 = vmatprep.subr.bf16.mxu0 0
    %8627 = vmatpush1.bf16.msra.mxu0 0
    %8628 = vmatprep.subr.bf16.mxu0 0
    %8629 = vmatpush1.bf16.msra.mxu0 0
    %8630 = vmatprep.subr.bf16.mxu0 0
    %8631 = vmatpush1.bf16.msra.mxu0 0
    %8632 = vmatprep.subr.bf16.mxu0 0
    %8633 = vmatpush1.bf16.msra.mxu0 0
    %8634 = vmatprep.subr.bf16.mxu0 0
    %8635 = vmatpush1.bf16.msra.mxu0 0
    %8636 = vmatprep.subr.bf16.mxu0 0
    %8637 = vmatpush1.bf16.msra.mxu0 0
    %8638 = vmatprep.subr.bf16.mxu0 0
    %8639 = vmatpush1.bf16.msra.mxu0 0
    %8640 = vmatprep.subr.bf16.mxu0 0
    %8641 = vmatpush1.bf16.msra.mxu0 0
    %8642 = vmatprep.subr.bf16.mxu0 0
    %8643 = vmatpush1.bf16.msra.mxu0 0
    %8644 = vmatprep.subr.bf16.mxu0 0
    %8645 = vmatpush1.bf16.msra.mxu0 0
    %8646 = vmatprep.mubr.bf16.mxu0 0
    %8647 = vmatmul.mubr.bf16.gmra.mrb[0].mxu0 %v8612
    %v8648 = vpop.f32.mrb[0].mxu0
    %v8649 = vadd.f32 0.0, %v8648
    %v8650 = vpop.f32.mrb[0].mxu0
    %v8651 = vadd.f32 0.0, %v8650
    %v8652 = vpop.f32.mrb[0].mxu0
    %v8653 = vadd.f32 0.0, %v8652
    %v8654 = vpop.f32.mrb[0].mxu0
    %v8655 = vadd.f32 0.0, %v8654
    %8656 = vdwg.mxu0
    %v8657 = vadd.f32 %v8600, %v8649
    %v8658 = vadd.f32 %v8601, %v8651
    %v8659 = vadd.f32 %v8602, %v8653
    %v8660 = vadd.f32 %v8603, %v8655
    %v8661 = vld [vmem:[#allocation3 + $0x8] sm:$0xff]
    %v8662 = vld [vmem:[#allocation3 + $0x10] sm:$0xff]
    %v8663 = vld [vmem:[#allocation3 + $0x18] sm:$0xff]
    %v8664 = vsel %vm3543, %v8661, 0
    %v8665 = vsel %vm3544, %v8662, 0
    %v8666 = vsel %vm3545, %v8663, 0
    %v8667 = vld [vmem:[%s4292] sm:$0xf]
    %v8668 = vld [vmem:[%s4292 + $0x4] sm:$0xf]
    %v8671 = vunpack.c.l.b16 %v8667
    %v8672 = vunpack.c.l.b16 %v8668
    %v8673 = vpack.c.b16 %v8672, %v8671
    %8677 = vrot.lane.b32.xlu0 %v8664, 127
    %v8678 = vpop.permute.xlu0 %8677
    %8679 = vrot.lane.b32.xlu0 %v8665, 127
    %v8680 = vpop.permute.xlu0 %8679
    %8681 = vrot.lane.b32.xlu0 %v8666, 127
    %v8682 = vpop.permute.xlu0 %8681
    %v8683 = vsel %vm3378, %v8678, %v8680
    %v8684 = vsel %vm3378, %v8680, %v8682
    %v8688 = vsel %vm166, %v8673, 0
    %8690 = vmatprep.subr.bf16.mxu0 %v8684
    %8691 = vmatpush1.bf16.msra.mxu0 %v8683
    %8692 = vmatprep.subr.bf16.mxu0 0
    %8693 = vmatpush1.bf16.msra.mxu0 0
    %8694 = vmatprep.subr.bf16.mxu0 0
    %8695 = vmatpush1.bf16.msra.mxu0 0
    %8696 = vmatprep.subr.bf16.mxu0 0
    %8697 = vmatpush1.bf16.msra.mxu0 0
    %8698 = vmatprep.subr.bf16.mxu0 0
    %8699 = vmatpush1.bf16.msra.mxu0 0
    %8700 = vmatprep.subr.bf16.mxu0 0
    %8701 = vmatpush1.bf16.msra.mxu0 0
    %8702 = vmatprep.subr.bf16.mxu0 0
    %8703 = vmatpush1.bf16.msra.mxu0 0
    %8704 = vmatprep.subr.bf16.mxu0 0
    %8705 = vmatpush1.bf16.msra.mxu0 0
    %8706 = vmatprep.subr.bf16.mxu0 0
    %8707 = vmatpush1.bf16.msra.mxu0 0
    %8708 = vmatprep.subr.bf16.mxu0 0
    %8709 = vmatpush1.bf16.msra.mxu0 0
    %8710 = vmatprep.subr.bf16.mxu0 0
    %8711 = vmatpush1.bf16.msra.mxu0 0
    %8712 = vmatprep.subr.bf16.mxu0 0
    %8713 = vmatpush1.bf16.msra.mxu0 0
    %8714 = vmatprep.subr.bf16.mxu0 0
    %8715 = vmatpush1.bf16.msra.mxu0 0
    %8716 = vmatprep.subr.bf16.mxu0 0
    %8717 = vmatpush1.bf16.msra.mxu0 0
    %8718 = vmatprep.subr.bf16.mxu0 0
    %8719 = vmatpush1.bf16.msra.mxu0 0
    %8720 = vmatprep.subr.bf16.mxu0 0
    %8721 = vmatpush1.bf16.msra.mxu0 0
    %8722 = vmatprep.mubr.bf16.mxu0 0
    %8723 = vmatmul.mubr.bf16.gmra.mrb[0].mxu0 %v8688
    %v8724 = vpop.f32.mrb[0].mxu0
    %v8725 = vadd.f32 0.0, %v8724
    %v8726 = vpop.f32.mrb[0].mxu0
    %v8727 = vadd.f32 0.0, %v8726
    %v8728 = vpop.f32.mrb[0].mxu0
    %v8729 = vadd.f32 0.0, %v8728
    %v8730 = vpop.f32.mrb[0].mxu0
    %v8731 = vadd.f32 0.0, %v8730
    %8732 = vdwg.mxu0
    %v8733 = vadd.f32 %v8657, %v8725
    %v8734 = vadd.f32 %v8658, %v8727
    %v8735 = vadd.f32 %v8659, %v8729
    %v8736 = vadd.f32 %v8660, %v8731
    %v8737 = vsel %vm3641, %v8661, 0
    %v8738 = vsel %vm3642, %v8662, 0
    %v8739 = vsel %vm3643, %v8663, 0
    %v8740 = vld [vmem:[%s4366] sm:$0xf]
    %v8741 = vld [vmem:[%s4366 + $0x4] sm:$0xf]
    %v8744 = vunpack.c.l.b16 %v8740
    %v8745 = vunpack.c.l.b16 %v8741
    %v8746 = vpack.c.b16 %v8745, %v8744
    %8750 = vrot.lane.b32.xlu0 %v8737, 113
    %v8751 = vpop.permute.xlu0 %8750
    %8752 = vrot.lane.b32.xlu0 %v8738, 113
    %v8753 = vpop.permute.xlu0 %8752
    %8754 = vrot.lane.b32.xlu0 %v8739, 113
    %v8755 = vpop.permute.xlu0 %8754
    %v8756 = vsel %vm3278, %v8751, %v8753
    %v8757 = vsel %vm3278, %v8753, %v8755
    %v8761 = vsel %vm166, %v8746, 0
    %8763 = vmatprep.subr.bf16.mxu0 %v8757
    %8764 = vmatpush1.bf16.msra.mxu0 %v8756
    %8765 = vmatprep.subr.bf16.mxu0 0
    %8766 = vmatpush1.bf16.msra.mxu0 0
    %8767 = vmatprep.subr.bf16.mxu0 0
    %8768 = vmatpush1.bf16.msra.mxu0 0
    %8769 = vmatprep.subr.bf16.mxu0 0
    %8770 = vmatpush1.bf16.msra.mxu0 0
    %8771 = vmatprep.subr.bf16.mxu0 0
    %8772 = vmatpush1.bf16.msra.mxu0 0
    %8773 = vmatprep.subr.bf16.mxu0 0
    %8774 = vmatpush1.bf16.msra.mxu0 0
    %8775 = vmatprep.subr.bf16.mxu0 0
    %8776 = vmatpush1.bf16.msra.mxu0 0
    %8777 = vmatprep.subr.bf16.mxu0 0
    %8778 = vmatpush1.bf16.msra.mxu0 0
    %8779 = vmatprep.subr.bf16.mxu0 0
    %8780 = vmatpush1.bf16.msra.mxu0 0
    %8781 = vmatprep.subr.bf16.mxu0 0
    %8782 = vmatpush1.bf16.msra.mxu0 0
    %8783 = vmatprep.subr.bf16.mxu0 0
    %8784 = vmatpush1.bf16.msra.mxu0 0
    %8785 = vmatprep.subr.bf16.mxu0 0
    %8786 = vmatpush1.bf16.msra.mxu0 0
    %8787 = vmatprep.subr.bf16.mxu0 0
    %8788 = vmatpush1.bf16.msra.mxu0 0
    %8789 = vmatprep.subr.bf16.mxu0 0
    %8790 = vmatpush1.bf16.msra.mxu0 0
    %8791 = vmatprep.subr.bf16.mxu0 0
    %8792 = vmatpush1.bf16.msra.mxu0 0
    %8793 = vmatprep.subr.bf16.mxu0 0
    %8794 = vmatpush1.bf16.msra.mxu0 0
    %8795 = vmatprep.mubr.bf16.mxu0 0
    %8796 = vmatmul.mubr.bf16.gmra.mrb[0].mxu0 %v8761
    %v8797 = vpop.f32.mrb[0].mxu0
    %v8798 = vadd.f32 0.0, %v8797
    %v8799 = vpop.f32.mrb[0].mxu0
    %v8800 = vadd.f32 0.0, %v8799
    %v8801 = vpop.f32.mrb[0].mxu0
    %v8802 = vadd.f32 0.0, %v8801
    %v8803 = vpop.f32.mrb[0].mxu0
    %v8804 = vadd.f32 0.0, %v8803
    %8805 = vdwg.mxu0
    %v8806 = vadd.f32 %v8733, %v8798
    %v8807 = vadd.f32 %v8734, %v8800
    %v8808 = vadd.f32 %v8735, %v8802
    %v8809 = vadd.f32 %v8736, %v8804
    %v8810 = vld [vmem:[%s4437] sm:$0xf]
    %v8811 = vld [vmem:[%s4437 + $0x4] sm:$0xf]
    %v8814 = vunpack.c.l.b16 %v8810
    %v8815 = vunpack.c.l.b16 %v8811
    %v8816 = vpack.c.b16 %v8815, %v8814
    %8820 = vrot.lane.b32.xlu0 %v8661, 112
    %v8821 = vpop.permute.xlu0 %8820
    %8822 = vrot.lane.b32.xlu0 %v8662, 112
    %v8823 = vpop.permute.xlu0 %8822
    %8824 = vrot.lane.b32.xlu0 %v8663, 112
    %v8825 = vpop.permute.xlu0 %8824
    %v8826 = vsel %vm3760, %v8821, %v8823
    %v8827 = vsel %vm3760, %v8823, %v8825
    %v8831 = vsel %vm166, %v8816, 0
    %8833 = vmatprep.subr.bf16.mxu0 %v8827
    %8834 = vmatpush1.bf16.msra.mxu0 %v8826
    %8835 = vmatprep.subr.bf16.mxu0 0
    %8836 = vmatpush1.bf16.msra.mxu0 0
    %8837 = vmatprep.subr.bf16.mxu0 0
    %8838 = vmatpush1.bf16.msra.mxu0 0
    %8839 = vmatprep.subr.bf16.mxu0 0
    %8840 = vmatpush1.bf16.msra.mxu0 0
    %8841 = vmatprep.subr.bf16.mxu0 0
    %8842 = vmatpush1.bf16.msra.mxu0 0
    %8843 = vmatprep.subr.bf16.mxu0 0
    %8844 = vmatpush1.bf16.msra.mxu0 0
    %8845 = vmatprep.subr.bf16.mxu0 0
    %8846 = vmatpush1.bf16.msra.mxu0 0
    %8847 = vmatprep.subr.bf16.mxu0 0
    %8848 = vmatpush1.bf16.msra.mxu0 0
    %8849 = vmatprep.subr.bf16.mxu0 0
    %8850 = vmatpush1.bf16.msra.mxu0 0
    %8851 = vmatprep.subr.bf16.mxu0 0
    %8852 = vmatpush1.bf16.msra.mxu0 0
    %8853 = vmatprep.subr.bf16.mxu0 0
    %8854 = vmatpush1.bf16.msra.mxu0 0
    %8855 = vmatprep.subr.bf16.mxu0 0
    %8856 = vmatpush1.bf16.msra.mxu0 0
    %8857 = vmatprep.subr.bf16.mxu0 0
    %8858 = vmatpush1.bf16.msra.mxu0 0
    %8859 = vmatprep.subr.bf16.mxu0 0
    %8860 = vmatpush1.bf16.msra.mxu0 0
    %8861 = vmatprep.subr.bf16.mxu0 0
    %8862 = vmatpush1.bf16.msra.mxu0 0
    %8863 = vmatprep.subr.bf16.mxu0 0
    %8864 = vmatpush1.bf16.msra.mxu0 0
    %8865 = vmatprep.mubr.bf16.mxu0 0
    %8866 = vmatmul.mubr.bf16.gmra.mrb[0].mxu0 %v8831
    %v8867 = vpop.f32.mrb[0].mxu0
    %v8868 = vadd.f32 0.0, %v8867
    %v8869 = vpop.f32.mrb[0].mxu0
    %v8870 = vadd.f32 0.0, %v8869
    %v8871 = vpop.f32.mrb[0].mxu0
    %v8872 = vadd.f32 0.0, %v8871
    %v8873 = vpop.f32.mrb[0].mxu0
    %v8874 = vadd.f32 0.0, %v8873
    %8875 = vdwg.mxu0
    %v8876 = vadd.f32 %v8806, %v8868
    %v8877 = vadd.f32 %v8807, %v8870
    %v8878 = vadd.f32 %v8808, %v8872
    %v8879 = vadd.f32 %v8809, %v8874
    %v8880 = vsel %vm3824, %v8661, 0
    %v8881 = vsel %vm3825, %v8662, 0
    %v8882 = vsel %vm3826, %v8663, 0
    %v8883 = vld [vmem:[%s4511] sm:$0xf]
    %v8884 = vld [vmem:[%s4511 + $0x4] sm:$0xf]
    %v8887 = vunpack.c.l.b16 %v8883
    %v8888 = vunpack.c.l.b16 %v8884
    %v8889 = vpack.c.b16 %v8888, %v8887
    %8893 = vrot.lane.b32.xlu0 %v8880, 111
    %v8894 = vpop.permute.xlu0 %8893
    %8895 = vrot.lane.b32.xlu0 %v8881, 111
    %v8896 = vpop.permute.xlu0 %8895
    %8897 = vrot.lane.b32.xlu0 %v8882, 111
    %v8898 = vpop.permute.xlu0 %8897
    %v8899 = vsel %vm3087, %v8894, %v8896
    %v8900 = vsel %vm3087, %v8896, %v8898
    %v8904 = vsel %vm166, %v8889, 0
    %8906 = vmatprep.subr.bf16.mxu0 %v8900
    %8907 = vmatpush1.bf16.msra.mxu0 %v8899
    %8908 = vmatprep.subr.bf16.mxu0 0
    %8909 = vmatpush1.bf16.msra.mxu0 0
    %8910 = vmatprep.subr.bf16.mxu0 0
    %8911 = vmatpush1.bf16.msra.mxu0 0
    %8912 = vmatprep.subr.bf16.mxu0 0
    %8913 = vmatpush1.bf16.msra.mxu0 0
    %8914 = vmatprep.subr.bf16.mxu0 0
    %8915 = vmatpush1.bf16.msra.mxu0 0
    %8916 = vmatprep.subr.bf16.mxu0 0
    %8917 = vmatpush1.bf16.msra.mxu0 0
    %8918 = vmatprep.subr.bf16.mxu0 0
    %8919 = vmatpush1.bf16.msra.mxu0 0
    %8920 = vmatprep.subr.bf16.mxu0 0
    %8921 = vmatpush1.bf16.msra.mxu0 0
    %8922 = vmatprep.subr.bf16.mxu0 0
    %8923 = vmatpush1.bf16.msra.mxu0 0
    %8924 = vmatprep.subr.bf16.mxu0 0
    %8925 = vmatpush1.bf16.msra.mxu0 0
    %8926 = vmatprep.subr.bf16.mxu0 0
    %8927 = vmatpush1.bf16.msra.mxu0 0
    %8928 = vmatprep.subr.bf16.mxu0 0
    %8929 = vmatpush1.bf16.msra.mxu0 0
    %8930 = vmatprep.subr.bf16.mxu0 0
    %8931 = vmatpush1.bf16.msra.mxu0 0
    %8932 = vmatprep.subr.bf16.mxu0 0
    %8933 = vmatpush1.bf16.msra.mxu0 0
    %8934 = vmatprep.subr.bf16.mxu0 0
    %8935 = vmatpush1.bf16.msra.mxu0 0
    %8936 = vmatprep.subr.bf16.mxu0 0
    %8937 = vmatpush1.bf16.msra.mxu0 0
    %8938 = vmatprep.mubr.bf16.mxu0 0
    %8939 = vmatmul.mubr.bf16.gmra.mrb[0].mxu0 %v8904
    %v8940 = vpop.f32.mrb[0].mxu0
    %v8941 = vadd.f32 0.0, %v8940
    %v8942 = vpop.f32.mrb[0].mxu0
    %v8943 = vadd.f32 0.0, %v8942
    %v8944 = vpop.f32.mrb[0].mxu0
    %v8945 = vadd.f32 0.0, %v8944
    %v8946 = vpop.f32.mrb[0].mxu0
    %v8947 = vadd.f32 0.0, %v8946
    %8948 = vdwg.mxu0
    %v8949 = vadd.f32 %v8876, %v8941
    %v8950 = vadd.f32 %v8877, %v8943
    %v8951 = vadd.f32 %v8878, %v8945
    %v8952 = vadd.f32 %v8879, %v8947
    %v8953 = vld [vmem:[%s8] sm:$0xff]
    %v8954 = vld [vmem:[%s8 + $0x8] sm:$0xff]
    %8956 = vset.pattern.permute.xlu0 0
    %8957 = vperm.xlu0 %8956, %v8953
    %v8958 = vpop.permute.xlu0 %8957
    %8961 = vset.pattern.permute.xlu0 0
    %8962 = vperm.xlu0 %8961, %v8954
    %v8963 = vpop.permute.xlu0 %8962
    %v8965 = vadd.f32 %v8949, %v8958
    %v8966 = vadd.f32 %v8950, %v8958
    %v8967 = vadd.f32 %v8951, %v8963
    %v8968 = vadd.f32 %v8952, %v8963
    %v8969 = vmax.f32 %v8965, 0.0
    %v8970 = vmax.f32 %v8966, 0.0
    %v8971 = vmax.f32 %v8967, 0.0
    %v8972 = vmax.f32 %v8968, 0.0
    %s8973 = scalar_lea.vmem [#allocation10], 32
    %8974 = vst [vmem:[%s8973] sm:$0xff] %v8969
    %8975 = vst [vmem:[%s8973 + $0x8] sm:$0xff] %v8970
    %8976 = vst [vmem:[%s8973 + $0x10] sm:$0xff] %v8971
    %8977 = vst [vmem:[%s8973 + $0x18] sm:$0xff] %v8972
    // Predicated region
    $region50: #{tpu_custom_call.1} parent=1 // pred_check
      _
    $region51: #{tpu_custom_call.1} parent=1 // pred_check_branch
      %8979 = sbr.rel (0) target = $region53
    $region52: #{tpu_custom_call.1} parent=1 // pred_region
      %s8981 = ssub.s32 1024, 1024
      %8982 = vsyncadd [#allocation6], %s8981
      %s8983 = sshll.u32 [#allocation10], 4
      %s8984 = int_to_ptr.vmem [resolvable:$true] %s8983
      %8989 = dma.vmem_to_hbm [thread:$0]  %s8984, 1024, %s9, [#allocation6], 256, 256, 16
    $region53: #{tpu_custom_call.1} parent=1 // pred_fallthru
      _
    // Predicated region
    $region54: #{tpu_custom_call.1} parent=1 // pred_check
      _
    $region55: #{tpu_custom_call.1} parent=1 // pred_check_branch
      %8991 = sbr.rel (0) target = $region57
    $region56: #{tpu_custom_call.1} parent=1 // pred_region
      %8992 = dma.done [#allocation6], 1024
    $region57: #{tpu_custom_call.1} parent=1 // pred_fallthru
      _
    %8993 = vsyncpa [#allocation5], 1
    %8994 = vsyncpa [#allocation8], 1
    %8995 = vsyncpa [#allocation6], 1

</llo_original>
